<compile_context>
chip_gen: v7x
topology: tpu7x:2x2x1
jax: 0.10.0
libtpu: 0.0.40
codegen_flags: <defaults>
</compile_context>

<pallas_src>
import functools

import jax
import jax.numpy as jnp
from jax.experimental import pallas as pl
from jax.experimental.pallas import tpu as pltpu

EPS = 0.01


def _flow_lrexp_kernel(num_layers, x_ref, *refs):
    # refs = (W0, b0, W1, b1, ..., W_hidden_last, b_hidden_last,
    #         w_lastT (1,H), b_last (1,1), out_ref)
    out_ref = refs[-1]
    p = refs[:-1]

    x = x_ref[...]                       # (TB, dim) f32
    x1 = x[:, :1]                        # (TB, 1)
    x2 = x[:, 1:]                        # (TB, dim-1)

    def vpu_linear(h, w_ref, b_ref):
        # h: (TB, K)  w: (K, N)  b: (1, N)  ->  (TB, N), computed on the VPU
        # as an unrolled broadcast-MAC (no padded MXU pass).
        w = w_ref[...]
        b = b_ref[...]
        k_dim = w.shape[0]
        acc = h[:, 0:1] * w[0:1, :] + b
        for k in range(1, k_dim):
            acc = acc + h[:, k:k + 1] * w[k:k + 1, :]
        return acc

    # First layer + hidden layers, each followed by ReLU.
    h = x2
    for i in range(num_layers + 1):
        h = jnp.maximum(vpu_linear(h, p[2 * i], p[2 * i + 1]), 0.0)

    # Final (H -> 1) layer: elementwise multiply (VPU) + lane reduce (XLU).
    w_last = p[2 * (num_layers + 1)][...]      # (1, H)   (pre-transposed)
    b_last = p[2 * (num_layers + 1) + 1][...]  # (1, 1)
    g = jnp.sum(h * w_last, axis=-1, keepdims=True) + b_last   # (TB, 1)

    y1 = x1 * jnp.exp(-(EPS + g * g))    # (TB, 1)

    # Direct stores (no concatenate): pass x2 through, overwrite column 0.
    out_ref[:, 1:] = x2
    out_ref[:, :1] = y1


def flow_lrexp_forward(x, params, num_layers, block_rows=1024):
    """x: (B, dim) f32. params: flat list [W0, b0, W1, b1, ..., W_last, b_last]
    with W_i of shape (in, out) and b_i of shape (1, out)."""
    B, dim = x.shape
    hidden_dim = params[0].shape[1]

    tb = min(block_rows, B)
    grid = (pl.cdiv(B, tb),)

    # Operand list: hidden-layer params as-is; last weight pre-transposed to
    # (1, H) so the kernel can do the final layer as multiply + row-reduce.
    ops = list(params[:-2]) + [params[-2].reshape(1, hidden_dim), params[-1]]

    x_spec = pl.BlockSpec((tb, dim), lambda i: (i, 0))
    # Weights/biases: full-array blocks with a constant block index, so Pallas
    # keeps them resident in VMEM across grid steps (no per-step re-DMA).
    param_specs = [pl.BlockSpec(p.shape, lambda i: (0, 0)) for p in ops]
    out_spec = pl.BlockSpec((tb, dim), lambda i: (i, 0))

    flops = 2 * B * ((dim - 1) * hidden_dim
                     + num_layers * hidden_dim * hidden_dim
                     + hidden_dim) + 6 * B
    bytes_accessed = 4 * (2 * B * dim + sum(int(p.size) for p in ops))

    kernel = functools.partial(_flow_lrexp_kernel, num_layers)
    return pl.pallas_call(
        kernel,
        out_shape=jax.ShapeDtypeStruct((B, dim), jnp.float32),
        grid=grid,
        in_specs=[x_spec] + param_specs,
        out_specs=out_spec,
        compiler_params=pltpu.CompilerParams(
            dimension_semantics=("parallel",)),
        cost_estimate=pl.CostEstimate(
            flops=flops, transcendentals=B, bytes_accessed=bytes_accessed),
    )(x, *ops)


def init_params(key, dim, hidden_dim, num_layers):
    """Deterministic init of the reluNet weights (uniform, PyTorch-style bound)."""
    sizes = [(dim - 1, hidden_dim)]
    for _ in range(num_layers):
        sizes.append((hidden_dim, hidden_dim))
    sizes.append((hidden_dim, 1))

    params = []
    for (fan_in, fan_out) in sizes:
        key, kw, kb = jax.random.split(key, 3)
        bound = 1.0 / jnp.sqrt(jnp.float32(fan_in))
        w = jax.random.uniform(kw, (fan_in, fan_out), jnp.float32, -bound, bound)
        b = jax.random.uniform(kb, (1, fan_out), jnp.float32, -bound, bound)
        params += [w, b]
    return params


def reference_forward(x, params, num_layers):
    x1, x2 = x[:, :1], x[:, 1:]
    h = x2
    n_lin = num_layers + 2
    for i in range(n_lin):
        h = h @ params[2 * i] + params[2 * i + 1]
        if i < n_lin - 1:
            h = jnp.maximum(h, 0.0)
    y1 = x1 * jnp.exp(-(EPS + h * h))
    return jnp.concatenate([y1, x2], axis=1)


if __name__ == "__main__":
    # Small deterministic example; block_rows=128 exercises a 2-step grid.
    B, dim, hidden_dim, num_layers = 256, 4, 32, 2

    key = jax.random.PRNGKey(0)
    key, kx = jax.random.split(key)
    x = jax.random.normal(kx, (B, dim), jnp.float32)
    params = init_params(key, dim, hidden_dim, num_layers)

    out = flow_lrexp_forward(x, params, num_layers, block_rows=128)
    out = jax.block_until_ready(out)

    ref = reference_forward(x, params, num_layers)
    assert out.shape == (B, dim)
    assert jnp.allclose(out, ref, atol=1e-5, rtol=1e-5), "mismatch vs reference"

    print("KERNEL_OK")
</pallas_src>

<mosaic_0001>
module attributes {stable_mosaic.version = 11 : i64} {
  func.func @_flow_lrexp_kernel(%arg0: i32, %arg1: memref<128x4xf32, #tpu.memory_space<vmem>>, %arg2: memref<3x32xf32, #tpu.memory_space<vmem>>, %arg3: memref<1x32xf32, #tpu.memory_space<vmem>>, %arg4: memref<32x32xf32, #tpu.memory_space<vmem>>, %arg5: memref<1x32xf32, #tpu.memory_space<vmem>>, %arg6: memref<32x32xf32, #tpu.memory_space<vmem>>, %arg7: memref<1x32xf32, #tpu.memory_space<vmem>>, %arg8: memref<1x32xf32, #tpu.memory_space<vmem>>, %arg9: memref<1x1xf32, #tpu.memory_space<vmem>>, %arg10: memref<128x4xf32, #tpu.memory_space<vmem>>) attributes {dimension_semantics = [#tpu.dimension_semantics<parallel>], iteration_bounds = array<i64: 2>, scalar_prefetch = 0 : i64, scratch_operands = 0 : i64, tpu.core_type = #tpu.core_type<tc>, window_params = [{transform_indices = @transform_0, window_bounds = array<i64: 128, 4>}, {pipeline_mode = #tpu.pipeline_mode<synchronous>, transform_indices = @transform_1, window_bounds = array<i64: 3, 32>}, {pipeline_mode = #tpu.pipeline_mode<synchronous>, transform_indices = @transform_2, window_bounds = array<i64: 1, 32>}, {pipeline_mode = #tpu.pipeline_mode<synchronous>, transform_indices = @transform_3, window_bounds = array<i64: 32, 32>}, {pipeline_mode = #tpu.pipeline_mode<synchronous>, transform_indices = @transform_4, window_bounds = array<i64: 1, 32>}, {pipeline_mode = #tpu.pipeline_mode<synchronous>, transform_indices = @transform_5, window_bounds = array<i64: 32, 32>}, {pipeline_mode = #tpu.pipeline_mode<synchronous>, transform_indices = @transform_6, window_bounds = array<i64: 1, 32>}, {pipeline_mode = #tpu.pipeline_mode<synchronous>, transform_indices = @transform_7, window_bounds = array<i64: 1, 32>}, {pipeline_mode = #tpu.pipeline_mode<synchronous>, transform_indices = @transform_8, window_bounds = array<i64: 1, 1>}, {transform_indices = @transform_9, window_bounds = array<i64: 128, 4>}]} {
    %c0 = arith.constant 0 : index
    %c0_0 = arith.constant 0 : index
    %0 = vector.load %arg1[%c0, %c0_0] : memref<128x4xf32, #tpu.memory_space<vmem>>, vector<128x4xf32>
    %1 = vector.extract_strided_slice %0 {offsets = [0, 0], sizes = [128, 1], strides = [1, 1]} : vector<128x4xf32> to vector<128x1xf32>
    %2 = vector.extract_strided_slice %0 {offsets = [0, 1], sizes = [128, 3], strides = [1, 1]} : vector<128x4xf32> to vector<128x3xf32>
    %c0_1 = arith.constant 0 : index
    %c0_2 = arith.constant 0 : index
    %3 = vector.load %arg2[%c0_1, %c0_2] : memref<3x32xf32, #tpu.memory_space<vmem>>, vector<3x32xf32>
    %c0_3 = arith.constant 0 : index
    %c0_4 = arith.constant 0 : index
    %4 = vector.load %arg3[%c0_3, %c0_4] : memref<1x32xf32, #tpu.memory_space<vmem>>, vector<1x32xf32>
    %5 = vector.extract_strided_slice %2 {offsets = [0, 0], sizes = [128, 1], strides = [1, 1]} : vector<128x3xf32> to vector<128x1xf32>
    %6 = vector.extract_strided_slice %3 {offsets = [0, 0], sizes = [1, 32], strides = [1, 1]} : vector<3x32xf32> to vector<1x32xf32>
    %7 = vector.broadcast %5 : vector<128x1xf32> to vector<128x32xf32>
    %8 = vector.broadcast %6 : vector<1x32xf32> to vector<128x32xf32>
    %9 = arith.mulf %7, %8 : vector<128x32xf32>
    %10 = vector.broadcast %4 : vector<1x32xf32> to vector<128x32xf32>
    %11 = arith.addf %9, %10 : vector<128x32xf32>
    %12 = vector.extract_strided_slice %2 {offsets = [0, 1], sizes = [128, 1], strides = [1, 1]} : vector<128x3xf32> to vector<128x1xf32>
    %13 = vector.extract_strided_slice %3 {offsets = [1, 0], sizes = [1, 32], strides = [1, 1]} : vector<3x32xf32> to vector<1x32xf32>
    %14 = vector.broadcast %12 : vector<128x1xf32> to vector<128x32xf32>
    %15 = vector.broadcast %13 : vector<1x32xf32> to vector<128x32xf32>
    %16 = arith.mulf %14, %15 : vector<128x32xf32>
    %17 = arith.addf %11, %16 : vector<128x32xf32>
    %18 = vector.extract_strided_slice %2 {offsets = [0, 2], sizes = [128, 1], strides = [1, 1]} : vector<128x3xf32> to vector<128x1xf32>
    %19 = vector.extract_strided_slice %3 {offsets = [2, 0], sizes = [1, 32], strides = [1, 1]} : vector<3x32xf32> to vector<1x32xf32>
    %20 = vector.broadcast %18 : vector<128x1xf32> to vector<128x32xf32>
    %21 = vector.broadcast %19 : vector<1x32xf32> to vector<128x32xf32>
    %22 = arith.mulf %20, %21 : vector<128x32xf32>
    %23 = arith.addf %17, %22 : vector<128x32xf32>
    %cst = arith.constant 0.000000e+00 : f32
    %24 = vector.broadcast %cst : f32 to vector<128x32xf32>
    %25 = arith.maximumf %23, %24 : vector<128x32xf32>
    %c0_5 = arith.constant 0 : index
    %c0_6 = arith.constant 0 : index
    %26 = vector.load %arg4[%c0_5, %c0_6] : memref<32x32xf32, #tpu.memory_space<vmem>>, vector<32x32xf32>
    %c0_7 = arith.constant 0 : index
    %c0_8 = arith.constant 0 : index
    %27 = vector.load %arg5[%c0_7, %c0_8] : memref<1x32xf32, #tpu.memory_space<vmem>>, vector<1x32xf32>
    %28 = vector.extract_strided_slice %25 {offsets = [0, 0], sizes = [128, 1], strides = [1, 1]} : vector<128x32xf32> to vector<128x1xf32>
    %29 = vector.extract_strided_slice %26 {offsets = [0, 0], sizes = [1, 32], strides = [1, 1]} : vector<32x32xf32> to vector<1x32xf32>
    %30 = vector.broadcast %28 : vector<128x1xf32> to vector<128x32xf32>
    %31 = vector.broadcast %29 : vector<1x32xf32> to vector<128x32xf32>
    %32 = arith.mulf %30, %31 : vector<128x32xf32>
    %33 = vector.broadcast %27 : vector<1x32xf32> to vector<128x32xf32>
    %34 = arith.addf %32, %33 : vector<128x32xf32>
    %35 = vector.extract_strided_slice %25 {offsets = [0, 1], sizes = [128, 1], strides = [1, 1]} : vector<128x32xf32> to vector<128x1xf32>
    %36 = vector.extract_strided_slice %26 {offsets = [1, 0], sizes = [1, 32], strides = [1, 1]} : vector<32x32xf32> to vector<1x32xf32>
    %37 = vector.broadcast %35 : vector<128x1xf32> to vector<128x32xf32>
    %38 = vector.broadcast %36 : vector<1x32xf32> to vector<128x32xf32>
    %39 = arith.mulf %37, %38 : vector<128x32xf32>
    %40 = arith.addf %34, %39 : vector<128x32xf32>
    %41 = vector.extract_strided_slice %25 {offsets = [0, 2], sizes = [128, 1], strides = [1, 1]} : vector<128x32xf32> to vector<128x1xf32>
    %42 = vector.extract_strided_slice %26 {offsets = [2, 0], sizes = [1, 32], strides = [1, 1]} : vector<32x32xf32> to vector<1x32xf32>
    %43 = vector.broadcast %41 : vector<128x1xf32> to vector<128x32xf32>
    %44 = vector.broadcast %42 : vector<1x32xf32> to vector<128x32xf32>
    %45 = arith.mulf %43, %44 : vector<128x32xf32>
    %46 = arith.addf %40, %45 : vector<128x32xf32>
    %47 = vector.extract_strided_slice %25 {offsets = [0, 3], sizes = [128, 1], strides = [1, 1]} : vector<128x32xf32> to vector<128x1xf32>
    %48 = vector.extract_strided_slice %26 {offsets = [3, 0], sizes = [1, 32], strides = [1, 1]} : vector<32x32xf32> to vector<1x32xf32>
    %49 = vector.broadcast %47 : vector<128x1xf32> to vector<128x32xf32>
    %50 = vector.broadcast %48 : vector<1x32xf32> to vector<128x32xf32>
    %51 = arith.mulf %49, %50 : vector<128x32xf32>
    %52 = arith.addf %46, %51 : vector<128x32xf32>
    %53 = vector.extract_strided_slice %25 {offsets = [0, 4], sizes = [128, 1], strides = [1, 1]} : vector<128x32xf32> to vector<128x1xf32>
    %54 = vector.extract_strided_slice %26 {offsets = [4, 0], sizes = [1, 32], strides = [1, 1]} : vector<32x32xf32> to vector<1x32xf32>
    %55 = vector.broadcast %53 : vector<128x1xf32> to vector<128x32xf32>
    %56 = vector.broadcast %54 : vector<1x32xf32> to vector<128x32xf32>
    %57 = arith.mulf %55, %56 : vector<128x32xf32>
    %58 = arith.addf %52, %57 : vector<128x32xf32>
    %59 = vector.extract_strided_slice %25 {offsets = [0, 5], sizes = [128, 1], strides = [1, 1]} : vector<128x32xf32> to vector<128x1xf32>
    %60 = vector.extract_strided_slice %26 {offsets = [5, 0], sizes = [1, 32], strides = [1, 1]} : vector<32x32xf32> to vector<1x32xf32>
    %61 = vector.broadcast %59 : vector<128x1xf32> to vector<128x32xf32>
    %62 = vector.broadcast %60 : vector<1x32xf32> to vector<128x32xf32>
    %63 = arith.mulf %61, %62 : vector<128x32xf32>
    %64 = arith.addf %58, %63 : vector<128x32xf32>
    %65 = vector.extract_strided_slice %25 {offsets = [0, 6], sizes = [128, 1], strides = [1, 1]} : vector<128x32xf32> to vector<128x1xf32>
    %66 = vector.extract_strided_slice %26 {offsets = [6, 0], sizes = [1, 32], strides = [1, 1]} : vector<32x32xf32> to vector<1x32xf32>
    %67 = vector.broadcast %65 : vector<128x1xf32> to vector<128x32xf32>
    %68 = vector.broadcast %66 : vector<1x32xf32> to vector<128x32xf32>
    %69 = arith.mulf %67, %68 : vector<128x32xf32>
    %70 = arith.addf %64, %69 : vector<128x32xf32>
    %71 = vector.extract_strided_slice %25 {offsets = [0, 7], sizes = [128, 1], strides = [1, 1]} : vector<128x32xf32> to vector<128x1xf32>
    %72 = vector.extract_strided_slice %26 {offsets = [7, 0], sizes = [1, 32], strides = [1, 1]} : vector<32x32xf32> to vector<1x32xf32>
    %73 = vector.broadcast %71 : vector<128x1xf32> to vector<128x32xf32>
    %74 = vector.broadcast %72 : vector<1x32xf32> to vector<128x32xf32>
    %75 = arith.mulf %73, %74 : vector<128x32xf32>
    %76 = arith.addf %70, %75 : vector<128x32xf32>
    %77 = vector.extract_strided_slice %25 {offsets = [0, 8], sizes = [128, 1], strides = [1, 1]} : vector<128x32xf32> to vector<128x1xf32>
    %78 = vector.extract_strided_slice %26 {offsets = [8, 0], sizes = [1, 32], strides = [1, 1]} : vector<32x32xf32> to vector<1x32xf32>
    %79 = vector.broadcast %77 : vector<128x1xf32> to vector<128x32xf32>
    %80 = vector.broadcast %78 : vector<1x32xf32> to vector<128x32xf32>
    %81 = arith.mulf %79, %80 : vector<128x32xf32>
    %82 = arith.addf %76, %81 : vector<128x32xf32>
    %83 = vector.extract_strided_slice %25 {offsets = [0, 9], sizes = [128, 1], strides = [1, 1]} : vector<128x32xf32> to vector<128x1xf32>
    %84 = vector.extract_strided_slice %26 {offsets = [9, 0], sizes = [1, 32], strides = [1, 1]} : vector<32x32xf32> to vector<1x32xf32>
    %85 = vector.broadcast %83 : vector<128x1xf32> to vector<128x32xf32>
    %86 = vector.broadcast %84 : vector<1x32xf32> to vector<128x32xf32>
    %87 = arith.mulf %85, %86 : vector<128x32xf32>
    %88 = arith.addf %82, %87 : vector<128x32xf32>
    %89 = vector.extract_strided_slice %25 {offsets = [0, 10], sizes = [128, 1], strides = [1, 1]} : vector<128x32xf32> to vector<128x1xf32>
    %90 = vector.extract_strided_slice %26 {offsets = [10, 0], sizes = [1, 32], strides = [1, 1]} : vector<32x32xf32> to vector<1x32xf32>
    %91 = vector.broadcast %89 : vector<128x1xf32> to vector<128x32xf32>
    %92 = vector.broadcast %90 : vector<1x32xf32> to vector<128x32xf32>
    %93 = arith.mulf %91, %92 : vector<128x32xf32>
    %94 = arith.addf %88, %93 : vector<128x32xf32>
    %95 = vector.extract_strided_slice %25 {offsets = [0, 11], sizes = [128, 1], strides = [1, 1]} : vector<128x32xf32> to vector<128x1xf32>
    %96 = vector.extract_strided_slice %26 {offsets = [11, 0], sizes = [1, 32], strides = [1, 1]} : vector<32x32xf32> to vector<1x32xf32>
    %97 = vector.broadcast %95 : vector<128x1xf32> to vector<128x32xf32>
    %98 = vector.broadcast %96 : vector<1x32xf32> to vector<128x32xf32>
    %99 = arith.mulf %97, %98 : vector<128x32xf32>
    %100 = arith.addf %94, %99 : vector<128x32xf32>
    %101 = vector.extract_strided_slice %25 {offsets = [0, 12], sizes = [128, 1], strides = [1, 1]} : vector<128x32xf32> to vector<128x1xf32>
    %102 = vector.extract_strided_slice %26 {offsets = [12, 0], sizes = [1, 32], strides = [1, 1]} : vector<32x32xf32> to vector<1x32xf32>
    %103 = vector.broadcast %101 : vector<128x1xf32> to vector<128x32xf32>
    %104 = vector.broadcast %102 : vector<1x32xf32> to vector<128x32xf32>
    %105 = arith.mulf %103, %104 : vector<128x32xf32>
    %106 = arith.addf %100, %105 : vector<128x32xf32>
    %107 = vector.extract_strided_slice %25 {offsets = [0, 13], sizes = [128, 1], strides = [1, 1]} : vector<128x32xf32> to vector<128x1xf32>
    %108 = vector.extract_strided_slice %26 {offsets = [13, 0], sizes = [1, 32], strides = [1, 1]} : vector<32x32xf32> to vector<1x32xf32>
    %109 = vector.broadcast %107 : vector<128x1xf32> to vector<128x32xf32>
    %110 = vector.broadcast %108 : vector<1x32xf32> to vector<128x32xf32>
    %111 = arith.mulf %109, %110 : vector<128x32xf32>
    %112 = arith.addf %106, %111 : vector<128x32xf32>
    %113 = vector.extract_strided_slice %25 {offsets = [0, 14], sizes = [128, 1], strides = [1, 1]} : vector<128x32xf32> to vector<128x1xf32>
    %114 = vector.extract_strided_slice %26 {offsets = [14, 0], sizes = [1, 32], strides = [1, 1]} : vector<32x32xf32> to vector<1x32xf32>
    %115 = vector.broadcast %113 : vector<128x1xf32> to vector<128x32xf32>
    %116 = vector.broadcast %114 : vector<1x32xf32> to vector<128x32xf32>
    %117 = arith.mulf %115, %116 : vector<128x32xf32>
    %118 = arith.addf %112, %117 : vector<128x32xf32>
    %119 = vector.extract_strided_slice %25 {offsets = [0, 15], sizes = [128, 1], strides = [1, 1]} : vector<128x32xf32> to vector<128x1xf32>
    %120 = vector.extract_strided_slice %26 {offsets = [15, 0], sizes = [1, 32], strides = [1, 1]} : vector<32x32xf32> to vector<1x32xf32>
    %121 = vector.broadcast %119 : vector<128x1xf32> to vector<128x32xf32>
    %122 = vector.broadcast %120 : vector<1x32xf32> to vector<128x32xf32>
    %123 = arith.mulf %121, %122 : vector<128x32xf32>
    %124 = arith.addf %118, %123 : vector<128x32xf32>
    %125 = vector.extract_strided_slice %25 {offsets = [0, 16], sizes = [128, 1], strides = [1, 1]} : vector<128x32xf32> to vector<128x1xf32>
    %126 = vector.extract_strided_slice %26 {offsets = [16, 0], sizes = [1, 32], strides = [1, 1]} : vector<32x32xf32> to vector<1x32xf32>
    %127 = vector.broadcast %125 : vector<128x1xf32> to vector<128x32xf32>
    %128 = vector.broadcast %126 : vector<1x32xf32> to vector<128x32xf32>
    %129 = arith.mulf %127, %128 : vector<128x32xf32>
    %130 = arith.addf %124, %129 : vector<128x32xf32>
    %131 = vector.extract_strided_slice %25 {offsets = [0, 17], sizes = [128, 1], strides = [1, 1]} : vector<128x32xf32> to vector<128x1xf32>
    %132 = vector.extract_strided_slice %26 {offsets = [17, 0], sizes = [1, 32], strides = [1, 1]} : vector<32x32xf32> to vector<1x32xf32>
    %133 = vector.broadcast %131 : vector<128x1xf32> to vector<128x32xf32>
    %134 = vector.broadcast %132 : vector<1x32xf32> to vector<128x32xf32>
    %135 = arith.mulf %133, %134 : vector<128x32xf32>
    %136 = arith.addf %130, %135 : vector<128x32xf32>
    %137 = vector.extract_strided_slice %25 {offsets = [0, 18], sizes = [128, 1], strides = [1, 1]} : vector<128x32xf32> to vector<128x1xf32>
    %138 = vector.extract_strided_slice %26 {offsets = [18, 0], sizes = [1, 32], strides = [1, 1]} : vector<32x32xf32> to vector<1x32xf32>
    %139 = vector.broadcast %137 : vector<128x1xf32> to vector<128x32xf32>
    %140 = vector.broadcast %138 : vector<1x32xf32> to vector<128x32xf32>
    %141 = arith.mulf %139, %140 : vector<128x32xf32>
    %142 = arith.addf %136, %141 : vector<128x32xf32>
    %143 = vector.extract_strided_slice %25 {offsets = [0, 19], sizes = [128, 1], strides = [1, 1]} : vector<128x32xf32> to vector<128x1xf32>
    %144 = vector.extract_strided_slice %26 {offsets = [19, 0], sizes = [1, 32], strides = [1, 1]} : vector<32x32xf32> to vector<1x32xf32>
    %145 = vector.broadcast %143 : vector<128x1xf32> to vector<128x32xf32>
    %146 = vector.broadcast %144 : vector<1x32xf32> to vector<128x32xf32>
    %147 = arith.mulf %145, %146 : vector<128x32xf32>
    %148 = arith.addf %142, %147 : vector<128x32xf32>
    %149 = vector.extract_strided_slice %25 {offsets = [0, 20], sizes = [128, 1], strides = [1, 1]} : vector<128x32xf32> to vector<128x1xf32>
    %150 = vector.extract_strided_slice %26 {offsets = [20, 0], sizes = [1, 32], strides = [1, 1]} : vector<32x32xf32> to vector<1x32xf32>
    %151 = vector.broadcast %149 : vector<128x1xf32> to vector<128x32xf32>
    %152 = vector.broadcast %150 : vector<1x32xf32> to vector<128x32xf32>
    %153 = arith.mulf %151, %152 : vector<128x32xf32>
    %154 = arith.addf %148, %153 : vector<128x32xf32>
    %155 = vector.extract_strided_slice %25 {offsets = [0, 21], sizes = [128, 1], strides = [1, 1]} : vector<128x32xf32> to vector<128x1xf32>
    %156 = vector.extract_strided_slice %26 {offsets = [21, 0], sizes = [1, 32], strides = [1, 1]} : vector<32x32xf32> to vector<1x32xf32>
    %157 = vector.broadcast %155 : vector<128x1xf32> to vector<128x32xf32>
    %158 = vector.broadcast %156 : vector<1x32xf32> to vector<128x32xf32>
    %159 = arith.mulf %157, %158 : vector<128x32xf32>
    %160 = arith.addf %154, %159 : vector<128x32xf32>
    %161 = vector.extract_strided_slice %25 {offsets = [0, 22], sizes = [128, 1], strides = [1, 1]} : vector<128x32xf32> to vector<128x1xf32>
    %162 = vector.extract_strided_slice %26 {offsets = [22, 0], sizes = [1, 32], strides = [1, 1]} : vector<32x32xf32> to vector<1x32xf32>
    %163 = vector.broadcast %161 : vector<128x1xf32> to vector<128x32xf32>
    %164 = vector.broadcast %162 : vector<1x32xf32> to vector<128x32xf32>
    %165 = arith.mulf %163, %164 : vector<128x32xf32>
    %166 = arith.addf %160, %165 : vector<128x32xf32>
    %167 = vector.extract_strided_slice %25 {offsets = [0, 23], sizes = [128, 1], strides = [1, 1]} : vector<128x32xf32> to vector<128x1xf32>
    %168 = vector.extract_strided_slice %26 {offsets = [23, 0], sizes = [1, 32], strides = [1, 1]} : vector<32x32xf32> to vector<1x32xf32>
    %169 = vector.broadcast %167 : vector<128x1xf32> to vector<128x32xf32>
    %170 = vector.broadcast %168 : vector<1x32xf32> to vector<128x32xf32>
    %171 = arith.mulf %169, %170 : vector<128x32xf32>
    %172 = arith.addf %166, %171 : vector<128x32xf32>
    %173 = vector.extract_strided_slice %25 {offsets = [0, 24], sizes = [128, 1], strides = [1, 1]} : vector<128x32xf32> to vector<128x1xf32>
    %174 = vector.extract_strided_slice %26 {offsets = [24, 0], sizes = [1, 32], strides = [1, 1]} : vector<32x32xf32> to vector<1x32xf32>
    %175 = vector.broadcast %173 : vector<128x1xf32> to vector<128x32xf32>
    %176 = vector.broadcast %174 : vector<1x32xf32> to vector<128x32xf32>
    %177 = arith.mulf %175, %176 : vector<128x32xf32>
    %178 = arith.addf %172, %177 : vector<128x32xf32>
    %179 = vector.extract_strided_slice %25 {offsets = [0, 25], sizes = [128, 1], strides = [1, 1]} : vector<128x32xf32> to vector<128x1xf32>
    %180 = vector.extract_strided_slice %26 {offsets = [25, 0], sizes = [1, 32], strides = [1, 1]} : vector<32x32xf32> to vector<1x32xf32>
    %181 = vector.broadcast %179 : vector<128x1xf32> to vector<128x32xf32>
    %182 = vector.broadcast %180 : vector<1x32xf32> to vector<128x32xf32>
    %183 = arith.mulf %181, %182 : vector<128x32xf32>
    %184 = arith.addf %178, %183 : vector<128x32xf32>
    %185 = vector.extract_strided_slice %25 {offsets = [0, 26], sizes = [128, 1], strides = [1, 1]} : vector<128x32xf32> to vector<128x1xf32>
    %186 = vector.extract_strided_slice %26 {offsets = [26, 0], sizes = [1, 32], strides = [1, 1]} : vector<32x32xf32> to vector<1x32xf32>
    %187 = vector.broadcast %185 : vector<128x1xf32> to vector<128x32xf32>
    %188 = vector.broadcast %186 : vector<1x32xf32> to vector<128x32xf32>
    %189 = arith.mulf %187, %188 : vector<128x32xf32>
    %190 = arith.addf %184, %189 : vector<128x32xf32>
    %191 = vector.extract_strided_slice %25 {offsets = [0, 27], sizes = [128, 1], strides = [1, 1]} : vector<128x32xf32> to vector<128x1xf32>
    %192 = vector.extract_strided_slice %26 {offsets = [27, 0], sizes = [1, 32], strides = [1, 1]} : vector<32x32xf32> to vector<1x32xf32>
    %193 = vector.broadcast %191 : vector<128x1xf32> to vector<128x32xf32>
    %194 = vector.broadcast %192 : vector<1x32xf32> to vector<128x32xf32>
    %195 = arith.mulf %193, %194 : vector<128x32xf32>
    %196 = arith.addf %190, %195 : vector<128x32xf32>
    %197 = vector.extract_strided_slice %25 {offsets = [0, 28], sizes = [128, 1], strides = [1, 1]} : vector<128x32xf32> to vector<128x1xf32>
    %198 = vector.extract_strided_slice %26 {offsets = [28, 0], sizes = [1, 32], strides = [1, 1]} : vector<32x32xf32> to vector<1x32xf32>
    %199 = vector.broadcast %197 : vector<128x1xf32> to vector<128x32xf32>
    %200 = vector.broadcast %198 : vector<1x32xf32> to vector<128x32xf32>
    %201 = arith.mulf %199, %200 : vector<128x32xf32>
    %202 = arith.addf %196, %201 : vector<128x32xf32>
    %203 = vector.extract_strided_slice %25 {offsets = [0, 29], sizes = [128, 1], strides = [1, 1]} : vector<128x32xf32> to vector<128x1xf32>
    %204 = vector.extract_strided_slice %26 {offsets = [29, 0], sizes = [1, 32], strides = [1, 1]} : vector<32x32xf32> to vector<1x32xf32>
    %205 = vector.broadcast %203 : vector<128x1xf32> to vector<128x32xf32>
    %206 = vector.broadcast %204 : vector<1x32xf32> to vector<128x32xf32>
    %207 = arith.mulf %205, %206 : vector<128x32xf32>
    %208 = arith.addf %202, %207 : vector<128x32xf32>
    %209 = vector.extract_strided_slice %25 {offsets = [0, 30], sizes = [128, 1], strides = [1, 1]} : vector<128x32xf32> to vector<128x1xf32>
    %210 = vector.extract_strided_slice %26 {offsets = [30, 0], sizes = [1, 32], strides = [1, 1]} : vector<32x32xf32> to vector<1x32xf32>
    %211 = vector.broadcast %209 : vector<128x1xf32> to vector<128x32xf32>
    %212 = vector.broadcast %210 : vector<1x32xf32> to vector<128x32xf32>
    %213 = arith.mulf %211, %212 : vector<128x32xf32>
    %214 = arith.addf %208, %213 : vector<128x32xf32>
    %215 = vector.extract_strided_slice %25 {offsets = [0, 31], sizes = [128, 1], strides = [1, 1]} : vector<128x32xf32> to vector<128x1xf32>
    %216 = vector.extract_strided_slice %26 {offsets = [31, 0], sizes = [1, 32], strides = [1, 1]} : vector<32x32xf32> to vector<1x32xf32>
    %217 = vector.broadcast %215 : vector<128x1xf32> to vector<128x32xf32>
    %218 = vector.broadcast %216 : vector<1x32xf32> to vector<128x32xf32>
    %219 = arith.mulf %217, %218 : vector<128x32xf32>
    %220 = arith.addf %214, %219 : vector<128x32xf32>
    %cst_9 = arith.constant 0.000000e+00 : f32
    %221 = vector.broadcast %cst_9 : f32 to vector<128x32xf32>
    %222 = arith.maximumf %220, %221 : vector<128x32xf32>
    %c0_10 = arith.constant 0 : index
    %c0_11 = arith.constant 0 : index
    %223 = vector.load %arg6[%c0_10, %c0_11] : memref<32x32xf32, #tpu.memory_space<vmem>>, vector<32x32xf32>
    %c0_12 = arith.constant 0 : index
    %c0_13 = arith.constant 0 : index
    %224 = vector.load %arg7[%c0_12, %c0_13] : memref<1x32xf32, #tpu.memory_space<vmem>>, vector<1x32xf32>
    %225 = vector.extract_strided_slice %222 {offsets = [0, 0], sizes = [128, 1], strides = [1, 1]} : vector<128x32xf32> to vector<128x1xf32>
    %226 = vector.extract_strided_slice %223 {offsets = [0, 0], sizes = [1, 32], strides = [1, 1]} : vector<32x32xf32> to vector<1x32xf32>
    %227 = vector.broadcast %225 : vector<128x1xf32> to vector<128x32xf32>
    %228 = vector.broadcast %226 : vector<1x32xf32> to vector<128x32xf32>
    %229 = arith.mulf %227, %228 : vector<128x32xf32>
    %230 = vector.broadcast %224 : vector<1x32xf32> to vector<128x32xf32>
    %231 = arith.addf %229, %230 : vector<128x32xf32>
    %232 = vector.extract_strided_slice %222 {offsets = [0, 1], sizes = [128, 1], strides = [1, 1]} : vector<128x32xf32> to vector<128x1xf32>
    %233 = vector.extract_strided_slice %223 {offsets = [1, 0], sizes = [1, 32], strides = [1, 1]} : vector<32x32xf32> to vector<1x32xf32>
    %234 = vector.broadcast %232 : vector<128x1xf32> to vector<128x32xf32>
    %235 = vector.broadcast %233 : vector<1x32xf32> to vector<128x32xf32>
    %236 = arith.mulf %234, %235 : vector<128x32xf32>
    %237 = arith.addf %231, %236 : vector<128x32xf32>
    %238 = vector.extract_strided_slice %222 {offsets = [0, 2], sizes = [128, 1], strides = [1, 1]} : vector<128x32xf32> to vector<128x1xf32>
    %239 = vector.extract_strided_slice %223 {offsets = [2, 0], sizes = [1, 32], strides = [1, 1]} : vector<32x32xf32> to vector<1x32xf32>
    %240 = vector.broadcast %238 : vector<128x1xf32> to vector<128x32xf32>
    %241 = vector.broadcast %239 : vector<1x32xf32> to vector<128x32xf32>
    %242 = arith.mulf %240, %241 : vector<128x32xf32>
    %243 = arith.addf %237, %242 : vector<128x32xf32>
    %244 = vector.extract_strided_slice %222 {offsets = [0, 3], sizes = [128, 1], strides = [1, 1]} : vector<128x32xf32> to vector<128x1xf32>
    %245 = vector.extract_strided_slice %223 {offsets = [3, 0], sizes = [1, 32], strides = [1, 1]} : vector<32x32xf32> to vector<1x32xf32>
    %246 = vector.broadcast %244 : vector<128x1xf32> to vector<128x32xf32>
    %247 = vector.broadcast %245 : vector<1x32xf32> to vector<128x32xf32>
    %248 = arith.mulf %246, %247 : vector<128x32xf32>
    %249 = arith.addf %243, %248 : vector<128x32xf32>
    %250 = vector.extract_strided_slice %222 {offsets = [0, 4], sizes = [128, 1], strides = [1, 1]} : vector<128x32xf32> to vector<128x1xf32>
    %251 = vector.extract_strided_slice %223 {offsets = [4, 0], sizes = [1, 32], strides = [1, 1]} : vector<32x32xf32> to vector<1x32xf32>
    %252 = vector.broadcast %250 : vector<128x1xf32> to vector<128x32xf32>
    %253 = vector.broadcast %251 : vector<1x32xf32> to vector<128x32xf32>
    %254 = arith.mulf %252, %253 : vector<128x32xf32>
    %255 = arith.addf %249, %254 : vector<128x32xf32>
    %256 = vector.extract_strided_slice %222 {offsets = [0, 5], sizes = [128, 1], strides = [1, 1]} : vector<128x32xf32> to vector<128x1xf32>
    %257 = vector.extract_strided_slice %223 {offsets = [5, 0], sizes = [1, 32], strides = [1, 1]} : vector<32x32xf32> to vector<1x32xf32>
    %258 = vector.broadcast %256 : vector<128x1xf32> to vector<128x32xf32>
    %259 = vector.broadcast %257 : vector<1x32xf32> to vector<128x32xf32>
    %260 = arith.mulf %258, %259 : vector<128x32xf32>
    %261 = arith.addf %255, %260 : vector<128x32xf32>
    %262 = vector.extract_strided_slice %222 {offsets = [0, 6], sizes = [128, 1], strides = [1, 1]} : vector<128x32xf32> to vector<128x1xf32>
    %263 = vector.extract_strided_slice %223 {offsets = [6, 0], sizes = [1, 32], strides = [1, 1]} : vector<32x32xf32> to vector<1x32xf32>
    %264 = vector.broadcast %262 : vector<128x1xf32> to vector<128x32xf32>
    %265 = vector.broadcast %263 : vector<1x32xf32> to vector<128x32xf32>
    %266 = arith.mulf %264, %265 : vector<128x32xf32>
    %267 = arith.addf %261, %266 : vector<128x32xf32>
    %268 = vector.extract_strided_slice %222 {offsets = [0, 7], sizes = [128, 1], strides = [1, 1]} : vector<128x32xf32> to vector<128x1xf32>
    %269 = vector.extract_strided_slice %223 {offsets = [7, 0], sizes = [1, 32], strides = [1, 1]} : vector<32x32xf32> to vector<1x32xf32>
    %270 = vector.broadcast %268 : vector<128x1xf32> to vector<128x32xf32>
    %271 = vector.broadcast %269 : vector<1x32xf32> to vector<128x32xf32>
    %272 = arith.mulf %270, %271 : vector<128x32xf32>
    %273 = arith.addf %267, %272 : vector<128x32xf32>
    %274 = vector.extract_strided_slice %222 {offsets = [0, 8], sizes = [128, 1], strides = [1, 1]} : vector<128x32xf32> to vector<128x1xf32>
    %275 = vector.extract_strided_slice %223 {offsets = [8, 0], sizes = [1, 32], strides = [1, 1]} : vector<32x32xf32> to vector<1x32xf32>
    %276 = vector.broadcast %274 : vector<128x1xf32> to vector<128x32xf32>
    %277 = vector.broadcast %275 : vector<1x32xf32> to vector<128x32xf32>
    %278 = arith.mulf %276, %277 : vector<128x32xf32>
    %279 = arith.addf %273, %278 : vector<128x32xf32>
    %280 = vector.extract_strided_slice %222 {offsets = [0, 9], sizes = [128, 1], strides = [1, 1]} : vector<128x32xf32> to vector<128x1xf32>
    %281 = vector.extract_strided_slice %223 {offsets = [9, 0], sizes = [1, 32], strides = [1, 1]} : vector<32x32xf32> to vector<1x32xf32>
    %282 = vector.broadcast %280 : vector<128x1xf32> to vector<128x32xf32>
    %283 = vector.broadcast %281 : vector<1x32xf32> to vector<128x32xf32>
    %284 = arith.mulf %282, %283 : vector<128x32xf32>
    %285 = arith.addf %279, %284 : vector<128x32xf32>
    %286 = vector.extract_strided_slice %222 {offsets = [0, 10], sizes = [128, 1], strides = [1, 1]} : vector<128x32xf32> to vector<128x1xf32>
    %287 = vector.extract_strided_slice %223 {offsets = [10, 0], sizes = [1, 32], strides = [1, 1]} : vector<32x32xf32> to vector<1x32xf32>
    %288 = vector.broadcast %286 : vector<128x1xf32> to vector<128x32xf32>
    %289 = vector.broadcast %287 : vector<1x32xf32> to vector<128x32xf32>
    %290 = arith.mulf %288, %289 : vector<128x32xf32>
    %291 = arith.addf %285, %290 : vector<128x32xf32>
    %292 = vector.extract_strided_slice %222 {offsets = [0, 11], sizes = [128, 1], strides = [1, 1]} : vector<128x32xf32> to vector<128x1xf32>
    %293 = vector.extract_strided_slice %223 {offsets = [11, 0], sizes = [1, 32], strides = [1, 1]} : vector<32x32xf32> to vector<1x32xf32>
    %294 = vector.broadcast %292 : vector<128x1xf32> to vector<128x32xf32>
    %295 = vector.broadcast %293 : vector<1x32xf32> to vector<128x32xf32>
    %296 = arith.mulf %294, %295 : vector<128x32xf32>
    %297 = arith.addf %291, %296 : vector<128x32xf32>
    %298 = vector.extract_strided_slice %222 {offsets = [0, 12], sizes = [128, 1], strides = [1, 1]} : vector<128x32xf32> to vector<128x1xf32>
    %299 = vector.extract_strided_slice %223 {offsets = [12, 0], sizes = [1, 32], strides = [1, 1]} : vector<32x32xf32> to vector<1x32xf32>
    %300 = vector.broadcast %298 : vector<128x1xf32> to vector<128x32xf32>
    %301 = vector.broadcast %299 : vector<1x32xf32> to vector<128x32xf32>
    %302 = arith.mulf %300, %301 : vector<128x32xf32>
    %303 = arith.addf %297, %302 : vector<128x32xf32>
    %304 = vector.extract_strided_slice %222 {offsets = [0, 13], sizes = [128, 1], strides = [1, 1]} : vector<128x32xf32> to vector<128x1xf32>
    %305 = vector.extract_strided_slice %223 {offsets = [13, 0], sizes = [1, 32], strides = [1, 1]} : vector<32x32xf32> to vector<1x32xf32>
    %306 = vector.broadcast %304 : vector<128x1xf32> to vector<128x32xf32>
    %307 = vector.broadcast %305 : vector<1x32xf32> to vector<128x32xf32>
    %308 = arith.mulf %306, %307 : vector<128x32xf32>
    %309 = arith.addf %303, %308 : vector<128x32xf32>
    %310 = vector.extract_strided_slice %222 {offsets = [0, 14], sizes = [128, 1], strides = [1, 1]} : vector<128x32xf32> to vector<128x1xf32>
    %311 = vector.extract_strided_slice %223 {offsets = [14, 0], sizes = [1, 32], strides = [1, 1]} : vector<32x32xf32> to vector<1x32xf32>
    %312 = vector.broadcast %310 : vector<128x1xf32> to vector<128x32xf32>
    %313 = vector.broadcast %311 : vector<1x32xf32> to vector<128x32xf32>
    %314 = arith.mulf %312, %313 : vector<128x32xf32>
    %315 = arith.addf %309, %314 : vector<128x32xf32>
    %316 = vector.extract_strided_slice %222 {offsets = [0, 15], sizes = [128, 1], strides = [1, 1]} : vector<128x32xf32> to vector<128x1xf32>
    %317 = vector.extract_strided_slice %223 {offsets = [15, 0], sizes = [1, 32], strides = [1, 1]} : vector<32x32xf32> to vector<1x32xf32>
    %318 = vector.broadcast %316 : vector<128x1xf32> to vector<128x32xf32>
    %319 = vector.broadcast %317 : vector<1x32xf32> to vector<128x32xf32>
    %320 = arith.mulf %318, %319 : vector<128x32xf32>
    %321 = arith.addf %315, %320 : vector<128x32xf32>
    %322 = vector.extract_strided_slice %222 {offsets = [0, 16], sizes = [128, 1], strides = [1, 1]} : vector<128x32xf32> to vector<128x1xf32>
    %323 = vector.extract_strided_slice %223 {offsets = [16, 0], sizes = [1, 32], strides = [1, 1]} : vector<32x32xf32> to vector<1x32xf32>
    %324 = vector.broadcast %322 : vector<128x1xf32> to vector<128x32xf32>
    %325 = vector.broadcast %323 : vector<1x32xf32> to vector<128x32xf32>
    %326 = arith.mulf %324, %325 : vector<128x32xf32>
    %327 = arith.addf %321, %326 : vector<128x32xf32>
    %328 = vector.extract_strided_slice %222 {offsets = [0, 17], sizes = [128, 1], strides = [1, 1]} : vector<128x32xf32> to vector<128x1xf32>
    %329 = vector.extract_strided_slice %223 {offsets = [17, 0], sizes = [1, 32], strides = [1, 1]} : vector<32x32xf32> to vector<1x32xf32>
    %330 = vector.broadcast %328 : vector<128x1xf32> to vector<128x32xf32>
    %331 = vector.broadcast %329 : vector<1x32xf32> to vector<128x32xf32>
    %332 = arith.mulf %330, %331 : vector<128x32xf32>
    %333 = arith.addf %327, %332 : vector<128x32xf32>
    %334 = vector.extract_strided_slice %222 {offsets = [0, 18], sizes = [128, 1], strides = [1, 1]} : vector<128x32xf32> to vector<128x1xf32>
    %335 = vector.extract_strided_slice %223 {offsets = [18, 0], sizes = [1, 32], strides = [1, 1]} : vector<32x32xf32> to vector<1x32xf32>
    %336 = vector.broadcast %334 : vector<128x1xf32> to vector<128x32xf32>
    %337 = vector.broadcast %335 : vector<1x32xf32> to vector<128x32xf32>
    %338 = arith.mulf %336, %337 : vector<128x32xf32>
    %339 = arith.addf %333, %338 : vector<128x32xf32>
    %340 = vector.extract_strided_slice %222 {offsets = [0, 19], sizes = [128, 1], strides = [1, 1]} : vector<128x32xf32> to vector<128x1xf32>
    %341 = vector.extract_strided_slice %223 {offsets = [19, 0], sizes = [1, 32], strides = [1, 1]} : vector<32x32xf32> to vector<1x32xf32>
    %342 = vector.broadcast %340 : vector<128x1xf32> to vector<128x32xf32>
    %343 = vector.broadcast %341 : vector<1x32xf32> to vector<128x32xf32>
    %344 = arith.mulf %342, %343 : vector<128x32xf32>
    %345 = arith.addf %339, %344 : vector<128x32xf32>
    %346 = vector.extract_strided_slice %222 {offsets = [0, 20], sizes = [128, 1], strides = [1, 1]} : vector<128x32xf32> to vector<128x1xf32>
    %347 = vector.extract_strided_slice %223 {offsets = [20, 0], sizes = [1, 32], strides = [1, 1]} : vector<32x32xf32> to vector<1x32xf32>
    %348 = vector.broadcast %346 : vector<128x1xf32> to vector<128x32xf32>
    %349 = vector.broadcast %347 : vector<1x32xf32> to vector<128x32xf32>
    %350 = arith.mulf %348, %349 : vector<128x32xf32>
    %351 = arith.addf %345, %350 : vector<128x32xf32>
    %352 = vector.extract_strided_slice %222 {offsets = [0, 21], sizes = [128, 1], strides = [1, 1]} : vector<128x32xf32> to vector<128x1xf32>
    %353 = vector.extract_strided_slice %223 {offsets = [21, 0], sizes = [1, 32], strides = [1, 1]} : vector<32x32xf32> to vector<1x32xf32>
    %354 = vector.broadcast %352 : vector<128x1xf32> to vector<128x32xf32>
    %355 = vector.broadcast %353 : vector<1x32xf32> to vector<128x32xf32>
    %356 = arith.mulf %354, %355 : vector<128x32xf32>
    %357 = arith.addf %351, %356 : vector<128x32xf32>
    %358 = vector.extract_strided_slice %222 {offsets = [0, 22], sizes = [128, 1], strides = [1, 1]} : vector<128x32xf32> to vector<128x1xf32>
    %359 = vector.extract_strided_slice %223 {offsets = [22, 0], sizes = [1, 32], strides = [1, 1]} : vector<32x32xf32> to vector<1x32xf32>
    %360 = vector.broadcast %358 : vector<128x1xf32> to vector<128x32xf32>
    %361 = vector.broadcast %359 : vector<1x32xf32> to vector<128x32xf32>
    %362 = arith.mulf %360, %361 : vector<128x32xf32>
    %363 = arith.addf %357, %362 : vector<128x32xf32>
    %364 = vector.extract_strided_slice %222 {offsets = [0, 23], sizes = [128, 1], strides = [1, 1]} : vector<128x32xf32> to vector<128x1xf32>
    %365 = vector.extract_strided_slice %223 {offsets = [23, 0], sizes = [1, 32], strides = [1, 1]} : vector<32x32xf32> to vector<1x32xf32>
    %366 = vector.broadcast %364 : vector<128x1xf32> to vector<128x32xf32>
    %367 = vector.broadcast %365 : vector<1x32xf32> to vector<128x32xf32>
    %368 = arith.mulf %366, %367 : vector<128x32xf32>
    %369 = arith.addf %363, %368 : vector<128x32xf32>
    %370 = vector.extract_strided_slice %222 {offsets = [0, 24], sizes = [128, 1], strides = [1, 1]} : vector<128x32xf32> to vector<128x1xf32>
    %371 = vector.extract_strided_slice %223 {offsets = [24, 0], sizes = [1, 32], strides = [1, 1]} : vector<32x32xf32> to vector<1x32xf32>
    %372 = vector.broadcast %370 : vector<128x1xf32> to vector<128x32xf32>
    %373 = vector.broadcast %371 : vector<1x32xf32> to vector<128x32xf32>
    %374 = arith.mulf %372, %373 : vector<128x32xf32>
    %375 = arith.addf %369, %374 : vector<128x32xf32>
    %376 = vector.extract_strided_slice %222 {offsets = [0, 25], sizes = [128, 1], strides = [1, 1]} : vector<128x32xf32> to vector<128x1xf32>
    %377 = vector.extract_strided_slice %223 {offsets = [25, 0], sizes = [1, 32], strides = [1, 1]} : vector<32x32xf32> to vector<1x32xf32>
    %378 = vector.broadcast %376 : vector<128x1xf32> to vector<128x32xf32>
    %379 = vector.broadcast %377 : vector<1x32xf32> to vector<128x32xf32>
    %380 = arith.mulf %378, %379 : vector<128x32xf32>
    %381 = arith.addf %375, %380 : vector<128x32xf32>
    %382 = vector.extract_strided_slice %222 {offsets = [0, 26], sizes = [128, 1], strides = [1, 1]} : vector<128x32xf32> to vector<128x1xf32>
    %383 = vector.extract_strided_slice %223 {offsets = [26, 0], sizes = [1, 32], strides = [1, 1]} : vector<32x32xf32> to vector<1x32xf32>
    %384 = vector.broadcast %382 : vector<128x1xf32> to vector<128x32xf32>
    %385 = vector.broadcast %383 : vector<1x32xf32> to vector<128x32xf32>
    %386 = arith.mulf %384, %385 : vector<128x32xf32>
    %387 = arith.addf %381, %386 : vector<128x32xf32>
    %388 = vector.extract_strided_slice %222 {offsets = [0, 27], sizes = [128, 1], strides = [1, 1]} : vector<128x32xf32> to vector<128x1xf32>
    %389 = vector.extract_strided_slice %223 {offsets = [27, 0], sizes = [1, 32], strides = [1, 1]} : vector<32x32xf32> to vector<1x32xf32>
    %390 = vector.broadcast %388 : vector<128x1xf32> to vector<128x32xf32>
    %391 = vector.broadcast %389 : vector<1x32xf32> to vector<128x32xf32>
    %392 = arith.mulf %390, %391 : vector<128x32xf32>
    %393 = arith.addf %387, %392 : vector<128x32xf32>
    %394 = vector.extract_strided_slice %222 {offsets = [0, 28], sizes = [128, 1], strides = [1, 1]} : vector<128x32xf32> to vector<128x1xf32>
    %395 = vector.extract_strided_slice %223 {offsets = [28, 0], sizes = [1, 32], strides = [1, 1]} : vector<32x32xf32> to vector<1x32xf32>
    %396 = vector.broadcast %394 : vector<128x1xf32> to vector<128x32xf32>
    %397 = vector.broadcast %395 : vector<1x32xf32> to vector<128x32xf32>
    %398 = arith.mulf %396, %397 : vector<128x32xf32>
    %399 = arith.addf %393, %398 : vector<128x32xf32>
    %400 = vector.extract_strided_slice %222 {offsets = [0, 29], sizes = [128, 1], strides = [1, 1]} : vector<128x32xf32> to vector<128x1xf32>
    %401 = vector.extract_strided_slice %223 {offsets = [29, 0], sizes = [1, 32], strides = [1, 1]} : vector<32x32xf32> to vector<1x32xf32>
    %402 = vector.broadcast %400 : vector<128x1xf32> to vector<128x32xf32>
    %403 = vector.broadcast %401 : vector<1x32xf32> to vector<128x32xf32>
    %404 = arith.mulf %402, %403 : vector<128x32xf32>
    %405 = arith.addf %399, %404 : vector<128x32xf32>
    %406 = vector.extract_strided_slice %222 {offsets = [0, 30], sizes = [128, 1], strides = [1, 1]} : vector<128x32xf32> to vector<128x1xf32>
    %407 = vector.extract_strided_slice %223 {offsets = [30, 0], sizes = [1, 32], strides = [1, 1]} : vector<32x32xf32> to vector<1x32xf32>
    %408 = vector.broadcast %406 : vector<128x1xf32> to vector<128x32xf32>
    %409 = vector.broadcast %407 : vector<1x32xf32> to vector<128x32xf32>
    %410 = arith.mulf %408, %409 : vector<128x32xf32>
    %411 = arith.addf %405, %410 : vector<128x32xf32>
    %412 = vector.extract_strided_slice %222 {offsets = [0, 31], sizes = [128, 1], strides = [1, 1]} : vector<128x32xf32> to vector<128x1xf32>
    %413 = vector.extract_strided_slice %223 {offsets = [31, 0], sizes = [1, 32], strides = [1, 1]} : vector<32x32xf32> to vector<1x32xf32>
    %414 = vector.broadcast %412 : vector<128x1xf32> to vector<128x32xf32>
    %415 = vector.broadcast %413 : vector<1x32xf32> to vector<128x32xf32>
    %416 = arith.mulf %414, %415 : vector<128x32xf32>
    %417 = arith.addf %411, %416 : vector<128x32xf32>
    %cst_14 = arith.constant 0.000000e+00 : f32
    %418 = vector.broadcast %cst_14 : f32 to vector<128x32xf32>
    %419 = arith.maximumf %417, %418 : vector<128x32xf32>
    %c0_15 = arith.constant 0 : index
    %c0_16 = arith.constant 0 : index
    %420 = vector.load %arg8[%c0_15, %c0_16] : memref<1x32xf32, #tpu.memory_space<vmem>>, vector<1x32xf32>
    %c0_17 = arith.constant 0 : index
    %c0_18 = arith.constant 0 : index
    %421 = vector.load %arg9[%c0_17, %c0_18] : memref<1x1xf32, #tpu.memory_space<vmem>>, vector<1x1xf32>
    %422 = vector.broadcast %420 : vector<1x32xf32> to vector<128x32xf32>
    %423 = arith.mulf %419, %422 : vector<128x32xf32>
    %cst_19 = arith.constant dense<0.000000e+00> : vector<128xf32>
    %424 = vector.multi_reduction <add>, %423, %cst_19 [1] : vector<128x32xf32> to vector<128xf32>
    %425 = vector.shape_cast %424 : vector<128xf32> to vector<128x1xf32>
    %426 = vector.broadcast %421 : vector<1x1xf32> to vector<128x1xf32>
    %427 = arith.addf %425, %426 : vector<128x1xf32>
    %428 = arith.mulf %427, %427 : vector<128x1xf32>
    %cst_20 = arith.constant 0.00999999977 : f32
    %429 = vector.broadcast %cst_20 : f32 to vector<128x1xf32>
    %430 = arith.addf %429, %428 : vector<128x1xf32>
    %cst_21 = arith.constant 0.000000e+00 : f32
    %431 = vector.broadcast %cst_21 : f32 to vector<128x1xf32>
    %432 = arith.subf %431, %430 : vector<128x1xf32>
    %433 = math.exp %432 : vector<128x1xf32>
    %434 = arith.mulf %1, %433 : vector<128x1xf32>
    %c0_22 = arith.constant 0 : index
    %c1 = arith.constant 1 : index
    %435 = vector.load %arg10[%c0_22, %c1] : memref<128x4xf32, #tpu.memory_space<vmem>>, vector<128x3xf32>
    tpu.vector_store %arg10[%c0_22, %c1], %2 {strides = array<i32>} : memref<128x4xf32, #tpu.memory_space<vmem>>, vector<128x3xf32>,
    %c0_23 = arith.constant 0 : index
    %c0_24 = arith.constant 0 : index
    %436 = vector.load %arg10[%c0_23, %c0_24] : memref<128x4xf32, #tpu.memory_space<vmem>>, vector<128x1xf32>
    tpu.vector_store %arg10[%c0_23, %c0_24], %434 {strides = array<i32>} : memref<128x4xf32, #tpu.memory_space<vmem>>, vector<128x1xf32>,
    return
  }
  func.func @transform_0(%arg0: i32) -> (i32, i32) {
    %c0_i32 = arith.constant 0 : i32
    %c0_i32_0 = arith.constant 0 : i32
    return %arg0, %c0_i32 : i32, i32
  }
  func.func @transform_1(%arg0: i32) -> (i32, i32) {
    %c0_i32 = arith.constant 0 : i32
    %c0_i32_0 = arith.constant 0 : i32
    %c0_i32_1 = arith.constant 0 : i32
    return %c0_i32, %c0_i32_0 : i32, i32
  }
  func.func @transform_2(%arg0: i32) -> (i32, i32) {
    %c0_i32 = arith.constant 0 : i32
    %c0_i32_0 = arith.constant 0 : i32
    %c0_i32_1 = arith.constant 0 : i32
    return %c0_i32, %c0_i32_0 : i32, i32
  }
  func.func @transform_3(%arg0: i32) -> (i32, i32) {
    %c0_i32 = arith.constant 0 : i32
    %c0_i32_0 = arith.constant 0 : i32
    %c0_i32_1 = arith.constant 0 : i32
    return %c0_i32, %c0_i32_0 : i32, i32
  }
  func.func @transform_4(%arg0: i32) -> (i32, i32) {
    %c0_i32 = arith.constant 0 : i32
    %c0_i32_0 = arith.constant 0 : i32
    %c0_i32_1 = arith.constant 0 : i32
    return %c0_i32, %c0_i32_0 : i32, i32
  }
  func.func @transform_5(%arg0: i32) -> (i32, i32) {
    %c0_i32 = arith.constant 0 : i32
    %c0_i32_0 = arith.constant 0 : i32
    %c0_i32_1 = arith.constant 0 : i32
    return %c0_i32, %c0_i32_0 : i32, i32
  }
  func.func @transform_6(%arg0: i32) -> (i32, i32) {
    %c0_i32 = arith.constant 0 : i32
    %c0_i32_0 = arith.constant 0 : i32
    %c0_i32_1 = arith.constant 0 : i32
    return %c0_i32, %c0_i32_0 : i32, i32
  }
  func.func @transform_7(%arg0: i32) -> (i32, i32) {
    %c0_i32 = arith.constant 0 : i32
    %c0_i32_0 = arith.constant 0 : i32
    %c0_i32_1 = arith.constant 0 : i32
    return %c0_i32, %c0_i32_0 : i32, i32
  }
  func.func @transform_8(%arg0: i32) -> (i32, i32) {
    %c0_i32 = arith.constant 0 : i32
    %c0_i32_0 = arith.constant 0 : i32
    %c0_i32_1 = arith.constant 0 : i32
    return %c0_i32, %c0_i32_0 : i32, i32
  }
  func.func @transform_9(%arg0: i32) -> (i32, i32) {
    %c0_i32 = arith.constant 0 : i32
    %c0_i32_0 = arith.constant 0 : i32
    return %arg0, %c0_i32 : i32, i32
  }
}

</mosaic_0001>

<llo_original>
// kernel: tpu_custom_call.1
$region0: #{tpu_custom_call.1}
  #allocation0 [shape = 'u32[]', space=smem, size = 0x4, offset = 0x4, fixed_abs, tag = 'smem constant byte address 0x4 - core index']
  #allocation1 [shape = 'u32[144,128]{1,0:T(1,128)}', space=vmem, size = 0x12000, scoped, tag = 'internal scratch']
  #allocation2 [shape = 'f32[1,1]{1,0:T(1,128)S(1)}', space=vmem, size = 0x200, scoped, tag = 'scoped memory for tpu_custom_call.1']
  %s0 = inlined_call_operand.vmem [shape: f32[256,4], index: 0, kind: input, shape index: {}]
  %s1 = inlined_call_operand.vmem [shape: f32[3,32], index: 1, kind: input, shape index: {}]
  %s2 = inlined_call_operand.vmem [shape: f32[1,32], index: 2, kind: input, shape index: {}]
  %s3 = inlined_call_operand.vmem [shape: f32[32,32], index: 3, kind: input, shape index: {}]
  %s4 = inlined_call_operand.vmem [shape: f32[1,32], index: 4, kind: input, shape index: {}]
  %s5 = inlined_call_operand.vmem [shape: f32[32,32], index: 5, kind: input, shape index: {}]
  %s6 = inlined_call_operand.vmem [shape: f32[1,32], index: 6, kind: input, shape index: {}]
  %s7 = inlined_call_operand.vmem [shape: f32[1,32], index: 7, kind: input, shape index: {}]
  %s8 = inlined_call_operand.<no memory space> [shape: f32[1,1], index: 8, kind: input, shape index: {}]
  %s9 = inlined_call_operand.vmem [shape: f32[256,4], index: 9, kind: output, shape index: {}]
  %s10 = sld [smem:[#allocation0]]
  $region69: #{tpu_custom_call.1} parent=0
    _
  %s12 = ssub.s32 1, %s10
  %s13 = scalar_select 0, %s12, %s10
  %v14 = vstv %s8
  %15 = vst [vmem:[#allocation2] sm:$0x1] %v14
  loop: start=0, step=1, limit=4
  $region2: #{tpu_custom_call.1} parent=0 // loop_pre_header
    _
  $region3: #{tpu_custom_call.1} parent=0 // loop_header
    %s17 = sphi 0, %s21
    %p18 = scmp.ge.s32.totalorder %s17, 4
    %s27 = sphi 0, %s29
    %s30 = sphi 0, %s27
    %s31 = sphi 0, %s30
    %s47 = sphi 0, %s31
    %s51 = sphi 0, %s51
    %s53 = sphi 0, %s51
    %s54 = sphi 0, %s53
    %s68 = sphi 0, %s54
    %s72 = sphi 0, %s72
    %s74 = sphi 0, %s72
    %s75 = sphi 0, %s74
    %s89 = sphi 0, %s75
    %s93 = sphi 0, %s93
    %s95 = sphi 0, %s93
    %s96 = sphi 0, %s95
    %s110 = sphi 0, %s96
    %s114 = sphi 0, %s114
    %s116 = sphi 0, %s114
    %s117 = sphi 0, %s116
    %s131 = sphi 0, %s117
    %s135 = sphi 0, %s135
    %s137 = sphi 0, %s135
    %s138 = sphi 0, %s137
    %s152 = sphi 0, %s138
    %s156 = sphi 0, %s156
    %s158 = sphi 0, %s156
    %s159 = sphi 0, %s158
    %s173 = sphi 0, %s159
    %s177 = sphi 0, %s177
    %s179 = sphi 0, %s177
    %s180 = sphi 0, %s179
    %s194 = sphi 0, %s180
    %s198 = sphi 0, %s198
    %s200 = sphi 0, %s198
    %s201 = sphi 0, %s200
    %s215 = sphi 0, %s201
    %s221 = sphi 0, %s223
    %s224 = sphi 0, %s221
    %s225 = sphi 0, %s224
    %s241 = sphi 0, %s225
  $region4: #{tpu_custom_call.1} parent=0 // loop_header_branch
    %20 = sbr.rel (%p18) target = $region8
  $region5: #{tpu_custom_call.1} parent=0 // loop_body
    %s22 = ssub.s32 %s17, 1
    %s23 = ssub.s32 %s17, 2
    %s24 = sadd.s32 %s17, 1
    %s25 = ssub.s32 %s17, %s24
    %p26 = scmp.eq.s32.totalorder %s25, 0
    %s28 = sadd.s32 %s27, 1
    %s29 = scalar_select %p26, %s27, %s28
    %p32 = pneg %p26
    %p33 = scmp.eq.s32.totalorder %s17, 1
    %p34 = por %p32, %p33
    %p35 = scmp.ne.s32.totalorder %s27, %s30
    %p36 = scmp.eq.s32.totalorder %s17, 0
    %p37 = por %p35, %p36
    %p38 = scmp.ne.s32.totalorder %s27, %s30
    %p39 = scmp.eq.s32.totalorder %s22, 1
    %p40 = por %p38, %p39
    %p41 = scmp.ne.s32.totalorder %s30, %s31
    %p42 = scmp.eq.s32.totalorder %s22, 0
    %p43 = por %p41, %p42
    %p44 = scmp.ne.s32.totalorder %s30, %s31
    %p45 = scmp.eq.s32.totalorder %s23, 1
    %p46 = por %p44, %p45
    %p48 = scmp.ne.s32.totalorder %s31, %s47
    %p49 = scmp.eq.s32.totalorder %s23, 0
    %p50 = por %p48, %p49
    %s52 = sadd.s32 %s51, 1
    %p55 = scmp.eq.s32.totalorder %s17, 1
    %p56 = scmp.ne.s32.totalorder %s51, %s53
    %p57 = scmp.eq.s32.totalorder %s17, 0
    %p58 = por %p56, %p57
    %p59 = scmp.ne.s32.totalorder %s51, %s53
    %p60 = scmp.eq.s32.totalorder %s22, 1
    %p61 = por %p59, %p60
    %p62 = scmp.ne.s32.totalorder %s53, %s54
    %p63 = scmp.eq.s32.totalorder %s22, 0
    %p64 = por %p62, %p63
    %p65 = scmp.ne.s32.totalorder %s53, %s54
    %p66 = scmp.eq.s32.totalorder %s23, 1
    %p67 = por %p65, %p66
    %p69 = scmp.ne.s32.totalorder %s54, %s68
    %p70 = scmp.eq.s32.totalorder %s23, 0
    %p71 = por %p69, %p70
    %s73 = sadd.s32 %s72, 1
    %p76 = scmp.eq.s32.totalorder %s17, 1
    %p77 = scmp.ne.s32.totalorder %s72, %s74
    %p78 = scmp.eq.s32.totalorder %s17, 0
    %p79 = por %p77, %p78
    %p80 = scmp.ne.s32.totalorder %s72, %s74
    %p81 = scmp.eq.s32.totalorder %s22, 1
    %p82 = por %p80, %p81
    %p83 = scmp.ne.s32.totalorder %s74, %s75
    %p84 = scmp.eq.s32.totalorder %s22, 0
    %p85 = por %p83, %p84
    %p86 = scmp.ne.s32.totalorder %s74, %s75
    %p87 = scmp.eq.s32.totalorder %s23, 1
    %p88 = por %p86, %p87
    %p90 = scmp.ne.s32.totalorder %s75, %s89
    %p91 = scmp.eq.s32.totalorder %s23, 0
    %p92 = por %p90, %p91
    %s94 = sadd.s32 %s93, 1
    %p97 = scmp.eq.s32.totalorder %s17, 1
    %p98 = scmp.ne.s32.totalorder %s93, %s95
    %p99 = scmp.eq.s32.totalorder %s17, 0
    %p100 = por %p98, %p99
    %p101 = scmp.ne.s32.totalorder %s93, %s95
    %p102 = scmp.eq.s32.totalorder %s22, 1
    %p103 = por %p101, %p102
    %p104 = scmp.ne.s32.totalorder %s95, %s96
    %p105 = scmp.eq.s32.totalorder %s22, 0
    %p106 = por %p104, %p105
    %p107 = scmp.ne.s32.totalorder %s95, %s96
    %p108 = scmp.eq.s32.totalorder %s23, 1
    %p109 = por %p107, %p108
    %p111 = scmp.ne.s32.totalorder %s96, %s110
    %p112 = scmp.eq.s32.totalorder %s23, 0
    %p113 = por %p111, %p112
    %s115 = sadd.s32 %s114, 1
    %p118 = scmp.eq.s32.totalorder %s17, 1
    %p119 = scmp.ne.s32.totalorder %s114, %s116
    %p120 = scmp.eq.s32.totalorder %s17, 0
    %p121 = por %p119, %p120
    %p122 = scmp.ne.s32.totalorder %s114, %s116
    %p123 = scmp.eq.s32.totalorder %s22, 1
    %p124 = por %p122, %p123
    %p125 = scmp.ne.s32.totalorder %s116, %s117
    %p126 = scmp.eq.s32.totalorder %s22, 0
    %p127 = por %p125, %p126
    %p128 = scmp.ne.s32.totalorder %s116, %s117
    %p129 = scmp.eq.s32.totalorder %s23, 1
    %p130 = por %p128, %p129
    %p132 = scmp.ne.s32.totalorder %s117, %s131
    %p133 = scmp.eq.s32.totalorder %s23, 0
    %p134 = por %p132, %p133
    %s136 = sadd.s32 %s135, 1
    %p139 = scmp.eq.s32.totalorder %s17, 1
    %p140 = scmp.ne.s32.totalorder %s135, %s137
    %p141 = scmp.eq.s32.totalorder %s17, 0
    %p142 = por %p140, %p141
    %p143 = scmp.ne.s32.totalorder %s135, %s137
    %p144 = scmp.eq.s32.totalorder %s22, 1
    %p145 = por %p143, %p144
    %p146 = scmp.ne.s32.totalorder %s137, %s138
    %p147 = scmp.eq.s32.totalorder %s22, 0
    %p148 = por %p146, %p147
    %p149 = scmp.ne.s32.totalorder %s137, %s138
    %p150 = scmp.eq.s32.totalorder %s23, 1
    %p151 = por %p149, %p150
    %p153 = scmp.ne.s32.totalorder %s138, %s152
    %p154 = scmp.eq.s32.totalorder %s23, 0
    %p155 = por %p153, %p154
    %s157 = sadd.s32 %s156, 1
    %p160 = scmp.eq.s32.totalorder %s17, 1
    %p161 = scmp.ne.s32.totalorder %s156, %s158
    %p162 = scmp.eq.s32.totalorder %s17, 0
    %p163 = por %p161, %p162
    %p164 = scmp.ne.s32.totalorder %s156, %s158
    %p165 = scmp.eq.s32.totalorder %s22, 1
    %p166 = por %p164, %p165
    %p167 = scmp.ne.s32.totalorder %s158, %s159
    %p168 = scmp.eq.s32.totalorder %s22, 0
    %p169 = por %p167, %p168
    %p170 = scmp.ne.s32.totalorder %s158, %s159
    %p171 = scmp.eq.s32.totalorder %s23, 1
    %p172 = por %p170, %p171
    %p174 = scmp.ne.s32.totalorder %s159, %s173
    %p175 = scmp.eq.s32.totalorder %s23, 0
    %p176 = por %p174, %p175
    %s178 = sadd.s32 %s177, 1
    %p181 = scmp.eq.s32.totalorder %s17, 1
    %p182 = scmp.ne.s32.totalorder %s177, %s179
    %p183 = scmp.eq.s32.totalorder %s17, 0
    %p184 = por %p182, %p183
    %p185 = scmp.ne.s32.totalorder %s177, %s179
    %p186 = scmp.eq.s32.totalorder %s22, 1
    %p187 = por %p185, %p186
    %p188 = scmp.ne.s32.totalorder %s179, %s180
    %p189 = scmp.eq.s32.totalorder %s22, 0
    %p190 = por %p188, %p189
    %p191 = scmp.ne.s32.totalorder %s179, %s180
    %p192 = scmp.eq.s32.totalorder %s23, 1
    %p193 = por %p191, %p192
    %p195 = scmp.ne.s32.totalorder %s180, %s194
    %p196 = scmp.eq.s32.totalorder %s23, 0
    %p197 = por %p195, %p196
    %s199 = sadd.s32 %s198, 1
    %p202 = scmp.eq.s32.totalorder %s17, 1
    %p203 = scmp.ne.s32.totalorder %s198, %s200
    %p204 = scmp.eq.s32.totalorder %s17, 0
    %p205 = por %p203, %p204
    %p206 = scmp.ne.s32.totalorder %s198, %s200
    %p207 = scmp.eq.s32.totalorder %s22, 1
    %p208 = por %p206, %p207
    %p209 = scmp.ne.s32.totalorder %s200, %s201
    %p210 = scmp.eq.s32.totalorder %s22, 0
    %p211 = por %p209, %p210
    %p212 = scmp.ne.s32.totalorder %s200, %s201
    %p213 = scmp.eq.s32.totalorder %s23, 1
    %p214 = por %p212, %p213
    %p216 = scmp.ne.s32.totalorder %s201, %s215
    %p217 = scmp.eq.s32.totalorder %s23, 0
    %p218 = por %p216, %p217
    %s219 = ssub.s32 %s17, %s24
    %p220 = scmp.eq.s32.totalorder %s219, 0
    %s222 = sadd.s32 %s221, 1
    %s223 = scalar_select %p220, %s221, %s222
    %p226 = pneg %p220
    %p227 = scmp.eq.s32.totalorder %s17, 1
    %p228 = por %p226, %p227
    %p229 = scmp.ne.s32.totalorder %s221, %s224
    %p230 = scmp.eq.s32.totalorder %s17, 0
    %p231 = por %p229, %p230
    %p232 = scmp.ne.s32.totalorder %s221, %s224
    %p233 = scmp.eq.s32.totalorder %s22, 1
    %p234 = por %p232, %p233
    %p235 = scmp.ne.s32.totalorder %s224, %s225
    %p236 = scmp.eq.s32.totalorder %s22, 0
    %p237 = por %p235, %p236
    %p238 = scmp.ne.s32.totalorder %s224, %s225
    %p239 = scmp.eq.s32.totalorder %s23, 1
    %p240 = por %p238, %p239
    %p242 = scmp.ne.s32.totalorder %s225, %s241
    %p243 = scmp.eq.s32.totalorder %s23, 0
    %p244 = por %p242, %p243
    %p245 = scmp.le.s32.totalorder 1, %s17
    %p246 = scmp.lt.s32.totalorder %s17, 3
    %p247 = pnand %p245, %p246
    %p248 = pneg %p247
    // Predicated region
    $region9: #{tpu_custom_call.1} parent=5 // pred_check
      _
    $region10: #{tpu_custom_call.1} parent=5 // pred_check_branch
      %250 = sbr.rel (%p247) target = $region12
    $region11: #{tpu_custom_call.1} parent=5 // pred_region
      %s251 = ssub.s32 %s17, 1
      // Predicated region
      $region13: #{tpu_custom_call.1} parent=11 // pred_check
        %p252 = pneg %p64
      $region14: #{tpu_custom_call.1} parent=11 // pred_check_branch
        %254 = sbr.rel (%p252) target = $region16
      $region15: #{tpu_custom_call.1} parent=11 // pred_region
        _
      $region16: #{tpu_custom_call.1} parent=11 // pred_fallthru
        _
      // Predicated region
      $region17: #{tpu_custom_call.1} parent=11 // pred_check
        %p255 = pneg %p85
      $region18: #{tpu_custom_call.1} parent=11 // pred_check_branch
        %257 = sbr.rel (%p255) target = $region20
      $region19: #{tpu_custom_call.1} parent=11 // pred_region
        _
      $region20: #{tpu_custom_call.1} parent=11 // pred_fallthru
        _
      // Predicated region
      $region21: #{tpu_custom_call.1} parent=11 // pred_check
        %p258 = pneg %p106
      $region22: #{tpu_custom_call.1} parent=11 // pred_check_branch
        %260 = sbr.rel (%p258) target = $region24
      $region23: #{tpu_custom_call.1} parent=11 // pred_region
        _
      $region24: #{tpu_custom_call.1} parent=11 // pred_fallthru
        _
      // Predicated region
      $region25: #{tpu_custom_call.1} parent=11 // pred_check
        %p261 = pneg %p127
      $region26: #{tpu_custom_call.1} parent=11 // pred_check_branch
        %263 = sbr.rel (%p261) target = $region28
      $region27: #{tpu_custom_call.1} parent=11 // pred_region
        _
      $region28: #{tpu_custom_call.1} parent=11 // pred_fallthru
        _
      // Predicated region
      $region29: #{tpu_custom_call.1} parent=11 // pred_check
        %p264 = pneg %p148
      $region30: #{tpu_custom_call.1} parent=11 // pred_check_branch
        %266 = sbr.rel (%p264) target = $region32
      $region31: #{tpu_custom_call.1} parent=11 // pred_region
        _
      $region32: #{tpu_custom_call.1} parent=11 // pred_fallthru
        _
      // Predicated region
      $region33: #{tpu_custom_call.1} parent=11 // pred_check
        %p267 = pneg %p169
      $region34: #{tpu_custom_call.1} parent=11 // pred_check_branch
        %269 = sbr.rel (%p267) target = $region36
      $region35: #{tpu_custom_call.1} parent=11 // pred_region
        _
      $region36: #{tpu_custom_call.1} parent=11 // pred_fallthru
        _
      // Predicated region
      $region37: #{tpu_custom_call.1} parent=11 // pred_check
        %p270 = pneg %p190
      $region38: #{tpu_custom_call.1} parent=11 // pred_check_branch
        %272 = sbr.rel (%p270) target = $region40
      $region39: #{tpu_custom_call.1} parent=11 // pred_region
        _
      $region40: #{tpu_custom_call.1} parent=11 // pred_fallthru
        _
      // Predicated region
      $region41: #{tpu_custom_call.1} parent=11 // pred_check
        %p273 = pneg %p211
      $region42: #{tpu_custom_call.1} parent=11 // pred_check_branch
        %275 = sbr.rel (%p273) target = $region44
      $region43: #{tpu_custom_call.1} parent=11 // pred_region
        _
      $region44: #{tpu_custom_call.1} parent=11 // pred_fallthru
        _
    $region12: #{tpu_custom_call.1} parent=5 // pred_fallthru
      _
    %p276 = scmp.lt.s32.totalorder %s17, 2
    // Predicated region
    $region45: #{tpu_custom_call.1} parent=5 // pred_check
      %p277 = pneg %p276
    $region46: #{tpu_custom_call.1} parent=5 // pred_check_branch
      %279 = sbr.rel (%p277) target = $region48
    $region47: #{tpu_custom_call.1} parent=5 // pred_region
      // Predicated region
      $region49: #{tpu_custom_call.1} parent=47 // pred_check
        %p280 = pneg %p37
      $region50: #{tpu_custom_call.1} parent=47 // pred_check_branch
        %282 = sbr.rel (%p280) target = $region52
      $region51: #{tpu_custom_call.1} parent=47 // pred_region
        %s283 = smul.u32 16, %s17
        %p284 = scmp.lt.s32.totalorder %s283, 31
        %s285 = scalar_select %p284, %s283, 31
        %s286 = smul.addr %s285, 8
        %s287 = scalar_lea.vmem %s0, %s286
        %s288 = smul.u32 16, %s17
      $region52: #{tpu_custom_call.1} parent=47 // pred_fallthru
        _
    $region48: #{tpu_custom_call.1} parent=5 // pred_fallthru
      _
    %p289 = scmp.le.s32.totalorder 1, %s17
    %p290 = scmp.lt.s32.totalorder %s17, 3
    %p291 = pnand %p289, %p290
    %p292 = pneg %p291
    // Predicated region
    $region53: #{tpu_custom_call.1} parent=5 // pred_check
      _
    $region54: #{tpu_custom_call.1} parent=5 // pred_check_branch
      %294 = sbr.rel (%p291) target = $region56
    $region55: #{tpu_custom_call.1} parent=5 // pred_region
      %s295 = ssub.s32 %s17, 1
      %s296 = smul.u32 16, %s22
      %p297 = scmp.lt.s32.totalorder %s296, 31
      %s298 = scalar_select %p297, %s296, 31
      %s299 = smul.addr %s298, 8
      %s300 = scalar_lea.vmem %s0, %s299
      %p301 = pneg %p43
      %p302 = pneg %p40
      %p303 = pneg %p64
      %p304 = pneg %p61
      %p305 = pneg %p85
      %p306 = pneg %p82
      %p307 = pneg %p106
      %p308 = pneg %p103
      %p309 = pneg %p127
      %p310 = pneg %p124
      %p311 = pneg %p148
      %p312 = pneg %p145
      %p313 = pneg %p169
      %p314 = pneg %p166
      %p315 = pneg %p190
      %p316 = pneg %p187
      %p317 = pneg %p211
      %p318 = pneg %p208
      %p319 = pneg %p237
      %p320 = pneg %p234
      %s321 = smul.u32 16, %s22
      %p322 = scmp.lt.s32.totalorder %s321, 31
      %s323 = scalar_select %p322, %s321, 31
      %s324 = smul.addr %s323, 8
      %s325 = scalar_lea.vmem %s9, %s324
      %s326 = smul.u32 16, %s22
      %p327 = scmp.lt.s32.totalorder %s326, 31
      %s328 = scalar_select %p327, %s326, 31
      %s329 = smul.addr %s328, 8
      %s330 = scalar_lea.vmem %s0, %s329
      %s331 = smul.u32 16, %s22
      %s332 = smul.u32 16, %s22
      %p333 = scmp.lt.s32.totalorder %s332, 31
      %s334 = scalar_select %p333, %s332, 31
      %s335 = smul.addr %s334, 8
      %s336 = scalar_lea.vmem %s9, %s335
      %s337 = smul.u32 16, %s22
      %v338 = vld [vmem:[%s330] sm:$0xff]
      %v339 = vld [vmem:[%s330 + $0x8] sm:$0xff]
      %v340 = vld [vmem:[%s330 + $0x10] sm:$0xff]
      %v341 = vld [vmem:[%s330 + $0x18] sm:$0xff]
      %v342 = vld [vmem:[%s330 + $0x20] sm:$0xff]
      %v343 = vld [vmem:[%s330 + $0x28] sm:$0xff]
      %v344 = vld [vmem:[%s330 + $0x30] sm:$0xff]
      %v345 = vld [vmem:[%s330 + $0x38] sm:$0xff]
      %v346 = vld [vmem:[%s330 + $0x40] sm:$0xff]
      %v347 = vld [vmem:[%s330 + $0x48] sm:$0xff]
      %v348 = vld [vmem:[%s330 + $0x50] sm:$0xff]
      %v349 = vld [vmem:[%s330 + $0x58] sm:$0xff]
      %v350 = vld [vmem:[%s330 + $0x60] sm:$0xff]
      %v351 = vld [vmem:[%s330 + $0x68] sm:$0xff]
      %v352 = vld [vmem:[%s330 + $0x70] sm:$0xff]
      %v353 = vld [vmem:[%s330 + $0x78] sm:$0xff]
      %v354 = vld [vmem:[%s1] sm:$0x7]
      %v355 = vld [vmem:[%s2] sm:$0x1]
      %357 = vset.pattern.permute.xlu0 1
      %358 = vperm.xlu0 %357, %v338
      %v359 = vpop.permute.xlu0 %358
      %362 = vset.pattern.permute.xlu0 1
      %363 = vperm.xlu0 %362, %v339
      %v364 = vpop.permute.xlu0 %363
      %367 = vset.pattern.permute.xlu0 1
      %368 = vperm.xlu0 %367, %v340
      %v369 = vpop.permute.xlu0 %368
      %372 = vset.pattern.permute.xlu0 1
      %373 = vperm.xlu0 %372, %v341
      %v374 = vpop.permute.xlu0 %373
      %377 = vset.pattern.permute.xlu0 1
      %378 = vperm.xlu0 %377, %v342
      %v379 = vpop.permute.xlu0 %378
      %382 = vset.pattern.permute.xlu0 1
      %383 = vperm.xlu0 %382, %v343
      %v384 = vpop.permute.xlu0 %383
      %387 = vset.pattern.permute.xlu0 1
      %388 = vperm.xlu0 %387, %v344
      %v389 = vpop.permute.xlu0 %388
      %392 = vset.pattern.permute.xlu0 1
      %393 = vperm.xlu0 %392, %v345
      %v394 = vpop.permute.xlu0 %393
      %397 = vset.pattern.permute.xlu0 1
      %398 = vperm.xlu0 %397, %v346
      %v399 = vpop.permute.xlu0 %398
      %402 = vset.pattern.permute.xlu0 1
      %403 = vperm.xlu0 %402, %v347
      %v404 = vpop.permute.xlu0 %403
      %407 = vset.pattern.permute.xlu0 1
      %408 = vperm.xlu0 %407, %v348
      %v409 = vpop.permute.xlu0 %408
      %412 = vset.pattern.permute.xlu0 1
      %413 = vperm.xlu0 %412, %v349
      %v414 = vpop.permute.xlu0 %413
      %417 = vset.pattern.permute.xlu0 1
      %418 = vperm.xlu0 %417, %v350
      %v419 = vpop.permute.xlu0 %418
      %422 = vset.pattern.permute.xlu0 1
      %423 = vperm.xlu0 %422, %v351
      %v424 = vpop.permute.xlu0 %423
      %427 = vset.pattern.permute.xlu0 1
      %428 = vperm.xlu0 %427, %v352
      %v429 = vpop.permute.xlu0 %428
      %432 = vset.pattern.permute.xlu0 1
      %433 = vperm.xlu0 %432, %v353
      %v434 = vpop.permute.xlu0 %433
      %v436 = vlaneseq
      %v437 = vshrl.u32 %v436, 7
      %v438 = vsub.s32 0, %v437
      %v439 = vrot.slane %v354, %v438
      %v440 = vmul.f32 %v359, %v439
      %v441 = vmul.f32 %v364, %v439
      %v442 = vmul.f32 %v369, %v439
      %v443 = vmul.f32 %v374, %v439
      %v444 = vmul.f32 %v379, %v439
      %v445 = vmul.f32 %v384, %v439
      %v446 = vmul.f32 %v389, %v439
      %v447 = vmul.f32 %v394, %v439
      %v448 = vmul.f32 %v399, %v439
      %v449 = vmul.f32 %v404, %v439
      %v450 = vmul.f32 %v409, %v439
      %v451 = vmul.f32 %v414, %v439
      %v452 = vmul.f32 %v419, %v439
      %v453 = vmul.f32 %v424, %v439
      %v454 = vmul.f32 %v429, %v439
      %v455 = vmul.f32 %v434, %v439
      %v457 = vlaneseq
      %v458 = vshrl.u32 %v457, 7
      %v459 = vsub.s32 0, %v458
      %v460 = vrot.slane %v355, %v459
      %v462 = vadd.f32 %v440, %v460
      %v463 = vadd.f32 %v441, %v460
      %v464 = vadd.f32 %v442, %v460
      %v465 = vadd.f32 %v443, %v460
      %v466 = vadd.f32 %v444, %v460
      %v467 = vadd.f32 %v445, %v460
      %v468 = vadd.f32 %v446, %v460
      %v469 = vadd.f32 %v447, %v460
      %v470 = vadd.f32 %v448, %v460
      %v471 = vadd.f32 %v449, %v460
      %v472 = vadd.f32 %v450, %v460
      %v473 = vadd.f32 %v451, %v460
      %v474 = vadd.f32 %v452, %v460
      %v475 = vadd.f32 %v453, %v460
      %v476 = vadd.f32 %v454, %v460
      %v477 = vadd.f32 %v455, %v460
      %478 = vset.pattern.permute.xlu0 2
      %479 = vperm.xlu0 %478, %v338
      %v480 = vpop.permute.xlu0 %479
      %482 = vset.pattern.permute.xlu0 2
      %483 = vperm.xlu0 %482, %v339
      %v484 = vpop.permute.xlu0 %483
      %486 = vset.pattern.permute.xlu0 2
      %487 = vperm.xlu0 %486, %v340
      %v488 = vpop.permute.xlu0 %487
      %490 = vset.pattern.permute.xlu0 2
      %491 = vperm.xlu0 %490, %v341
      %v492 = vpop.permute.xlu0 %491
      %494 = vset.pattern.permute.xlu0 2
      %495 = vperm.xlu0 %494, %v342
      %v496 = vpop.permute.xlu0 %495
      %498 = vset.pattern.permute.xlu0 2
      %499 = vperm.xlu0 %498, %v343
      %v500 = vpop.permute.xlu0 %499
      %502 = vset.pattern.permute.xlu0 2
      %503 = vperm.xlu0 %502, %v344
      %v504 = vpop.permute.xlu0 %503
      %506 = vset.pattern.permute.xlu0 2
      %507 = vperm.xlu0 %506, %v345
      %v508 = vpop.permute.xlu0 %507
      %510 = vset.pattern.permute.xlu0 2
      %511 = vperm.xlu0 %510, %v346
      %v512 = vpop.permute.xlu0 %511
      %514 = vset.pattern.permute.xlu0 2
      %515 = vperm.xlu0 %514, %v347
      %v516 = vpop.permute.xlu0 %515
      %518 = vset.pattern.permute.xlu0 2
      %519 = vperm.xlu0 %518, %v348
      %v520 = vpop.permute.xlu0 %519
      %522 = vset.pattern.permute.xlu0 2
      %523 = vperm.xlu0 %522, %v349
      %v524 = vpop.permute.xlu0 %523
      %526 = vset.pattern.permute.xlu0 2
      %527 = vperm.xlu0 %526, %v350
      %v528 = vpop.permute.xlu0 %527
      %530 = vset.pattern.permute.xlu0 2
      %531 = vperm.xlu0 %530, %v351
      %v532 = vpop.permute.xlu0 %531
      %534 = vset.pattern.permute.xlu0 2
      %535 = vperm.xlu0 %534, %v352
      %v536 = vpop.permute.xlu0 %535
      %538 = vset.pattern.permute.xlu0 2
      %539 = vperm.xlu0 %538, %v353
      %v540 = vpop.permute.xlu0 %539
      %v542 = vlaneseq
      %v543 = vshrl.u32 %v542, 7
      %v544 = vsub.s32 1, %v543
      %v545 = vrot.slane %v354, %v544
      %v546 = vmul.f32 %v480, %v545
      %v547 = vmul.f32 %v484, %v545
      %v548 = vmul.f32 %v488, %v545
      %v549 = vmul.f32 %v492, %v545
      %v550 = vmul.f32 %v496, %v545
      %v551 = vmul.f32 %v500, %v545
      %v552 = vmul.f32 %v504, %v545
      %v553 = vmul.f32 %v508, %v545
      %v554 = vmul.f32 %v512, %v545
      %v555 = vmul.f32 %v516, %v545
      %v556 = vmul.f32 %v520, %v545
      %v557 = vmul.f32 %v524, %v545
      %v558 = vmul.f32 %v528, %v545
      %v559 = vmul.f32 %v532, %v545
      %v560 = vmul.f32 %v536, %v545
      %v561 = vmul.f32 %v540, %v545
      %v562 = vadd.f32 %v462, %v546
      %v563 = vadd.f32 %v463, %v547
      %v564 = vadd.f32 %v464, %v548
      %v565 = vadd.f32 %v465, %v549
      %v566 = vadd.f32 %v466, %v550
      %v567 = vadd.f32 %v467, %v551
      %v568 = vadd.f32 %v468, %v552
      %v569 = vadd.f32 %v469, %v553
      %v570 = vadd.f32 %v470, %v554
      %v571 = vadd.f32 %v471, %v555
      %v572 = vadd.f32 %v472, %v556
      %v573 = vadd.f32 %v473, %v557
      %v574 = vadd.f32 %v474, %v558
      %v575 = vadd.f32 %v475, %v559
      %v576 = vadd.f32 %v476, %v560
      %v577 = vadd.f32 %v477, %v561
      %578 = vset.pattern.permute.xlu0 3
      %579 = vperm.xlu0 %578, %v338
      %v580 = vpop.permute.xlu0 %579
      %582 = vset.pattern.permute.xlu0 3
      %583 = vperm.xlu0 %582, %v339
      %v584 = vpop.permute.xlu0 %583
      %586 = vset.pattern.permute.xlu0 3
      %587 = vperm.xlu0 %586, %v340
      %v588 = vpop.permute.xlu0 %587
      %590 = vset.pattern.permute.xlu0 3
      %591 = vperm.xlu0 %590, %v341
      %v592 = vpop.permute.xlu0 %591
      %594 = vset.pattern.permute.xlu0 3
      %595 = vperm.xlu0 %594, %v342
      %v596 = vpop.permute.xlu0 %595
      %598 = vset.pattern.permute.xlu0 3
      %599 = vperm.xlu0 %598, %v343
      %v600 = vpop.permute.xlu0 %599
      %602 = vset.pattern.permute.xlu0 3
      %603 = vperm.xlu0 %602, %v344
      %v604 = vpop.permute.xlu0 %603
      %606 = vset.pattern.permute.xlu0 3
      %607 = vperm.xlu0 %606, %v345
      %v608 = vpop.permute.xlu0 %607
      %610 = vset.pattern.permute.xlu0 3
      %611 = vperm.xlu0 %610, %v346
      %v612 = vpop.permute.xlu0 %611
      %614 = vset.pattern.permute.xlu0 3
      %615 = vperm.xlu0 %614, %v347
      %v616 = vpop.permute.xlu0 %615
      %618 = vset.pattern.permute.xlu0 3
      %619 = vperm.xlu0 %618, %v348
      %v620 = vpop.permute.xlu0 %619
      %622 = vset.pattern.permute.xlu0 3
      %623 = vperm.xlu0 %622, %v349
      %v624 = vpop.permute.xlu0 %623
      %626 = vset.pattern.permute.xlu0 3
      %627 = vperm.xlu0 %626, %v350
      %v628 = vpop.permute.xlu0 %627
      %630 = vset.pattern.permute.xlu0 3
      %631 = vperm.xlu0 %630, %v351
      %v632 = vpop.permute.xlu0 %631
      %634 = vset.pattern.permute.xlu0 3
      %635 = vperm.xlu0 %634, %v352
      %v636 = vpop.permute.xlu0 %635
      %638 = vset.pattern.permute.xlu0 3
      %639 = vperm.xlu0 %638, %v353
      %v640 = vpop.permute.xlu0 %639
      %v642 = vlaneseq
      %v643 = vshrl.u32 %v642, 7
      %v644 = vsub.s32 2, %v643
      %v645 = vrot.slane %v354, %v644
      %v646 = vmul.f32 %v580, %v645
      %v647 = vmul.f32 %v584, %v645
      %v648 = vmul.f32 %v588, %v645
      %v649 = vmul.f32 %v592, %v645
      %v650 = vmul.f32 %v596, %v645
      %v651 = vmul.f32 %v600, %v645
      %v652 = vmul.f32 %v604, %v645
      %v653 = vmul.f32 %v608, %v645
      %v654 = vmul.f32 %v612, %v645
      %v655 = vmul.f32 %v616, %v645
      %v656 = vmul.f32 %v620, %v645
      %v657 = vmul.f32 %v624, %v645
      %v658 = vmul.f32 %v628, %v645
      %v659 = vmul.f32 %v632, %v645
      %v660 = vmul.f32 %v636, %v645
      %v661 = vmul.f32 %v640, %v645
      %v662 = vadd.f32 %v562, %v646
      %v663 = vadd.f32 %v563, %v647
      %v664 = vadd.f32 %v564, %v648
      %v665 = vadd.f32 %v565, %v649
      %v666 = vadd.f32 %v566, %v650
      %v667 = vadd.f32 %v567, %v651
      %v668 = vadd.f32 %v568, %v652
      %v669 = vadd.f32 %v569, %v653
      %v670 = vadd.f32 %v570, %v654
      %v671 = vadd.f32 %v571, %v655
      %v672 = vadd.f32 %v572, %v656
      %v673 = vadd.f32 %v573, %v657
      %v674 = vadd.f32 %v574, %v658
      %v675 = vadd.f32 %v575, %v659
      %v676 = vadd.f32 %v576, %v660
      %v677 = vadd.f32 %v577, %v661
      %v678 = vmax.f32 %v662, 0.0
      %v679 = vmax.f32 %v663, 0.0
      %v680 = vmax.f32 %v664, 0.0
      %v681 = vmax.f32 %v665, 0.0
      %v682 = vmax.f32 %v666, 0.0
      %v683 = vmax.f32 %v667, 0.0
      %v684 = vmax.f32 %v668, 0.0
      %v685 = vmax.f32 %v669, 0.0
      %v686 = vmax.f32 %v670, 0.0
      %v687 = vmax.f32 %v671, 0.0
      %v688 = vmax.f32 %v672, 0.0
      %v689 = vmax.f32 %v673, 0.0
      %v690 = vmax.f32 %v674, 0.0
      %v691 = vmax.f32 %v675, 0.0
      %v692 = vmax.f32 %v676, 0.0
      %v693 = vmax.f32 %v677, 0.0
      %v694 = vld [vmem:[%s3] sm:$0xff]
      %v695 = vld [vmem:[%s3 + $0x8] sm:$0xff]
      %v696 = vld [vmem:[%s3 + $0x10] sm:$0xff]
      %v697 = vld [vmem:[%s3 + $0x18] sm:$0xff]
      %v698 = vld [vmem:[%s4] sm:$0x1]
      %700 = vset.pattern.permute.xlu0 0
      %701 = vperm.xlu0 %700, %v678
      %v702 = vpop.permute.xlu0 %701
      %705 = vset.pattern.permute.xlu0 0
      %706 = vperm.xlu0 %705, %v679
      %v707 = vpop.permute.xlu0 %706
      %710 = vset.pattern.permute.xlu0 0
      %711 = vperm.xlu0 %710, %v680
      %v712 = vpop.permute.xlu0 %711
      %715 = vset.pattern.permute.xlu0 0
      %716 = vperm.xlu0 %715, %v681
      %v717 = vpop.permute.xlu0 %716
      %720 = vset.pattern.permute.xlu0 0
      %721 = vperm.xlu0 %720, %v682
      %v722 = vpop.permute.xlu0 %721
      %725 = vset.pattern.permute.xlu0 0
      %726 = vperm.xlu0 %725, %v683
      %v727 = vpop.permute.xlu0 %726
      %730 = vset.pattern.permute.xlu0 0
      %731 = vperm.xlu0 %730, %v684
      %v732 = vpop.permute.xlu0 %731
      %735 = vset.pattern.permute.xlu0 0
      %736 = vperm.xlu0 %735, %v685
      %v737 = vpop.permute.xlu0 %736
      %740 = vset.pattern.permute.xlu0 0
      %741 = vperm.xlu0 %740, %v686
      %v742 = vpop.permute.xlu0 %741
      %745 = vset.pattern.permute.xlu0 0
      %746 = vperm.xlu0 %745, %v687
      %v747 = vpop.permute.xlu0 %746
      %750 = vset.pattern.permute.xlu0 0
      %751 = vperm.xlu0 %750, %v688
      %v752 = vpop.permute.xlu0 %751
      %755 = vset.pattern.permute.xlu0 0
      %756 = vperm.xlu0 %755, %v689
      %v757 = vpop.permute.xlu0 %756
      %760 = vset.pattern.permute.xlu0 0
      %761 = vperm.xlu0 %760, %v690
      %v762 = vpop.permute.xlu0 %761
      %765 = vset.pattern.permute.xlu0 0
      %766 = vperm.xlu0 %765, %v691
      %v767 = vpop.permute.xlu0 %766
      %770 = vset.pattern.permute.xlu0 0
      %771 = vperm.xlu0 %770, %v692
      %v772 = vpop.permute.xlu0 %771
      %775 = vset.pattern.permute.xlu0 0
      %776 = vperm.xlu0 %775, %v693
      %v777 = vpop.permute.xlu0 %776
      %v779 = vlaneseq
      %v780 = vshrl.u32 %v779, 7
      %v781 = vsub.s32 0, %v780
      %v782 = vrot.slane %v694, %v781
      %v783 = vmul.f32 %v702, %v782
      %v784 = vmul.f32 %v707, %v782
      %v785 = vmul.f32 %v712, %v782
      %v786 = vmul.f32 %v717, %v782
      %v787 = vmul.f32 %v722, %v782
      %v788 = vmul.f32 %v727, %v782
      %v789 = vmul.f32 %v732, %v782
      %v790 = vmul.f32 %v737, %v782
      %v791 = vmul.f32 %v742, %v782
      %v792 = vmul.f32 %v747, %v782
      %v793 = vmul.f32 %v752, %v782
      %v794 = vmul.f32 %v757, %v782
      %v795 = vmul.f32 %v762, %v782
      %v796 = vmul.f32 %v767, %v782
      %v797 = vmul.f32 %v772, %v782
      %v798 = vmul.f32 %v777, %v782
      %v800 = vlaneseq
      %v801 = vshrl.u32 %v800, 7
      %v802 = vsub.s32 0, %v801
      %v803 = vrot.slane %v698, %v802
      %v805 = vadd.f32 %v783, %v803
      %v806 = vadd.f32 %v784, %v803
      %v807 = vadd.f32 %v785, %v803
      %v808 = vadd.f32 %v786, %v803
      %v809 = vadd.f32 %v787, %v803
      %v810 = vadd.f32 %v788, %v803
      %v811 = vadd.f32 %v789, %v803
      %v812 = vadd.f32 %v790, %v803
      %v813 = vadd.f32 %v791, %v803
      %v814 = vadd.f32 %v792, %v803
      %v815 = vadd.f32 %v793, %v803
      %v816 = vadd.f32 %v794, %v803
      %v817 = vadd.f32 %v795, %v803
      %v818 = vadd.f32 %v796, %v803
      %v819 = vadd.f32 %v797, %v803
      %v820 = vadd.f32 %v798, %v803
      %821 = vset.pattern.permute.xlu0 1
      %822 = vperm.xlu0 %821, %v678
      %v823 = vpop.permute.xlu0 %822
      %825 = vset.pattern.permute.xlu0 1
      %826 = vperm.xlu0 %825, %v679
      %v827 = vpop.permute.xlu0 %826
      %829 = vset.pattern.permute.xlu0 1
      %830 = vperm.xlu0 %829, %v680
      %v831 = vpop.permute.xlu0 %830
      %833 = vset.pattern.permute.xlu0 1
      %834 = vperm.xlu0 %833, %v681
      %v835 = vpop.permute.xlu0 %834
      %837 = vset.pattern.permute.xlu0 1
      %838 = vperm.xlu0 %837, %v682
      %v839 = vpop.permute.xlu0 %838
      %841 = vset.pattern.permute.xlu0 1
      %842 = vperm.xlu0 %841, %v683
      %v843 = vpop.permute.xlu0 %842
      %845 = vset.pattern.permute.xlu0 1
      %846 = vperm.xlu0 %845, %v684
      %v847 = vpop.permute.xlu0 %846
      %849 = vset.pattern.permute.xlu0 1
      %850 = vperm.xlu0 %849, %v685
      %v851 = vpop.permute.xlu0 %850
      %853 = vset.pattern.permute.xlu0 1
      %854 = vperm.xlu0 %853, %v686
      %v855 = vpop.permute.xlu0 %854
      %857 = vset.pattern.permute.xlu0 1
      %858 = vperm.xlu0 %857, %v687
      %v859 = vpop.permute.xlu0 %858
      %861 = vset.pattern.permute.xlu0 1
      %862 = vperm.xlu0 %861, %v688
      %v863 = vpop.permute.xlu0 %862
      %865 = vset.pattern.permute.xlu0 1
      %866 = vperm.xlu0 %865, %v689
      %v867 = vpop.permute.xlu0 %866
      %869 = vset.pattern.permute.xlu0 1
      %870 = vperm.xlu0 %869, %v690
      %v871 = vpop.permute.xlu0 %870
      %873 = vset.pattern.permute.xlu0 1
      %874 = vperm.xlu0 %873, %v691
      %v875 = vpop.permute.xlu0 %874
      %877 = vset.pattern.permute.xlu0 1
      %878 = vperm.xlu0 %877, %v692
      %v879 = vpop.permute.xlu0 %878
      %881 = vset.pattern.permute.xlu0 1
      %882 = vperm.xlu0 %881, %v693
      %v883 = vpop.permute.xlu0 %882
      %v885 = vlaneseq
      %v886 = vshrl.u32 %v885, 7
      %v887 = vsub.s32 1, %v886
      %v888 = vrot.slane %v694, %v887
      %v889 = vmul.f32 %v823, %v888
      %v890 = vmul.f32 %v827, %v888
      %v891 = vmul.f32 %v831, %v888
      %v892 = vmul.f32 %v835, %v888
      %v893 = vmul.f32 %v839, %v888
      %v894 = vmul.f32 %v843, %v888
      %v895 = vmul.f32 %v847, %v888
      %v896 = vmul.f32 %v851, %v888
      %v897 = vmul.f32 %v855, %v888
      %v898 = vmul.f32 %v859, %v888
      %v899 = vmul.f32 %v863, %v888
      %v900 = vmul.f32 %v867, %v888
      %v901 = vmul.f32 %v871, %v888
      %v902 = vmul.f32 %v875, %v888
      %v903 = vmul.f32 %v879, %v888
      %v904 = vmul.f32 %v883, %v888
      %v905 = vadd.f32 %v805, %v889
      %v906 = vadd.f32 %v806, %v890
      %v907 = vadd.f32 %v807, %v891
      %v908 = vadd.f32 %v808, %v892
      %v909 = vadd.f32 %v809, %v893
      %v910 = vadd.f32 %v810, %v894
      %v911 = vadd.f32 %v811, %v895
      %v912 = vadd.f32 %v812, %v896
      %v913 = vadd.f32 %v813, %v897
      %v914 = vadd.f32 %v814, %v898
      %v915 = vadd.f32 %v815, %v899
      %v916 = vadd.f32 %v816, %v900
      %v917 = vadd.f32 %v817, %v901
      %v918 = vadd.f32 %v818, %v902
      %v919 = vadd.f32 %v819, %v903
      %v920 = vadd.f32 %v820, %v904
      %921 = vset.pattern.permute.xlu0 2
      %922 = vperm.xlu0 %921, %v678
      %v923 = vpop.permute.xlu0 %922
      %925 = vset.pattern.permute.xlu0 2
      %926 = vperm.xlu0 %925, %v679
      %v927 = vpop.permute.xlu0 %926
      %929 = vset.pattern.permute.xlu0 2
      %930 = vperm.xlu0 %929, %v680
      %v931 = vpop.permute.xlu0 %930
      %933 = vset.pattern.permute.xlu0 2
      %934 = vperm.xlu0 %933, %v681
      %v935 = vpop.permute.xlu0 %934
      %937 = vset.pattern.permute.xlu0 2
      %938 = vperm.xlu0 %937, %v682
      %v939 = vpop.permute.xlu0 %938
      %941 = vset.pattern.permute.xlu0 2
      %942 = vperm.xlu0 %941, %v683
      %v943 = vpop.permute.xlu0 %942
      %945 = vset.pattern.permute.xlu0 2
      %946 = vperm.xlu0 %945, %v684
      %v947 = vpop.permute.xlu0 %946
      %949 = vset.pattern.permute.xlu0 2
      %950 = vperm.xlu0 %949, %v685
      %v951 = vpop.permute.xlu0 %950
      %953 = vset.pattern.permute.xlu0 2
      %954 = vperm.xlu0 %953, %v686
      %v955 = vpop.permute.xlu0 %954
      %957 = vset.pattern.permute.xlu0 2
      %958 = vperm.xlu0 %957, %v687
      %v959 = vpop.permute.xlu0 %958
      %961 = vset.pattern.permute.xlu0 2
      %962 = vperm.xlu0 %961, %v688
      %v963 = vpop.permute.xlu0 %962
      %965 = vset.pattern.permute.xlu0 2
      %966 = vperm.xlu0 %965, %v689
      %v967 = vpop.permute.xlu0 %966
      %969 = vset.pattern.permute.xlu0 2
      %970 = vperm.xlu0 %969, %v690
      %v971 = vpop.permute.xlu0 %970
      %973 = vset.pattern.permute.xlu0 2
      %974 = vperm.xlu0 %973, %v691
      %v975 = vpop.permute.xlu0 %974
      %977 = vset.pattern.permute.xlu0 2
      %978 = vperm.xlu0 %977, %v692
      %v979 = vpop.permute.xlu0 %978
      %981 = vset.pattern.permute.xlu0 2
      %982 = vperm.xlu0 %981, %v693
      %v983 = vpop.permute.xlu0 %982
      %v985 = vlaneseq
      %v986 = vshrl.u32 %v985, 7
      %v987 = vsub.s32 2, %v986
      %v988 = vrot.slane %v694, %v987
      %v989 = vmul.f32 %v923, %v988
      %v990 = vmul.f32 %v927, %v988
      %v991 = vmul.f32 %v931, %v988
      %v992 = vmul.f32 %v935, %v988
      %v993 = vmul.f32 %v939, %v988
      %v994 = vmul.f32 %v943, %v988
      %v995 = vmul.f32 %v947, %v988
      %v996 = vmul.f32 %v951, %v988
      %v997 = vmul.f32 %v955, %v988
      %v998 = vmul.f32 %v959, %v988
      %v999 = vmul.f32 %v963, %v988
      %v1000 = vmul.f32 %v967, %v988
      %v1001 = vmul.f32 %v971, %v988
      %v1002 = vmul.f32 %v975, %v988
      %v1003 = vmul.f32 %v979, %v988
      %v1004 = vmul.f32 %v983, %v988
      %v1005 = vadd.f32 %v905, %v989
      %v1006 = vadd.f32 %v906, %v990
      %v1007 = vadd.f32 %v907, %v991
      %v1008 = vadd.f32 %v908, %v992
      %v1009 = vadd.f32 %v909, %v993
      %v1010 = vadd.f32 %v910, %v994
      %v1011 = vadd.f32 %v911, %v995
      %v1012 = vadd.f32 %v912, %v996
      %v1013 = vadd.f32 %v913, %v997
      %v1014 = vadd.f32 %v914, %v998
      %v1015 = vadd.f32 %v915, %v999
      %v1016 = vadd.f32 %v916, %v1000
      %v1017 = vadd.f32 %v917, %v1001
      %v1018 = vadd.f32 %v918, %v1002
      %v1019 = vadd.f32 %v919, %v1003
      %v1020 = vadd.f32 %v920, %v1004
      %1021 = vset.pattern.permute.xlu0 3
      %1022 = vperm.xlu0 %1021, %v678
      %v1023 = vpop.permute.xlu0 %1022
      %1025 = vset.pattern.permute.xlu0 3
      %1026 = vperm.xlu0 %1025, %v679
      %v1027 = vpop.permute.xlu0 %1026
      %1029 = vset.pattern.permute.xlu0 3
      %1030 = vperm.xlu0 %1029, %v680
      %v1031 = vpop.permute.xlu0 %1030
      %1033 = vset.pattern.permute.xlu0 3
      %1034 = vperm.xlu0 %1033, %v681
      %v1035 = vpop.permute.xlu0 %1034
      %1037 = vset.pattern.permute.xlu0 3
      %1038 = vperm.xlu0 %1037, %v682
      %v1039 = vpop.permute.xlu0 %1038
      %1041 = vset.pattern.permute.xlu0 3
      %1042 = vperm.xlu0 %1041, %v683
      %v1043 = vpop.permute.xlu0 %1042
      %1045 = vset.pattern.permute.xlu0 3
      %1046 = vperm.xlu0 %1045, %v684
      %v1047 = vpop.permute.xlu0 %1046
      %1049 = vset.pattern.permute.xlu0 3
      %1050 = vperm.xlu0 %1049, %v685
      %v1051 = vpop.permute.xlu0 %1050
      %1053 = vset.pattern.permute.xlu0 3
      %1054 = vperm.xlu0 %1053, %v686
      %v1055 = vpop.permute.xlu0 %1054
      %1057 = vset.pattern.permute.xlu0 3
      %1058 = vperm.xlu0 %1057, %v687
      %v1059 = vpop.permute.xlu0 %1058
      %1061 = vset.pattern.permute.xlu0 3
      %1062 = vperm.xlu0 %1061, %v688
      %v1063 = vpop.permute.xlu0 %1062
      %1065 = vset.pattern.permute.xlu0 3
      %1066 = vperm.xlu0 %1065, %v689
      %v1067 = vpop.permute.xlu0 %1066
      %1069 = vset.pattern.permute.xlu0 3
      %1070 = vperm.xlu0 %1069, %v690
      %v1071 = vpop.permute.xlu0 %1070
      %1073 = vset.pattern.permute.xlu0 3
      %1074 = vperm.xlu0 %1073, %v691
      %v1075 = vpop.permute.xlu0 %1074
      %1077 = vset.pattern.permute.xlu0 3
      %1078 = vperm.xlu0 %1077, %v692
      %v1079 = vpop.permute.xlu0 %1078
      %1081 = vset.pattern.permute.xlu0 3
      %1082 = vperm.xlu0 %1081, %v693
      %v1083 = vpop.permute.xlu0 %1082
      %v1085 = vlaneseq
      %v1086 = vshrl.u32 %v1085, 7
      %v1087 = vsub.s32 3, %v1086
      %v1088 = vrot.slane %v694, %v1087
      %v1089 = vmul.f32 %v1023, %v1088
      %v1090 = vmul.f32 %v1027, %v1088
      %v1091 = vmul.f32 %v1031, %v1088
      %v1092 = vmul.f32 %v1035, %v1088
      %v1093 = vmul.f32 %v1039, %v1088
      %v1094 = vmul.f32 %v1043, %v1088
      %v1095 = vmul.f32 %v1047, %v1088
      %v1096 = vmul.f32 %v1051, %v1088
      %v1097 = vmul.f32 %v1055, %v1088
      %v1098 = vmul.f32 %v1059, %v1088
      %v1099 = vmul.f32 %v1063, %v1088
      %v1100 = vmul.f32 %v1067, %v1088
      %v1101 = vmul.f32 %v1071, %v1088
      %v1102 = vmul.f32 %v1075, %v1088
      %v1103 = vmul.f32 %v1079, %v1088
      %v1104 = vmul.f32 %v1083, %v1088
      %v1105 = vadd.f32 %v1005, %v1089
      %v1106 = vadd.f32 %v1006, %v1090
      %v1107 = vadd.f32 %v1007, %v1091
      %v1108 = vadd.f32 %v1008, %v1092
      %v1109 = vadd.f32 %v1009, %v1093
      %v1110 = vadd.f32 %v1010, %v1094
      %v1111 = vadd.f32 %v1011, %v1095
      %v1112 = vadd.f32 %v1012, %v1096
      %v1113 = vadd.f32 %v1013, %v1097
      %v1114 = vadd.f32 %v1014, %v1098
      %v1115 = vadd.f32 %v1015, %v1099
      %v1116 = vadd.f32 %v1016, %v1100
      %v1117 = vadd.f32 %v1017, %v1101
      %v1118 = vadd.f32 %v1018, %v1102
      %v1119 = vadd.f32 %v1019, %v1103
      %v1120 = vadd.f32 %v1020, %v1104
      %1121 = vset.pattern.permute.xlu0 4
      %1122 = vperm.xlu0 %1121, %v678
      %v1123 = vpop.permute.xlu0 %1122
      %1125 = vset.pattern.permute.xlu0 4
      %1126 = vperm.xlu0 %1125, %v679
      %v1127 = vpop.permute.xlu0 %1126
      %1129 = vset.pattern.permute.xlu0 4
      %1130 = vperm.xlu0 %1129, %v680
      %v1131 = vpop.permute.xlu0 %1130
      %1133 = vset.pattern.permute.xlu0 4
      %1134 = vperm.xlu0 %1133, %v681
      %v1135 = vpop.permute.xlu0 %1134
      %1137 = vset.pattern.permute.xlu0 4
      %1138 = vperm.xlu0 %1137, %v682
      %v1139 = vpop.permute.xlu0 %1138
      %1141 = vset.pattern.permute.xlu0 4
      %1142 = vperm.xlu0 %1141, %v683
      %v1143 = vpop.permute.xlu0 %1142
      %1145 = vset.pattern.permute.xlu0 4
      %1146 = vperm.xlu0 %1145, %v684
      %v1147 = vpop.permute.xlu0 %1146
      %1149 = vset.pattern.permute.xlu0 4
      %1150 = vperm.xlu0 %1149, %v685
      %v1151 = vpop.permute.xlu0 %1150
      %1153 = vset.pattern.permute.xlu0 4
      %1154 = vperm.xlu0 %1153, %v686
      %v1155 = vpop.permute.xlu0 %1154
      %1157 = vset.pattern.permute.xlu0 4
      %1158 = vperm.xlu0 %1157, %v687
      %v1159 = vpop.permute.xlu0 %1158
      %1161 = vset.pattern.permute.xlu0 4
      %1162 = vperm.xlu0 %1161, %v688
      %v1163 = vpop.permute.xlu0 %1162
      %1165 = vset.pattern.permute.xlu0 4
      %1166 = vperm.xlu0 %1165, %v689
      %v1167 = vpop.permute.xlu0 %1166
      %1169 = vset.pattern.permute.xlu0 4
      %1170 = vperm.xlu0 %1169, %v690
      %v1171 = vpop.permute.xlu0 %1170
      %1173 = vset.pattern.permute.xlu0 4
      %1174 = vperm.xlu0 %1173, %v691
      %v1175 = vpop.permute.xlu0 %1174
      %1177 = vset.pattern.permute.xlu0 4
      %1178 = vperm.xlu0 %1177, %v692
      %v1179 = vpop.permute.xlu0 %1178
      %1181 = vset.pattern.permute.xlu0 4
      %1182 = vperm.xlu0 %1181, %v693
      %v1183 = vpop.permute.xlu0 %1182
      %v1185 = vlaneseq
      %v1186 = vshrl.u32 %v1185, 7
      %v1187 = vsub.s32 4, %v1186
      %v1188 = vrot.slane %v694, %v1187
      %v1189 = vmul.f32 %v1123, %v1188
      %v1190 = vmul.f32 %v1127, %v1188
      %v1191 = vmul.f32 %v1131, %v1188
      %v1192 = vmul.f32 %v1135, %v1188
      %v1193 = vmul.f32 %v1139, %v1188
      %v1194 = vmul.f32 %v1143, %v1188
      %v1195 = vmul.f32 %v1147, %v1188
      %v1196 = vmul.f32 %v1151, %v1188
      %v1197 = vmul.f32 %v1155, %v1188
      %v1198 = vmul.f32 %v1159, %v1188
      %v1199 = vmul.f32 %v1163, %v1188
      %v1200 = vmul.f32 %v1167, %v1188
      %v1201 = vmul.f32 %v1171, %v1188
      %v1202 = vmul.f32 %v1175, %v1188
      %v1203 = vmul.f32 %v1179, %v1188
      %v1204 = vmul.f32 %v1183, %v1188
      %v1205 = vadd.f32 %v1105, %v1189
      %v1206 = vadd.f32 %v1106, %v1190
      %v1207 = vadd.f32 %v1107, %v1191
      %v1208 = vadd.f32 %v1108, %v1192
      %v1209 = vadd.f32 %v1109, %v1193
      %v1210 = vadd.f32 %v1110, %v1194
      %v1211 = vadd.f32 %v1111, %v1195
      %v1212 = vadd.f32 %v1112, %v1196
      %v1213 = vadd.f32 %v1113, %v1197
      %v1214 = vadd.f32 %v1114, %v1198
      %v1215 = vadd.f32 %v1115, %v1199
      %v1216 = vadd.f32 %v1116, %v1200
      %v1217 = vadd.f32 %v1117, %v1201
      %v1218 = vadd.f32 %v1118, %v1202
      %v1219 = vadd.f32 %v1119, %v1203
      %v1220 = vadd.f32 %v1120, %v1204
      %1221 = vset.pattern.permute.xlu0 5
      %1222 = vperm.xlu0 %1221, %v678
      %v1223 = vpop.permute.xlu0 %1222
      %1225 = vset.pattern.permute.xlu0 5
      %1226 = vperm.xlu0 %1225, %v679
      %v1227 = vpop.permute.xlu0 %1226
      %1229 = vset.pattern.permute.xlu0 5
      %1230 = vperm.xlu0 %1229, %v680
      %v1231 = vpop.permute.xlu0 %1230
      %1233 = vset.pattern.permute.xlu0 5
      %1234 = vperm.xlu0 %1233, %v681
      %v1235 = vpop.permute.xlu0 %1234
      %1237 = vset.pattern.permute.xlu0 5
      %1238 = vperm.xlu0 %1237, %v682
      %v1239 = vpop.permute.xlu0 %1238
      %1241 = vset.pattern.permute.xlu0 5
      %1242 = vperm.xlu0 %1241, %v683
      %v1243 = vpop.permute.xlu0 %1242
      %1245 = vset.pattern.permute.xlu0 5
      %1246 = vperm.xlu0 %1245, %v684
      %v1247 = vpop.permute.xlu0 %1246
      %1249 = vset.pattern.permute.xlu0 5
      %1250 = vperm.xlu0 %1249, %v685
      %v1251 = vpop.permute.xlu0 %1250
      %1253 = vset.pattern.permute.xlu0 5
      %1254 = vperm.xlu0 %1253, %v686
      %v1255 = vpop.permute.xlu0 %1254
      %1257 = vset.pattern.permute.xlu0 5
      %1258 = vperm.xlu0 %1257, %v687
      %v1259 = vpop.permute.xlu0 %1258
      %1261 = vset.pattern.permute.xlu0 5
      %1262 = vperm.xlu0 %1261, %v688
      %v1263 = vpop.permute.xlu0 %1262
      %1265 = vset.pattern.permute.xlu0 5
      %1266 = vperm.xlu0 %1265, %v689
      %v1267 = vpop.permute.xlu0 %1266
      %1269 = vset.pattern.permute.xlu0 5
      %1270 = vperm.xlu0 %1269, %v690
      %v1271 = vpop.permute.xlu0 %1270
      %1273 = vset.pattern.permute.xlu0 5
      %1274 = vperm.xlu0 %1273, %v691
      %v1275 = vpop.permute.xlu0 %1274
      %1277 = vset.pattern.permute.xlu0 5
      %1278 = vperm.xlu0 %1277, %v692
      %v1279 = vpop.permute.xlu0 %1278
      %1281 = vset.pattern.permute.xlu0 5
      %1282 = vperm.xlu0 %1281, %v693
      %v1283 = vpop.permute.xlu0 %1282
      %v1285 = vlaneseq
      %v1286 = vshrl.u32 %v1285, 7
      %v1287 = vsub.s32 5, %v1286
      %v1288 = vrot.slane %v694, %v1287
      %v1289 = vmul.f32 %v1223, %v1288
      %v1290 = vmul.f32 %v1227, %v1288
      %v1291 = vmul.f32 %v1231, %v1288
      %v1292 = vmul.f32 %v1235, %v1288
      %v1293 = vmul.f32 %v1239, %v1288
      %v1294 = vmul.f32 %v1243, %v1288
      %v1295 = vmul.f32 %v1247, %v1288
      %v1296 = vmul.f32 %v1251, %v1288
      %v1297 = vmul.f32 %v1255, %v1288
      %v1298 = vmul.f32 %v1259, %v1288
      %v1299 = vmul.f32 %v1263, %v1288
      %v1300 = vmul.f32 %v1267, %v1288
      %v1301 = vmul.f32 %v1271, %v1288
      %v1302 = vmul.f32 %v1275, %v1288
      %v1303 = vmul.f32 %v1279, %v1288
      %v1304 = vmul.f32 %v1283, %v1288
      %v1305 = vadd.f32 %v1205, %v1289
      %v1306 = vadd.f32 %v1206, %v1290
      %v1307 = vadd.f32 %v1207, %v1291
      %v1308 = vadd.f32 %v1208, %v1292
      %v1309 = vadd.f32 %v1209, %v1293
      %v1310 = vadd.f32 %v1210, %v1294
      %v1311 = vadd.f32 %v1211, %v1295
      %v1312 = vadd.f32 %v1212, %v1296
      %v1313 = vadd.f32 %v1213, %v1297
      %v1314 = vadd.f32 %v1214, %v1298
      %v1315 = vadd.f32 %v1215, %v1299
      %v1316 = vadd.f32 %v1216, %v1300
      %v1317 = vadd.f32 %v1217, %v1301
      %v1318 = vadd.f32 %v1218, %v1302
      %v1319 = vadd.f32 %v1219, %v1303
      %v1320 = vadd.f32 %v1220, %v1304
      %1321 = vset.pattern.permute.xlu0 6
      %1322 = vperm.xlu0 %1321, %v678
      %v1323 = vpop.permute.xlu0 %1322
      %1325 = vset.pattern.permute.xlu0 6
      %1326 = vperm.xlu0 %1325, %v679
      %v1327 = vpop.permute.xlu0 %1326
      %1329 = vset.pattern.permute.xlu0 6
      %1330 = vperm.xlu0 %1329, %v680
      %v1331 = vpop.permute.xlu0 %1330
      %1333 = vset.pattern.permute.xlu0 6
      %1334 = vperm.xlu0 %1333, %v681
      %v1335 = vpop.permute.xlu0 %1334
      %1337 = vset.pattern.permute.xlu0 6
      %1338 = vperm.xlu0 %1337, %v682
      %v1339 = vpop.permute.xlu0 %1338
      %1341 = vset.pattern.permute.xlu0 6
      %1342 = vperm.xlu0 %1341, %v683
      %v1343 = vpop.permute.xlu0 %1342
      %1345 = vset.pattern.permute.xlu0 6
      %1346 = vperm.xlu0 %1345, %v684
      %v1347 = vpop.permute.xlu0 %1346
      %1349 = vset.pattern.permute.xlu0 6
      %1350 = vperm.xlu0 %1349, %v685
      %v1351 = vpop.permute.xlu0 %1350
      %1353 = vset.pattern.permute.xlu0 6
      %1354 = vperm.xlu0 %1353, %v686
      %v1355 = vpop.permute.xlu0 %1354
      %1357 = vset.pattern.permute.xlu0 6
      %1358 = vperm.xlu0 %1357, %v687
      %v1359 = vpop.permute.xlu0 %1358
      %1361 = vset.pattern.permute.xlu0 6
      %1362 = vperm.xlu0 %1361, %v688
      %v1363 = vpop.permute.xlu0 %1362
      %1365 = vset.pattern.permute.xlu0 6
      %1366 = vperm.xlu0 %1365, %v689
      %v1367 = vpop.permute.xlu0 %1366
      %1369 = vset.pattern.permute.xlu0 6
      %1370 = vperm.xlu0 %1369, %v690
      %v1371 = vpop.permute.xlu0 %1370
      %1373 = vset.pattern.permute.xlu0 6
      %1374 = vperm.xlu0 %1373, %v691
      %v1375 = vpop.permute.xlu0 %1374
      %1377 = vset.pattern.permute.xlu0 6
      %1378 = vperm.xlu0 %1377, %v692
      %v1379 = vpop.permute.xlu0 %1378
      %1381 = vset.pattern.permute.xlu0 6
      %1382 = vperm.xlu0 %1381, %v693
      %v1383 = vpop.permute.xlu0 %1382
      %v1385 = vlaneseq
      %v1386 = vshrl.u32 %v1385, 7
      %v1387 = vsub.s32 6, %v1386
      %v1388 = vrot.slane %v694, %v1387
      %v1389 = vmul.f32 %v1323, %v1388
      %v1390 = vmul.f32 %v1327, %v1388
      %v1391 = vmul.f32 %v1331, %v1388
      %v1392 = vmul.f32 %v1335, %v1388
      %v1393 = vmul.f32 %v1339, %v1388
      %v1394 = vmul.f32 %v1343, %v1388
      %v1395 = vmul.f32 %v1347, %v1388
      %v1396 = vmul.f32 %v1351, %v1388
      %v1397 = vmul.f32 %v1355, %v1388
      %v1398 = vmul.f32 %v1359, %v1388
      %v1399 = vmul.f32 %v1363, %v1388
      %v1400 = vmul.f32 %v1367, %v1388
      %v1401 = vmul.f32 %v1371, %v1388
      %v1402 = vmul.f32 %v1375, %v1388
      %v1403 = vmul.f32 %v1379, %v1388
      %v1404 = vmul.f32 %v1383, %v1388
      %v1405 = vadd.f32 %v1305, %v1389
      %v1406 = vadd.f32 %v1306, %v1390
      %v1407 = vadd.f32 %v1307, %v1391
      %v1408 = vadd.f32 %v1308, %v1392
      %v1409 = vadd.f32 %v1309, %v1393
      %v1410 = vadd.f32 %v1310, %v1394
      %v1411 = vadd.f32 %v1311, %v1395
      %v1412 = vadd.f32 %v1312, %v1396
      %v1413 = vadd.f32 %v1313, %v1397
      %v1414 = vadd.f32 %v1314, %v1398
      %v1415 = vadd.f32 %v1315, %v1399
      %v1416 = vadd.f32 %v1316, %v1400
      %v1417 = vadd.f32 %v1317, %v1401
      %v1418 = vadd.f32 %v1318, %v1402
      %v1419 = vadd.f32 %v1319, %v1403
      %v1420 = vadd.f32 %v1320, %v1404
      %1421 = vset.pattern.permute.xlu0 7
      %1422 = vperm.xlu0 %1421, %v678
      %v1423 = vpop.permute.xlu0 %1422
      %1425 = vset.pattern.permute.xlu0 7
      %1426 = vperm.xlu0 %1425, %v679
      %v1427 = vpop.permute.xlu0 %1426
      %1429 = vset.pattern.permute.xlu0 7
      %1430 = vperm.xlu0 %1429, %v680
      %v1431 = vpop.permute.xlu0 %1430
      %1433 = vset.pattern.permute.xlu0 7
      %1434 = vperm.xlu0 %1433, %v681
      %v1435 = vpop.permute.xlu0 %1434
      %1437 = vset.pattern.permute.xlu0 7
      %1438 = vperm.xlu0 %1437, %v682
      %v1439 = vpop.permute.xlu0 %1438
      %1441 = vset.pattern.permute.xlu0 7
      %1442 = vperm.xlu0 %1441, %v683
      %v1443 = vpop.permute.xlu0 %1442
      %1445 = vset.pattern.permute.xlu0 7
      %1446 = vperm.xlu0 %1445, %v684
      %v1447 = vpop.permute.xlu0 %1446
      %1449 = vset.pattern.permute.xlu0 7
      %1450 = vperm.xlu0 %1449, %v685
      %v1451 = vpop.permute.xlu0 %1450
      %1453 = vset.pattern.permute.xlu0 7
      %1454 = vperm.xlu0 %1453, %v686
      %v1455 = vpop.permute.xlu0 %1454
      %1457 = vset.pattern.permute.xlu0 7
      %1458 = vperm.xlu0 %1457, %v687
      %v1459 = vpop.permute.xlu0 %1458
      %1461 = vset.pattern.permute.xlu0 7
      %1462 = vperm.xlu0 %1461, %v688
      %v1463 = vpop.permute.xlu0 %1462
      %1465 = vset.pattern.permute.xlu0 7
      %1466 = vperm.xlu0 %1465, %v689
      %v1467 = vpop.permute.xlu0 %1466
      %1469 = vset.pattern.permute.xlu0 7
      %1470 = vperm.xlu0 %1469, %v690
      %v1471 = vpop.permute.xlu0 %1470
      %1473 = vset.pattern.permute.xlu0 7
      %1474 = vperm.xlu0 %1473, %v691
      %v1475 = vpop.permute.xlu0 %1474
      %1477 = vset.pattern.permute.xlu0 7
      %1478 = vperm.xlu0 %1477, %v692
      %v1479 = vpop.permute.xlu0 %1478
      %1481 = vset.pattern.permute.xlu0 7
      %1482 = vperm.xlu0 %1481, %v693
      %v1483 = vpop.permute.xlu0 %1482
      %v1485 = vlaneseq
      %v1486 = vshrl.u32 %v1485, 7
      %v1487 = vsub.s32 7, %v1486
      %v1488 = vrot.slane %v694, %v1487
      %v1489 = vmul.f32 %v1423, %v1488
      %v1490 = vmul.f32 %v1427, %v1488
      %v1491 = vmul.f32 %v1431, %v1488
      %v1492 = vmul.f32 %v1435, %v1488
      %v1493 = vmul.f32 %v1439, %v1488
      %v1494 = vmul.f32 %v1443, %v1488
      %v1495 = vmul.f32 %v1447, %v1488
      %v1496 = vmul.f32 %v1451, %v1488
      %v1497 = vmul.f32 %v1455, %v1488
      %v1498 = vmul.f32 %v1459, %v1488
      %v1499 = vmul.f32 %v1463, %v1488
      %v1500 = vmul.f32 %v1467, %v1488
      %v1501 = vmul.f32 %v1471, %v1488
      %v1502 = vmul.f32 %v1475, %v1488
      %v1503 = vmul.f32 %v1479, %v1488
      %v1504 = vmul.f32 %v1483, %v1488
      %v1505 = vadd.f32 %v1405, %v1489
      %v1506 = vadd.f32 %v1406, %v1490
      %v1507 = vadd.f32 %v1407, %v1491
      %v1508 = vadd.f32 %v1408, %v1492
      %v1509 = vadd.f32 %v1409, %v1493
      %v1510 = vadd.f32 %v1410, %v1494
      %v1511 = vadd.f32 %v1411, %v1495
      %v1512 = vadd.f32 %v1412, %v1496
      %v1513 = vadd.f32 %v1413, %v1497
      %v1514 = vadd.f32 %v1414, %v1498
      %v1515 = vadd.f32 %v1415, %v1499
      %v1516 = vadd.f32 %v1416, %v1500
      %v1517 = vadd.f32 %v1417, %v1501
      %v1518 = vadd.f32 %v1418, %v1502
      %v1519 = vadd.f32 %v1419, %v1503
      %v1520 = vadd.f32 %v1420, %v1504
      %1521 = vset.pattern.permute.xlu0 8
      %1522 = vperm.xlu0 %1521, %v678
      %v1523 = vpop.permute.xlu0 %1522
      %1525 = vset.pattern.permute.xlu0 8
      %1526 = vperm.xlu0 %1525, %v679
      %v1527 = vpop.permute.xlu0 %1526
      %1529 = vset.pattern.permute.xlu0 8
      %1530 = vperm.xlu0 %1529, %v680
      %v1531 = vpop.permute.xlu0 %1530
      %1533 = vset.pattern.permute.xlu0 8
      %1534 = vperm.xlu0 %1533, %v681
      %v1535 = vpop.permute.xlu0 %1534
      %1537 = vset.pattern.permute.xlu0 8
      %1538 = vperm.xlu0 %1537, %v682
      %v1539 = vpop.permute.xlu0 %1538
      %1541 = vset.pattern.permute.xlu0 8
      %1542 = vperm.xlu0 %1541, %v683
      %v1543 = vpop.permute.xlu0 %1542
      %1545 = vset.pattern.permute.xlu0 8
      %1546 = vperm.xlu0 %1545, %v684
      %v1547 = vpop.permute.xlu0 %1546
      %1549 = vset.pattern.permute.xlu0 8
      %1550 = vperm.xlu0 %1549, %v685
      %v1551 = vpop.permute.xlu0 %1550
      %1553 = vset.pattern.permute.xlu0 8
      %1554 = vperm.xlu0 %1553, %v686
      %v1555 = vpop.permute.xlu0 %1554
      %1557 = vset.pattern.permute.xlu0 8
      %1558 = vperm.xlu0 %1557, %v687
      %v1559 = vpop.permute.xlu0 %1558
      %1561 = vset.pattern.permute.xlu0 8
      %1562 = vperm.xlu0 %1561, %v688
      %v1563 = vpop.permute.xlu0 %1562
      %1565 = vset.pattern.permute.xlu0 8
      %1566 = vperm.xlu0 %1565, %v689
      %v1567 = vpop.permute.xlu0 %1566
      %1569 = vset.pattern.permute.xlu0 8
      %1570 = vperm.xlu0 %1569, %v690
      %v1571 = vpop.permute.xlu0 %1570
      %1573 = vset.pattern.permute.xlu0 8
      %1574 = vperm.xlu0 %1573, %v691
      %v1575 = vpop.permute.xlu0 %1574
      %1577 = vset.pattern.permute.xlu0 8
      %1578 = vperm.xlu0 %1577, %v692
      %v1579 = vpop.permute.xlu0 %1578
      %1581 = vset.pattern.permute.xlu0 8
      %1582 = vperm.xlu0 %1581, %v693
      %v1583 = vpop.permute.xlu0 %1582
      %v1585 = vlaneseq
      %v1586 = vshrl.u32 %v1585, 7
      %v1587 = vsub.s32 0, %v1586
      %v1588 = vrot.slane %v695, %v1587
      %v1589 = vmul.f32 %v1523, %v1588
      %v1590 = vmul.f32 %v1527, %v1588
      %v1591 = vmul.f32 %v1531, %v1588
      %v1592 = vmul.f32 %v1535, %v1588
      %v1593 = vmul.f32 %v1539, %v1588
      %v1594 = vmul.f32 %v1543, %v1588
      %v1595 = vmul.f32 %v1547, %v1588
      %v1596 = vmul.f32 %v1551, %v1588
      %v1597 = vmul.f32 %v1555, %v1588
      %v1598 = vmul.f32 %v1559, %v1588
      %v1599 = vmul.f32 %v1563, %v1588
      %v1600 = vmul.f32 %v1567, %v1588
      %v1601 = vmul.f32 %v1571, %v1588
      %v1602 = vmul.f32 %v1575, %v1588
      %v1603 = vmul.f32 %v1579, %v1588
      %v1604 = vmul.f32 %v1583, %v1588
      %v1605 = vadd.f32 %v1505, %v1589
      %v1606 = vadd.f32 %v1506, %v1590
      %v1607 = vadd.f32 %v1507, %v1591
      %v1608 = vadd.f32 %v1508, %v1592
      %v1609 = vadd.f32 %v1509, %v1593
      %v1610 = vadd.f32 %v1510, %v1594
      %v1611 = vadd.f32 %v1511, %v1595
      %v1612 = vadd.f32 %v1512, %v1596
      %v1613 = vadd.f32 %v1513, %v1597
      %v1614 = vadd.f32 %v1514, %v1598
      %v1615 = vadd.f32 %v1515, %v1599
      %v1616 = vadd.f32 %v1516, %v1600
      %v1617 = vadd.f32 %v1517, %v1601
      %v1618 = vadd.f32 %v1518, %v1602
      %v1619 = vadd.f32 %v1519, %v1603
      %v1620 = vadd.f32 %v1520, %v1604
      %1621 = vset.pattern.permute.xlu0 9
      %1622 = vperm.xlu0 %1621, %v678
      %v1623 = vpop.permute.xlu0 %1622
      %1625 = vset.pattern.permute.xlu0 9
      %1626 = vperm.xlu0 %1625, %v679
      %v1627 = vpop.permute.xlu0 %1626
      %1629 = vset.pattern.permute.xlu0 9
      %1630 = vperm.xlu0 %1629, %v680
      %v1631 = vpop.permute.xlu0 %1630
      %1633 = vset.pattern.permute.xlu0 9
      %1634 = vperm.xlu0 %1633, %v681
      %v1635 = vpop.permute.xlu0 %1634
      %1637 = vset.pattern.permute.xlu0 9
      %1638 = vperm.xlu0 %1637, %v682
      %v1639 = vpop.permute.xlu0 %1638
      %1641 = vset.pattern.permute.xlu0 9
      %1642 = vperm.xlu0 %1641, %v683
      %v1643 = vpop.permute.xlu0 %1642
      %1645 = vset.pattern.permute.xlu0 9
      %1646 = vperm.xlu0 %1645, %v684
      %v1647 = vpop.permute.xlu0 %1646
      %1649 = vset.pattern.permute.xlu0 9
      %1650 = vperm.xlu0 %1649, %v685
      %v1651 = vpop.permute.xlu0 %1650
      %1653 = vset.pattern.permute.xlu0 9
      %1654 = vperm.xlu0 %1653, %v686
      %v1655 = vpop.permute.xlu0 %1654
      %1657 = vset.pattern.permute.xlu0 9
      %1658 = vperm.xlu0 %1657, %v687
      %v1659 = vpop.permute.xlu0 %1658
      %1661 = vset.pattern.permute.xlu0 9
      %1662 = vperm.xlu0 %1661, %v688
      %v1663 = vpop.permute.xlu0 %1662
      %1665 = vset.pattern.permute.xlu0 9
      %1666 = vperm.xlu0 %1665, %v689
      %v1667 = vpop.permute.xlu0 %1666
      %1669 = vset.pattern.permute.xlu0 9
      %1670 = vperm.xlu0 %1669, %v690
      %v1671 = vpop.permute.xlu0 %1670
      %1673 = vset.pattern.permute.xlu0 9
      %1674 = vperm.xlu0 %1673, %v691
      %v1675 = vpop.permute.xlu0 %1674
      %1677 = vset.pattern.permute.xlu0 9
      %1678 = vperm.xlu0 %1677, %v692
      %v1679 = vpop.permute.xlu0 %1678
      %1681 = vset.pattern.permute.xlu0 9
      %1682 = vperm.xlu0 %1681, %v693
      %v1683 = vpop.permute.xlu0 %1682
      %v1685 = vlaneseq
      %v1686 = vshrl.u32 %v1685, 7
      %v1687 = vsub.s32 1, %v1686
      %v1688 = vrot.slane %v695, %v1687
      %v1689 = vmul.f32 %v1623, %v1688
      %v1690 = vmul.f32 %v1627, %v1688
      %v1691 = vmul.f32 %v1631, %v1688
      %v1692 = vmul.f32 %v1635, %v1688
      %v1693 = vmul.f32 %v1639, %v1688
      %v1694 = vmul.f32 %v1643, %v1688
      %v1695 = vmul.f32 %v1647, %v1688
      %v1696 = vmul.f32 %v1651, %v1688
      %v1697 = vmul.f32 %v1655, %v1688
      %v1698 = vmul.f32 %v1659, %v1688
      %v1699 = vmul.f32 %v1663, %v1688
      %v1700 = vmul.f32 %v1667, %v1688
      %v1701 = vmul.f32 %v1671, %v1688
      %v1702 = vmul.f32 %v1675, %v1688
      %v1703 = vmul.f32 %v1679, %v1688
      %v1704 = vmul.f32 %v1683, %v1688
      %v1705 = vadd.f32 %v1605, %v1689
      %v1706 = vadd.f32 %v1606, %v1690
      %v1707 = vadd.f32 %v1607, %v1691
      %v1708 = vadd.f32 %v1608, %v1692
      %v1709 = vadd.f32 %v1609, %v1693
      %v1710 = vadd.f32 %v1610, %v1694
      %v1711 = vadd.f32 %v1611, %v1695
      %v1712 = vadd.f32 %v1612, %v1696
      %v1713 = vadd.f32 %v1613, %v1697
      %v1714 = vadd.f32 %v1614, %v1698
      %v1715 = vadd.f32 %v1615, %v1699
      %v1716 = vadd.f32 %v1616, %v1700
      %v1717 = vadd.f32 %v1617, %v1701
      %v1718 = vadd.f32 %v1618, %v1702
      %v1719 = vadd.f32 %v1619, %v1703
      %v1720 = vadd.f32 %v1620, %v1704
      %1721 = vset.pattern.permute.xlu0 10
      %1722 = vperm.xlu0 %1721, %v678
      %v1723 = vpop.permute.xlu0 %1722
      %1725 = vset.pattern.permute.xlu0 10
      %1726 = vperm.xlu0 %1725, %v679
      %v1727 = vpop.permute.xlu0 %1726
      %1729 = vset.pattern.permute.xlu0 10
      %1730 = vperm.xlu0 %1729, %v680
      %v1731 = vpop.permute.xlu0 %1730
      %1733 = vset.pattern.permute.xlu0 10
      %1734 = vperm.xlu0 %1733, %v681
      %v1735 = vpop.permute.xlu0 %1734
      %1737 = vset.pattern.permute.xlu0 10
      %1738 = vperm.xlu0 %1737, %v682
      %v1739 = vpop.permute.xlu0 %1738
      %1741 = vset.pattern.permute.xlu0 10
      %1742 = vperm.xlu0 %1741, %v683
      %v1743 = vpop.permute.xlu0 %1742
      %1745 = vset.pattern.permute.xlu0 10
      %1746 = vperm.xlu0 %1745, %v684
      %v1747 = vpop.permute.xlu0 %1746
      %1749 = vset.pattern.permute.xlu0 10
      %1750 = vperm.xlu0 %1749, %v685
      %v1751 = vpop.permute.xlu0 %1750
      %1753 = vset.pattern.permute.xlu0 10
      %1754 = vperm.xlu0 %1753, %v686
      %v1755 = vpop.permute.xlu0 %1754
      %1757 = vset.pattern.permute.xlu0 10
      %1758 = vperm.xlu0 %1757, %v687
      %v1759 = vpop.permute.xlu0 %1758
      %1761 = vset.pattern.permute.xlu0 10
      %1762 = vperm.xlu0 %1761, %v688
      %v1763 = vpop.permute.xlu0 %1762
      %1765 = vset.pattern.permute.xlu0 10
      %1766 = vperm.xlu0 %1765, %v689
      %v1767 = vpop.permute.xlu0 %1766
      %1769 = vset.pattern.permute.xlu0 10
      %1770 = vperm.xlu0 %1769, %v690
      %v1771 = vpop.permute.xlu0 %1770
      %1773 = vset.pattern.permute.xlu0 10
      %1774 = vperm.xlu0 %1773, %v691
      %v1775 = vpop.permute.xlu0 %1774
      %1777 = vset.pattern.permute.xlu0 10
      %1778 = vperm.xlu0 %1777, %v692
      %v1779 = vpop.permute.xlu0 %1778
      %1781 = vset.pattern.permute.xlu0 10
      %1782 = vperm.xlu0 %1781, %v693
      %v1783 = vpop.permute.xlu0 %1782
      %v1785 = vlaneseq
      %v1786 = vshrl.u32 %v1785, 7
      %v1787 = vsub.s32 2, %v1786
      %v1788 = vrot.slane %v695, %v1787
      %v1789 = vmul.f32 %v1723, %v1788
      %v1790 = vmul.f32 %v1727, %v1788
      %v1791 = vmul.f32 %v1731, %v1788
      %v1792 = vmul.f32 %v1735, %v1788
      %v1793 = vmul.f32 %v1739, %v1788
      %v1794 = vmul.f32 %v1743, %v1788
      %v1795 = vmul.f32 %v1747, %v1788
      %v1796 = vmul.f32 %v1751, %v1788
      %v1797 = vmul.f32 %v1755, %v1788
      %v1798 = vmul.f32 %v1759, %v1788
      %v1799 = vmul.f32 %v1763, %v1788
      %v1800 = vmul.f32 %v1767, %v1788
      %v1801 = vmul.f32 %v1771, %v1788
      %v1802 = vmul.f32 %v1775, %v1788
      %v1803 = vmul.f32 %v1779, %v1788
      %v1804 = vmul.f32 %v1783, %v1788
      %v1805 = vadd.f32 %v1705, %v1789
      %v1806 = vadd.f32 %v1706, %v1790
      %v1807 = vadd.f32 %v1707, %v1791
      %v1808 = vadd.f32 %v1708, %v1792
      %v1809 = vadd.f32 %v1709, %v1793
      %v1810 = vadd.f32 %v1710, %v1794
      %v1811 = vadd.f32 %v1711, %v1795
      %v1812 = vadd.f32 %v1712, %v1796
      %v1813 = vadd.f32 %v1713, %v1797
      %v1814 = vadd.f32 %v1714, %v1798
      %v1815 = vadd.f32 %v1715, %v1799
      %v1816 = vadd.f32 %v1716, %v1800
      %v1817 = vadd.f32 %v1717, %v1801
      %v1818 = vadd.f32 %v1718, %v1802
      %v1819 = vadd.f32 %v1719, %v1803
      %v1820 = vadd.f32 %v1720, %v1804
      %1821 = vset.pattern.permute.xlu0 11
      %1822 = vperm.xlu0 %1821, %v678
      %v1823 = vpop.permute.xlu0 %1822
      %1825 = vset.pattern.permute.xlu0 11
      %1826 = vperm.xlu0 %1825, %v679
      %v1827 = vpop.permute.xlu0 %1826
      %1829 = vset.pattern.permute.xlu0 11
      %1830 = vperm.xlu0 %1829, %v680
      %v1831 = vpop.permute.xlu0 %1830
      %1833 = vset.pattern.permute.xlu0 11
      %1834 = vperm.xlu0 %1833, %v681
      %v1835 = vpop.permute.xlu0 %1834
      %1837 = vset.pattern.permute.xlu0 11
      %1838 = vperm.xlu0 %1837, %v682
      %v1839 = vpop.permute.xlu0 %1838
      %1841 = vset.pattern.permute.xlu0 11
      %1842 = vperm.xlu0 %1841, %v683
      %v1843 = vpop.permute.xlu0 %1842
      %1845 = vset.pattern.permute.xlu0 11
      %1846 = vperm.xlu0 %1845, %v684
      %v1847 = vpop.permute.xlu0 %1846
      %1849 = vset.pattern.permute.xlu0 11
      %1850 = vperm.xlu0 %1849, %v685
      %v1851 = vpop.permute.xlu0 %1850
      %1853 = vset.pattern.permute.xlu0 11
      %1854 = vperm.xlu0 %1853, %v686
      %v1855 = vpop.permute.xlu0 %1854
      %1857 = vset.pattern.permute.xlu0 11
      %1858 = vperm.xlu0 %1857, %v687
      %v1859 = vpop.permute.xlu0 %1858
      %1861 = vset.pattern.permute.xlu0 11
      %1862 = vperm.xlu0 %1861, %v688
      %v1863 = vpop.permute.xlu0 %1862
      %1865 = vset.pattern.permute.xlu0 11
      %1866 = vperm.xlu0 %1865, %v689
      %v1867 = vpop.permute.xlu0 %1866
      %1869 = vset.pattern.permute.xlu0 11
      %1870 = vperm.xlu0 %1869, %v690
      %v1871 = vpop.permute.xlu0 %1870
      %1873 = vset.pattern.permute.xlu0 11
      %1874 = vperm.xlu0 %1873, %v691
      %v1875 = vpop.permute.xlu0 %1874
      %1877 = vset.pattern.permute.xlu0 11
      %1878 = vperm.xlu0 %1877, %v692
      %v1879 = vpop.permute.xlu0 %1878
      %1881 = vset.pattern.permute.xlu0 11
      %1882 = vperm.xlu0 %1881, %v693
      %v1883 = vpop.permute.xlu0 %1882
      %v1885 = vlaneseq
      %v1886 = vshrl.u32 %v1885, 7
      %v1887 = vsub.s32 3, %v1886
      %v1888 = vrot.slane %v695, %v1887
      %v1889 = vmul.f32 %v1823, %v1888
      %v1890 = vmul.f32 %v1827, %v1888
      %v1891 = vmul.f32 %v1831, %v1888
      %v1892 = vmul.f32 %v1835, %v1888
      %v1893 = vmul.f32 %v1839, %v1888
      %v1894 = vmul.f32 %v1843, %v1888
      %v1895 = vmul.f32 %v1847, %v1888
      %v1896 = vmul.f32 %v1851, %v1888
      %v1897 = vmul.f32 %v1855, %v1888
      %v1898 = vmul.f32 %v1859, %v1888
      %v1899 = vmul.f32 %v1863, %v1888
      %v1900 = vmul.f32 %v1867, %v1888
      %v1901 = vmul.f32 %v1871, %v1888
      %v1902 = vmul.f32 %v1875, %v1888
      %v1903 = vmul.f32 %v1879, %v1888
      %v1904 = vmul.f32 %v1883, %v1888
      %v1905 = vadd.f32 %v1805, %v1889
      %v1906 = vadd.f32 %v1806, %v1890
      %v1907 = vadd.f32 %v1807, %v1891
      %v1908 = vadd.f32 %v1808, %v1892
      %v1909 = vadd.f32 %v1809, %v1893
      %v1910 = vadd.f32 %v1810, %v1894
      %v1911 = vadd.f32 %v1811, %v1895
      %v1912 = vadd.f32 %v1812, %v1896
      %v1913 = vadd.f32 %v1813, %v1897
      %v1914 = vadd.f32 %v1814, %v1898
      %v1915 = vadd.f32 %v1815, %v1899
      %v1916 = vadd.f32 %v1816, %v1900
      %v1917 = vadd.f32 %v1817, %v1901
      %v1918 = vadd.f32 %v1818, %v1902
      %v1919 = vadd.f32 %v1819, %v1903
      %v1920 = vadd.f32 %v1820, %v1904
      %1921 = vset.pattern.permute.xlu0 12
      %1922 = vperm.xlu0 %1921, %v678
      %v1923 = vpop.permute.xlu0 %1922
      %1925 = vset.pattern.permute.xlu0 12
      %1926 = vperm.xlu0 %1925, %v679
      %v1927 = vpop.permute.xlu0 %1926
      %1929 = vset.pattern.permute.xlu0 12
      %1930 = vperm.xlu0 %1929, %v680
      %v1931 = vpop.permute.xlu0 %1930
      %1933 = vset.pattern.permute.xlu0 12
      %1934 = vperm.xlu0 %1933, %v681
      %v1935 = vpop.permute.xlu0 %1934
      %1937 = vset.pattern.permute.xlu0 12
      %1938 = vperm.xlu0 %1937, %v682
      %v1939 = vpop.permute.xlu0 %1938
      %1941 = vset.pattern.permute.xlu0 12
      %1942 = vperm.xlu0 %1941, %v683
      %v1943 = vpop.permute.xlu0 %1942
      %1945 = vset.pattern.permute.xlu0 12
      %1946 = vperm.xlu0 %1945, %v684
      %v1947 = vpop.permute.xlu0 %1946
      %1949 = vset.pattern.permute.xlu0 12
      %1950 = vperm.xlu0 %1949, %v685
      %v1951 = vpop.permute.xlu0 %1950
      %1953 = vset.pattern.permute.xlu0 12
      %1954 = vperm.xlu0 %1953, %v686
      %v1955 = vpop.permute.xlu0 %1954
      %1957 = vset.pattern.permute.xlu0 12
      %1958 = vperm.xlu0 %1957, %v687
      %v1959 = vpop.permute.xlu0 %1958
      %1961 = vset.pattern.permute.xlu0 12
      %1962 = vperm.xlu0 %1961, %v688
      %v1963 = vpop.permute.xlu0 %1962
      %1965 = vset.pattern.permute.xlu0 12
      %1966 = vperm.xlu0 %1965, %v689
      %v1967 = vpop.permute.xlu0 %1966
      %1969 = vset.pattern.permute.xlu0 12
      %1970 = vperm.xlu0 %1969, %v690
      %v1971 = vpop.permute.xlu0 %1970
      %1973 = vset.pattern.permute.xlu0 12
      %1974 = vperm.xlu0 %1973, %v691
      %v1975 = vpop.permute.xlu0 %1974
      %1977 = vset.pattern.permute.xlu0 12
      %1978 = vperm.xlu0 %1977, %v692
      %v1979 = vpop.permute.xlu0 %1978
      %1981 = vset.pattern.permute.xlu0 12
      %1982 = vperm.xlu0 %1981, %v693
      %v1983 = vpop.permute.xlu0 %1982
      %v1985 = vlaneseq
      %v1986 = vshrl.u32 %v1985, 7
      %v1987 = vsub.s32 4, %v1986
      %v1988 = vrot.slane %v695, %v1987
      %v1989 = vmul.f32 %v1923, %v1988
      %v1990 = vmul.f32 %v1927, %v1988
      %v1991 = vmul.f32 %v1931, %v1988
      %v1992 = vmul.f32 %v1935, %v1988
      %v1993 = vmul.f32 %v1939, %v1988
      %v1994 = vmul.f32 %v1943, %v1988
      %v1995 = vmul.f32 %v1947, %v1988
      %v1996 = vmul.f32 %v1951, %v1988
      %v1997 = vmul.f32 %v1955, %v1988
      %v1998 = vmul.f32 %v1959, %v1988
      %v1999 = vmul.f32 %v1963, %v1988
      %v2000 = vmul.f32 %v1967, %v1988
      %v2001 = vmul.f32 %v1971, %v1988
      %v2002 = vmul.f32 %v1975, %v1988
      %v2003 = vmul.f32 %v1979, %v1988
      %v2004 = vmul.f32 %v1983, %v1988
      %v2005 = vadd.f32 %v1905, %v1989
      %v2006 = vadd.f32 %v1906, %v1990
      %v2007 = vadd.f32 %v1907, %v1991
      %v2008 = vadd.f32 %v1908, %v1992
      %v2009 = vadd.f32 %v1909, %v1993
      %v2010 = vadd.f32 %v1910, %v1994
      %v2011 = vadd.f32 %v1911, %v1995
      %v2012 = vadd.f32 %v1912, %v1996
      %v2013 = vadd.f32 %v1913, %v1997
      %v2014 = vadd.f32 %v1914, %v1998
      %v2015 = vadd.f32 %v1915, %v1999
      %v2016 = vadd.f32 %v1916, %v2000
      %v2017 = vadd.f32 %v1917, %v2001
      %v2018 = vadd.f32 %v1918, %v2002
      %v2019 = vadd.f32 %v1919, %v2003
      %v2020 = vadd.f32 %v1920, %v2004
      %2021 = vset.pattern.permute.xlu0 13
      %2022 = vperm.xlu0 %2021, %v678
      %v2023 = vpop.permute.xlu0 %2022
      %2025 = vset.pattern.permute.xlu0 13
      %2026 = vperm.xlu0 %2025, %v679
      %v2027 = vpop.permute.xlu0 %2026
      %2029 = vset.pattern.permute.xlu0 13
      %2030 = vperm.xlu0 %2029, %v680
      %v2031 = vpop.permute.xlu0 %2030
      %2033 = vset.pattern.permute.xlu0 13
      %2034 = vperm.xlu0 %2033, %v681
      %v2035 = vpop.permute.xlu0 %2034
      %2037 = vset.pattern.permute.xlu0 13
      %2038 = vperm.xlu0 %2037, %v682
      %v2039 = vpop.permute.xlu0 %2038
      %2041 = vset.pattern.permute.xlu0 13
      %2042 = vperm.xlu0 %2041, %v683
      %v2043 = vpop.permute.xlu0 %2042
      %2045 = vset.pattern.permute.xlu0 13
      %2046 = vperm.xlu0 %2045, %v684
      %v2047 = vpop.permute.xlu0 %2046
      %2049 = vset.pattern.permute.xlu0 13
      %2050 = vperm.xlu0 %2049, %v685
      %v2051 = vpop.permute.xlu0 %2050
      %2053 = vset.pattern.permute.xlu0 13
      %2054 = vperm.xlu0 %2053, %v686
      %v2055 = vpop.permute.xlu0 %2054
      %2057 = vset.pattern.permute.xlu0 13
      %2058 = vperm.xlu0 %2057, %v687
      %v2059 = vpop.permute.xlu0 %2058
      %2061 = vset.pattern.permute.xlu0 13
      %2062 = vperm.xlu0 %2061, %v688
      %v2063 = vpop.permute.xlu0 %2062
      %2065 = vset.pattern.permute.xlu0 13
      %2066 = vperm.xlu0 %2065, %v689
      %v2067 = vpop.permute.xlu0 %2066
      %2069 = vset.pattern.permute.xlu0 13
      %2070 = vperm.xlu0 %2069, %v690
      %v2071 = vpop.permute.xlu0 %2070
      %2073 = vset.pattern.permute.xlu0 13
      %2074 = vperm.xlu0 %2073, %v691
      %v2075 = vpop.permute.xlu0 %2074
      %2077 = vset.pattern.permute.xlu0 13
      %2078 = vperm.xlu0 %2077, %v692
      %v2079 = vpop.permute.xlu0 %2078
      %2081 = vset.pattern.permute.xlu0 13
      %2082 = vperm.xlu0 %2081, %v693
      %v2083 = vpop.permute.xlu0 %2082
      %v2085 = vlaneseq
      %v2086 = vshrl.u32 %v2085, 7
      %v2087 = vsub.s32 5, %v2086
      %v2088 = vrot.slane %v695, %v2087
      %v2089 = vmul.f32 %v2023, %v2088
      %v2090 = vmul.f32 %v2027, %v2088
      %v2091 = vmul.f32 %v2031, %v2088
      %v2092 = vmul.f32 %v2035, %v2088
      %v2093 = vmul.f32 %v2039, %v2088
      %v2094 = vmul.f32 %v2043, %v2088
      %v2095 = vmul.f32 %v2047, %v2088
      %v2096 = vmul.f32 %v2051, %v2088
      %v2097 = vmul.f32 %v2055, %v2088
      %v2098 = vmul.f32 %v2059, %v2088
      %v2099 = vmul.f32 %v2063, %v2088
      %v2100 = vmul.f32 %v2067, %v2088
      %v2101 = vmul.f32 %v2071, %v2088
      %v2102 = vmul.f32 %v2075, %v2088
      %v2103 = vmul.f32 %v2079, %v2088
      %v2104 = vmul.f32 %v2083, %v2088
      %v2105 = vadd.f32 %v2005, %v2089
      %v2106 = vadd.f32 %v2006, %v2090
      %v2107 = vadd.f32 %v2007, %v2091
      %v2108 = vadd.f32 %v2008, %v2092
      %v2109 = vadd.f32 %v2009, %v2093
      %v2110 = vadd.f32 %v2010, %v2094
      %v2111 = vadd.f32 %v2011, %v2095
      %v2112 = vadd.f32 %v2012, %v2096
      %v2113 = vadd.f32 %v2013, %v2097
      %v2114 = vadd.f32 %v2014, %v2098
      %v2115 = vadd.f32 %v2015, %v2099
      %v2116 = vadd.f32 %v2016, %v2100
      %v2117 = vadd.f32 %v2017, %v2101
      %v2118 = vadd.f32 %v2018, %v2102
      %v2119 = vadd.f32 %v2019, %v2103
      %v2120 = vadd.f32 %v2020, %v2104
      %2121 = vset.pattern.permute.xlu0 14
      %2122 = vperm.xlu0 %2121, %v678
      %v2123 = vpop.permute.xlu0 %2122
      %2125 = vset.pattern.permute.xlu0 14
      %2126 = vperm.xlu0 %2125, %v679
      %v2127 = vpop.permute.xlu0 %2126
      %2129 = vset.pattern.permute.xlu0 14
      %2130 = vperm.xlu0 %2129, %v680
      %v2131 = vpop.permute.xlu0 %2130
      %2133 = vset.pattern.permute.xlu0 14
      %2134 = vperm.xlu0 %2133, %v681
      %v2135 = vpop.permute.xlu0 %2134
      %2137 = vset.pattern.permute.xlu0 14
      %2138 = vperm.xlu0 %2137, %v682
      %v2139 = vpop.permute.xlu0 %2138
      %2141 = vset.pattern.permute.xlu0 14
      %2142 = vperm.xlu0 %2141, %v683
      %v2143 = vpop.permute.xlu0 %2142
      %2145 = vset.pattern.permute.xlu0 14
      %2146 = vperm.xlu0 %2145, %v684
      %v2147 = vpop.permute.xlu0 %2146
      %2149 = vset.pattern.permute.xlu0 14
      %2150 = vperm.xlu0 %2149, %v685
      %v2151 = vpop.permute.xlu0 %2150
      %2153 = vset.pattern.permute.xlu0 14
      %2154 = vperm.xlu0 %2153, %v686
      %v2155 = vpop.permute.xlu0 %2154
      %2157 = vset.pattern.permute.xlu0 14
      %2158 = vperm.xlu0 %2157, %v687
      %v2159 = vpop.permute.xlu0 %2158
      %2161 = vset.pattern.permute.xlu0 14
      %2162 = vperm.xlu0 %2161, %v688
      %v2163 = vpop.permute.xlu0 %2162
      %2165 = vset.pattern.permute.xlu0 14
      %2166 = vperm.xlu0 %2165, %v689
      %v2167 = vpop.permute.xlu0 %2166
      %2169 = vset.pattern.permute.xlu0 14
      %2170 = vperm.xlu0 %2169, %v690
      %v2171 = vpop.permute.xlu0 %2170
      %2173 = vset.pattern.permute.xlu0 14
      %2174 = vperm.xlu0 %2173, %v691
      %v2175 = vpop.permute.xlu0 %2174
      %2177 = vset.pattern.permute.xlu0 14
      %2178 = vperm.xlu0 %2177, %v692
      %v2179 = vpop.permute.xlu0 %2178
      %2181 = vset.pattern.permute.xlu0 14
      %2182 = vperm.xlu0 %2181, %v693
      %v2183 = vpop.permute.xlu0 %2182
      %v2185 = vlaneseq
      %v2186 = vshrl.u32 %v2185, 7
      %v2187 = vsub.s32 6, %v2186
      %v2188 = vrot.slane %v695, %v2187
      %v2189 = vmul.f32 %v2123, %v2188
      %v2190 = vmul.f32 %v2127, %v2188
      %v2191 = vmul.f32 %v2131, %v2188
      %v2192 = vmul.f32 %v2135, %v2188
      %v2193 = vmul.f32 %v2139, %v2188
      %v2194 = vmul.f32 %v2143, %v2188
      %v2195 = vmul.f32 %v2147, %v2188
      %v2196 = vmul.f32 %v2151, %v2188
      %v2197 = vmul.f32 %v2155, %v2188
      %v2198 = vmul.f32 %v2159, %v2188
      %v2199 = vmul.f32 %v2163, %v2188
      %v2200 = vmul.f32 %v2167, %v2188
      %v2201 = vmul.f32 %v2171, %v2188
      %v2202 = vmul.f32 %v2175, %v2188
      %v2203 = vmul.f32 %v2179, %v2188
      %v2204 = vmul.f32 %v2183, %v2188
      %v2205 = vadd.f32 %v2105, %v2189
      %v2206 = vadd.f32 %v2106, %v2190
      %v2207 = vadd.f32 %v2107, %v2191
      %v2208 = vadd.f32 %v2108, %v2192
      %v2209 = vadd.f32 %v2109, %v2193
      %v2210 = vadd.f32 %v2110, %v2194
      %v2211 = vadd.f32 %v2111, %v2195
      %v2212 = vadd.f32 %v2112, %v2196
      %v2213 = vadd.f32 %v2113, %v2197
      %v2214 = vadd.f32 %v2114, %v2198
      %v2215 = vadd.f32 %v2115, %v2199
      %v2216 = vadd.f32 %v2116, %v2200
      %v2217 = vadd.f32 %v2117, %v2201
      %v2218 = vadd.f32 %v2118, %v2202
      %v2219 = vadd.f32 %v2119, %v2203
      %v2220 = vadd.f32 %v2120, %v2204
      %2221 = vset.pattern.permute.xlu0 15
      %2222 = vperm.xlu0 %2221, %v678
      %v2223 = vpop.permute.xlu0 %2222
      %2225 = vset.pattern.permute.xlu0 15
      %2226 = vperm.xlu0 %2225, %v679
      %v2227 = vpop.permute.xlu0 %2226
      %2229 = vset.pattern.permute.xlu0 15
      %2230 = vperm.xlu0 %2229, %v680
      %v2231 = vpop.permute.xlu0 %2230
      %2233 = vset.pattern.permute.xlu0 15
      %2234 = vperm.xlu0 %2233, %v681
      %v2235 = vpop.permute.xlu0 %2234
      %2237 = vset.pattern.permute.xlu0 15
      %2238 = vperm.xlu0 %2237, %v682
      %v2239 = vpop.permute.xlu0 %2238
      %2241 = vset.pattern.permute.xlu0 15
      %2242 = vperm.xlu0 %2241, %v683
      %v2243 = vpop.permute.xlu0 %2242
      %2245 = vset.pattern.permute.xlu0 15
      %2246 = vperm.xlu0 %2245, %v684
      %v2247 = vpop.permute.xlu0 %2246
      %2249 = vset.pattern.permute.xlu0 15
      %2250 = vperm.xlu0 %2249, %v685
      %v2251 = vpop.permute.xlu0 %2250
      %2253 = vset.pattern.permute.xlu0 15
      %2254 = vperm.xlu0 %2253, %v686
      %v2255 = vpop.permute.xlu0 %2254
      %2257 = vset.pattern.permute.xlu0 15
      %2258 = vperm.xlu0 %2257, %v687
      %v2259 = vpop.permute.xlu0 %2258
      %2261 = vset.pattern.permute.xlu0 15
      %2262 = vperm.xlu0 %2261, %v688
      %v2263 = vpop.permute.xlu0 %2262
      %2265 = vset.pattern.permute.xlu0 15
      %2266 = vperm.xlu0 %2265, %v689
      %v2267 = vpop.permute.xlu0 %2266
      %2269 = vset.pattern.permute.xlu0 15
      %2270 = vperm.xlu0 %2269, %v690
      %v2271 = vpop.permute.xlu0 %2270
      %2273 = vset.pattern.permute.xlu0 15
      %2274 = vperm.xlu0 %2273, %v691
      %v2275 = vpop.permute.xlu0 %2274
      %2277 = vset.pattern.permute.xlu0 15
      %2278 = vperm.xlu0 %2277, %v692
      %v2279 = vpop.permute.xlu0 %2278
      %2281 = vset.pattern.permute.xlu0 15
      %2282 = vperm.xlu0 %2281, %v693
      %v2283 = vpop.permute.xlu0 %2282
      %v2285 = vlaneseq
      %v2286 = vshrl.u32 %v2285, 7
      %v2287 = vsub.s32 7, %v2286
      %v2288 = vrot.slane %v695, %v2287
      %v2289 = vmul.f32 %v2223, %v2288
      %v2290 = vmul.f32 %v2227, %v2288
      %v2291 = vmul.f32 %v2231, %v2288
      %v2292 = vmul.f32 %v2235, %v2288
      %v2293 = vmul.f32 %v2239, %v2288
      %v2294 = vmul.f32 %v2243, %v2288
      %v2295 = vmul.f32 %v2247, %v2288
      %v2296 = vmul.f32 %v2251, %v2288
      %v2297 = vmul.f32 %v2255, %v2288
      %v2298 = vmul.f32 %v2259, %v2288
      %v2299 = vmul.f32 %v2263, %v2288
      %v2300 = vmul.f32 %v2267, %v2288
      %v2301 = vmul.f32 %v2271, %v2288
      %v2302 = vmul.f32 %v2275, %v2288
      %v2303 = vmul.f32 %v2279, %v2288
      %v2304 = vmul.f32 %v2283, %v2288
      %v2305 = vadd.f32 %v2205, %v2289
      %v2306 = vadd.f32 %v2206, %v2290
      %v2307 = vadd.f32 %v2207, %v2291
      %v2308 = vadd.f32 %v2208, %v2292
      %v2309 = vadd.f32 %v2209, %v2293
      %v2310 = vadd.f32 %v2210, %v2294
      %v2311 = vadd.f32 %v2211, %v2295
      %v2312 = vadd.f32 %v2212, %v2296
      %v2313 = vadd.f32 %v2213, %v2297
      %v2314 = vadd.f32 %v2214, %v2298
      %v2315 = vadd.f32 %v2215, %v2299
      %v2316 = vadd.f32 %v2216, %v2300
      %v2317 = vadd.f32 %v2217, %v2301
      %v2318 = vadd.f32 %v2218, %v2302
      %v2319 = vadd.f32 %v2219, %v2303
      %v2320 = vadd.f32 %v2220, %v2304
      %2321 = vset.pattern.permute.xlu0 16
      %2322 = vperm.xlu0 %2321, %v678
      %v2323 = vpop.permute.xlu0 %2322
      %2325 = vset.pattern.permute.xlu0 16
      %2326 = vperm.xlu0 %2325, %v679
      %v2327 = vpop.permute.xlu0 %2326
      %2329 = vset.pattern.permute.xlu0 16
      %2330 = vperm.xlu0 %2329, %v680
      %v2331 = vpop.permute.xlu0 %2330
      %2333 = vset.pattern.permute.xlu0 16
      %2334 = vperm.xlu0 %2333, %v681
      %v2335 = vpop.permute.xlu0 %2334
      %2337 = vset.pattern.permute.xlu0 16
      %2338 = vperm.xlu0 %2337, %v682
      %v2339 = vpop.permute.xlu0 %2338
      %2341 = vset.pattern.permute.xlu0 16
      %2342 = vperm.xlu0 %2341, %v683
      %v2343 = vpop.permute.xlu0 %2342
      %2345 = vset.pattern.permute.xlu0 16
      %2346 = vperm.xlu0 %2345, %v684
      %v2347 = vpop.permute.xlu0 %2346
      %2349 = vset.pattern.permute.xlu0 16
      %2350 = vperm.xlu0 %2349, %v685
      %v2351 = vpop.permute.xlu0 %2350
      %2353 = vset.pattern.permute.xlu0 16
      %2354 = vperm.xlu0 %2353, %v686
      %v2355 = vpop.permute.xlu0 %2354
      %2357 = vset.pattern.permute.xlu0 16
      %2358 = vperm.xlu0 %2357, %v687
      %v2359 = vpop.permute.xlu0 %2358
      %2361 = vset.pattern.permute.xlu0 16
      %2362 = vperm.xlu0 %2361, %v688
      %v2363 = vpop.permute.xlu0 %2362
      %2365 = vset.pattern.permute.xlu0 16
      %2366 = vperm.xlu0 %2365, %v689
      %v2367 = vpop.permute.xlu0 %2366
      %2369 = vset.pattern.permute.xlu0 16
      %2370 = vperm.xlu0 %2369, %v690
      %v2371 = vpop.permute.xlu0 %2370
      %2373 = vset.pattern.permute.xlu0 16
      %2374 = vperm.xlu0 %2373, %v691
      %v2375 = vpop.permute.xlu0 %2374
      %2377 = vset.pattern.permute.xlu0 16
      %2378 = vperm.xlu0 %2377, %v692
      %v2379 = vpop.permute.xlu0 %2378
      %2381 = vset.pattern.permute.xlu0 16
      %2382 = vperm.xlu0 %2381, %v693
      %v2383 = vpop.permute.xlu0 %2382
      %v2385 = vlaneseq
      %v2386 = vshrl.u32 %v2385, 7
      %v2387 = vsub.s32 0, %v2386
      %v2388 = vrot.slane %v696, %v2387
      %v2389 = vmul.f32 %v2323, %v2388
      %v2390 = vmul.f32 %v2327, %v2388
      %v2391 = vmul.f32 %v2331, %v2388
      %v2392 = vmul.f32 %v2335, %v2388
      %v2393 = vmul.f32 %v2339, %v2388
      %v2394 = vmul.f32 %v2343, %v2388
      %v2395 = vmul.f32 %v2347, %v2388
      %v2396 = vmul.f32 %v2351, %v2388
      %v2397 = vmul.f32 %v2355, %v2388
      %v2398 = vmul.f32 %v2359, %v2388
      %v2399 = vmul.f32 %v2363, %v2388
      %v2400 = vmul.f32 %v2367, %v2388
      %v2401 = vmul.f32 %v2371, %v2388
      %v2402 = vmul.f32 %v2375, %v2388
      %v2403 = vmul.f32 %v2379, %v2388
      %v2404 = vmul.f32 %v2383, %v2388
      %v2405 = vadd.f32 %v2305, %v2389
      %v2406 = vadd.f32 %v2306, %v2390
      %v2407 = vadd.f32 %v2307, %v2391
      %v2408 = vadd.f32 %v2308, %v2392
      %v2409 = vadd.f32 %v2309, %v2393
      %v2410 = vadd.f32 %v2310, %v2394
      %v2411 = vadd.f32 %v2311, %v2395
      %v2412 = vadd.f32 %v2312, %v2396
      %v2413 = vadd.f32 %v2313, %v2397
      %v2414 = vadd.f32 %v2314, %v2398
      %v2415 = vadd.f32 %v2315, %v2399
      %v2416 = vadd.f32 %v2316, %v2400
      %v2417 = vadd.f32 %v2317, %v2401
      %v2418 = vadd.f32 %v2318, %v2402
      %v2419 = vadd.f32 %v2319, %v2403
      %v2420 = vadd.f32 %v2320, %v2404
      %2421 = vset.pattern.permute.xlu0 17
      %2422 = vperm.xlu0 %2421, %v678
      %v2423 = vpop.permute.xlu0 %2422
      %2425 = vset.pattern.permute.xlu0 17
      %2426 = vperm.xlu0 %2425, %v679
      %v2427 = vpop.permute.xlu0 %2426
      %2429 = vset.pattern.permute.xlu0 17
      %2430 = vperm.xlu0 %2429, %v680
      %v2431 = vpop.permute.xlu0 %2430
      %2433 = vset.pattern.permute.xlu0 17
      %2434 = vperm.xlu0 %2433, %v681
      %v2435 = vpop.permute.xlu0 %2434
      %2437 = vset.pattern.permute.xlu0 17
      %2438 = vperm.xlu0 %2437, %v682
      %v2439 = vpop.permute.xlu0 %2438
      %2441 = vset.pattern.permute.xlu0 17
      %2442 = vperm.xlu0 %2441, %v683
      %v2443 = vpop.permute.xlu0 %2442
      %2445 = vset.pattern.permute.xlu0 17
      %2446 = vperm.xlu0 %2445, %v684
      %v2447 = vpop.permute.xlu0 %2446
      %2449 = vset.pattern.permute.xlu0 17
      %2450 = vperm.xlu0 %2449, %v685
      %v2451 = vpop.permute.xlu0 %2450
      %2453 = vset.pattern.permute.xlu0 17
      %2454 = vperm.xlu0 %2453, %v686
      %v2455 = vpop.permute.xlu0 %2454
      %2457 = vset.pattern.permute.xlu0 17
      %2458 = vperm.xlu0 %2457, %v687
      %v2459 = vpop.permute.xlu0 %2458
      %2461 = vset.pattern.permute.xlu0 17
      %2462 = vperm.xlu0 %2461, %v688
      %v2463 = vpop.permute.xlu0 %2462
      %2465 = vset.pattern.permute.xlu0 17
      %2466 = vperm.xlu0 %2465, %v689
      %v2467 = vpop.permute.xlu0 %2466
      %2469 = vset.pattern.permute.xlu0 17
      %2470 = vperm.xlu0 %2469, %v690
      %v2471 = vpop.permute.xlu0 %2470
      %2473 = vset.pattern.permute.xlu0 17
      %2474 = vperm.xlu0 %2473, %v691
      %v2475 = vpop.permute.xlu0 %2474
      %2477 = vset.pattern.permute.xlu0 17
      %2478 = vperm.xlu0 %2477, %v692
      %v2479 = vpop.permute.xlu0 %2478
      %2481 = vset.pattern.permute.xlu0 17
      %2482 = vperm.xlu0 %2481, %v693
      %v2483 = vpop.permute.xlu0 %2482
      %v2485 = vlaneseq
      %v2486 = vshrl.u32 %v2485, 7
      %v2487 = vsub.s32 1, %v2486
      %v2488 = vrot.slane %v696, %v2487
      %v2489 = vmul.f32 %v2423, %v2488
      %v2490 = vmul.f32 %v2427, %v2488
      %v2491 = vmul.f32 %v2431, %v2488
      %v2492 = vmul.f32 %v2435, %v2488
      %v2493 = vmul.f32 %v2439, %v2488
      %v2494 = vmul.f32 %v2443, %v2488
      %v2495 = vmul.f32 %v2447, %v2488
      %v2496 = vmul.f32 %v2451, %v2488
      %v2497 = vmul.f32 %v2455, %v2488
      %v2498 = vmul.f32 %v2459, %v2488
      %v2499 = vmul.f32 %v2463, %v2488
      %v2500 = vmul.f32 %v2467, %v2488
      %v2501 = vmul.f32 %v2471, %v2488
      %v2502 = vmul.f32 %v2475, %v2488
      %v2503 = vmul.f32 %v2479, %v2488
      %v2504 = vmul.f32 %v2483, %v2488
      %v2505 = vadd.f32 %v2405, %v2489
      %v2506 = vadd.f32 %v2406, %v2490
      %v2507 = vadd.f32 %v2407, %v2491
      %v2508 = vadd.f32 %v2408, %v2492
      %v2509 = vadd.f32 %v2409, %v2493
      %v2510 = vadd.f32 %v2410, %v2494
      %v2511 = vadd.f32 %v2411, %v2495
      %v2512 = vadd.f32 %v2412, %v2496
      %v2513 = vadd.f32 %v2413, %v2497
      %v2514 = vadd.f32 %v2414, %v2498
      %v2515 = vadd.f32 %v2415, %v2499
      %v2516 = vadd.f32 %v2416, %v2500
      %v2517 = vadd.f32 %v2417, %v2501
      %v2518 = vadd.f32 %v2418, %v2502
      %v2519 = vadd.f32 %v2419, %v2503
      %v2520 = vadd.f32 %v2420, %v2504
      %2521 = vset.pattern.permute.xlu0 18
      %2522 = vperm.xlu0 %2521, %v678
      %v2523 = vpop.permute.xlu0 %2522
      %2525 = vset.pattern.permute.xlu0 18
      %2526 = vperm.xlu0 %2525, %v679
      %v2527 = vpop.permute.xlu0 %2526
      %2529 = vset.pattern.permute.xlu0 18
      %2530 = vperm.xlu0 %2529, %v680
      %v2531 = vpop.permute.xlu0 %2530
      %2533 = vset.pattern.permute.xlu0 18
      %2534 = vperm.xlu0 %2533, %v681
      %v2535 = vpop.permute.xlu0 %2534
      %2537 = vset.pattern.permute.xlu0 18
      %2538 = vperm.xlu0 %2537, %v682
      %v2539 = vpop.permute.xlu0 %2538
      %2541 = vset.pattern.permute.xlu0 18
      %2542 = vperm.xlu0 %2541, %v683
      %v2543 = vpop.permute.xlu0 %2542
      %2545 = vset.pattern.permute.xlu0 18
      %2546 = vperm.xlu0 %2545, %v684
      %v2547 = vpop.permute.xlu0 %2546
      %2549 = vset.pattern.permute.xlu0 18
      %2550 = vperm.xlu0 %2549, %v685
      %v2551 = vpop.permute.xlu0 %2550
      %2553 = vset.pattern.permute.xlu0 18
      %2554 = vperm.xlu0 %2553, %v686
      %v2555 = vpop.permute.xlu0 %2554
      %2557 = vset.pattern.permute.xlu0 18
      %2558 = vperm.xlu0 %2557, %v687
      %v2559 = vpop.permute.xlu0 %2558
      %2561 = vset.pattern.permute.xlu0 18
      %2562 = vperm.xlu0 %2561, %v688
      %v2563 = vpop.permute.xlu0 %2562
      %2565 = vset.pattern.permute.xlu0 18
      %2566 = vperm.xlu0 %2565, %v689
      %v2567 = vpop.permute.xlu0 %2566
      %2569 = vset.pattern.permute.xlu0 18
      %2570 = vperm.xlu0 %2569, %v690
      %v2571 = vpop.permute.xlu0 %2570
      %2573 = vset.pattern.permute.xlu0 18
      %2574 = vperm.xlu0 %2573, %v691
      %v2575 = vpop.permute.xlu0 %2574
      %2577 = vset.pattern.permute.xlu0 18
      %2578 = vperm.xlu0 %2577, %v692
      %v2579 = vpop.permute.xlu0 %2578
      %2581 = vset.pattern.permute.xlu0 18
      %2582 = vperm.xlu0 %2581, %v693
      %v2583 = vpop.permute.xlu0 %2582
      %v2585 = vlaneseq
      %v2586 = vshrl.u32 %v2585, 7
      %v2587 = vsub.s32 2, %v2586
      %v2588 = vrot.slane %v696, %v2587
      %v2589 = vmul.f32 %v2523, %v2588
      %v2590 = vmul.f32 %v2527, %v2588
      %v2591 = vmul.f32 %v2531, %v2588
      %v2592 = vmul.f32 %v2535, %v2588
      %v2593 = vmul.f32 %v2539, %v2588
      %v2594 = vmul.f32 %v2543, %v2588
      %v2595 = vmul.f32 %v2547, %v2588
      %v2596 = vmul.f32 %v2551, %v2588
      %v2597 = vmul.f32 %v2555, %v2588
      %v2598 = vmul.f32 %v2559, %v2588
      %v2599 = vmul.f32 %v2563, %v2588
      %v2600 = vmul.f32 %v2567, %v2588
      %v2601 = vmul.f32 %v2571, %v2588
      %v2602 = vmul.f32 %v2575, %v2588
      %v2603 = vmul.f32 %v2579, %v2588
      %v2604 = vmul.f32 %v2583, %v2588
      %v2605 = vadd.f32 %v2505, %v2589
      %v2606 = vadd.f32 %v2506, %v2590
      %v2607 = vadd.f32 %v2507, %v2591
      %v2608 = vadd.f32 %v2508, %v2592
      %v2609 = vadd.f32 %v2509, %v2593
      %v2610 = vadd.f32 %v2510, %v2594
      %v2611 = vadd.f32 %v2511, %v2595
      %v2612 = vadd.f32 %v2512, %v2596
      %v2613 = vadd.f32 %v2513, %v2597
      %v2614 = vadd.f32 %v2514, %v2598
      %v2615 = vadd.f32 %v2515, %v2599
      %v2616 = vadd.f32 %v2516, %v2600
      %v2617 = vadd.f32 %v2517, %v2601
      %v2618 = vadd.f32 %v2518, %v2602
      %v2619 = vadd.f32 %v2519, %v2603
      %v2620 = vadd.f32 %v2520, %v2604
      %2621 = vset.pattern.permute.xlu0 19
      %2622 = vperm.xlu0 %2621, %v678
      %v2623 = vpop.permute.xlu0 %2622
      %2625 = vset.pattern.permute.xlu0 19
      %2626 = vperm.xlu0 %2625, %v679
      %v2627 = vpop.permute.xlu0 %2626
      %2629 = vset.pattern.permute.xlu0 19
      %2630 = vperm.xlu0 %2629, %v680
      %v2631 = vpop.permute.xlu0 %2630
      %2633 = vset.pattern.permute.xlu0 19
      %2634 = vperm.xlu0 %2633, %v681
      %v2635 = vpop.permute.xlu0 %2634
      %2637 = vset.pattern.permute.xlu0 19
      %2638 = vperm.xlu0 %2637, %v682
      %v2639 = vpop.permute.xlu0 %2638
      %2641 = vset.pattern.permute.xlu0 19
      %2642 = vperm.xlu0 %2641, %v683
      %v2643 = vpop.permute.xlu0 %2642
      %2645 = vset.pattern.permute.xlu0 19
      %2646 = vperm.xlu0 %2645, %v684
      %v2647 = vpop.permute.xlu0 %2646
      %2649 = vset.pattern.permute.xlu0 19
      %2650 = vperm.xlu0 %2649, %v685
      %v2651 = vpop.permute.xlu0 %2650
      %2653 = vset.pattern.permute.xlu0 19
      %2654 = vperm.xlu0 %2653, %v686
      %v2655 = vpop.permute.xlu0 %2654
      %2657 = vset.pattern.permute.xlu0 19
      %2658 = vperm.xlu0 %2657, %v687
      %v2659 = vpop.permute.xlu0 %2658
      %2661 = vset.pattern.permute.xlu0 19
      %2662 = vperm.xlu0 %2661, %v688
      %v2663 = vpop.permute.xlu0 %2662
      %2665 = vset.pattern.permute.xlu0 19
      %2666 = vperm.xlu0 %2665, %v689
      %v2667 = vpop.permute.xlu0 %2666
      %2669 = vset.pattern.permute.xlu0 19
      %2670 = vperm.xlu0 %2669, %v690
      %v2671 = vpop.permute.xlu0 %2670
      %2673 = vset.pattern.permute.xlu0 19
      %2674 = vperm.xlu0 %2673, %v691
      %v2675 = vpop.permute.xlu0 %2674
      %2677 = vset.pattern.permute.xlu0 19
      %2678 = vperm.xlu0 %2677, %v692
      %v2679 = vpop.permute.xlu0 %2678
      %2681 = vset.pattern.permute.xlu0 19
      %2682 = vperm.xlu0 %2681, %v693
      %v2683 = vpop.permute.xlu0 %2682
      %v2685 = vlaneseq
      %v2686 = vshrl.u32 %v2685, 7
      %v2687 = vsub.s32 3, %v2686
      %v2688 = vrot.slane %v696, %v2687
      %v2689 = vmul.f32 %v2623, %v2688
      %v2690 = vmul.f32 %v2627, %v2688
      %v2691 = vmul.f32 %v2631, %v2688
      %v2692 = vmul.f32 %v2635, %v2688
      %v2693 = vmul.f32 %v2639, %v2688
      %v2694 = vmul.f32 %v2643, %v2688
      %v2695 = vmul.f32 %v2647, %v2688
      %v2696 = vmul.f32 %v2651, %v2688
      %v2697 = vmul.f32 %v2655, %v2688
      %v2698 = vmul.f32 %v2659, %v2688
      %v2699 = vmul.f32 %v2663, %v2688
      %v2700 = vmul.f32 %v2667, %v2688
      %v2701 = vmul.f32 %v2671, %v2688
      %v2702 = vmul.f32 %v2675, %v2688
      %v2703 = vmul.f32 %v2679, %v2688
      %v2704 = vmul.f32 %v2683, %v2688
      %v2705 = vadd.f32 %v2605, %v2689
      %v2706 = vadd.f32 %v2606, %v2690
      %v2707 = vadd.f32 %v2607, %v2691
      %v2708 = vadd.f32 %v2608, %v2692
      %v2709 = vadd.f32 %v2609, %v2693
      %v2710 = vadd.f32 %v2610, %v2694
      %v2711 = vadd.f32 %v2611, %v2695
      %v2712 = vadd.f32 %v2612, %v2696
      %v2713 = vadd.f32 %v2613, %v2697
      %v2714 = vadd.f32 %v2614, %v2698
      %v2715 = vadd.f32 %v2615, %v2699
      %v2716 = vadd.f32 %v2616, %v2700
      %v2717 = vadd.f32 %v2617, %v2701
      %v2718 = vadd.f32 %v2618, %v2702
      %v2719 = vadd.f32 %v2619, %v2703
      %v2720 = vadd.f32 %v2620, %v2704
      %2721 = vset.pattern.permute.xlu0 20
      %2722 = vperm.xlu0 %2721, %v678
      %v2723 = vpop.permute.xlu0 %2722
      %2725 = vset.pattern.permute.xlu0 20
      %2726 = vperm.xlu0 %2725, %v679
      %v2727 = vpop.permute.xlu0 %2726
      %2729 = vset.pattern.permute.xlu0 20
      %2730 = vperm.xlu0 %2729, %v680
      %v2731 = vpop.permute.xlu0 %2730
      %2733 = vset.pattern.permute.xlu0 20
      %2734 = vperm.xlu0 %2733, %v681
      %v2735 = vpop.permute.xlu0 %2734
      %2737 = vset.pattern.permute.xlu0 20
      %2738 = vperm.xlu0 %2737, %v682
      %v2739 = vpop.permute.xlu0 %2738
      %2741 = vset.pattern.permute.xlu0 20
      %2742 = vperm.xlu0 %2741, %v683
      %v2743 = vpop.permute.xlu0 %2742
      %2745 = vset.pattern.permute.xlu0 20
      %2746 = vperm.xlu0 %2745, %v684
      %v2747 = vpop.permute.xlu0 %2746
      %2749 = vset.pattern.permute.xlu0 20
      %2750 = vperm.xlu0 %2749, %v685
      %v2751 = vpop.permute.xlu0 %2750
      %2753 = vset.pattern.permute.xlu0 20
      %2754 = vperm.xlu0 %2753, %v686
      %v2755 = vpop.permute.xlu0 %2754
      %2757 = vset.pattern.permute.xlu0 20
      %2758 = vperm.xlu0 %2757, %v687
      %v2759 = vpop.permute.xlu0 %2758
      %2761 = vset.pattern.permute.xlu0 20
      %2762 = vperm.xlu0 %2761, %v688
      %v2763 = vpop.permute.xlu0 %2762
      %2765 = vset.pattern.permute.xlu0 20
      %2766 = vperm.xlu0 %2765, %v689
      %v2767 = vpop.permute.xlu0 %2766
      %2769 = vset.pattern.permute.xlu0 20
      %2770 = vperm.xlu0 %2769, %v690
      %v2771 = vpop.permute.xlu0 %2770
      %2773 = vset.pattern.permute.xlu0 20
      %2774 = vperm.xlu0 %2773, %v691
      %v2775 = vpop.permute.xlu0 %2774
      %2777 = vset.pattern.permute.xlu0 20
      %2778 = vperm.xlu0 %2777, %v692
      %v2779 = vpop.permute.xlu0 %2778
      %2781 = vset.pattern.permute.xlu0 20
      %2782 = vperm.xlu0 %2781, %v693
      %v2783 = vpop.permute.xlu0 %2782
      %v2785 = vlaneseq
      %v2786 = vshrl.u32 %v2785, 7
      %v2787 = vsub.s32 4, %v2786
      %v2788 = vrot.slane %v696, %v2787
      %v2789 = vmul.f32 %v2723, %v2788
      %v2790 = vmul.f32 %v2727, %v2788
      %v2791 = vmul.f32 %v2731, %v2788
      %v2792 = vmul.f32 %v2735, %v2788
      %v2793 = vmul.f32 %v2739, %v2788
      %v2794 = vmul.f32 %v2743, %v2788
      %v2795 = vmul.f32 %v2747, %v2788
      %v2796 = vmul.f32 %v2751, %v2788
      %v2797 = vmul.f32 %v2755, %v2788
      %v2798 = vmul.f32 %v2759, %v2788
      %v2799 = vmul.f32 %v2763, %v2788
      %v2800 = vmul.f32 %v2767, %v2788
      %v2801 = vmul.f32 %v2771, %v2788
      %v2802 = vmul.f32 %v2775, %v2788
      %v2803 = vmul.f32 %v2779, %v2788
      %v2804 = vmul.f32 %v2783, %v2788
      %v2805 = vadd.f32 %v2705, %v2789
      %v2806 = vadd.f32 %v2706, %v2790
      %v2807 = vadd.f32 %v2707, %v2791
      %v2808 = vadd.f32 %v2708, %v2792
      %v2809 = vadd.f32 %v2709, %v2793
      %v2810 = vadd.f32 %v2710, %v2794
      %v2811 = vadd.f32 %v2711, %v2795
      %v2812 = vadd.f32 %v2712, %v2796
      %v2813 = vadd.f32 %v2713, %v2797
      %v2814 = vadd.f32 %v2714, %v2798
      %v2815 = vadd.f32 %v2715, %v2799
      %v2816 = vadd.f32 %v2716, %v2800
      %v2817 = vadd.f32 %v2717, %v2801
      %v2818 = vadd.f32 %v2718, %v2802
      %v2819 = vadd.f32 %v2719, %v2803
      %v2820 = vadd.f32 %v2720, %v2804
      %2821 = vset.pattern.permute.xlu0 21
      %2822 = vperm.xlu0 %2821, %v678
      %v2823 = vpop.permute.xlu0 %2822
      %2825 = vset.pattern.permute.xlu0 21
      %2826 = vperm.xlu0 %2825, %v679
      %v2827 = vpop.permute.xlu0 %2826
      %2829 = vset.pattern.permute.xlu0 21
      %2830 = vperm.xlu0 %2829, %v680
      %v2831 = vpop.permute.xlu0 %2830
      %2833 = vset.pattern.permute.xlu0 21
      %2834 = vperm.xlu0 %2833, %v681
      %v2835 = vpop.permute.xlu0 %2834
      %2837 = vset.pattern.permute.xlu0 21
      %2838 = vperm.xlu0 %2837, %v682
      %v2839 = vpop.permute.xlu0 %2838
      %2841 = vset.pattern.permute.xlu0 21
      %2842 = vperm.xlu0 %2841, %v683
      %v2843 = vpop.permute.xlu0 %2842
      %2845 = vset.pattern.permute.xlu0 21
      %2846 = vperm.xlu0 %2845, %v684
      %v2847 = vpop.permute.xlu0 %2846
      %2849 = vset.pattern.permute.xlu0 21
      %2850 = vperm.xlu0 %2849, %v685
      %v2851 = vpop.permute.xlu0 %2850
      %2853 = vset.pattern.permute.xlu0 21
      %2854 = vperm.xlu0 %2853, %v686
      %v2855 = vpop.permute.xlu0 %2854
      %2857 = vset.pattern.permute.xlu0 21
      %2858 = vperm.xlu0 %2857, %v687
      %v2859 = vpop.permute.xlu0 %2858
      %2861 = vset.pattern.permute.xlu0 21
      %2862 = vperm.xlu0 %2861, %v688
      %v2863 = vpop.permute.xlu0 %2862
      %2865 = vset.pattern.permute.xlu0 21
      %2866 = vperm.xlu0 %2865, %v689
      %v2867 = vpop.permute.xlu0 %2866
      %2869 = vset.pattern.permute.xlu0 21
      %2870 = vperm.xlu0 %2869, %v690
      %v2871 = vpop.permute.xlu0 %2870
      %2873 = vset.pattern.permute.xlu0 21
      %2874 = vperm.xlu0 %2873, %v691
      %v2875 = vpop.permute.xlu0 %2874
      %2877 = vset.pattern.permute.xlu0 21
      %2878 = vperm.xlu0 %2877, %v692
      %v2879 = vpop.permute.xlu0 %2878
      %2881 = vset.pattern.permute.xlu0 21
      %2882 = vperm.xlu0 %2881, %v693
      %v2883 = vpop.permute.xlu0 %2882
      %v2885 = vlaneseq
      %v2886 = vshrl.u32 %v2885, 7
      %v2887 = vsub.s32 5, %v2886
      %v2888 = vrot.slane %v696, %v2887
      %v2889 = vmul.f32 %v2823, %v2888
      %v2890 = vmul.f32 %v2827, %v2888
      %v2891 = vmul.f32 %v2831, %v2888
      %v2892 = vmul.f32 %v2835, %v2888
      %v2893 = vmul.f32 %v2839, %v2888
      %v2894 = vmul.f32 %v2843, %v2888
      %v2895 = vmul.f32 %v2847, %v2888
      %v2896 = vmul.f32 %v2851, %v2888
      %v2897 = vmul.f32 %v2855, %v2888
      %v2898 = vmul.f32 %v2859, %v2888
      %v2899 = vmul.f32 %v2863, %v2888
      %v2900 = vmul.f32 %v2867, %v2888
      %v2901 = vmul.f32 %v2871, %v2888
      %v2902 = vmul.f32 %v2875, %v2888
      %v2903 = vmul.f32 %v2879, %v2888
      %v2904 = vmul.f32 %v2883, %v2888
      %v2905 = vadd.f32 %v2805, %v2889
      %v2906 = vadd.f32 %v2806, %v2890
      %v2907 = vadd.f32 %v2807, %v2891
      %v2908 = vadd.f32 %v2808, %v2892
      %v2909 = vadd.f32 %v2809, %v2893
      %v2910 = vadd.f32 %v2810, %v2894
      %v2911 = vadd.f32 %v2811, %v2895
      %v2912 = vadd.f32 %v2812, %v2896
      %v2913 = vadd.f32 %v2813, %v2897
      %v2914 = vadd.f32 %v2814, %v2898
      %v2915 = vadd.f32 %v2815, %v2899
      %v2916 = vadd.f32 %v2816, %v2900
      %v2917 = vadd.f32 %v2817, %v2901
      %v2918 = vadd.f32 %v2818, %v2902
      %v2919 = vadd.f32 %v2819, %v2903
      %v2920 = vadd.f32 %v2820, %v2904
      %2921 = vset.pattern.permute.xlu0 22
      %2922 = vperm.xlu0 %2921, %v678
      %v2923 = vpop.permute.xlu0 %2922
      %2925 = vset.pattern.permute.xlu0 22
      %2926 = vperm.xlu0 %2925, %v679
      %v2927 = vpop.permute.xlu0 %2926
      %2929 = vset.pattern.permute.xlu0 22
      %2930 = vperm.xlu0 %2929, %v680
      %v2931 = vpop.permute.xlu0 %2930
      %2933 = vset.pattern.permute.xlu0 22
      %2934 = vperm.xlu0 %2933, %v681
      %v2935 = vpop.permute.xlu0 %2934
      %2937 = vset.pattern.permute.xlu0 22
      %2938 = vperm.xlu0 %2937, %v682
      %v2939 = vpop.permute.xlu0 %2938
      %2941 = vset.pattern.permute.xlu0 22
      %2942 = vperm.xlu0 %2941, %v683
      %v2943 = vpop.permute.xlu0 %2942
      %2945 = vset.pattern.permute.xlu0 22
      %2946 = vperm.xlu0 %2945, %v684
      %v2947 = vpop.permute.xlu0 %2946
      %2949 = vset.pattern.permute.xlu0 22
      %2950 = vperm.xlu0 %2949, %v685
      %v2951 = vpop.permute.xlu0 %2950
      %2953 = vset.pattern.permute.xlu0 22
      %2954 = vperm.xlu0 %2953, %v686
      %v2955 = vpop.permute.xlu0 %2954
      %2957 = vset.pattern.permute.xlu0 22
      %2958 = vperm.xlu0 %2957, %v687
      %v2959 = vpop.permute.xlu0 %2958
      %2961 = vset.pattern.permute.xlu0 22
      %2962 = vperm.xlu0 %2961, %v688
      %v2963 = vpop.permute.xlu0 %2962
      %2965 = vset.pattern.permute.xlu0 22
      %2966 = vperm.xlu0 %2965, %v689
      %v2967 = vpop.permute.xlu0 %2966
      %2969 = vset.pattern.permute.xlu0 22
      %2970 = vperm.xlu0 %2969, %v690
      %v2971 = vpop.permute.xlu0 %2970
      %2973 = vset.pattern.permute.xlu0 22
      %2974 = vperm.xlu0 %2973, %v691
      %v2975 = vpop.permute.xlu0 %2974
      %2977 = vset.pattern.permute.xlu0 22
      %2978 = vperm.xlu0 %2977, %v692
      %v2979 = vpop.permute.xlu0 %2978
      %2981 = vset.pattern.permute.xlu0 22
      %2982 = vperm.xlu0 %2981, %v693
      %v2983 = vpop.permute.xlu0 %2982
      %v2985 = vlaneseq
      %v2986 = vshrl.u32 %v2985, 7
      %v2987 = vsub.s32 6, %v2986
      %v2988 = vrot.slane %v696, %v2987
      %v2989 = vmul.f32 %v2923, %v2988
      %v2990 = vmul.f32 %v2927, %v2988
      %v2991 = vmul.f32 %v2931, %v2988
      %v2992 = vmul.f32 %v2935, %v2988
      %v2993 = vmul.f32 %v2939, %v2988
      %v2994 = vmul.f32 %v2943, %v2988
      %v2995 = vmul.f32 %v2947, %v2988
      %v2996 = vmul.f32 %v2951, %v2988
      %v2997 = vmul.f32 %v2955, %v2988
      %v2998 = vmul.f32 %v2959, %v2988
      %v2999 = vmul.f32 %v2963, %v2988
      %v3000 = vmul.f32 %v2967, %v2988
      %v3001 = vmul.f32 %v2971, %v2988
      %v3002 = vmul.f32 %v2975, %v2988
      %v3003 = vmul.f32 %v2979, %v2988
      %v3004 = vmul.f32 %v2983, %v2988
      %v3005 = vadd.f32 %v2905, %v2989
      %v3006 = vadd.f32 %v2906, %v2990
      %v3007 = vadd.f32 %v2907, %v2991
      %v3008 = vadd.f32 %v2908, %v2992
      %v3009 = vadd.f32 %v2909, %v2993
      %v3010 = vadd.f32 %v2910, %v2994
      %v3011 = vadd.f32 %v2911, %v2995
      %v3012 = vadd.f32 %v2912, %v2996
      %v3013 = vadd.f32 %v2913, %v2997
      %v3014 = vadd.f32 %v2914, %v2998
      %v3015 = vadd.f32 %v2915, %v2999
      %v3016 = vadd.f32 %v2916, %v3000
      %v3017 = vadd.f32 %v2917, %v3001
      %v3018 = vadd.f32 %v2918, %v3002
      %v3019 = vadd.f32 %v2919, %v3003
      %v3020 = vadd.f32 %v2920, %v3004
      %3021 = vset.pattern.permute.xlu0 23
      %3022 = vperm.xlu0 %3021, %v678
      %v3023 = vpop.permute.xlu0 %3022
      %3025 = vset.pattern.permute.xlu0 23
      %3026 = vperm.xlu0 %3025, %v679
      %v3027 = vpop.permute.xlu0 %3026
      %3029 = vset.pattern.permute.xlu0 23
      %3030 = vperm.xlu0 %3029, %v680
      %v3031 = vpop.permute.xlu0 %3030
      %3033 = vset.pattern.permute.xlu0 23
      %3034 = vperm.xlu0 %3033, %v681
      %v3035 = vpop.permute.xlu0 %3034
      %3037 = vset.pattern.permute.xlu0 23
      %3038 = vperm.xlu0 %3037, %v682
      %v3039 = vpop.permute.xlu0 %3038
      %3041 = vset.pattern.permute.xlu0 23
      %3042 = vperm.xlu0 %3041, %v683
      %v3043 = vpop.permute.xlu0 %3042
      %3045 = vset.pattern.permute.xlu0 23
      %3046 = vperm.xlu0 %3045, %v684
      %v3047 = vpop.permute.xlu0 %3046
      %3049 = vset.pattern.permute.xlu0 23
      %3050 = vperm.xlu0 %3049, %v685
      %v3051 = vpop.permute.xlu0 %3050
      %3053 = vset.pattern.permute.xlu0 23
      %3054 = vperm.xlu0 %3053, %v686
      %v3055 = vpop.permute.xlu0 %3054
      %3057 = vset.pattern.permute.xlu0 23
      %3058 = vperm.xlu0 %3057, %v687
      %v3059 = vpop.permute.xlu0 %3058
      %3061 = vset.pattern.permute.xlu0 23
      %3062 = vperm.xlu0 %3061, %v688
      %v3063 = vpop.permute.xlu0 %3062
      %3065 = vset.pattern.permute.xlu0 23
      %3066 = vperm.xlu0 %3065, %v689
      %v3067 = vpop.permute.xlu0 %3066
      %3069 = vset.pattern.permute.xlu0 23
      %3070 = vperm.xlu0 %3069, %v690
      %v3071 = vpop.permute.xlu0 %3070
      %3073 = vset.pattern.permute.xlu0 23
      %3074 = vperm.xlu0 %3073, %v691
      %v3075 = vpop.permute.xlu0 %3074
      %3077 = vset.pattern.permute.xlu0 23
      %3078 = vperm.xlu0 %3077, %v692
      %v3079 = vpop.permute.xlu0 %3078
      %3081 = vset.pattern.permute.xlu0 23
      %3082 = vperm.xlu0 %3081, %v693
      %v3083 = vpop.permute.xlu0 %3082
      %v3085 = vlaneseq
      %v3086 = vshrl.u32 %v3085, 7
      %v3087 = vsub.s32 7, %v3086
      %v3088 = vrot.slane %v696, %v3087
      %v3089 = vmul.f32 %v3023, %v3088
      %v3090 = vmul.f32 %v3027, %v3088
      %v3091 = vmul.f32 %v3031, %v3088
      %v3092 = vmul.f32 %v3035, %v3088
      %v3093 = vmul.f32 %v3039, %v3088
      %v3094 = vmul.f32 %v3043, %v3088
      %v3095 = vmul.f32 %v3047, %v3088
      %v3096 = vmul.f32 %v3051, %v3088
      %v3097 = vmul.f32 %v3055, %v3088
      %v3098 = vmul.f32 %v3059, %v3088
      %v3099 = vmul.f32 %v3063, %v3088
      %v3100 = vmul.f32 %v3067, %v3088
      %v3101 = vmul.f32 %v3071, %v3088
      %v3102 = vmul.f32 %v3075, %v3088
      %v3103 = vmul.f32 %v3079, %v3088
      %v3104 = vmul.f32 %v3083, %v3088
      %v3105 = vadd.f32 %v3005, %v3089
      %v3106 = vadd.f32 %v3006, %v3090
      %v3107 = vadd.f32 %v3007, %v3091
      %v3108 = vadd.f32 %v3008, %v3092
      %v3109 = vadd.f32 %v3009, %v3093
      %v3110 = vadd.f32 %v3010, %v3094
      %v3111 = vadd.f32 %v3011, %v3095
      %v3112 = vadd.f32 %v3012, %v3096
      %v3113 = vadd.f32 %v3013, %v3097
      %v3114 = vadd.f32 %v3014, %v3098
      %v3115 = vadd.f32 %v3015, %v3099
      %v3116 = vadd.f32 %v3016, %v3100
      %v3117 = vadd.f32 %v3017, %v3101
      %v3118 = vadd.f32 %v3018, %v3102
      %v3119 = vadd.f32 %v3019, %v3103
      %v3120 = vadd.f32 %v3020, %v3104
      %3121 = vset.pattern.permute.xlu0 24
      %3122 = vperm.xlu0 %3121, %v678
      %v3123 = vpop.permute.xlu0 %3122
      %3125 = vset.pattern.permute.xlu0 24
      %3126 = vperm.xlu0 %3125, %v679
      %v3127 = vpop.permute.xlu0 %3126
      %3129 = vset.pattern.permute.xlu0 24
      %3130 = vperm.xlu0 %3129, %v680
      %v3131 = vpop.permute.xlu0 %3130
      %3133 = vset.pattern.permute.xlu0 24
      %3134 = vperm.xlu0 %3133, %v681
      %v3135 = vpop.permute.xlu0 %3134
      %3137 = vset.pattern.permute.xlu0 24
      %3138 = vperm.xlu0 %3137, %v682
      %v3139 = vpop.permute.xlu0 %3138
      %3141 = vset.pattern.permute.xlu0 24
      %3142 = vperm.xlu0 %3141, %v683
      %v3143 = vpop.permute.xlu0 %3142
      %3145 = vset.pattern.permute.xlu0 24
      %3146 = vperm.xlu0 %3145, %v684
      %v3147 = vpop.permute.xlu0 %3146
      %3149 = vset.pattern.permute.xlu0 24
      %3150 = vperm.xlu0 %3149, %v685
      %v3151 = vpop.permute.xlu0 %3150
      %3153 = vset.pattern.permute.xlu0 24
      %3154 = vperm.xlu0 %3153, %v686
      %v3155 = vpop.permute.xlu0 %3154
      %3157 = vset.pattern.permute.xlu0 24
      %3158 = vperm.xlu0 %3157, %v687
      %v3159 = vpop.permute.xlu0 %3158
      %3161 = vset.pattern.permute.xlu0 24
      %3162 = vperm.xlu0 %3161, %v688
      %v3163 = vpop.permute.xlu0 %3162
      %3165 = vset.pattern.permute.xlu0 24
      %3166 = vperm.xlu0 %3165, %v689
      %v3167 = vpop.permute.xlu0 %3166
      %3169 = vset.pattern.permute.xlu0 24
      %3170 = vperm.xlu0 %3169, %v690
      %v3171 = vpop.permute.xlu0 %3170
      %3173 = vset.pattern.permute.xlu0 24
      %3174 = vperm.xlu0 %3173, %v691
      %v3175 = vpop.permute.xlu0 %3174
      %3177 = vset.pattern.permute.xlu0 24
      %3178 = vperm.xlu0 %3177, %v692
      %v3179 = vpop.permute.xlu0 %3178
      %3181 = vset.pattern.permute.xlu0 24
      %3182 = vperm.xlu0 %3181, %v693
      %v3183 = vpop.permute.xlu0 %3182
      %v3185 = vlaneseq
      %v3186 = vshrl.u32 %v3185, 7
      %v3187 = vsub.s32 0, %v3186
      %v3188 = vrot.slane %v697, %v3187
      %v3189 = vmul.f32 %v3123, %v3188
      %v3190 = vmul.f32 %v3127, %v3188
      %v3191 = vmul.f32 %v3131, %v3188
      %v3192 = vmul.f32 %v3135, %v3188
      %v3193 = vmul.f32 %v3139, %v3188
      %v3194 = vmul.f32 %v3143, %v3188
      %v3195 = vmul.f32 %v3147, %v3188
      %v3196 = vmul.f32 %v3151, %v3188
      %v3197 = vmul.f32 %v3155, %v3188
      %v3198 = vmul.f32 %v3159, %v3188
      %v3199 = vmul.f32 %v3163, %v3188
      %v3200 = vmul.f32 %v3167, %v3188
      %v3201 = vmul.f32 %v3171, %v3188
      %v3202 = vmul.f32 %v3175, %v3188
      %v3203 = vmul.f32 %v3179, %v3188
      %v3204 = vmul.f32 %v3183, %v3188
      %v3205 = vadd.f32 %v3105, %v3189
      %v3206 = vadd.f32 %v3106, %v3190
      %v3207 = vadd.f32 %v3107, %v3191
      %v3208 = vadd.f32 %v3108, %v3192
      %v3209 = vadd.f32 %v3109, %v3193
      %v3210 = vadd.f32 %v3110, %v3194
      %v3211 = vadd.f32 %v3111, %v3195
      %v3212 = vadd.f32 %v3112, %v3196
      %v3213 = vadd.f32 %v3113, %v3197
      %v3214 = vadd.f32 %v3114, %v3198
      %v3215 = vadd.f32 %v3115, %v3199
      %v3216 = vadd.f32 %v3116, %v3200
      %v3217 = vadd.f32 %v3117, %v3201
      %v3218 = vadd.f32 %v3118, %v3202
      %v3219 = vadd.f32 %v3119, %v3203
      %v3220 = vadd.f32 %v3120, %v3204
      %3221 = vset.pattern.permute.xlu0 25
      %3222 = vperm.xlu0 %3221, %v678
      %v3223 = vpop.permute.xlu0 %3222
      %3225 = vset.pattern.permute.xlu0 25
      %3226 = vperm.xlu0 %3225, %v679
      %v3227 = vpop.permute.xlu0 %3226
      %3229 = vset.pattern.permute.xlu0 25
      %3230 = vperm.xlu0 %3229, %v680
      %v3231 = vpop.permute.xlu0 %3230
      %3233 = vset.pattern.permute.xlu0 25
      %3234 = vperm.xlu0 %3233, %v681
      %v3235 = vpop.permute.xlu0 %3234
      %3237 = vset.pattern.permute.xlu0 25
      %3238 = vperm.xlu0 %3237, %v682
      %v3239 = vpop.permute.xlu0 %3238
      %3241 = vset.pattern.permute.xlu0 25
      %3242 = vperm.xlu0 %3241, %v683
      %v3243 = vpop.permute.xlu0 %3242
      %3245 = vset.pattern.permute.xlu0 25
      %3246 = vperm.xlu0 %3245, %v684
      %v3247 = vpop.permute.xlu0 %3246
      %3249 = vset.pattern.permute.xlu0 25
      %3250 = vperm.xlu0 %3249, %v685
      %v3251 = vpop.permute.xlu0 %3250
      %3253 = vset.pattern.permute.xlu0 25
      %3254 = vperm.xlu0 %3253, %v686
      %v3255 = vpop.permute.xlu0 %3254
      %3257 = vset.pattern.permute.xlu0 25
      %3258 = vperm.xlu0 %3257, %v687
      %v3259 = vpop.permute.xlu0 %3258
      %3261 = vset.pattern.permute.xlu0 25
      %3262 = vperm.xlu0 %3261, %v688
      %v3263 = vpop.permute.xlu0 %3262
      %3265 = vset.pattern.permute.xlu0 25
      %3266 = vperm.xlu0 %3265, %v689
      %v3267 = vpop.permute.xlu0 %3266
      %3269 = vset.pattern.permute.xlu0 25
      %3270 = vperm.xlu0 %3269, %v690
      %v3271 = vpop.permute.xlu0 %3270
      %3273 = vset.pattern.permute.xlu0 25
      %3274 = vperm.xlu0 %3273, %v691
      %v3275 = vpop.permute.xlu0 %3274
      %3277 = vset.pattern.permute.xlu0 25
      %3278 = vperm.xlu0 %3277, %v692
      %v3279 = vpop.permute.xlu0 %3278
      %3281 = vset.pattern.permute.xlu0 25
      %3282 = vperm.xlu0 %3281, %v693
      %v3283 = vpop.permute.xlu0 %3282
      %v3285 = vlaneseq
      %v3286 = vshrl.u32 %v3285, 7
      %v3287 = vsub.s32 1, %v3286
      %v3288 = vrot.slane %v697, %v3287
      %v3289 = vmul.f32 %v3223, %v3288
      %v3290 = vmul.f32 %v3227, %v3288
      %v3291 = vmul.f32 %v3231, %v3288
      %v3292 = vmul.f32 %v3235, %v3288
      %v3293 = vmul.f32 %v3239, %v3288
      %v3294 = vmul.f32 %v3243, %v3288
      %v3295 = vmul.f32 %v3247, %v3288
      %v3296 = vmul.f32 %v3251, %v3288
      %v3297 = vmul.f32 %v3255, %v3288
      %v3298 = vmul.f32 %v3259, %v3288
      %v3299 = vmul.f32 %v3263, %v3288
      %v3300 = vmul.f32 %v3267, %v3288
      %v3301 = vmul.f32 %v3271, %v3288
      %v3302 = vmul.f32 %v3275, %v3288
      %v3303 = vmul.f32 %v3279, %v3288
      %v3304 = vmul.f32 %v3283, %v3288
      %v3305 = vadd.f32 %v3205, %v3289
      %v3306 = vadd.f32 %v3206, %v3290
      %v3307 = vadd.f32 %v3207, %v3291
      %v3308 = vadd.f32 %v3208, %v3292
      %v3309 = vadd.f32 %v3209, %v3293
      %v3310 = vadd.f32 %v3210, %v3294
      %v3311 = vadd.f32 %v3211, %v3295
      %v3312 = vadd.f32 %v3212, %v3296
      %v3313 = vadd.f32 %v3213, %v3297
      %v3314 = vadd.f32 %v3214, %v3298
      %v3315 = vadd.f32 %v3215, %v3299
      %v3316 = vadd.f32 %v3216, %v3300
      %v3317 = vadd.f32 %v3217, %v3301
      %v3318 = vadd.f32 %v3218, %v3302
      %v3319 = vadd.f32 %v3219, %v3303
      %v3320 = vadd.f32 %v3220, %v3304
      %3321 = vset.pattern.permute.xlu0 26
      %3322 = vperm.xlu0 %3321, %v678
      %v3323 = vpop.permute.xlu0 %3322
      %3325 = vset.pattern.permute.xlu0 26
      %3326 = vperm.xlu0 %3325, %v679
      %v3327 = vpop.permute.xlu0 %3326
      %3329 = vset.pattern.permute.xlu0 26
      %3330 = vperm.xlu0 %3329, %v680
      %v3331 = vpop.permute.xlu0 %3330
      %3333 = vset.pattern.permute.xlu0 26
      %3334 = vperm.xlu0 %3333, %v681
      %v3335 = vpop.permute.xlu0 %3334
      %3337 = vset.pattern.permute.xlu0 26
      %3338 = vperm.xlu0 %3337, %v682
      %v3339 = vpop.permute.xlu0 %3338
      %3341 = vset.pattern.permute.xlu0 26
      %3342 = vperm.xlu0 %3341, %v683
      %v3343 = vpop.permute.xlu0 %3342
      %3345 = vset.pattern.permute.xlu0 26
      %3346 = vperm.xlu0 %3345, %v684
      %v3347 = vpop.permute.xlu0 %3346
      %3349 = vset.pattern.permute.xlu0 26
      %3350 = vperm.xlu0 %3349, %v685
      %v3351 = vpop.permute.xlu0 %3350
      %3353 = vset.pattern.permute.xlu0 26
      %3354 = vperm.xlu0 %3353, %v686
      %v3355 = vpop.permute.xlu0 %3354
      %3357 = vset.pattern.permute.xlu0 26
      %3358 = vperm.xlu0 %3357, %v687
      %v3359 = vpop.permute.xlu0 %3358
      %3361 = vset.pattern.permute.xlu0 26
      %3362 = vperm.xlu0 %3361, %v688
      %v3363 = vpop.permute.xlu0 %3362
      %3365 = vset.pattern.permute.xlu0 26
      %3366 = vperm.xlu0 %3365, %v689
      %v3367 = vpop.permute.xlu0 %3366
      %3369 = vset.pattern.permute.xlu0 26
      %3370 = vperm.xlu0 %3369, %v690
      %v3371 = vpop.permute.xlu0 %3370
      %3373 = vset.pattern.permute.xlu0 26
      %3374 = vperm.xlu0 %3373, %v691
      %v3375 = vpop.permute.xlu0 %3374
      %3377 = vset.pattern.permute.xlu0 26
      %3378 = vperm.xlu0 %3377, %v692
      %v3379 = vpop.permute.xlu0 %3378
      %3381 = vset.pattern.permute.xlu0 26
      %3382 = vperm.xlu0 %3381, %v693
      %v3383 = vpop.permute.xlu0 %3382
      %v3385 = vlaneseq
      %v3386 = vshrl.u32 %v3385, 7
      %v3387 = vsub.s32 2, %v3386
      %v3388 = vrot.slane %v697, %v3387
      %v3389 = vmul.f32 %v3323, %v3388
      %v3390 = vmul.f32 %v3327, %v3388
      %v3391 = vmul.f32 %v3331, %v3388
      %v3392 = vmul.f32 %v3335, %v3388
      %v3393 = vmul.f32 %v3339, %v3388
      %v3394 = vmul.f32 %v3343, %v3388
      %v3395 = vmul.f32 %v3347, %v3388
      %v3396 = vmul.f32 %v3351, %v3388
      %v3397 = vmul.f32 %v3355, %v3388
      %v3398 = vmul.f32 %v3359, %v3388
      %v3399 = vmul.f32 %v3363, %v3388
      %v3400 = vmul.f32 %v3367, %v3388
      %v3401 = vmul.f32 %v3371, %v3388
      %v3402 = vmul.f32 %v3375, %v3388
      %v3403 = vmul.f32 %v3379, %v3388
      %v3404 = vmul.f32 %v3383, %v3388
      %v3405 = vadd.f32 %v3305, %v3389
      %v3406 = vadd.f32 %v3306, %v3390
      %v3407 = vadd.f32 %v3307, %v3391
      %v3408 = vadd.f32 %v3308, %v3392
      %v3409 = vadd.f32 %v3309, %v3393
      %v3410 = vadd.f32 %v3310, %v3394
      %v3411 = vadd.f32 %v3311, %v3395
      %v3412 = vadd.f32 %v3312, %v3396
      %v3413 = vadd.f32 %v3313, %v3397
      %v3414 = vadd.f32 %v3314, %v3398
      %v3415 = vadd.f32 %v3315, %v3399
      %v3416 = vadd.f32 %v3316, %v3400
      %v3417 = vadd.f32 %v3317, %v3401
      %v3418 = vadd.f32 %v3318, %v3402
      %v3419 = vadd.f32 %v3319, %v3403
      %v3420 = vadd.f32 %v3320, %v3404
      %3421 = vset.pattern.permute.xlu0 27
      %3422 = vperm.xlu0 %3421, %v678
      %v3423 = vpop.permute.xlu0 %3422
      %3425 = vset.pattern.permute.xlu0 27
      %3426 = vperm.xlu0 %3425, %v679
      %v3427 = vpop.permute.xlu0 %3426
      %3429 = vset.pattern.permute.xlu0 27
      %3430 = vperm.xlu0 %3429, %v680
      %v3431 = vpop.permute.xlu0 %3430
      %3433 = vset.pattern.permute.xlu0 27
      %3434 = vperm.xlu0 %3433, %v681
      %v3435 = vpop.permute.xlu0 %3434
      %3437 = vset.pattern.permute.xlu0 27
      %3438 = vperm.xlu0 %3437, %v682
      %v3439 = vpop.permute.xlu0 %3438
      %3441 = vset.pattern.permute.xlu0 27
      %3442 = vperm.xlu0 %3441, %v683
      %v3443 = vpop.permute.xlu0 %3442
      %3445 = vset.pattern.permute.xlu0 27
      %3446 = vperm.xlu0 %3445, %v684
      %v3447 = vpop.permute.xlu0 %3446
      %3449 = vset.pattern.permute.xlu0 27
      %3450 = vperm.xlu0 %3449, %v685
      %v3451 = vpop.permute.xlu0 %3450
      %3453 = vset.pattern.permute.xlu0 27
      %3454 = vperm.xlu0 %3453, %v686
      %v3455 = vpop.permute.xlu0 %3454
      %3457 = vset.pattern.permute.xlu0 27
      %3458 = vperm.xlu0 %3457, %v687
      %v3459 = vpop.permute.xlu0 %3458
      %3461 = vset.pattern.permute.xlu0 27
      %3462 = vperm.xlu0 %3461, %v688
      %v3463 = vpop.permute.xlu0 %3462
      %3465 = vset.pattern.permute.xlu0 27
      %3466 = vperm.xlu0 %3465, %v689
      %v3467 = vpop.permute.xlu0 %3466
      %3469 = vset.pattern.permute.xlu0 27
      %3470 = vperm.xlu0 %3469, %v690
      %v3471 = vpop.permute.xlu0 %3470
      %3473 = vset.pattern.permute.xlu0 27
      %3474 = vperm.xlu0 %3473, %v691
      %v3475 = vpop.permute.xlu0 %3474
      %3477 = vset.pattern.permute.xlu0 27
      %3478 = vperm.xlu0 %3477, %v692
      %v3479 = vpop.permute.xlu0 %3478
      %3481 = vset.pattern.permute.xlu0 27
      %3482 = vperm.xlu0 %3481, %v693
      %v3483 = vpop.permute.xlu0 %3482
      %v3485 = vlaneseq
      %v3486 = vshrl.u32 %v3485, 7
      %v3487 = vsub.s32 3, %v3486
      %v3488 = vrot.slane %v697, %v3487
      %v3489 = vmul.f32 %v3423, %v3488
      %v3490 = vmul.f32 %v3427, %v3488
      %v3491 = vmul.f32 %v3431, %v3488
      %v3492 = vmul.f32 %v3435, %v3488
      %v3493 = vmul.f32 %v3439, %v3488
      %v3494 = vmul.f32 %v3443, %v3488
      %v3495 = vmul.f32 %v3447, %v3488
      %v3496 = vmul.f32 %v3451, %v3488
      %v3497 = vmul.f32 %v3455, %v3488
      %v3498 = vmul.f32 %v3459, %v3488
      %v3499 = vmul.f32 %v3463, %v3488
      %v3500 = vmul.f32 %v3467, %v3488
      %v3501 = vmul.f32 %v3471, %v3488
      %v3502 = vmul.f32 %v3475, %v3488
      %v3503 = vmul.f32 %v3479, %v3488
      %v3504 = vmul.f32 %v3483, %v3488
      %v3505 = vadd.f32 %v3405, %v3489
      %v3506 = vadd.f32 %v3406, %v3490
      %v3507 = vadd.f32 %v3407, %v3491
      %v3508 = vadd.f32 %v3408, %v3492
      %v3509 = vadd.f32 %v3409, %v3493
      %v3510 = vadd.f32 %v3410, %v3494
      %v3511 = vadd.f32 %v3411, %v3495
      %v3512 = vadd.f32 %v3412, %v3496
      %v3513 = vadd.f32 %v3413, %v3497
      %v3514 = vadd.f32 %v3414, %v3498
      %v3515 = vadd.f32 %v3415, %v3499
      %v3516 = vadd.f32 %v3416, %v3500
      %v3517 = vadd.f32 %v3417, %v3501
      %v3518 = vadd.f32 %v3418, %v3502
      %v3519 = vadd.f32 %v3419, %v3503
      %v3520 = vadd.f32 %v3420, %v3504
      %3521 = vset.pattern.permute.xlu0 28
      %3522 = vperm.xlu0 %3521, %v678
      %v3523 = vpop.permute.xlu0 %3522
      %3525 = vset.pattern.permute.xlu0 28
      %3526 = vperm.xlu0 %3525, %v679
      %v3527 = vpop.permute.xlu0 %3526
      %3529 = vset.pattern.permute.xlu0 28
      %3530 = vperm.xlu0 %3529, %v680
      %v3531 = vpop.permute.xlu0 %3530
      %3533 = vset.pattern.permute.xlu0 28
      %3534 = vperm.xlu0 %3533, %v681
      %v3535 = vpop.permute.xlu0 %3534
      %3537 = vset.pattern.permute.xlu0 28
      %3538 = vperm.xlu0 %3537, %v682
      %v3539 = vpop.permute.xlu0 %3538
      %3541 = vset.pattern.permute.xlu0 28
      %3542 = vperm.xlu0 %3541, %v683
      %v3543 = vpop.permute.xlu0 %3542
      %3545 = vset.pattern.permute.xlu0 28
      %3546 = vperm.xlu0 %3545, %v684
      %v3547 = vpop.permute.xlu0 %3546
      %3549 = vset.pattern.permute.xlu0 28
      %3550 = vperm.xlu0 %3549, %v685
      %v3551 = vpop.permute.xlu0 %3550
      %3553 = vset.pattern.permute.xlu0 28
      %3554 = vperm.xlu0 %3553, %v686
      %v3555 = vpop.permute.xlu0 %3554
      %3557 = vset.pattern.permute.xlu0 28
      %3558 = vperm.xlu0 %3557, %v687
      %v3559 = vpop.permute.xlu0 %3558
      %3561 = vset.pattern.permute.xlu0 28
      %3562 = vperm.xlu0 %3561, %v688
      %v3563 = vpop.permute.xlu0 %3562
      %3565 = vset.pattern.permute.xlu0 28
      %3566 = vperm.xlu0 %3565, %v689
      %v3567 = vpop.permute.xlu0 %3566
      %3569 = vset.pattern.permute.xlu0 28
      %3570 = vperm.xlu0 %3569, %v690
      %v3571 = vpop.permute.xlu0 %3570
      %3573 = vset.pattern.permute.xlu0 28
      %3574 = vperm.xlu0 %3573, %v691
      %v3575 = vpop.permute.xlu0 %3574
      %3577 = vset.pattern.permute.xlu0 28
      %3578 = vperm.xlu0 %3577, %v692
      %v3579 = vpop.permute.xlu0 %3578
      %3581 = vset.pattern.permute.xlu0 28
      %3582 = vperm.xlu0 %3581, %v693
      %v3583 = vpop.permute.xlu0 %3582
      %v3585 = vlaneseq
      %v3586 = vshrl.u32 %v3585, 7
      %v3587 = vsub.s32 4, %v3586
      %v3588 = vrot.slane %v697, %v3587
      %v3589 = vmul.f32 %v3523, %v3588
      %v3590 = vmul.f32 %v3527, %v3588
      %v3591 = vmul.f32 %v3531, %v3588
      %v3592 = vmul.f32 %v3535, %v3588
      %v3593 = vmul.f32 %v3539, %v3588
      %v3594 = vmul.f32 %v3543, %v3588
      %v3595 = vmul.f32 %v3547, %v3588
      %v3596 = vmul.f32 %v3551, %v3588
      %v3597 = vmul.f32 %v3555, %v3588
      %v3598 = vmul.f32 %v3559, %v3588
      %v3599 = vmul.f32 %v3563, %v3588
      %v3600 = vmul.f32 %v3567, %v3588
      %v3601 = vmul.f32 %v3571, %v3588
      %v3602 = vmul.f32 %v3575, %v3588
      %v3603 = vmul.f32 %v3579, %v3588
      %v3604 = vmul.f32 %v3583, %v3588
      %v3605 = vadd.f32 %v3505, %v3589
      %v3606 = vadd.f32 %v3506, %v3590
      %v3607 = vadd.f32 %v3507, %v3591
      %v3608 = vadd.f32 %v3508, %v3592
      %v3609 = vadd.f32 %v3509, %v3593
      %v3610 = vadd.f32 %v3510, %v3594
      %v3611 = vadd.f32 %v3511, %v3595
      %v3612 = vadd.f32 %v3512, %v3596
      %v3613 = vadd.f32 %v3513, %v3597
      %v3614 = vadd.f32 %v3514, %v3598
      %v3615 = vadd.f32 %v3515, %v3599
      %v3616 = vadd.f32 %v3516, %v3600
      %v3617 = vadd.f32 %v3517, %v3601
      %v3618 = vadd.f32 %v3518, %v3602
      %v3619 = vadd.f32 %v3519, %v3603
      %v3620 = vadd.f32 %v3520, %v3604
      %3621 = vset.pattern.permute.xlu0 29
      %3622 = vperm.xlu0 %3621, %v678
      %v3623 = vpop.permute.xlu0 %3622
      %3625 = vset.pattern.permute.xlu0 29
      %3626 = vperm.xlu0 %3625, %v679
      %v3627 = vpop.permute.xlu0 %3626
      %3629 = vset.pattern.permute.xlu0 29
      %3630 = vperm.xlu0 %3629, %v680
      %v3631 = vpop.permute.xlu0 %3630
      %3633 = vset.pattern.permute.xlu0 29
      %3634 = vperm.xlu0 %3633, %v681
      %v3635 = vpop.permute.xlu0 %3634
      %3637 = vset.pattern.permute.xlu0 29
      %3638 = vperm.xlu0 %3637, %v682
      %v3639 = vpop.permute.xlu0 %3638
      %3641 = vset.pattern.permute.xlu0 29
      %3642 = vperm.xlu0 %3641, %v683
      %v3643 = vpop.permute.xlu0 %3642
      %3645 = vset.pattern.permute.xlu0 29
      %3646 = vperm.xlu0 %3645, %v684
      %v3647 = vpop.permute.xlu0 %3646
      %3649 = vset.pattern.permute.xlu0 29
      %3650 = vperm.xlu0 %3649, %v685
      %v3651 = vpop.permute.xlu0 %3650
      %3653 = vset.pattern.permute.xlu0 29
      %3654 = vperm.xlu0 %3653, %v686
      %v3655 = vpop.permute.xlu0 %3654
      %3657 = vset.pattern.permute.xlu0 29
      %3658 = vperm.xlu0 %3657, %v687
      %v3659 = vpop.permute.xlu0 %3658
      %3661 = vset.pattern.permute.xlu0 29
      %3662 = vperm.xlu0 %3661, %v688
      %v3663 = vpop.permute.xlu0 %3662
      %3665 = vset.pattern.permute.xlu0 29
      %3666 = vperm.xlu0 %3665, %v689
      %v3667 = vpop.permute.xlu0 %3666
      %3669 = vset.pattern.permute.xlu0 29
      %3670 = vperm.xlu0 %3669, %v690
      %v3671 = vpop.permute.xlu0 %3670
      %3673 = vset.pattern.permute.xlu0 29
      %3674 = vperm.xlu0 %3673, %v691
      %v3675 = vpop.permute.xlu0 %3674
      %3677 = vset.pattern.permute.xlu0 29
      %3678 = vperm.xlu0 %3677, %v692
      %v3679 = vpop.permute.xlu0 %3678
      %3681 = vset.pattern.permute.xlu0 29
      %3682 = vperm.xlu0 %3681, %v693
      %v3683 = vpop.permute.xlu0 %3682
      %v3685 = vlaneseq
      %v3686 = vshrl.u32 %v3685, 7
      %v3687 = vsub.s32 5, %v3686
      %v3688 = vrot.slane %v697, %v3687
      %v3689 = vmul.f32 %v3623, %v3688
      %v3690 = vmul.f32 %v3627, %v3688
      %v3691 = vmul.f32 %v3631, %v3688
      %v3692 = vmul.f32 %v3635, %v3688
      %v3693 = vmul.f32 %v3639, %v3688
      %v3694 = vmul.f32 %v3643, %v3688
      %v3695 = vmul.f32 %v3647, %v3688
      %v3696 = vmul.f32 %v3651, %v3688
      %v3697 = vmul.f32 %v3655, %v3688
      %v3698 = vmul.f32 %v3659, %v3688
      %v3699 = vmul.f32 %v3663, %v3688
      %v3700 = vmul.f32 %v3667, %v3688
      %v3701 = vmul.f32 %v3671, %v3688
      %v3702 = vmul.f32 %v3675, %v3688
      %v3703 = vmul.f32 %v3679, %v3688
      %v3704 = vmul.f32 %v3683, %v3688
      %v3705 = vadd.f32 %v3605, %v3689
      %v3706 = vadd.f32 %v3606, %v3690
      %v3707 = vadd.f32 %v3607, %v3691
      %v3708 = vadd.f32 %v3608, %v3692
      %v3709 = vadd.f32 %v3609, %v3693
      %v3710 = vadd.f32 %v3610, %v3694
      %v3711 = vadd.f32 %v3611, %v3695
      %v3712 = vadd.f32 %v3612, %v3696
      %v3713 = vadd.f32 %v3613, %v3697
      %v3714 = vadd.f32 %v3614, %v3698
      %v3715 = vadd.f32 %v3615, %v3699
      %v3716 = vadd.f32 %v3616, %v3700
      %v3717 = vadd.f32 %v3617, %v3701
      %v3718 = vadd.f32 %v3618, %v3702
      %v3719 = vadd.f32 %v3619, %v3703
      %v3720 = vadd.f32 %v3620, %v3704
      %3721 = vset.pattern.permute.xlu0 30
      %3722 = vperm.xlu0 %3721, %v678
      %v3723 = vpop.permute.xlu0 %3722
      %3725 = vset.pattern.permute.xlu0 30
      %3726 = vperm.xlu0 %3725, %v679
      %v3727 = vpop.permute.xlu0 %3726
      %3729 = vset.pattern.permute.xlu0 30
      %3730 = vperm.xlu0 %3729, %v680
      %v3731 = vpop.permute.xlu0 %3730
      %3733 = vset.pattern.permute.xlu0 30
      %3734 = vperm.xlu0 %3733, %v681
      %v3735 = vpop.permute.xlu0 %3734
      %3737 = vset.pattern.permute.xlu0 30
      %3738 = vperm.xlu0 %3737, %v682
      %v3739 = vpop.permute.xlu0 %3738
      %3741 = vset.pattern.permute.xlu0 30
      %3742 = vperm.xlu0 %3741, %v683
      %v3743 = vpop.permute.xlu0 %3742
      %3745 = vset.pattern.permute.xlu0 30
      %3746 = vperm.xlu0 %3745, %v684
      %v3747 = vpop.permute.xlu0 %3746
      %3749 = vset.pattern.permute.xlu0 30
      %3750 = vperm.xlu0 %3749, %v685
      %v3751 = vpop.permute.xlu0 %3750
      %3753 = vset.pattern.permute.xlu0 30
      %3754 = vperm.xlu0 %3753, %v686
      %v3755 = vpop.permute.xlu0 %3754
      %3757 = vset.pattern.permute.xlu0 30
      %3758 = vperm.xlu0 %3757, %v687
      %v3759 = vpop.permute.xlu0 %3758
      %3761 = vset.pattern.permute.xlu0 30
      %3762 = vperm.xlu0 %3761, %v688
      %v3763 = vpop.permute.xlu0 %3762
      %3765 = vset.pattern.permute.xlu0 30
      %3766 = vperm.xlu0 %3765, %v689
      %v3767 = vpop.permute.xlu0 %3766
      %3769 = vset.pattern.permute.xlu0 30
      %3770 = vperm.xlu0 %3769, %v690
      %v3771 = vpop.permute.xlu0 %3770
      %3773 = vset.pattern.permute.xlu0 30
      %3774 = vperm.xlu0 %3773, %v691
      %v3775 = vpop.permute.xlu0 %3774
      %3777 = vset.pattern.permute.xlu0 30
      %3778 = vperm.xlu0 %3777, %v692
      %v3779 = vpop.permute.xlu0 %3778
      %3781 = vset.pattern.permute.xlu0 30
      %3782 = vperm.xlu0 %3781, %v693
      %v3783 = vpop.permute.xlu0 %3782
      %v3785 = vlaneseq
      %v3786 = vshrl.u32 %v3785, 7
      %v3787 = vsub.s32 6, %v3786
      %v3788 = vrot.slane %v697, %v3787
      %v3789 = vmul.f32 %v3723, %v3788
      %v3790 = vmul.f32 %v3727, %v3788
      %v3791 = vmul.f32 %v3731, %v3788
      %v3792 = vmul.f32 %v3735, %v3788
      %v3793 = vmul.f32 %v3739, %v3788
      %v3794 = vmul.f32 %v3743, %v3788
      %v3795 = vmul.f32 %v3747, %v3788
      %v3796 = vmul.f32 %v3751, %v3788
      %v3797 = vmul.f32 %v3755, %v3788
      %v3798 = vmul.f32 %v3759, %v3788
      %v3799 = vmul.f32 %v3763, %v3788
      %v3800 = vmul.f32 %v3767, %v3788
      %v3801 = vmul.f32 %v3771, %v3788
      %v3802 = vmul.f32 %v3775, %v3788
      %v3803 = vmul.f32 %v3779, %v3788
      %v3804 = vmul.f32 %v3783, %v3788
      %v3805 = vadd.f32 %v3705, %v3789
      %v3806 = vadd.f32 %v3706, %v3790
      %v3807 = vadd.f32 %v3707, %v3791
      %v3808 = vadd.f32 %v3708, %v3792
      %v3809 = vadd.f32 %v3709, %v3793
      %v3810 = vadd.f32 %v3710, %v3794
      %v3811 = vadd.f32 %v3711, %v3795
      %v3812 = vadd.f32 %v3712, %v3796
      %v3813 = vadd.f32 %v3713, %v3797
      %v3814 = vadd.f32 %v3714, %v3798
      %v3815 = vadd.f32 %v3715, %v3799
      %v3816 = vadd.f32 %v3716, %v3800
      %v3817 = vadd.f32 %v3717, %v3801
      %v3818 = vadd.f32 %v3718, %v3802
      %v3819 = vadd.f32 %v3719, %v3803
      %v3820 = vadd.f32 %v3720, %v3804
      %3821 = vset.pattern.permute.xlu0 31
      %3822 = vperm.xlu0 %3821, %v678
      %v3823 = vpop.permute.xlu0 %3822
      %3825 = vset.pattern.permute.xlu0 31
      %3826 = vperm.xlu0 %3825, %v679
      %v3827 = vpop.permute.xlu0 %3826
      %3829 = vset.pattern.permute.xlu0 31
      %3830 = vperm.xlu0 %3829, %v680
      %v3831 = vpop.permute.xlu0 %3830
      %3833 = vset.pattern.permute.xlu0 31
      %3834 = vperm.xlu0 %3833, %v681
      %v3835 = vpop.permute.xlu0 %3834
      %3837 = vset.pattern.permute.xlu0 31
      %3838 = vperm.xlu0 %3837, %v682
      %v3839 = vpop.permute.xlu0 %3838
      %3841 = vset.pattern.permute.xlu0 31
      %3842 = vperm.xlu0 %3841, %v683
      %v3843 = vpop.permute.xlu0 %3842
      %3845 = vset.pattern.permute.xlu0 31
      %3846 = vperm.xlu0 %3845, %v684
      %v3847 = vpop.permute.xlu0 %3846
      %3849 = vset.pattern.permute.xlu0 31
      %3850 = vperm.xlu0 %3849, %v685
      %v3851 = vpop.permute.xlu0 %3850
      %3853 = vset.pattern.permute.xlu0 31
      %3854 = vperm.xlu0 %3853, %v686
      %v3855 = vpop.permute.xlu0 %3854
      %3857 = vset.pattern.permute.xlu0 31
      %3858 = vperm.xlu0 %3857, %v687
      %v3859 = vpop.permute.xlu0 %3858
      %3861 = vset.pattern.permute.xlu0 31
      %3862 = vperm.xlu0 %3861, %v688
      %v3863 = vpop.permute.xlu0 %3862
      %3865 = vset.pattern.permute.xlu0 31
      %3866 = vperm.xlu0 %3865, %v689
      %v3867 = vpop.permute.xlu0 %3866
      %3869 = vset.pattern.permute.xlu0 31
      %3870 = vperm.xlu0 %3869, %v690
      %v3871 = vpop.permute.xlu0 %3870
      %3873 = vset.pattern.permute.xlu0 31
      %3874 = vperm.xlu0 %3873, %v691
      %v3875 = vpop.permute.xlu0 %3874
      %3877 = vset.pattern.permute.xlu0 31
      %3878 = vperm.xlu0 %3877, %v692
      %v3879 = vpop.permute.xlu0 %3878
      %3881 = vset.pattern.permute.xlu0 31
      %3882 = vperm.xlu0 %3881, %v693
      %v3883 = vpop.permute.xlu0 %3882
      %v3885 = vlaneseq
      %v3886 = vshrl.u32 %v3885, 7
      %v3887 = vsub.s32 7, %v3886
      %v3888 = vrot.slane %v697, %v3887
      %v3889 = vmul.f32 %v3823, %v3888
      %v3890 = vmul.f32 %v3827, %v3888
      %v3891 = vmul.f32 %v3831, %v3888
      %v3892 = vmul.f32 %v3835, %v3888
      %v3893 = vmul.f32 %v3839, %v3888
      %v3894 = vmul.f32 %v3843, %v3888
      %v3895 = vmul.f32 %v3847, %v3888
      %v3896 = vmul.f32 %v3851, %v3888
      %v3897 = vmul.f32 %v3855, %v3888
      %v3898 = vmul.f32 %v3859, %v3888
      %v3899 = vmul.f32 %v3863, %v3888
      %v3900 = vmul.f32 %v3867, %v3888
      %v3901 = vmul.f32 %v3871, %v3888
      %v3902 = vmul.f32 %v3875, %v3888
      %v3903 = vmul.f32 %v3879, %v3888
      %v3904 = vmul.f32 %v3883, %v3888
      %v3905 = vadd.f32 %v3805, %v3889
      %v3906 = vadd.f32 %v3806, %v3890
      %v3907 = vadd.f32 %v3807, %v3891
      %v3908 = vadd.f32 %v3808, %v3892
      %v3909 = vadd.f32 %v3809, %v3893
      %v3910 = vadd.f32 %v3810, %v3894
      %v3911 = vadd.f32 %v3811, %v3895
      %v3912 = vadd.f32 %v3812, %v3896
      %v3913 = vadd.f32 %v3813, %v3897
      %v3914 = vadd.f32 %v3814, %v3898
      %v3915 = vadd.f32 %v3815, %v3899
      %v3916 = vadd.f32 %v3816, %v3900
      %v3917 = vadd.f32 %v3817, %v3901
      %v3918 = vadd.f32 %v3818, %v3902
      %v3919 = vadd.f32 %v3819, %v3903
      %v3920 = vadd.f32 %v3820, %v3904
      %v3921 = vmax.f32 %v3905, 0.0
      %v3922 = vmax.f32 %v3906, 0.0
      %v3923 = vmax.f32 %v3907, 0.0
      %v3924 = vmax.f32 %v3908, 0.0
      %v3925 = vmax.f32 %v3909, 0.0
      %v3926 = vmax.f32 %v3910, 0.0
      %v3927 = vmax.f32 %v3911, 0.0
      %v3928 = vmax.f32 %v3912, 0.0
      %v3929 = vmax.f32 %v3913, 0.0
      %v3930 = vmax.f32 %v3914, 0.0
      %v3931 = vmax.f32 %v3915, 0.0
      %v3932 = vmax.f32 %v3916, 0.0
      %v3933 = vmax.f32 %v3917, 0.0
      %v3934 = vmax.f32 %v3918, 0.0
      %v3935 = vmax.f32 %v3919, 0.0
      %v3936 = vmax.f32 %v3920, 0.0
      %v3937 = vld [vmem:[%s5] sm:$0xff]
      %v3938 = vld [vmem:[%s5 + $0x8] sm:$0xff]
      %v3939 = vld [vmem:[%s5 + $0x10] sm:$0xff]
      %v3940 = vld [vmem:[%s5 + $0x18] sm:$0xff]
      %v3941 = vld [vmem:[%s6] sm:$0x1]
      %3943 = vset.pattern.permute.xlu0 0
      %3944 = vperm.xlu0 %3943, %v3921
      %v3945 = vpop.permute.xlu0 %3944
      %3948 = vset.pattern.permute.xlu0 0
      %3949 = vperm.xlu0 %3948, %v3922
      %v3950 = vpop.permute.xlu0 %3949
      %3953 = vset.pattern.permute.xlu0 0
      %3954 = vperm.xlu0 %3953, %v3923
      %v3955 = vpop.permute.xlu0 %3954
      %3958 = vset.pattern.permute.xlu0 0
      %3959 = vperm.xlu0 %3958, %v3924
      %v3960 = vpop.permute.xlu0 %3959
      %3963 = vset.pattern.permute.xlu0 0
      %3964 = vperm.xlu0 %3963, %v3925
      %v3965 = vpop.permute.xlu0 %3964
      %3968 = vset.pattern.permute.xlu0 0
      %3969 = vperm.xlu0 %3968, %v3926
      %v3970 = vpop.permute.xlu0 %3969
      %3973 = vset.pattern.permute.xlu0 0
      %3974 = vperm.xlu0 %3973, %v3927
      %v3975 = vpop.permute.xlu0 %3974
      %3978 = vset.pattern.permute.xlu0 0
      %3979 = vperm.xlu0 %3978, %v3928
      %v3980 = vpop.permute.xlu0 %3979
      %3983 = vset.pattern.permute.xlu0 0
      %3984 = vperm.xlu0 %3983, %v3929
      %v3985 = vpop.permute.xlu0 %3984
      %3988 = vset.pattern.permute.xlu0 0
      %3989 = vperm.xlu0 %3988, %v3930
      %v3990 = vpop.permute.xlu0 %3989
      %3993 = vset.pattern.permute.xlu0 0
      %3994 = vperm.xlu0 %3993, %v3931
      %v3995 = vpop.permute.xlu0 %3994
      %3998 = vset.pattern.permute.xlu0 0
      %3999 = vperm.xlu0 %3998, %v3932
      %v4000 = vpop.permute.xlu0 %3999
      %4003 = vset.pattern.permute.xlu0 0
      %4004 = vperm.xlu0 %4003, %v3933
      %v4005 = vpop.permute.xlu0 %4004
      %4008 = vset.pattern.permute.xlu0 0
      %4009 = vperm.xlu0 %4008, %v3934
      %v4010 = vpop.permute.xlu0 %4009
      %4013 = vset.pattern.permute.xlu0 0
      %4014 = vperm.xlu0 %4013, %v3935
      %v4015 = vpop.permute.xlu0 %4014
      %4018 = vset.pattern.permute.xlu0 0
      %4019 = vperm.xlu0 %4018, %v3936
      %v4020 = vpop.permute.xlu0 %4019
      %v4022 = vlaneseq
      %v4023 = vshrl.u32 %v4022, 7
      %v4024 = vsub.s32 0, %v4023
      %v4025 = vrot.slane %v3937, %v4024
      %v4026 = vmul.f32 %v3945, %v4025
      %v4027 = vmul.f32 %v3950, %v4025
      %v4028 = vmul.f32 %v3955, %v4025
      %v4029 = vmul.f32 %v3960, %v4025
      %v4030 = vmul.f32 %v3965, %v4025
      %v4031 = vmul.f32 %v3970, %v4025
      %v4032 = vmul.f32 %v3975, %v4025
      %v4033 = vmul.f32 %v3980, %v4025
      %v4034 = vmul.f32 %v3985, %v4025
      %v4035 = vmul.f32 %v3990, %v4025
      %v4036 = vmul.f32 %v3995, %v4025
      %v4037 = vmul.f32 %v4000, %v4025
      %v4038 = vmul.f32 %v4005, %v4025
      %v4039 = vmul.f32 %v4010, %v4025
      %v4040 = vmul.f32 %v4015, %v4025
      %v4041 = vmul.f32 %v4020, %v4025
      %v4043 = vlaneseq
      %v4044 = vshrl.u32 %v4043, 7
      %v4045 = vsub.s32 0, %v4044
      %v4046 = vrot.slane %v3941, %v4045
      %v4048 = vadd.f32 %v4026, %v4046
      %v4049 = vadd.f32 %v4027, %v4046
      %v4050 = vadd.f32 %v4028, %v4046
      %v4051 = vadd.f32 %v4029, %v4046
      %v4052 = vadd.f32 %v4030, %v4046
      %v4053 = vadd.f32 %v4031, %v4046
      %v4054 = vadd.f32 %v4032, %v4046
      %v4055 = vadd.f32 %v4033, %v4046
      %v4056 = vadd.f32 %v4034, %v4046
      %v4057 = vadd.f32 %v4035, %v4046
      %v4058 = vadd.f32 %v4036, %v4046
      %v4059 = vadd.f32 %v4037, %v4046
      %v4060 = vadd.f32 %v4038, %v4046
      %v4061 = vadd.f32 %v4039, %v4046
      %v4062 = vadd.f32 %v4040, %v4046
      %v4063 = vadd.f32 %v4041, %v4046
      %4064 = vset.pattern.permute.xlu0 1
      %4065 = vperm.xlu0 %4064, %v3921
      %v4066 = vpop.permute.xlu0 %4065
      %4068 = vset.pattern.permute.xlu0 1
      %4069 = vperm.xlu0 %4068, %v3922
      %v4070 = vpop.permute.xlu0 %4069
      %4072 = vset.pattern.permute.xlu0 1
      %4073 = vperm.xlu0 %4072, %v3923
      %v4074 = vpop.permute.xlu0 %4073
      %4076 = vset.pattern.permute.xlu0 1
      %4077 = vperm.xlu0 %4076, %v3924
      %v4078 = vpop.permute.xlu0 %4077
      %4080 = vset.pattern.permute.xlu0 1
      %4081 = vperm.xlu0 %4080, %v3925
      %v4082 = vpop.permute.xlu0 %4081
      %4084 = vset.pattern.permute.xlu0 1
      %4085 = vperm.xlu0 %4084, %v3926
      %v4086 = vpop.permute.xlu0 %4085
      %4088 = vset.pattern.permute.xlu0 1
      %4089 = vperm.xlu0 %4088, %v3927
      %v4090 = vpop.permute.xlu0 %4089
      %4092 = vset.pattern.permute.xlu0 1
      %4093 = vperm.xlu0 %4092, %v3928
      %v4094 = vpop.permute.xlu0 %4093
      %4096 = vset.pattern.permute.xlu0 1
      %4097 = vperm.xlu0 %4096, %v3929
      %v4098 = vpop.permute.xlu0 %4097
      %4100 = vset.pattern.permute.xlu0 1
      %4101 = vperm.xlu0 %4100, %v3930
      %v4102 = vpop.permute.xlu0 %4101
      %4104 = vset.pattern.permute.xlu0 1
      %4105 = vperm.xlu0 %4104, %v3931
      %v4106 = vpop.permute.xlu0 %4105
      %4108 = vset.pattern.permute.xlu0 1
      %4109 = vperm.xlu0 %4108, %v3932
      %v4110 = vpop.permute.xlu0 %4109
      %4112 = vset.pattern.permute.xlu0 1
      %4113 = vperm.xlu0 %4112, %v3933
      %v4114 = vpop.permute.xlu0 %4113
      %4116 = vset.pattern.permute.xlu0 1
      %4117 = vperm.xlu0 %4116, %v3934
      %v4118 = vpop.permute.xlu0 %4117
      %4120 = vset.pattern.permute.xlu0 1
      %4121 = vperm.xlu0 %4120, %v3935
      %v4122 = vpop.permute.xlu0 %4121
      %4124 = vset.pattern.permute.xlu0 1
      %4125 = vperm.xlu0 %4124, %v3936
      %v4126 = vpop.permute.xlu0 %4125
      %v4128 = vlaneseq
      %v4129 = vshrl.u32 %v4128, 7
      %v4130 = vsub.s32 1, %v4129
      %v4131 = vrot.slane %v3937, %v4130
      %v4132 = vmul.f32 %v4066, %v4131
      %v4133 = vmul.f32 %v4070, %v4131
      %v4134 = vmul.f32 %v4074, %v4131
      %v4135 = vmul.f32 %v4078, %v4131
      %v4136 = vmul.f32 %v4082, %v4131
      %v4137 = vmul.f32 %v4086, %v4131
      %v4138 = vmul.f32 %v4090, %v4131
      %v4139 = vmul.f32 %v4094, %v4131
      %v4140 = vmul.f32 %v4098, %v4131
      %v4141 = vmul.f32 %v4102, %v4131
      %v4142 = vmul.f32 %v4106, %v4131
      %v4143 = vmul.f32 %v4110, %v4131
      %v4144 = vmul.f32 %v4114, %v4131
      %v4145 = vmul.f32 %v4118, %v4131
      %v4146 = vmul.f32 %v4122, %v4131
      %v4147 = vmul.f32 %v4126, %v4131
      %v4148 = vadd.f32 %v4048, %v4132
      %v4149 = vadd.f32 %v4049, %v4133
      %v4150 = vadd.f32 %v4050, %v4134
      %v4151 = vadd.f32 %v4051, %v4135
      %v4152 = vadd.f32 %v4052, %v4136
      %v4153 = vadd.f32 %v4053, %v4137
      %v4154 = vadd.f32 %v4054, %v4138
      %v4155 = vadd.f32 %v4055, %v4139
      %v4156 = vadd.f32 %v4056, %v4140
      %v4157 = vadd.f32 %v4057, %v4141
      %v4158 = vadd.f32 %v4058, %v4142
      %v4159 = vadd.f32 %v4059, %v4143
      %v4160 = vadd.f32 %v4060, %v4144
      %v4161 = vadd.f32 %v4061, %v4145
      %v4162 = vadd.f32 %v4062, %v4146
      %v4163 = vadd.f32 %v4063, %v4147
      %4164 = vset.pattern.permute.xlu0 2
      %4165 = vperm.xlu0 %4164, %v3921
      %v4166 = vpop.permute.xlu0 %4165
      %4168 = vset.pattern.permute.xlu0 2
      %4169 = vperm.xlu0 %4168, %v3922
      %v4170 = vpop.permute.xlu0 %4169
      %4172 = vset.pattern.permute.xlu0 2
      %4173 = vperm.xlu0 %4172, %v3923
      %v4174 = vpop.permute.xlu0 %4173
      %4176 = vset.pattern.permute.xlu0 2
      %4177 = vperm.xlu0 %4176, %v3924
      %v4178 = vpop.permute.xlu0 %4177
      %4180 = vset.pattern.permute.xlu0 2
      %4181 = vperm.xlu0 %4180, %v3925
      %v4182 = vpop.permute.xlu0 %4181
      %4184 = vset.pattern.permute.xlu0 2
      %4185 = vperm.xlu0 %4184, %v3926
      %v4186 = vpop.permute.xlu0 %4185
      %4188 = vset.pattern.permute.xlu0 2
      %4189 = vperm.xlu0 %4188, %v3927
      %v4190 = vpop.permute.xlu0 %4189
      %4192 = vset.pattern.permute.xlu0 2
      %4193 = vperm.xlu0 %4192, %v3928
      %v4194 = vpop.permute.xlu0 %4193
      %4196 = vset.pattern.permute.xlu0 2
      %4197 = vperm.xlu0 %4196, %v3929
      %v4198 = vpop.permute.xlu0 %4197
      %4200 = vset.pattern.permute.xlu0 2
      %4201 = vperm.xlu0 %4200, %v3930
      %v4202 = vpop.permute.xlu0 %4201
      %4204 = vset.pattern.permute.xlu0 2
      %4205 = vperm.xlu0 %4204, %v3931
      %v4206 = vpop.permute.xlu0 %4205
      %4208 = vset.pattern.permute.xlu0 2
      %4209 = vperm.xlu0 %4208, %v3932
      %v4210 = vpop.permute.xlu0 %4209
      %4212 = vset.pattern.permute.xlu0 2
      %4213 = vperm.xlu0 %4212, %v3933
      %v4214 = vpop.permute.xlu0 %4213
      %4216 = vset.pattern.permute.xlu0 2
      %4217 = vperm.xlu0 %4216, %v3934
      %v4218 = vpop.permute.xlu0 %4217
      %4220 = vset.pattern.permute.xlu0 2
      %4221 = vperm.xlu0 %4220, %v3935
      %v4222 = vpop.permute.xlu0 %4221
      %4224 = vset.pattern.permute.xlu0 2
      %4225 = vperm.xlu0 %4224, %v3936
      %v4226 = vpop.permute.xlu0 %4225
      %v4228 = vlaneseq
      %v4229 = vshrl.u32 %v4228, 7
      %v4230 = vsub.s32 2, %v4229
      %v4231 = vrot.slane %v3937, %v4230
      %v4232 = vmul.f32 %v4166, %v4231
      %v4233 = vmul.f32 %v4170, %v4231
      %v4234 = vmul.f32 %v4174, %v4231
      %v4235 = vmul.f32 %v4178, %v4231
      %v4236 = vmul.f32 %v4182, %v4231
      %v4237 = vmul.f32 %v4186, %v4231
      %v4238 = vmul.f32 %v4190, %v4231
      %v4239 = vmul.f32 %v4194, %v4231
      %v4240 = vmul.f32 %v4198, %v4231
      %v4241 = vmul.f32 %v4202, %v4231
      %v4242 = vmul.f32 %v4206, %v4231
      %v4243 = vmul.f32 %v4210, %v4231
      %v4244 = vmul.f32 %v4214, %v4231
      %v4245 = vmul.f32 %v4218, %v4231
      %v4246 = vmul.f32 %v4222, %v4231
      %v4247 = vmul.f32 %v4226, %v4231
      %v4248 = vadd.f32 %v4148, %v4232
      %v4249 = vadd.f32 %v4149, %v4233
      %v4250 = vadd.f32 %v4150, %v4234
      %v4251 = vadd.f32 %v4151, %v4235
      %v4252 = vadd.f32 %v4152, %v4236
      %v4253 = vadd.f32 %v4153, %v4237
      %v4254 = vadd.f32 %v4154, %v4238
      %v4255 = vadd.f32 %v4155, %v4239
      %v4256 = vadd.f32 %v4156, %v4240
      %v4257 = vadd.f32 %v4157, %v4241
      %v4258 = vadd.f32 %v4158, %v4242
      %v4259 = vadd.f32 %v4159, %v4243
      %v4260 = vadd.f32 %v4160, %v4244
      %v4261 = vadd.f32 %v4161, %v4245
      %v4262 = vadd.f32 %v4162, %v4246
      %v4263 = vadd.f32 %v4163, %v4247
      %4264 = vset.pattern.permute.xlu0 3
      %4265 = vperm.xlu0 %4264, %v3921
      %v4266 = vpop.permute.xlu0 %4265
      %4268 = vset.pattern.permute.xlu0 3
      %4269 = vperm.xlu0 %4268, %v3922
      %v4270 = vpop.permute.xlu0 %4269
      %4272 = vset.pattern.permute.xlu0 3
      %4273 = vperm.xlu0 %4272, %v3923
      %v4274 = vpop.permute.xlu0 %4273
      %4276 = vset.pattern.permute.xlu0 3
      %4277 = vperm.xlu0 %4276, %v3924
      %v4278 = vpop.permute.xlu0 %4277
      %4280 = vset.pattern.permute.xlu0 3
      %4281 = vperm.xlu0 %4280, %v3925
      %v4282 = vpop.permute.xlu0 %4281
      %4284 = vset.pattern.permute.xlu0 3
      %4285 = vperm.xlu0 %4284, %v3926
      %v4286 = vpop.permute.xlu0 %4285
      %4288 = vset.pattern.permute.xlu0 3
      %4289 = vperm.xlu0 %4288, %v3927
      %v4290 = vpop.permute.xlu0 %4289
      %4292 = vset.pattern.permute.xlu0 3
      %4293 = vperm.xlu0 %4292, %v3928
      %v4294 = vpop.permute.xlu0 %4293
      %4296 = vset.pattern.permute.xlu0 3
      %4297 = vperm.xlu0 %4296, %v3929
      %v4298 = vpop.permute.xlu0 %4297
      %4300 = vset.pattern.permute.xlu0 3
      %4301 = vperm.xlu0 %4300, %v3930
      %v4302 = vpop.permute.xlu0 %4301
      %4304 = vset.pattern.permute.xlu0 3
      %4305 = vperm.xlu0 %4304, %v3931
      %v4306 = vpop.permute.xlu0 %4305
      %4308 = vset.pattern.permute.xlu0 3
      %4309 = vperm.xlu0 %4308, %v3932
      %v4310 = vpop.permute.xlu0 %4309
      %4312 = vset.pattern.permute.xlu0 3
      %4313 = vperm.xlu0 %4312, %v3933
      %v4314 = vpop.permute.xlu0 %4313
      %4316 = vset.pattern.permute.xlu0 3
      %4317 = vperm.xlu0 %4316, %v3934
      %v4318 = vpop.permute.xlu0 %4317
      %4320 = vset.pattern.permute.xlu0 3
      %4321 = vperm.xlu0 %4320, %v3935
      %v4322 = vpop.permute.xlu0 %4321
      %4324 = vset.pattern.permute.xlu0 3
      %4325 = vperm.xlu0 %4324, %v3936
      %v4326 = vpop.permute.xlu0 %4325
      %v4328 = vlaneseq
      %v4329 = vshrl.u32 %v4328, 7
      %v4330 = vsub.s32 3, %v4329
      %v4331 = vrot.slane %v3937, %v4330
      %v4332 = vmul.f32 %v4266, %v4331
      %v4333 = vmul.f32 %v4270, %v4331
      %v4334 = vmul.f32 %v4274, %v4331
      %v4335 = vmul.f32 %v4278, %v4331
      %v4336 = vmul.f32 %v4282, %v4331
      %v4337 = vmul.f32 %v4286, %v4331
      %v4338 = vmul.f32 %v4290, %v4331
      %v4339 = vmul.f32 %v4294, %v4331
      %v4340 = vmul.f32 %v4298, %v4331
      %v4341 = vmul.f32 %v4302, %v4331
      %v4342 = vmul.f32 %v4306, %v4331
      %v4343 = vmul.f32 %v4310, %v4331
      %v4344 = vmul.f32 %v4314, %v4331
      %v4345 = vmul.f32 %v4318, %v4331
      %v4346 = vmul.f32 %v4322, %v4331
      %v4347 = vmul.f32 %v4326, %v4331
      %v4348 = vadd.f32 %v4248, %v4332
      %v4349 = vadd.f32 %v4249, %v4333
      %v4350 = vadd.f32 %v4250, %v4334
      %v4351 = vadd.f32 %v4251, %v4335
      %v4352 = vadd.f32 %v4252, %v4336
      %v4353 = vadd.f32 %v4253, %v4337
      %v4354 = vadd.f32 %v4254, %v4338
      %v4355 = vadd.f32 %v4255, %v4339
      %v4356 = vadd.f32 %v4256, %v4340
      %v4357 = vadd.f32 %v4257, %v4341
      %v4358 = vadd.f32 %v4258, %v4342
      %v4359 = vadd.f32 %v4259, %v4343
      %v4360 = vadd.f32 %v4260, %v4344
      %v4361 = vadd.f32 %v4261, %v4345
      %v4362 = vadd.f32 %v4262, %v4346
      %v4363 = vadd.f32 %v4263, %v4347
      %4364 = vset.pattern.permute.xlu0 4
      %4365 = vperm.xlu0 %4364, %v3921
      %v4366 = vpop.permute.xlu0 %4365
      %4368 = vset.pattern.permute.xlu0 4
      %4369 = vperm.xlu0 %4368, %v3922
      %v4370 = vpop.permute.xlu0 %4369
      %4372 = vset.pattern.permute.xlu0 4
      %4373 = vperm.xlu0 %4372, %v3923
      %v4374 = vpop.permute.xlu0 %4373
      %4376 = vset.pattern.permute.xlu0 4
      %4377 = vperm.xlu0 %4376, %v3924
      %v4378 = vpop.permute.xlu0 %4377
      %4380 = vset.pattern.permute.xlu0 4
      %4381 = vperm.xlu0 %4380, %v3925
      %v4382 = vpop.permute.xlu0 %4381
      %4384 = vset.pattern.permute.xlu0 4
      %4385 = vperm.xlu0 %4384, %v3926
      %v4386 = vpop.permute.xlu0 %4385
      %4388 = vset.pattern.permute.xlu0 4
      %4389 = vperm.xlu0 %4388, %v3927
      %v4390 = vpop.permute.xlu0 %4389
      %4392 = vset.pattern.permute.xlu0 4
      %4393 = vperm.xlu0 %4392, %v3928
      %v4394 = vpop.permute.xlu0 %4393
      %4396 = vset.pattern.permute.xlu0 4
      %4397 = vperm.xlu0 %4396, %v3929
      %v4398 = vpop.permute.xlu0 %4397
      %4400 = vset.pattern.permute.xlu0 4
      %4401 = vperm.xlu0 %4400, %v3930
      %v4402 = vpop.permute.xlu0 %4401
      %4404 = vset.pattern.permute.xlu0 4
      %4405 = vperm.xlu0 %4404, %v3931
      %v4406 = vpop.permute.xlu0 %4405
      %4408 = vset.pattern.permute.xlu0 4
      %4409 = vperm.xlu0 %4408, %v3932
      %v4410 = vpop.permute.xlu0 %4409
      %4412 = vset.pattern.permute.xlu0 4
      %4413 = vperm.xlu0 %4412, %v3933
      %v4414 = vpop.permute.xlu0 %4413
      %4416 = vset.pattern.permute.xlu0 4
      %4417 = vperm.xlu0 %4416, %v3934
      %v4418 = vpop.permute.xlu0 %4417
      %4420 = vset.pattern.permute.xlu0 4
      %4421 = vperm.xlu0 %4420, %v3935
      %v4422 = vpop.permute.xlu0 %4421
      %4424 = vset.pattern.permute.xlu0 4
      %4425 = vperm.xlu0 %4424, %v3936
      %v4426 = vpop.permute.xlu0 %4425
      %v4428 = vlaneseq
      %v4429 = vshrl.u32 %v4428, 7
      %v4430 = vsub.s32 4, %v4429
      %v4431 = vrot.slane %v3937, %v4430
      %v4432 = vmul.f32 %v4366, %v4431
      %v4433 = vmul.f32 %v4370, %v4431
      %v4434 = vmul.f32 %v4374, %v4431
      %v4435 = vmul.f32 %v4378, %v4431
      %v4436 = vmul.f32 %v4382, %v4431
      %v4437 = vmul.f32 %v4386, %v4431
      %v4438 = vmul.f32 %v4390, %v4431
      %v4439 = vmul.f32 %v4394, %v4431
      %v4440 = vmul.f32 %v4398, %v4431
      %v4441 = vmul.f32 %v4402, %v4431
      %v4442 = vmul.f32 %v4406, %v4431
      %v4443 = vmul.f32 %v4410, %v4431
      %v4444 = vmul.f32 %v4414, %v4431
      %v4445 = vmul.f32 %v4418, %v4431
      %v4446 = vmul.f32 %v4422, %v4431
      %v4447 = vmul.f32 %v4426, %v4431
      %v4448 = vadd.f32 %v4348, %v4432
      %v4449 = vadd.f32 %v4349, %v4433
      %v4450 = vadd.f32 %v4350, %v4434
      %v4451 = vadd.f32 %v4351, %v4435
      %v4452 = vadd.f32 %v4352, %v4436
      %v4453 = vadd.f32 %v4353, %v4437
      %v4454 = vadd.f32 %v4354, %v4438
      %v4455 = vadd.f32 %v4355, %v4439
      %v4456 = vadd.f32 %v4356, %v4440
      %v4457 = vadd.f32 %v4357, %v4441
      %v4458 = vadd.f32 %v4358, %v4442
      %v4459 = vadd.f32 %v4359, %v4443
      %v4460 = vadd.f32 %v4360, %v4444
      %v4461 = vadd.f32 %v4361, %v4445
      %v4462 = vadd.f32 %v4362, %v4446
      %v4463 = vadd.f32 %v4363, %v4447
      %4464 = vset.pattern.permute.xlu0 5
      %4465 = vperm.xlu0 %4464, %v3921
      %v4466 = vpop.permute.xlu0 %4465
      %4468 = vset.pattern.permute.xlu0 5
      %4469 = vperm.xlu0 %4468, %v3922
      %v4470 = vpop.permute.xlu0 %4469
      %4472 = vset.pattern.permute.xlu0 5
      %4473 = vperm.xlu0 %4472, %v3923
      %v4474 = vpop.permute.xlu0 %4473
      %4476 = vset.pattern.permute.xlu0 5
      %4477 = vperm.xlu0 %4476, %v3924
      %v4478 = vpop.permute.xlu0 %4477
      %4480 = vset.pattern.permute.xlu0 5
      %4481 = vperm.xlu0 %4480, %v3925
      %v4482 = vpop.permute.xlu0 %4481
      %4484 = vset.pattern.permute.xlu0 5
      %4485 = vperm.xlu0 %4484, %v3926
      %v4486 = vpop.permute.xlu0 %4485
      %4488 = vset.pattern.permute.xlu0 5
      %4489 = vperm.xlu0 %4488, %v3927
      %v4490 = vpop.permute.xlu0 %4489
      %4492 = vset.pattern.permute.xlu0 5
      %4493 = vperm.xlu0 %4492, %v3928
      %v4494 = vpop.permute.xlu0 %4493
      %4496 = vset.pattern.permute.xlu0 5
      %4497 = vperm.xlu0 %4496, %v3929
      %v4498 = vpop.permute.xlu0 %4497
      %4500 = vset.pattern.permute.xlu0 5
      %4501 = vperm.xlu0 %4500, %v3930
      %v4502 = vpop.permute.xlu0 %4501
      %4504 = vset.pattern.permute.xlu0 5
      %4505 = vperm.xlu0 %4504, %v3931
      %v4506 = vpop.permute.xlu0 %4505
      %4508 = vset.pattern.permute.xlu0 5
      %4509 = vperm.xlu0 %4508, %v3932
      %v4510 = vpop.permute.xlu0 %4509
      %4512 = vset.pattern.permute.xlu0 5
      %4513 = vperm.xlu0 %4512, %v3933
      %v4514 = vpop.permute.xlu0 %4513
      %4516 = vset.pattern.permute.xlu0 5
      %4517 = vperm.xlu0 %4516, %v3934
      %v4518 = vpop.permute.xlu0 %4517
      %4520 = vset.pattern.permute.xlu0 5
      %4521 = vperm.xlu0 %4520, %v3935
      %v4522 = vpop.permute.xlu0 %4521
      %4524 = vset.pattern.permute.xlu0 5
      %4525 = vperm.xlu0 %4524, %v3936
      %v4526 = vpop.permute.xlu0 %4525
      %v4528 = vlaneseq
      %v4529 = vshrl.u32 %v4528, 7
      %v4530 = vsub.s32 5, %v4529
      %v4531 = vrot.slane %v3937, %v4530
      %v4532 = vmul.f32 %v4466, %v4531
      %v4533 = vmul.f32 %v4470, %v4531
      %v4534 = vmul.f32 %v4474, %v4531
      %v4535 = vmul.f32 %v4478, %v4531
      %v4536 = vmul.f32 %v4482, %v4531
      %v4537 = vmul.f32 %v4486, %v4531
      %v4538 = vmul.f32 %v4490, %v4531
      %v4539 = vmul.f32 %v4494, %v4531
      %v4540 = vmul.f32 %v4498, %v4531
      %v4541 = vmul.f32 %v4502, %v4531
      %v4542 = vmul.f32 %v4506, %v4531
      %v4543 = vmul.f32 %v4510, %v4531
      %v4544 = vmul.f32 %v4514, %v4531
      %v4545 = vmul.f32 %v4518, %v4531
      %v4546 = vmul.f32 %v4522, %v4531
      %v4547 = vmul.f32 %v4526, %v4531
      %v4548 = vadd.f32 %v4448, %v4532
      %v4549 = vadd.f32 %v4449, %v4533
      %v4550 = vadd.f32 %v4450, %v4534
      %v4551 = vadd.f32 %v4451, %v4535
      %v4552 = vadd.f32 %v4452, %v4536
      %v4553 = vadd.f32 %v4453, %v4537
      %v4554 = vadd.f32 %v4454, %v4538
      %v4555 = vadd.f32 %v4455, %v4539
      %v4556 = vadd.f32 %v4456, %v4540
      %v4557 = vadd.f32 %v4457, %v4541
      %v4558 = vadd.f32 %v4458, %v4542
      %v4559 = vadd.f32 %v4459, %v4543
      %v4560 = vadd.f32 %v4460, %v4544
      %v4561 = vadd.f32 %v4461, %v4545
      %v4562 = vadd.f32 %v4462, %v4546
      %v4563 = vadd.f32 %v4463, %v4547
      %4564 = vset.pattern.permute.xlu0 6
      %4565 = vperm.xlu0 %4564, %v3921
      %v4566 = vpop.permute.xlu0 %4565
      %4568 = vset.pattern.permute.xlu0 6
      %4569 = vperm.xlu0 %4568, %v3922
      %v4570 = vpop.permute.xlu0 %4569
      %4572 = vset.pattern.permute.xlu0 6
      %4573 = vperm.xlu0 %4572, %v3923
      %v4574 = vpop.permute.xlu0 %4573
      %4576 = vset.pattern.permute.xlu0 6
      %4577 = vperm.xlu0 %4576, %v3924
      %v4578 = vpop.permute.xlu0 %4577
      %4580 = vset.pattern.permute.xlu0 6
      %4581 = vperm.xlu0 %4580, %v3925
      %v4582 = vpop.permute.xlu0 %4581
      %4584 = vset.pattern.permute.xlu0 6
      %4585 = vperm.xlu0 %4584, %v3926
      %v4586 = vpop.permute.xlu0 %4585
      %4588 = vset.pattern.permute.xlu0 6
      %4589 = vperm.xlu0 %4588, %v3927
      %v4590 = vpop.permute.xlu0 %4589
      %4592 = vset.pattern.permute.xlu0 6
      %4593 = vperm.xlu0 %4592, %v3928
      %v4594 = vpop.permute.xlu0 %4593
      %4596 = vset.pattern.permute.xlu0 6
      %4597 = vperm.xlu0 %4596, %v3929
      %v4598 = vpop.permute.xlu0 %4597
      %4600 = vset.pattern.permute.xlu0 6
      %4601 = vperm.xlu0 %4600, %v3930
      %v4602 = vpop.permute.xlu0 %4601
      %4604 = vset.pattern.permute.xlu0 6
      %4605 = vperm.xlu0 %4604, %v3931
      %v4606 = vpop.permute.xlu0 %4605
      %4608 = vset.pattern.permute.xlu0 6
      %4609 = vperm.xlu0 %4608, %v3932
      %v4610 = vpop.permute.xlu0 %4609
      %4612 = vset.pattern.permute.xlu0 6
      %4613 = vperm.xlu0 %4612, %v3933
      %v4614 = vpop.permute.xlu0 %4613
      %4616 = vset.pattern.permute.xlu0 6
      %4617 = vperm.xlu0 %4616, %v3934
      %v4618 = vpop.permute.xlu0 %4617
      %4620 = vset.pattern.permute.xlu0 6
      %4621 = vperm.xlu0 %4620, %v3935
      %v4622 = vpop.permute.xlu0 %4621
      %4624 = vset.pattern.permute.xlu0 6
      %4625 = vperm.xlu0 %4624, %v3936
      %v4626 = vpop.permute.xlu0 %4625
      %v4628 = vlaneseq
      %v4629 = vshrl.u32 %v4628, 7
      %v4630 = vsub.s32 6, %v4629
      %v4631 = vrot.slane %v3937, %v4630
      %v4632 = vmul.f32 %v4566, %v4631
      %v4633 = vmul.f32 %v4570, %v4631
      %v4634 = vmul.f32 %v4574, %v4631
      %v4635 = vmul.f32 %v4578, %v4631
      %v4636 = vmul.f32 %v4582, %v4631
      %v4637 = vmul.f32 %v4586, %v4631
      %v4638 = vmul.f32 %v4590, %v4631
      %v4639 = vmul.f32 %v4594, %v4631
      %v4640 = vmul.f32 %v4598, %v4631
      %v4641 = vmul.f32 %v4602, %v4631
      %v4642 = vmul.f32 %v4606, %v4631
      %v4643 = vmul.f32 %v4610, %v4631
      %v4644 = vmul.f32 %v4614, %v4631
      %v4645 = vmul.f32 %v4618, %v4631
      %v4646 = vmul.f32 %v4622, %v4631
      %v4647 = vmul.f32 %v4626, %v4631
      %v4648 = vadd.f32 %v4548, %v4632
      %v4649 = vadd.f32 %v4549, %v4633
      %v4650 = vadd.f32 %v4550, %v4634
      %v4651 = vadd.f32 %v4551, %v4635
      %v4652 = vadd.f32 %v4552, %v4636
      %v4653 = vadd.f32 %v4553, %v4637
      %v4654 = vadd.f32 %v4554, %v4638
      %v4655 = vadd.f32 %v4555, %v4639
      %v4656 = vadd.f32 %v4556, %v4640
      %v4657 = vadd.f32 %v4557, %v4641
      %v4658 = vadd.f32 %v4558, %v4642
      %v4659 = vadd.f32 %v4559, %v4643
      %v4660 = vadd.f32 %v4560, %v4644
      %v4661 = vadd.f32 %v4561, %v4645
      %v4662 = vadd.f32 %v4562, %v4646
      %v4663 = vadd.f32 %v4563, %v4647
      %4664 = vset.pattern.permute.xlu0 7
      %4665 = vperm.xlu0 %4664, %v3921
      %v4666 = vpop.permute.xlu0 %4665
      %4668 = vset.pattern.permute.xlu0 7
      %4669 = vperm.xlu0 %4668, %v3922
      %v4670 = vpop.permute.xlu0 %4669
      %4672 = vset.pattern.permute.xlu0 7
      %4673 = vperm.xlu0 %4672, %v3923
      %v4674 = vpop.permute.xlu0 %4673
      %4676 = vset.pattern.permute.xlu0 7
      %4677 = vperm.xlu0 %4676, %v3924
      %v4678 = vpop.permute.xlu0 %4677
      %4680 = vset.pattern.permute.xlu0 7
      %4681 = vperm.xlu0 %4680, %v3925
      %v4682 = vpop.permute.xlu0 %4681
      %4684 = vset.pattern.permute.xlu0 7
      %4685 = vperm.xlu0 %4684, %v3926
      %v4686 = vpop.permute.xlu0 %4685
      %4688 = vset.pattern.permute.xlu0 7
      %4689 = vperm.xlu0 %4688, %v3927
      %v4690 = vpop.permute.xlu0 %4689
      %4692 = vset.pattern.permute.xlu0 7
      %4693 = vperm.xlu0 %4692, %v3928
      %v4694 = vpop.permute.xlu0 %4693
      %4696 = vset.pattern.permute.xlu0 7
      %4697 = vperm.xlu0 %4696, %v3929
      %v4698 = vpop.permute.xlu0 %4697
      %4700 = vset.pattern.permute.xlu0 7
      %4701 = vperm.xlu0 %4700, %v3930
      %v4702 = vpop.permute.xlu0 %4701
      %4704 = vset.pattern.permute.xlu0 7
      %4705 = vperm.xlu0 %4704, %v3931
      %v4706 = vpop.permute.xlu0 %4705
      %4708 = vset.pattern.permute.xlu0 7
      %4709 = vperm.xlu0 %4708, %v3932
      %v4710 = vpop.permute.xlu0 %4709
      %4712 = vset.pattern.permute.xlu0 7
      %4713 = vperm.xlu0 %4712, %v3933
      %v4714 = vpop.permute.xlu0 %4713
      %4716 = vset.pattern.permute.xlu0 7
      %4717 = vperm.xlu0 %4716, %v3934
      %v4718 = vpop.permute.xlu0 %4717
      %4720 = vset.pattern.permute.xlu0 7
      %4721 = vperm.xlu0 %4720, %v3935
      %v4722 = vpop.permute.xlu0 %4721
      %4724 = vset.pattern.permute.xlu0 7
      %4725 = vperm.xlu0 %4724, %v3936
      %v4726 = vpop.permute.xlu0 %4725
      %v4728 = vlaneseq
      %v4729 = vshrl.u32 %v4728, 7
      %v4730 = vsub.s32 7, %v4729
      %v4731 = vrot.slane %v3937, %v4730
      %v4732 = vmul.f32 %v4666, %v4731
      %v4733 = vmul.f32 %v4670, %v4731
      %v4734 = vmul.f32 %v4674, %v4731
      %v4735 = vmul.f32 %v4678, %v4731
      %v4736 = vmul.f32 %v4682, %v4731
      %v4737 = vmul.f32 %v4686, %v4731
      %v4738 = vmul.f32 %v4690, %v4731
      %v4739 = vmul.f32 %v4694, %v4731
      %v4740 = vmul.f32 %v4698, %v4731
      %v4741 = vmul.f32 %v4702, %v4731
      %v4742 = vmul.f32 %v4706, %v4731
      %v4743 = vmul.f32 %v4710, %v4731
      %v4744 = vmul.f32 %v4714, %v4731
      %v4745 = vmul.f32 %v4718, %v4731
      %v4746 = vmul.f32 %v4722, %v4731
      %v4747 = vmul.f32 %v4726, %v4731
      %v4748 = vadd.f32 %v4648, %v4732
      %v4749 = vadd.f32 %v4649, %v4733
      %v4750 = vadd.f32 %v4650, %v4734
      %v4751 = vadd.f32 %v4651, %v4735
      %v4752 = vadd.f32 %v4652, %v4736
      %v4753 = vadd.f32 %v4653, %v4737
      %v4754 = vadd.f32 %v4654, %v4738
      %v4755 = vadd.f32 %v4655, %v4739
      %v4756 = vadd.f32 %v4656, %v4740
      %v4757 = vadd.f32 %v4657, %v4741
      %v4758 = vadd.f32 %v4658, %v4742
      %v4759 = vadd.f32 %v4659, %v4743
      %v4760 = vadd.f32 %v4660, %v4744
      %v4761 = vadd.f32 %v4661, %v4745
      %v4762 = vadd.f32 %v4662, %v4746
      %v4763 = vadd.f32 %v4663, %v4747
      %4764 = vset.pattern.permute.xlu0 8
      %4765 = vperm.xlu0 %4764, %v3921
      %v4766 = vpop.permute.xlu0 %4765
      %4768 = vset.pattern.permute.xlu0 8
      %4769 = vperm.xlu0 %4768, %v3922
      %v4770 = vpop.permute.xlu0 %4769
      %4772 = vset.pattern.permute.xlu0 8
      %4773 = vperm.xlu0 %4772, %v3923
      %v4774 = vpop.permute.xlu0 %4773
      %4776 = vset.pattern.permute.xlu0 8
      %4777 = vperm.xlu0 %4776, %v3924
      %v4778 = vpop.permute.xlu0 %4777
      %4780 = vset.pattern.permute.xlu0 8
      %4781 = vperm.xlu0 %4780, %v3925
      %v4782 = vpop.permute.xlu0 %4781
      %4784 = vset.pattern.permute.xlu0 8
      %4785 = vperm.xlu0 %4784, %v3926
      %v4786 = vpop.permute.xlu0 %4785
      %4788 = vset.pattern.permute.xlu0 8
      %4789 = vperm.xlu0 %4788, %v3927
      %v4790 = vpop.permute.xlu0 %4789
      %4792 = vset.pattern.permute.xlu0 8
      %4793 = vperm.xlu0 %4792, %v3928
      %v4794 = vpop.permute.xlu0 %4793
      %4796 = vset.pattern.permute.xlu0 8
      %4797 = vperm.xlu0 %4796, %v3929
      %v4798 = vpop.permute.xlu0 %4797
      %4800 = vset.pattern.permute.xlu0 8
      %4801 = vperm.xlu0 %4800, %v3930
      %v4802 = vpop.permute.xlu0 %4801
      %4804 = vset.pattern.permute.xlu0 8
      %4805 = vperm.xlu0 %4804, %v3931
      %v4806 = vpop.permute.xlu0 %4805
      %4808 = vset.pattern.permute.xlu0 8
      %4809 = vperm.xlu0 %4808, %v3932
      %v4810 = vpop.permute.xlu0 %4809
      %4812 = vset.pattern.permute.xlu0 8
      %4813 = vperm.xlu0 %4812, %v3933
      %v4814 = vpop.permute.xlu0 %4813
      %4816 = vset.pattern.permute.xlu0 8
      %4817 = vperm.xlu0 %4816, %v3934
      %v4818 = vpop.permute.xlu0 %4817
      %4820 = vset.pattern.permute.xlu0 8
      %4821 = vperm.xlu0 %4820, %v3935
      %v4822 = vpop.permute.xlu0 %4821
      %4824 = vset.pattern.permute.xlu0 8
      %4825 = vperm.xlu0 %4824, %v3936
      %v4826 = vpop.permute.xlu0 %4825
      %v4828 = vlaneseq
      %v4829 = vshrl.u32 %v4828, 7
      %v4830 = vsub.s32 0, %v4829
      %v4831 = vrot.slane %v3938, %v4830
      %v4832 = vmul.f32 %v4766, %v4831
      %v4833 = vmul.f32 %v4770, %v4831
      %v4834 = vmul.f32 %v4774, %v4831
      %v4835 = vmul.f32 %v4778, %v4831
      %v4836 = vmul.f32 %v4782, %v4831
      %v4837 = vmul.f32 %v4786, %v4831
      %v4838 = vmul.f32 %v4790, %v4831
      %v4839 = vmul.f32 %v4794, %v4831
      %v4840 = vmul.f32 %v4798, %v4831
      %v4841 = vmul.f32 %v4802, %v4831
      %v4842 = vmul.f32 %v4806, %v4831
      %v4843 = vmul.f32 %v4810, %v4831
      %v4844 = vmul.f32 %v4814, %v4831
      %v4845 = vmul.f32 %v4818, %v4831
      %v4846 = vmul.f32 %v4822, %v4831
      %v4847 = vmul.f32 %v4826, %v4831
      %v4848 = vadd.f32 %v4748, %v4832
      %v4849 = vadd.f32 %v4749, %v4833
      %v4850 = vadd.f32 %v4750, %v4834
      %v4851 = vadd.f32 %v4751, %v4835
      %v4852 = vadd.f32 %v4752, %v4836
      %v4853 = vadd.f32 %v4753, %v4837
      %v4854 = vadd.f32 %v4754, %v4838
      %v4855 = vadd.f32 %v4755, %v4839
      %v4856 = vadd.f32 %v4756, %v4840
      %v4857 = vadd.f32 %v4757, %v4841
      %v4858 = vadd.f32 %v4758, %v4842
      %v4859 = vadd.f32 %v4759, %v4843
      %v4860 = vadd.f32 %v4760, %v4844
      %v4861 = vadd.f32 %v4761, %v4845
      %v4862 = vadd.f32 %v4762, %v4846
      %v4863 = vadd.f32 %v4763, %v4847
      %4864 = vset.pattern.permute.xlu0 9
      %4865 = vperm.xlu0 %4864, %v3921
      %v4866 = vpop.permute.xlu0 %4865
      %4868 = vset.pattern.permute.xlu0 9
      %4869 = vperm.xlu0 %4868, %v3922
      %v4870 = vpop.permute.xlu0 %4869
      %4872 = vset.pattern.permute.xlu0 9
      %4873 = vperm.xlu0 %4872, %v3923
      %v4874 = vpop.permute.xlu0 %4873
      %4876 = vset.pattern.permute.xlu0 9
      %4877 = vperm.xlu0 %4876, %v3924
      %v4878 = vpop.permute.xlu0 %4877
      %4880 = vset.pattern.permute.xlu0 9
      %4881 = vperm.xlu0 %4880, %v3925
      %v4882 = vpop.permute.xlu0 %4881
      %4884 = vset.pattern.permute.xlu0 9
      %4885 = vperm.xlu0 %4884, %v3926
      %v4886 = vpop.permute.xlu0 %4885
      %4888 = vset.pattern.permute.xlu0 9
      %4889 = vperm.xlu0 %4888, %v3927
      %v4890 = vpop.permute.xlu0 %4889
      %4892 = vset.pattern.permute.xlu0 9
      %4893 = vperm.xlu0 %4892, %v3928
      %v4894 = vpop.permute.xlu0 %4893
      %4896 = vset.pattern.permute.xlu0 9
      %4897 = vperm.xlu0 %4896, %v3929
      %v4898 = vpop.permute.xlu0 %4897
      %4900 = vset.pattern.permute.xlu0 9
      %4901 = vperm.xlu0 %4900, %v3930
      %v4902 = vpop.permute.xlu0 %4901
      %4904 = vset.pattern.permute.xlu0 9
      %4905 = vperm.xlu0 %4904, %v3931
      %v4906 = vpop.permute.xlu0 %4905
      %4908 = vset.pattern.permute.xlu0 9
      %4909 = vperm.xlu0 %4908, %v3932
      %v4910 = vpop.permute.xlu0 %4909
      %4912 = vset.pattern.permute.xlu0 9
      %4913 = vperm.xlu0 %4912, %v3933
      %v4914 = vpop.permute.xlu0 %4913
      %4916 = vset.pattern.permute.xlu0 9
      %4917 = vperm.xlu0 %4916, %v3934
      %v4918 = vpop.permute.xlu0 %4917
      %4920 = vset.pattern.permute.xlu0 9
      %4921 = vperm.xlu0 %4920, %v3935
      %v4922 = vpop.permute.xlu0 %4921
      %4924 = vset.pattern.permute.xlu0 9
      %4925 = vperm.xlu0 %4924, %v3936
      %v4926 = vpop.permute.xlu0 %4925
      %v4928 = vlaneseq
      %v4929 = vshrl.u32 %v4928, 7
      %v4930 = vsub.s32 1, %v4929
      %v4931 = vrot.slane %v3938, %v4930
      %v4932 = vmul.f32 %v4866, %v4931
      %v4933 = vmul.f32 %v4870, %v4931
      %v4934 = vmul.f32 %v4874, %v4931
      %v4935 = vmul.f32 %v4878, %v4931
      %v4936 = vmul.f32 %v4882, %v4931
      %v4937 = vmul.f32 %v4886, %v4931
      %v4938 = vmul.f32 %v4890, %v4931
      %v4939 = vmul.f32 %v4894, %v4931
      %v4940 = vmul.f32 %v4898, %v4931
      %v4941 = vmul.f32 %v4902, %v4931
      %v4942 = vmul.f32 %v4906, %v4931
      %v4943 = vmul.f32 %v4910, %v4931
      %v4944 = vmul.f32 %v4914, %v4931
      %v4945 = vmul.f32 %v4918, %v4931
      %v4946 = vmul.f32 %v4922, %v4931
      %v4947 = vmul.f32 %v4926, %v4931
      %v4948 = vadd.f32 %v4848, %v4932
      %v4949 = vadd.f32 %v4849, %v4933
      %v4950 = vadd.f32 %v4850, %v4934
      %v4951 = vadd.f32 %v4851, %v4935
      %v4952 = vadd.f32 %v4852, %v4936
      %v4953 = vadd.f32 %v4853, %v4937
      %v4954 = vadd.f32 %v4854, %v4938
      %v4955 = vadd.f32 %v4855, %v4939
      %v4956 = vadd.f32 %v4856, %v4940
      %v4957 = vadd.f32 %v4857, %v4941
      %v4958 = vadd.f32 %v4858, %v4942
      %v4959 = vadd.f32 %v4859, %v4943
      %v4960 = vadd.f32 %v4860, %v4944
      %v4961 = vadd.f32 %v4861, %v4945
      %v4962 = vadd.f32 %v4862, %v4946
      %v4963 = vadd.f32 %v4863, %v4947
      %4964 = vset.pattern.permute.xlu0 10
      %4965 = vperm.xlu0 %4964, %v3921
      %v4966 = vpop.permute.xlu0 %4965
      %4968 = vset.pattern.permute.xlu0 10
      %4969 = vperm.xlu0 %4968, %v3922
      %v4970 = vpop.permute.xlu0 %4969
      %4972 = vset.pattern.permute.xlu0 10
      %4973 = vperm.xlu0 %4972, %v3923
      %v4974 = vpop.permute.xlu0 %4973
      %4976 = vset.pattern.permute.xlu0 10
      %4977 = vperm.xlu0 %4976, %v3924
      %v4978 = vpop.permute.xlu0 %4977
      %4980 = vset.pattern.permute.xlu0 10
      %4981 = vperm.xlu0 %4980, %v3925
      %v4982 = vpop.permute.xlu0 %4981
      %4984 = vset.pattern.permute.xlu0 10
      %4985 = vperm.xlu0 %4984, %v3926
      %v4986 = vpop.permute.xlu0 %4985
      %4988 = vset.pattern.permute.xlu0 10
      %4989 = vperm.xlu0 %4988, %v3927
      %v4990 = vpop.permute.xlu0 %4989
      %4992 = vset.pattern.permute.xlu0 10
      %4993 = vperm.xlu0 %4992, %v3928
      %v4994 = vpop.permute.xlu0 %4993
      %4996 = vset.pattern.permute.xlu0 10
      %4997 = vperm.xlu0 %4996, %v3929
      %v4998 = vpop.permute.xlu0 %4997
      %5000 = vset.pattern.permute.xlu0 10
      %5001 = vperm.xlu0 %5000, %v3930
      %v5002 = vpop.permute.xlu0 %5001
      %5004 = vset.pattern.permute.xlu0 10
      %5005 = vperm.xlu0 %5004, %v3931
      %v5006 = vpop.permute.xlu0 %5005
      %5008 = vset.pattern.permute.xlu0 10
      %5009 = vperm.xlu0 %5008, %v3932
      %v5010 = vpop.permute.xlu0 %5009
      %5012 = vset.pattern.permute.xlu0 10
      %5013 = vperm.xlu0 %5012, %v3933
      %v5014 = vpop.permute.xlu0 %5013
      %5016 = vset.pattern.permute.xlu0 10
      %5017 = vperm.xlu0 %5016, %v3934
      %v5018 = vpop.permute.xlu0 %5017
      %5020 = vset.pattern.permute.xlu0 10
      %5021 = vperm.xlu0 %5020, %v3935
      %v5022 = vpop.permute.xlu0 %5021
      %5024 = vset.pattern.permute.xlu0 10
      %5025 = vperm.xlu0 %5024, %v3936
      %v5026 = vpop.permute.xlu0 %5025
      %v5028 = vlaneseq
      %v5029 = vshrl.u32 %v5028, 7
      %v5030 = vsub.s32 2, %v5029
      %v5031 = vrot.slane %v3938, %v5030
      %v5032 = vmul.f32 %v4966, %v5031
      %v5033 = vmul.f32 %v4970, %v5031
      %v5034 = vmul.f32 %v4974, %v5031
      %v5035 = vmul.f32 %v4978, %v5031
      %v5036 = vmul.f32 %v4982, %v5031
      %v5037 = vmul.f32 %v4986, %v5031
      %v5038 = vmul.f32 %v4990, %v5031
      %v5039 = vmul.f32 %v4994, %v5031
      %v5040 = vmul.f32 %v4998, %v5031
      %v5041 = vmul.f32 %v5002, %v5031
      %v5042 = vmul.f32 %v5006, %v5031
      %v5043 = vmul.f32 %v5010, %v5031
      %v5044 = vmul.f32 %v5014, %v5031
      %v5045 = vmul.f32 %v5018, %v5031
      %v5046 = vmul.f32 %v5022, %v5031
      %v5047 = vmul.f32 %v5026, %v5031
      %v5048 = vadd.f32 %v4948, %v5032
      %v5049 = vadd.f32 %v4949, %v5033
      %v5050 = vadd.f32 %v4950, %v5034
      %v5051 = vadd.f32 %v4951, %v5035
      %v5052 = vadd.f32 %v4952, %v5036
      %v5053 = vadd.f32 %v4953, %v5037
      %v5054 = vadd.f32 %v4954, %v5038
      %v5055 = vadd.f32 %v4955, %v5039
      %v5056 = vadd.f32 %v4956, %v5040
      %v5057 = vadd.f32 %v4957, %v5041
      %v5058 = vadd.f32 %v4958, %v5042
      %v5059 = vadd.f32 %v4959, %v5043
      %v5060 = vadd.f32 %v4960, %v5044
      %v5061 = vadd.f32 %v4961, %v5045
      %v5062 = vadd.f32 %v4962, %v5046
      %v5063 = vadd.f32 %v4963, %v5047
      %5064 = vset.pattern.permute.xlu0 11
      %5065 = vperm.xlu0 %5064, %v3921
      %v5066 = vpop.permute.xlu0 %5065
      %5068 = vset.pattern.permute.xlu0 11
      %5069 = vperm.xlu0 %5068, %v3922
      %v5070 = vpop.permute.xlu0 %5069
      %5072 = vset.pattern.permute.xlu0 11
      %5073 = vperm.xlu0 %5072, %v3923
      %v5074 = vpop.permute.xlu0 %5073
      %5076 = vset.pattern.permute.xlu0 11
      %5077 = vperm.xlu0 %5076, %v3924
      %v5078 = vpop.permute.xlu0 %5077
      %5080 = vset.pattern.permute.xlu0 11
      %5081 = vperm.xlu0 %5080, %v3925
      %v5082 = vpop.permute.xlu0 %5081
      %5084 = vset.pattern.permute.xlu0 11
      %5085 = vperm.xlu0 %5084, %v3926
      %v5086 = vpop.permute.xlu0 %5085
      %5088 = vset.pattern.permute.xlu0 11
      %5089 = vperm.xlu0 %5088, %v3927
      %v5090 = vpop.permute.xlu0 %5089
      %5092 = vset.pattern.permute.xlu0 11
      %5093 = vperm.xlu0 %5092, %v3928
      %v5094 = vpop.permute.xlu0 %5093
      %5096 = vset.pattern.permute.xlu0 11
      %5097 = vperm.xlu0 %5096, %v3929
      %v5098 = vpop.permute.xlu0 %5097
      %5100 = vset.pattern.permute.xlu0 11
      %5101 = vperm.xlu0 %5100, %v3930
      %v5102 = vpop.permute.xlu0 %5101
      %5104 = vset.pattern.permute.xlu0 11
      %5105 = vperm.xlu0 %5104, %v3931
      %v5106 = vpop.permute.xlu0 %5105
      %5108 = vset.pattern.permute.xlu0 11
      %5109 = vperm.xlu0 %5108, %v3932
      %v5110 = vpop.permute.xlu0 %5109
      %5112 = vset.pattern.permute.xlu0 11
      %5113 = vperm.xlu0 %5112, %v3933
      %v5114 = vpop.permute.xlu0 %5113
      %5116 = vset.pattern.permute.xlu0 11
      %5117 = vperm.xlu0 %5116, %v3934
      %v5118 = vpop.permute.xlu0 %5117
      %5120 = vset.pattern.permute.xlu0 11
      %5121 = vperm.xlu0 %5120, %v3935
      %v5122 = vpop.permute.xlu0 %5121
      %5124 = vset.pattern.permute.xlu0 11
      %5125 = vperm.xlu0 %5124, %v3936
      %v5126 = vpop.permute.xlu0 %5125
      %v5128 = vlaneseq
      %v5129 = vshrl.u32 %v5128, 7
      %v5130 = vsub.s32 3, %v5129
      %v5131 = vrot.slane %v3938, %v5130
      %v5132 = vmul.f32 %v5066, %v5131
      %v5133 = vmul.f32 %v5070, %v5131
      %v5134 = vmul.f32 %v5074, %v5131
      %v5135 = vmul.f32 %v5078, %v5131
      %v5136 = vmul.f32 %v5082, %v5131
      %v5137 = vmul.f32 %v5086, %v5131
      %v5138 = vmul.f32 %v5090, %v5131
      %v5139 = vmul.f32 %v5094, %v5131
      %v5140 = vmul.f32 %v5098, %v5131
      %v5141 = vmul.f32 %v5102, %v5131
      %v5142 = vmul.f32 %v5106, %v5131
      %v5143 = vmul.f32 %v5110, %v5131
      %v5144 = vmul.f32 %v5114, %v5131
      %v5145 = vmul.f32 %v5118, %v5131
      %v5146 = vmul.f32 %v5122, %v5131
      %v5147 = vmul.f32 %v5126, %v5131
      %v5148 = vadd.f32 %v5048, %v5132
      %v5149 = vadd.f32 %v5049, %v5133
      %v5150 = vadd.f32 %v5050, %v5134
      %v5151 = vadd.f32 %v5051, %v5135
      %v5152 = vadd.f32 %v5052, %v5136
      %v5153 = vadd.f32 %v5053, %v5137
      %v5154 = vadd.f32 %v5054, %v5138
      %v5155 = vadd.f32 %v5055, %v5139
      %v5156 = vadd.f32 %v5056, %v5140
      %v5157 = vadd.f32 %v5057, %v5141
      %v5158 = vadd.f32 %v5058, %v5142
      %v5159 = vadd.f32 %v5059, %v5143
      %v5160 = vadd.f32 %v5060, %v5144
      %v5161 = vadd.f32 %v5061, %v5145
      %v5162 = vadd.f32 %v5062, %v5146
      %v5163 = vadd.f32 %v5063, %v5147
      %5164 = vset.pattern.permute.xlu0 12
      %5165 = vperm.xlu0 %5164, %v3921
      %v5166 = vpop.permute.xlu0 %5165
      %5168 = vset.pattern.permute.xlu0 12
      %5169 = vperm.xlu0 %5168, %v3922
      %v5170 = vpop.permute.xlu0 %5169
      %5172 = vset.pattern.permute.xlu0 12
      %5173 = vperm.xlu0 %5172, %v3923
      %v5174 = vpop.permute.xlu0 %5173
      %5176 = vset.pattern.permute.xlu0 12
      %5177 = vperm.xlu0 %5176, %v3924
      %v5178 = vpop.permute.xlu0 %5177
      %5180 = vset.pattern.permute.xlu0 12
      %5181 = vperm.xlu0 %5180, %v3925
      %v5182 = vpop.permute.xlu0 %5181
      %5184 = vset.pattern.permute.xlu0 12
      %5185 = vperm.xlu0 %5184, %v3926
      %v5186 = vpop.permute.xlu0 %5185
      %5188 = vset.pattern.permute.xlu0 12
      %5189 = vperm.xlu0 %5188, %v3927
      %v5190 = vpop.permute.xlu0 %5189
      %5192 = vset.pattern.permute.xlu0 12
      %5193 = vperm.xlu0 %5192, %v3928
      %v5194 = vpop.permute.xlu0 %5193
      %5196 = vset.pattern.permute.xlu0 12
      %5197 = vperm.xlu0 %5196, %v3929
      %v5198 = vpop.permute.xlu0 %5197
      %5200 = vset.pattern.permute.xlu0 12
      %5201 = vperm.xlu0 %5200, %v3930
      %v5202 = vpop.permute.xlu0 %5201
      %5204 = vset.pattern.permute.xlu0 12
      %5205 = vperm.xlu0 %5204, %v3931
      %v5206 = vpop.permute.xlu0 %5205
      %5208 = vset.pattern.permute.xlu0 12
      %5209 = vperm.xlu0 %5208, %v3932
      %v5210 = vpop.permute.xlu0 %5209
      %5212 = vset.pattern.permute.xlu0 12
      %5213 = vperm.xlu0 %5212, %v3933
      %v5214 = vpop.permute.xlu0 %5213
      %5216 = vset.pattern.permute.xlu0 12
      %5217 = vperm.xlu0 %5216, %v3934
      %v5218 = vpop.permute.xlu0 %5217
      %5220 = vset.pattern.permute.xlu0 12
      %5221 = vperm.xlu0 %5220, %v3935
      %v5222 = vpop.permute.xlu0 %5221
      %5224 = vset.pattern.permute.xlu0 12
      %5225 = vperm.xlu0 %5224, %v3936
      %v5226 = vpop.permute.xlu0 %5225
      %v5228 = vlaneseq
      %v5229 = vshrl.u32 %v5228, 7
      %v5230 = vsub.s32 4, %v5229
      %v5231 = vrot.slane %v3938, %v5230
      %v5232 = vmul.f32 %v5166, %v5231
      %v5233 = vmul.f32 %v5170, %v5231
      %v5234 = vmul.f32 %v5174, %v5231
      %v5235 = vmul.f32 %v5178, %v5231
      %v5236 = vmul.f32 %v5182, %v5231
      %v5237 = vmul.f32 %v5186, %v5231
      %v5238 = vmul.f32 %v5190, %v5231
      %v5239 = vmul.f32 %v5194, %v5231
      %v5240 = vmul.f32 %v5198, %v5231
      %v5241 = vmul.f32 %v5202, %v5231
      %v5242 = vmul.f32 %v5206, %v5231
      %v5243 = vmul.f32 %v5210, %v5231
      %v5244 = vmul.f32 %v5214, %v5231
      %v5245 = vmul.f32 %v5218, %v5231
      %v5246 = vmul.f32 %v5222, %v5231
      %v5247 = vmul.f32 %v5226, %v5231
      %v5248 = vadd.f32 %v5148, %v5232
      %v5249 = vadd.f32 %v5149, %v5233
      %v5250 = vadd.f32 %v5150, %v5234
      %v5251 = vadd.f32 %v5151, %v5235
      %v5252 = vadd.f32 %v5152, %v5236
      %v5253 = vadd.f32 %v5153, %v5237
      %v5254 = vadd.f32 %v5154, %v5238
      %v5255 = vadd.f32 %v5155, %v5239
      %v5256 = vadd.f32 %v5156, %v5240
      %v5257 = vadd.f32 %v5157, %v5241
      %v5258 = vadd.f32 %v5158, %v5242
      %v5259 = vadd.f32 %v5159, %v5243
      %v5260 = vadd.f32 %v5160, %v5244
      %v5261 = vadd.f32 %v5161, %v5245
      %v5262 = vadd.f32 %v5162, %v5246
      %v5263 = vadd.f32 %v5163, %v5247
      %5264 = vset.pattern.permute.xlu0 13
      %5265 = vperm.xlu0 %5264, %v3921
      %v5266 = vpop.permute.xlu0 %5265
      %5268 = vset.pattern.permute.xlu0 13
      %5269 = vperm.xlu0 %5268, %v3922
      %v5270 = vpop.permute.xlu0 %5269
      %5272 = vset.pattern.permute.xlu0 13
      %5273 = vperm.xlu0 %5272, %v3923
      %v5274 = vpop.permute.xlu0 %5273
      %5276 = vset.pattern.permute.xlu0 13
      %5277 = vperm.xlu0 %5276, %v3924
      %v5278 = vpop.permute.xlu0 %5277
      %5280 = vset.pattern.permute.xlu0 13
      %5281 = vperm.xlu0 %5280, %v3925
      %v5282 = vpop.permute.xlu0 %5281
      %5284 = vset.pattern.permute.xlu0 13
      %5285 = vperm.xlu0 %5284, %v3926
      %v5286 = vpop.permute.xlu0 %5285
      %5288 = vset.pattern.permute.xlu0 13
      %5289 = vperm.xlu0 %5288, %v3927
      %v5290 = vpop.permute.xlu0 %5289
      %5292 = vset.pattern.permute.xlu0 13
      %5293 = vperm.xlu0 %5292, %v3928
      %v5294 = vpop.permute.xlu0 %5293
      %5296 = vset.pattern.permute.xlu0 13
      %5297 = vperm.xlu0 %5296, %v3929
      %v5298 = vpop.permute.xlu0 %5297
      %5300 = vset.pattern.permute.xlu0 13
      %5301 = vperm.xlu0 %5300, %v3930
      %v5302 = vpop.permute.xlu0 %5301
      %5304 = vset.pattern.permute.xlu0 13
      %5305 = vperm.xlu0 %5304, %v3931
      %v5306 = vpop.permute.xlu0 %5305
      %5308 = vset.pattern.permute.xlu0 13
      %5309 = vperm.xlu0 %5308, %v3932
      %v5310 = vpop.permute.xlu0 %5309
      %5312 = vset.pattern.permute.xlu0 13
      %5313 = vperm.xlu0 %5312, %v3933
      %v5314 = vpop.permute.xlu0 %5313
      %5316 = vset.pattern.permute.xlu0 13
      %5317 = vperm.xlu0 %5316, %v3934
      %v5318 = vpop.permute.xlu0 %5317
      %5320 = vset.pattern.permute.xlu0 13
      %5321 = vperm.xlu0 %5320, %v3935
      %v5322 = vpop.permute.xlu0 %5321
      %5324 = vset.pattern.permute.xlu0 13
      %5325 = vperm.xlu0 %5324, %v3936
      %v5326 = vpop.permute.xlu0 %5325
      %v5328 = vlaneseq
      %v5329 = vshrl.u32 %v5328, 7
      %v5330 = vsub.s32 5, %v5329
      %v5331 = vrot.slane %v3938, %v5330
      %v5332 = vmul.f32 %v5266, %v5331
      %v5333 = vmul.f32 %v5270, %v5331
      %v5334 = vmul.f32 %v5274, %v5331
      %v5335 = vmul.f32 %v5278, %v5331
      %v5336 = vmul.f32 %v5282, %v5331
      %v5337 = vmul.f32 %v5286, %v5331
      %v5338 = vmul.f32 %v5290, %v5331
      %v5339 = vmul.f32 %v5294, %v5331
      %v5340 = vmul.f32 %v5298, %v5331
      %v5341 = vmul.f32 %v5302, %v5331
      %v5342 = vmul.f32 %v5306, %v5331
      %v5343 = vmul.f32 %v5310, %v5331
      %v5344 = vmul.f32 %v5314, %v5331
      %v5345 = vmul.f32 %v5318, %v5331
      %v5346 = vmul.f32 %v5322, %v5331
      %v5347 = vmul.f32 %v5326, %v5331
      %v5348 = vadd.f32 %v5248, %v5332
      %v5349 = vadd.f32 %v5249, %v5333
      %v5350 = vadd.f32 %v5250, %v5334
      %v5351 = vadd.f32 %v5251, %v5335
      %v5352 = vadd.f32 %v5252, %v5336
      %v5353 = vadd.f32 %v5253, %v5337
      %v5354 = vadd.f32 %v5254, %v5338
      %v5355 = vadd.f32 %v5255, %v5339
      %v5356 = vadd.f32 %v5256, %v5340
      %v5357 = vadd.f32 %v5257, %v5341
      %v5358 = vadd.f32 %v5258, %v5342
      %v5359 = vadd.f32 %v5259, %v5343
      %v5360 = vadd.f32 %v5260, %v5344
      %v5361 = vadd.f32 %v5261, %v5345
      %v5362 = vadd.f32 %v5262, %v5346
      %v5363 = vadd.f32 %v5263, %v5347
      %5364 = vset.pattern.permute.xlu0 14
      %5365 = vperm.xlu0 %5364, %v3921
      %v5366 = vpop.permute.xlu0 %5365
      %5368 = vset.pattern.permute.xlu0 14
      %5369 = vperm.xlu0 %5368, %v3922
      %v5370 = vpop.permute.xlu0 %5369
      %5372 = vset.pattern.permute.xlu0 14
      %5373 = vperm.xlu0 %5372, %v3923
      %v5374 = vpop.permute.xlu0 %5373
      %5376 = vset.pattern.permute.xlu0 14
      %5377 = vperm.xlu0 %5376, %v3924
      %v5378 = vpop.permute.xlu0 %5377
      %5380 = vset.pattern.permute.xlu0 14
      %5381 = vperm.xlu0 %5380, %v3925
      %v5382 = vpop.permute.xlu0 %5381
      %5384 = vset.pattern.permute.xlu0 14
      %5385 = vperm.xlu0 %5384, %v3926
      %v5386 = vpop.permute.xlu0 %5385
      %5388 = vset.pattern.permute.xlu0 14
      %5389 = vperm.xlu0 %5388, %v3927
      %v5390 = vpop.permute.xlu0 %5389
      %5392 = vset.pattern.permute.xlu0 14
      %5393 = vperm.xlu0 %5392, %v3928
      %v5394 = vpop.permute.xlu0 %5393
      %5396 = vset.pattern.permute.xlu0 14
      %5397 = vperm.xlu0 %5396, %v3929
      %v5398 = vpop.permute.xlu0 %5397
      %5400 = vset.pattern.permute.xlu0 14
      %5401 = vperm.xlu0 %5400, %v3930
      %v5402 = vpop.permute.xlu0 %5401
      %5404 = vset.pattern.permute.xlu0 14
      %5405 = vperm.xlu0 %5404, %v3931
      %v5406 = vpop.permute.xlu0 %5405
      %5408 = vset.pattern.permute.xlu0 14
      %5409 = vperm.xlu0 %5408, %v3932
      %v5410 = vpop.permute.xlu0 %5409
      %5412 = vset.pattern.permute.xlu0 14
      %5413 = vperm.xlu0 %5412, %v3933
      %v5414 = vpop.permute.xlu0 %5413
      %5416 = vset.pattern.permute.xlu0 14
      %5417 = vperm.xlu0 %5416, %v3934
      %v5418 = vpop.permute.xlu0 %5417
      %5420 = vset.pattern.permute.xlu0 14
      %5421 = vperm.xlu0 %5420, %v3935
      %v5422 = vpop.permute.xlu0 %5421
      %5424 = vset.pattern.permute.xlu0 14
      %5425 = vperm.xlu0 %5424, %v3936
      %v5426 = vpop.permute.xlu0 %5425
      %v5428 = vlaneseq
      %v5429 = vshrl.u32 %v5428, 7
      %v5430 = vsub.s32 6, %v5429
      %v5431 = vrot.slane %v3938, %v5430
      %v5432 = vmul.f32 %v5366, %v5431
      %v5433 = vmul.f32 %v5370, %v5431
      %v5434 = vmul.f32 %v5374, %v5431
      %v5435 = vmul.f32 %v5378, %v5431
      %v5436 = vmul.f32 %v5382, %v5431
      %v5437 = vmul.f32 %v5386, %v5431
      %v5438 = vmul.f32 %v5390, %v5431
      %v5439 = vmul.f32 %v5394, %v5431
      %v5440 = vmul.f32 %v5398, %v5431
      %v5441 = vmul.f32 %v5402, %v5431
      %v5442 = vmul.f32 %v5406, %v5431
      %v5443 = vmul.f32 %v5410, %v5431
      %v5444 = vmul.f32 %v5414, %v5431
      %v5445 = vmul.f32 %v5418, %v5431
      %v5446 = vmul.f32 %v5422, %v5431
      %v5447 = vmul.f32 %v5426, %v5431
      %v5448 = vadd.f32 %v5348, %v5432
      %v5449 = vadd.f32 %v5349, %v5433
      %v5450 = vadd.f32 %v5350, %v5434
      %v5451 = vadd.f32 %v5351, %v5435
      %v5452 = vadd.f32 %v5352, %v5436
      %v5453 = vadd.f32 %v5353, %v5437
      %v5454 = vadd.f32 %v5354, %v5438
      %v5455 = vadd.f32 %v5355, %v5439
      %v5456 = vadd.f32 %v5356, %v5440
      %v5457 = vadd.f32 %v5357, %v5441
      %v5458 = vadd.f32 %v5358, %v5442
      %v5459 = vadd.f32 %v5359, %v5443
      %v5460 = vadd.f32 %v5360, %v5444
      %v5461 = vadd.f32 %v5361, %v5445
      %v5462 = vadd.f32 %v5362, %v5446
      %v5463 = vadd.f32 %v5363, %v5447
      %5464 = vset.pattern.permute.xlu0 15
      %5465 = vperm.xlu0 %5464, %v3921
      %v5466 = vpop.permute.xlu0 %5465
      %5468 = vset.pattern.permute.xlu0 15
      %5469 = vperm.xlu0 %5468, %v3922
      %v5470 = vpop.permute.xlu0 %5469
      %5472 = vset.pattern.permute.xlu0 15
      %5473 = vperm.xlu0 %5472, %v3923
      %v5474 = vpop.permute.xlu0 %5473
      %5476 = vset.pattern.permute.xlu0 15
      %5477 = vperm.xlu0 %5476, %v3924
      %v5478 = vpop.permute.xlu0 %5477
      %5480 = vset.pattern.permute.xlu0 15
      %5481 = vperm.xlu0 %5480, %v3925
      %v5482 = vpop.permute.xlu0 %5481
      %5484 = vset.pattern.permute.xlu0 15
      %5485 = vperm.xlu0 %5484, %v3926
      %v5486 = vpop.permute.xlu0 %5485
      %5488 = vset.pattern.permute.xlu0 15
      %5489 = vperm.xlu0 %5488, %v3927
      %v5490 = vpop.permute.xlu0 %5489
      %5492 = vset.pattern.permute.xlu0 15
      %5493 = vperm.xlu0 %5492, %v3928
      %v5494 = vpop.permute.xlu0 %5493
      %5496 = vset.pattern.permute.xlu0 15
      %5497 = vperm.xlu0 %5496, %v3929
      %v5498 = vpop.permute.xlu0 %5497
      %5500 = vset.pattern.permute.xlu0 15
      %5501 = vperm.xlu0 %5500, %v3930
      %v5502 = vpop.permute.xlu0 %5501
      %5504 = vset.pattern.permute.xlu0 15
      %5505 = vperm.xlu0 %5504, %v3931
      %v5506 = vpop.permute.xlu0 %5505
      %5508 = vset.pattern.permute.xlu0 15
      %5509 = vperm.xlu0 %5508, %v3932
      %v5510 = vpop.permute.xlu0 %5509
      %5512 = vset.pattern.permute.xlu0 15
      %5513 = vperm.xlu0 %5512, %v3933
      %v5514 = vpop.permute.xlu0 %5513
      %5516 = vset.pattern.permute.xlu0 15
      %5517 = vperm.xlu0 %5516, %v3934
      %v5518 = vpop.permute.xlu0 %5517
      %5520 = vset.pattern.permute.xlu0 15
      %5521 = vperm.xlu0 %5520, %v3935
      %v5522 = vpop.permute.xlu0 %5521
      %5524 = vset.pattern.permute.xlu0 15
      %5525 = vperm.xlu0 %5524, %v3936
      %v5526 = vpop.permute.xlu0 %5525
      %v5528 = vlaneseq
      %v5529 = vshrl.u32 %v5528, 7
      %v5530 = vsub.s32 7, %v5529
      %v5531 = vrot.slane %v3938, %v5530
      %v5532 = vmul.f32 %v5466, %v5531
      %v5533 = vmul.f32 %v5470, %v5531
      %v5534 = vmul.f32 %v5474, %v5531
      %v5535 = vmul.f32 %v5478, %v5531
      %v5536 = vmul.f32 %v5482, %v5531
      %v5537 = vmul.f32 %v5486, %v5531
      %v5538 = vmul.f32 %v5490, %v5531
      %v5539 = vmul.f32 %v5494, %v5531
      %v5540 = vmul.f32 %v5498, %v5531
      %v5541 = vmul.f32 %v5502, %v5531
      %v5542 = vmul.f32 %v5506, %v5531
      %v5543 = vmul.f32 %v5510, %v5531
      %v5544 = vmul.f32 %v5514, %v5531
      %v5545 = vmul.f32 %v5518, %v5531
      %v5546 = vmul.f32 %v5522, %v5531
      %v5547 = vmul.f32 %v5526, %v5531
      %v5548 = vadd.f32 %v5448, %v5532
      %v5549 = vadd.f32 %v5449, %v5533
      %v5550 = vadd.f32 %v5450, %v5534
      %v5551 = vadd.f32 %v5451, %v5535
      %v5552 = vadd.f32 %v5452, %v5536
      %v5553 = vadd.f32 %v5453, %v5537
      %v5554 = vadd.f32 %v5454, %v5538
      %v5555 = vadd.f32 %v5455, %v5539
      %v5556 = vadd.f32 %v5456, %v5540
      %v5557 = vadd.f32 %v5457, %v5541
      %v5558 = vadd.f32 %v5458, %v5542
      %v5559 = vadd.f32 %v5459, %v5543
      %v5560 = vadd.f32 %v5460, %v5544
      %v5561 = vadd.f32 %v5461, %v5545
      %v5562 = vadd.f32 %v5462, %v5546
      %v5563 = vadd.f32 %v5463, %v5547
      %5564 = vset.pattern.permute.xlu0 16
      %5565 = vperm.xlu0 %5564, %v3921
      %v5566 = vpop.permute.xlu0 %5565
      %5568 = vset.pattern.permute.xlu0 16
      %5569 = vperm.xlu0 %5568, %v3922
      %v5570 = vpop.permute.xlu0 %5569
      %5572 = vset.pattern.permute.xlu0 16
      %5573 = vperm.xlu0 %5572, %v3923
      %v5574 = vpop.permute.xlu0 %5573
      %5576 = vset.pattern.permute.xlu0 16
      %5577 = vperm.xlu0 %5576, %v3924
      %v5578 = vpop.permute.xlu0 %5577
      %5580 = vset.pattern.permute.xlu0 16
      %5581 = vperm.xlu0 %5580, %v3925
      %v5582 = vpop.permute.xlu0 %5581
      %5584 = vset.pattern.permute.xlu0 16
      %5585 = vperm.xlu0 %5584, %v3926
      %v5586 = vpop.permute.xlu0 %5585
      %5588 = vset.pattern.permute.xlu0 16
      %5589 = vperm.xlu0 %5588, %v3927
      %v5590 = vpop.permute.xlu0 %5589
      %5592 = vset.pattern.permute.xlu0 16
      %5593 = vperm.xlu0 %5592, %v3928
      %v5594 = vpop.permute.xlu0 %5593
      %5596 = vset.pattern.permute.xlu0 16
      %5597 = vperm.xlu0 %5596, %v3929
      %v5598 = vpop.permute.xlu0 %5597
      %5600 = vset.pattern.permute.xlu0 16
      %5601 = vperm.xlu0 %5600, %v3930
      %v5602 = vpop.permute.xlu0 %5601
      %5604 = vset.pattern.permute.xlu0 16
      %5605 = vperm.xlu0 %5604, %v3931
      %v5606 = vpop.permute.xlu0 %5605
      %5608 = vset.pattern.permute.xlu0 16
      %5609 = vperm.xlu0 %5608, %v3932
      %v5610 = vpop.permute.xlu0 %5609
      %5612 = vset.pattern.permute.xlu0 16
      %5613 = vperm.xlu0 %5612, %v3933
      %v5614 = vpop.permute.xlu0 %5613
      %5616 = vset.pattern.permute.xlu0 16
      %5617 = vperm.xlu0 %5616, %v3934
      %v5618 = vpop.permute.xlu0 %5617
      %5620 = vset.pattern.permute.xlu0 16
      %5621 = vperm.xlu0 %5620, %v3935
      %v5622 = vpop.permute.xlu0 %5621
      %5624 = vset.pattern.permute.xlu0 16
      %5625 = vperm.xlu0 %5624, %v3936
      %v5626 = vpop.permute.xlu0 %5625
      %v5628 = vlaneseq
      %v5629 = vshrl.u32 %v5628, 7
      %v5630 = vsub.s32 0, %v5629
      %v5631 = vrot.slane %v3939, %v5630
      %v5632 = vmul.f32 %v5566, %v5631
      %v5633 = vmul.f32 %v5570, %v5631
      %v5634 = vmul.f32 %v5574, %v5631
      %v5635 = vmul.f32 %v5578, %v5631
      %v5636 = vmul.f32 %v5582, %v5631
      %v5637 = vmul.f32 %v5586, %v5631
      %v5638 = vmul.f32 %v5590, %v5631
      %v5639 = vmul.f32 %v5594, %v5631
      %v5640 = vmul.f32 %v5598, %v5631
      %v5641 = vmul.f32 %v5602, %v5631
      %v5642 = vmul.f32 %v5606, %v5631
      %v5643 = vmul.f32 %v5610, %v5631
      %v5644 = vmul.f32 %v5614, %v5631
      %v5645 = vmul.f32 %v5618, %v5631
      %v5646 = vmul.f32 %v5622, %v5631
      %v5647 = vmul.f32 %v5626, %v5631
      %v5648 = vadd.f32 %v5548, %v5632
      %v5649 = vadd.f32 %v5549, %v5633
      %v5650 = vadd.f32 %v5550, %v5634
      %v5651 = vadd.f32 %v5551, %v5635
      %v5652 = vadd.f32 %v5552, %v5636
      %v5653 = vadd.f32 %v5553, %v5637
      %v5654 = vadd.f32 %v5554, %v5638
      %v5655 = vadd.f32 %v5555, %v5639
      %v5656 = vadd.f32 %v5556, %v5640
      %v5657 = vadd.f32 %v5557, %v5641
      %v5658 = vadd.f32 %v5558, %v5642
      %v5659 = vadd.f32 %v5559, %v5643
      %v5660 = vadd.f32 %v5560, %v5644
      %v5661 = vadd.f32 %v5561, %v5645
      %v5662 = vadd.f32 %v5562, %v5646
      %v5663 = vadd.f32 %v5563, %v5647
      %5664 = vset.pattern.permute.xlu0 17
      %5665 = vperm.xlu0 %5664, %v3921
      %v5666 = vpop.permute.xlu0 %5665
      %5668 = vset.pattern.permute.xlu0 17
      %5669 = vperm.xlu0 %5668, %v3922
      %v5670 = vpop.permute.xlu0 %5669
      %5672 = vset.pattern.permute.xlu0 17
      %5673 = vperm.xlu0 %5672, %v3923
      %v5674 = vpop.permute.xlu0 %5673
      %5676 = vset.pattern.permute.xlu0 17
      %5677 = vperm.xlu0 %5676, %v3924
      %v5678 = vpop.permute.xlu0 %5677
      %5680 = vset.pattern.permute.xlu0 17
      %5681 = vperm.xlu0 %5680, %v3925
      %v5682 = vpop.permute.xlu0 %5681
      %5684 = vset.pattern.permute.xlu0 17
      %5685 = vperm.xlu0 %5684, %v3926
      %v5686 = vpop.permute.xlu0 %5685
      %5688 = vset.pattern.permute.xlu0 17
      %5689 = vperm.xlu0 %5688, %v3927
      %v5690 = vpop.permute.xlu0 %5689
      %5692 = vset.pattern.permute.xlu0 17
      %5693 = vperm.xlu0 %5692, %v3928
      %v5694 = vpop.permute.xlu0 %5693
      %5696 = vset.pattern.permute.xlu0 17
      %5697 = vperm.xlu0 %5696, %v3929
      %v5698 = vpop.permute.xlu0 %5697
      %5700 = vset.pattern.permute.xlu0 17
      %5701 = vperm.xlu0 %5700, %v3930
      %v5702 = vpop.permute.xlu0 %5701
      %5704 = vset.pattern.permute.xlu0 17
      %5705 = vperm.xlu0 %5704, %v3931
      %v5706 = vpop.permute.xlu0 %5705
      %5708 = vset.pattern.permute.xlu0 17
      %5709 = vperm.xlu0 %5708, %v3932
      %v5710 = vpop.permute.xlu0 %5709
      %5712 = vset.pattern.permute.xlu0 17
      %5713 = vperm.xlu0 %5712, %v3933
      %v5714 = vpop.permute.xlu0 %5713
      %5716 = vset.pattern.permute.xlu0 17
      %5717 = vperm.xlu0 %5716, %v3934
      %v5718 = vpop.permute.xlu0 %5717
      %5720 = vset.pattern.permute.xlu0 17
      %5721 = vperm.xlu0 %5720, %v3935
      %v5722 = vpop.permute.xlu0 %5721
      %5724 = vset.pattern.permute.xlu0 17
      %5725 = vperm.xlu0 %5724, %v3936
      %v5726 = vpop.permute.xlu0 %5725
      %v5728 = vlaneseq
      %v5729 = vshrl.u32 %v5728, 7
      %v5730 = vsub.s32 1, %v5729
      %v5731 = vrot.slane %v3939, %v5730
      %v5732 = vmul.f32 %v5666, %v5731
      %v5733 = vmul.f32 %v5670, %v5731
      %v5734 = vmul.f32 %v5674, %v5731
      %v5735 = vmul.f32 %v5678, %v5731
      %v5736 = vmul.f32 %v5682, %v5731
      %v5737 = vmul.f32 %v5686, %v5731
      %v5738 = vmul.f32 %v5690, %v5731
      %v5739 = vmul.f32 %v5694, %v5731
      %v5740 = vmul.f32 %v5698, %v5731
      %v5741 = vmul.f32 %v5702, %v5731
      %v5742 = vmul.f32 %v5706, %v5731
      %v5743 = vmul.f32 %v5710, %v5731
      %v5744 = vmul.f32 %v5714, %v5731
      %v5745 = vmul.f32 %v5718, %v5731
      %v5746 = vmul.f32 %v5722, %v5731
      %v5747 = vmul.f32 %v5726, %v5731
      %v5748 = vadd.f32 %v5648, %v5732
      %v5749 = vadd.f32 %v5649, %v5733
      %v5750 = vadd.f32 %v5650, %v5734
      %v5751 = vadd.f32 %v5651, %v5735
      %v5752 = vadd.f32 %v5652, %v5736
      %v5753 = vadd.f32 %v5653, %v5737
      %v5754 = vadd.f32 %v5654, %v5738
      %v5755 = vadd.f32 %v5655, %v5739
      %v5756 = vadd.f32 %v5656, %v5740
      %v5757 = vadd.f32 %v5657, %v5741
      %v5758 = vadd.f32 %v5658, %v5742
      %v5759 = vadd.f32 %v5659, %v5743
      %v5760 = vadd.f32 %v5660, %v5744
      %v5761 = vadd.f32 %v5661, %v5745
      %v5762 = vadd.f32 %v5662, %v5746
      %v5763 = vadd.f32 %v5663, %v5747
      %5764 = vset.pattern.permute.xlu0 18
      %5765 = vperm.xlu0 %5764, %v3921
      %v5766 = vpop.permute.xlu0 %5765
      %5768 = vset.pattern.permute.xlu0 18
      %5769 = vperm.xlu0 %5768, %v3922
      %v5770 = vpop.permute.xlu0 %5769
      %5772 = vset.pattern.permute.xlu0 18
      %5773 = vperm.xlu0 %5772, %v3923
      %v5774 = vpop.permute.xlu0 %5773
      %5776 = vset.pattern.permute.xlu0 18
      %5777 = vperm.xlu0 %5776, %v3924
      %v5778 = vpop.permute.xlu0 %5777
      %5780 = vset.pattern.permute.xlu0 18
      %5781 = vperm.xlu0 %5780, %v3925
      %v5782 = vpop.permute.xlu0 %5781
      %5784 = vset.pattern.permute.xlu0 18
      %5785 = vperm.xlu0 %5784, %v3926
      %v5786 = vpop.permute.xlu0 %5785
      %5788 = vset.pattern.permute.xlu0 18
      %5789 = vperm.xlu0 %5788, %v3927
      %v5790 = vpop.permute.xlu0 %5789
      %5792 = vset.pattern.permute.xlu0 18
      %5793 = vperm.xlu0 %5792, %v3928
      %v5794 = vpop.permute.xlu0 %5793
      %5796 = vset.pattern.permute.xlu0 18
      %5797 = vperm.xlu0 %5796, %v3929
      %v5798 = vpop.permute.xlu0 %5797
      %5800 = vset.pattern.permute.xlu0 18
      %5801 = vperm.xlu0 %5800, %v3930
      %v5802 = vpop.permute.xlu0 %5801
      %5804 = vset.pattern.permute.xlu0 18
      %5805 = vperm.xlu0 %5804, %v3931
      %v5806 = vpop.permute.xlu0 %5805
      %5808 = vset.pattern.permute.xlu0 18
      %5809 = vperm.xlu0 %5808, %v3932
      %v5810 = vpop.permute.xlu0 %5809
      %5812 = vset.pattern.permute.xlu0 18
      %5813 = vperm.xlu0 %5812, %v3933
      %v5814 = vpop.permute.xlu0 %5813
      %5816 = vset.pattern.permute.xlu0 18
      %5817 = vperm.xlu0 %5816, %v3934
      %v5818 = vpop.permute.xlu0 %5817
      %5820 = vset.pattern.permute.xlu0 18
      %5821 = vperm.xlu0 %5820, %v3935
      %v5822 = vpop.permute.xlu0 %5821
      %5824 = vset.pattern.permute.xlu0 18
      %5825 = vperm.xlu0 %5824, %v3936
      %v5826 = vpop.permute.xlu0 %5825
      %v5828 = vlaneseq
      %v5829 = vshrl.u32 %v5828, 7
      %v5830 = vsub.s32 2, %v5829
      %v5831 = vrot.slane %v3939, %v5830
      %v5832 = vmul.f32 %v5766, %v5831
      %v5833 = vmul.f32 %v5770, %v5831
      %v5834 = vmul.f32 %v5774, %v5831
      %v5835 = vmul.f32 %v5778, %v5831
      %v5836 = vmul.f32 %v5782, %v5831
      %v5837 = vmul.f32 %v5786, %v5831
      %v5838 = vmul.f32 %v5790, %v5831
      %v5839 = vmul.f32 %v5794, %v5831
      %v5840 = vmul.f32 %v5798, %v5831
      %v5841 = vmul.f32 %v5802, %v5831
      %v5842 = vmul.f32 %v5806, %v5831
      %v5843 = vmul.f32 %v5810, %v5831
      %v5844 = vmul.f32 %v5814, %v5831
      %v5845 = vmul.f32 %v5818, %v5831
      %v5846 = vmul.f32 %v5822, %v5831
      %v5847 = vmul.f32 %v5826, %v5831
      %v5848 = vadd.f32 %v5748, %v5832
      %v5849 = vadd.f32 %v5749, %v5833
      %v5850 = vadd.f32 %v5750, %v5834
      %v5851 = vadd.f32 %v5751, %v5835
      %v5852 = vadd.f32 %v5752, %v5836
      %v5853 = vadd.f32 %v5753, %v5837
      %v5854 = vadd.f32 %v5754, %v5838
      %v5855 = vadd.f32 %v5755, %v5839
      %v5856 = vadd.f32 %v5756, %v5840
      %v5857 = vadd.f32 %v5757, %v5841
      %v5858 = vadd.f32 %v5758, %v5842
      %v5859 = vadd.f32 %v5759, %v5843
      %v5860 = vadd.f32 %v5760, %v5844
      %v5861 = vadd.f32 %v5761, %v5845
      %v5862 = vadd.f32 %v5762, %v5846
      %v5863 = vadd.f32 %v5763, %v5847
      %5864 = vset.pattern.permute.xlu0 19
      %5865 = vperm.xlu0 %5864, %v3921
      %v5866 = vpop.permute.xlu0 %5865
      %5868 = vset.pattern.permute.xlu0 19
      %5869 = vperm.xlu0 %5868, %v3922
      %v5870 = vpop.permute.xlu0 %5869
      %5872 = vset.pattern.permute.xlu0 19
      %5873 = vperm.xlu0 %5872, %v3923
      %v5874 = vpop.permute.xlu0 %5873
      %5876 = vset.pattern.permute.xlu0 19
      %5877 = vperm.xlu0 %5876, %v3924
      %v5878 = vpop.permute.xlu0 %5877
      %5880 = vset.pattern.permute.xlu0 19
      %5881 = vperm.xlu0 %5880, %v3925
      %v5882 = vpop.permute.xlu0 %5881
      %5884 = vset.pattern.permute.xlu0 19
      %5885 = vperm.xlu0 %5884, %v3926
      %v5886 = vpop.permute.xlu0 %5885
      %5888 = vset.pattern.permute.xlu0 19
      %5889 = vperm.xlu0 %5888, %v3927
      %v5890 = vpop.permute.xlu0 %5889
      %5892 = vset.pattern.permute.xlu0 19
      %5893 = vperm.xlu0 %5892, %v3928
      %v5894 = vpop.permute.xlu0 %5893
      %5896 = vset.pattern.permute.xlu0 19
      %5897 = vperm.xlu0 %5896, %v3929
      %v5898 = vpop.permute.xlu0 %5897
      %5900 = vset.pattern.permute.xlu0 19
      %5901 = vperm.xlu0 %5900, %v3930
      %v5902 = vpop.permute.xlu0 %5901
      %5904 = vset.pattern.permute.xlu0 19
      %5905 = vperm.xlu0 %5904, %v3931
      %v5906 = vpop.permute.xlu0 %5905
      %5908 = vset.pattern.permute.xlu0 19
      %5909 = vperm.xlu0 %5908, %v3932
      %v5910 = vpop.permute.xlu0 %5909
      %5912 = vset.pattern.permute.xlu0 19
      %5913 = vperm.xlu0 %5912, %v3933
      %v5914 = vpop.permute.xlu0 %5913
      %5916 = vset.pattern.permute.xlu0 19
      %5917 = vperm.xlu0 %5916, %v3934
      %v5918 = vpop.permute.xlu0 %5917
      %5920 = vset.pattern.permute.xlu0 19
      %5921 = vperm.xlu0 %5920, %v3935
      %v5922 = vpop.permute.xlu0 %5921
      %5924 = vset.pattern.permute.xlu0 19
      %5925 = vperm.xlu0 %5924, %v3936
      %v5926 = vpop.permute.xlu0 %5925
      %v5928 = vlaneseq
      %v5929 = vshrl.u32 %v5928, 7
      %v5930 = vsub.s32 3, %v5929
      %v5931 = vrot.slane %v3939, %v5930
      %v5932 = vmul.f32 %v5866, %v5931
      %v5933 = vmul.f32 %v5870, %v5931
      %v5934 = vmul.f32 %v5874, %v5931
      %v5935 = vmul.f32 %v5878, %v5931
      %v5936 = vmul.f32 %v5882, %v5931
      %v5937 = vmul.f32 %v5886, %v5931
      %v5938 = vmul.f32 %v5890, %v5931
      %v5939 = vmul.f32 %v5894, %v5931
      %v5940 = vmul.f32 %v5898, %v5931
      %v5941 = vmul.f32 %v5902, %v5931
      %v5942 = vmul.f32 %v5906, %v5931
      %v5943 = vmul.f32 %v5910, %v5931
      %v5944 = vmul.f32 %v5914, %v5931
      %v5945 = vmul.f32 %v5918, %v5931
      %v5946 = vmul.f32 %v5922, %v5931
      %v5947 = vmul.f32 %v5926, %v5931
      %v5948 = vadd.f32 %v5848, %v5932
      %v5949 = vadd.f32 %v5849, %v5933
      %v5950 = vadd.f32 %v5850, %v5934
      %v5951 = vadd.f32 %v5851, %v5935
      %v5952 = vadd.f32 %v5852, %v5936
      %v5953 = vadd.f32 %v5853, %v5937
      %v5954 = vadd.f32 %v5854, %v5938
      %v5955 = vadd.f32 %v5855, %v5939
      %v5956 = vadd.f32 %v5856, %v5940
      %v5957 = vadd.f32 %v5857, %v5941
      %v5958 = vadd.f32 %v5858, %v5942
      %v5959 = vadd.f32 %v5859, %v5943
      %v5960 = vadd.f32 %v5860, %v5944
      %v5961 = vadd.f32 %v5861, %v5945
      %v5962 = vadd.f32 %v5862, %v5946
      %v5963 = vadd.f32 %v5863, %v5947
      %5964 = vset.pattern.permute.xlu0 20
      %5965 = vperm.xlu0 %5964, %v3921
      %v5966 = vpop.permute.xlu0 %5965
      %5968 = vset.pattern.permute.xlu0 20
      %5969 = vperm.xlu0 %5968, %v3922
      %v5970 = vpop.permute.xlu0 %5969
      %5972 = vset.pattern.permute.xlu0 20
      %5973 = vperm.xlu0 %5972, %v3923
      %v5974 = vpop.permute.xlu0 %5973
      %5976 = vset.pattern.permute.xlu0 20
      %5977 = vperm.xlu0 %5976, %v3924
      %v5978 = vpop.permute.xlu0 %5977
      %5980 = vset.pattern.permute.xlu0 20
      %5981 = vperm.xlu0 %5980, %v3925
      %v5982 = vpop.permute.xlu0 %5981
      %5984 = vset.pattern.permute.xlu0 20
      %5985 = vperm.xlu0 %5984, %v3926
      %v5986 = vpop.permute.xlu0 %5985
      %5988 = vset.pattern.permute.xlu0 20
      %5989 = vperm.xlu0 %5988, %v3927
      %v5990 = vpop.permute.xlu0 %5989
      %5992 = vset.pattern.permute.xlu0 20
      %5993 = vperm.xlu0 %5992, %v3928
      %v5994 = vpop.permute.xlu0 %5993
      %5996 = vset.pattern.permute.xlu0 20
      %5997 = vperm.xlu0 %5996, %v3929
      %v5998 = vpop.permute.xlu0 %5997
      %6000 = vset.pattern.permute.xlu0 20
      %6001 = vperm.xlu0 %6000, %v3930
      %v6002 = vpop.permute.xlu0 %6001
      %6004 = vset.pattern.permute.xlu0 20
      %6005 = vperm.xlu0 %6004, %v3931
      %v6006 = vpop.permute.xlu0 %6005
      %6008 = vset.pattern.permute.xlu0 20
      %6009 = vperm.xlu0 %6008, %v3932
      %v6010 = vpop.permute.xlu0 %6009
      %6012 = vset.pattern.permute.xlu0 20
      %6013 = vperm.xlu0 %6012, %v3933
      %v6014 = vpop.permute.xlu0 %6013
      %6016 = vset.pattern.permute.xlu0 20
      %6017 = vperm.xlu0 %6016, %v3934
      %v6018 = vpop.permute.xlu0 %6017
      %6020 = vset.pattern.permute.xlu0 20
      %6021 = vperm.xlu0 %6020, %v3935
      %v6022 = vpop.permute.xlu0 %6021
      %6024 = vset.pattern.permute.xlu0 20
      %6025 = vperm.xlu0 %6024, %v3936
      %v6026 = vpop.permute.xlu0 %6025
      %v6028 = vlaneseq
      %v6029 = vshrl.u32 %v6028, 7
      %v6030 = vsub.s32 4, %v6029
      %v6031 = vrot.slane %v3939, %v6030
      %v6032 = vmul.f32 %v5966, %v6031
      %v6033 = vmul.f32 %v5970, %v6031
      %v6034 = vmul.f32 %v5974, %v6031
      %v6035 = vmul.f32 %v5978, %v6031
      %v6036 = vmul.f32 %v5982, %v6031
      %v6037 = vmul.f32 %v5986, %v6031
      %v6038 = vmul.f32 %v5990, %v6031
      %v6039 = vmul.f32 %v5994, %v6031
      %v6040 = vmul.f32 %v5998, %v6031
      %v6041 = vmul.f32 %v6002, %v6031
      %v6042 = vmul.f32 %v6006, %v6031
      %v6043 = vmul.f32 %v6010, %v6031
      %v6044 = vmul.f32 %v6014, %v6031
      %v6045 = vmul.f32 %v6018, %v6031
      %v6046 = vmul.f32 %v6022, %v6031
      %v6047 = vmul.f32 %v6026, %v6031
      %v6048 = vadd.f32 %v5948, %v6032
      %v6049 = vadd.f32 %v5949, %v6033
      %v6050 = vadd.f32 %v5950, %v6034
      %v6051 = vadd.f32 %v5951, %v6035
      %v6052 = vadd.f32 %v5952, %v6036
      %v6053 = vadd.f32 %v5953, %v6037
      %v6054 = vadd.f32 %v5954, %v6038
      %v6055 = vadd.f32 %v5955, %v6039
      %v6056 = vadd.f32 %v5956, %v6040
      %v6057 = vadd.f32 %v5957, %v6041
      %v6058 = vadd.f32 %v5958, %v6042
      %v6059 = vadd.f32 %v5959, %v6043
      %v6060 = vadd.f32 %v5960, %v6044
      %v6061 = vadd.f32 %v5961, %v6045
      %v6062 = vadd.f32 %v5962, %v6046
      %v6063 = vadd.f32 %v5963, %v6047
      %6064 = vset.pattern.permute.xlu0 21
      %6065 = vperm.xlu0 %6064, %v3921
      %v6066 = vpop.permute.xlu0 %6065
      %6068 = vset.pattern.permute.xlu0 21
      %6069 = vperm.xlu0 %6068, %v3922
      %v6070 = vpop.permute.xlu0 %6069
      %6072 = vset.pattern.permute.xlu0 21
      %6073 = vperm.xlu0 %6072, %v3923
      %v6074 = vpop.permute.xlu0 %6073
      %6076 = vset.pattern.permute.xlu0 21
      %6077 = vperm.xlu0 %6076, %v3924
      %v6078 = vpop.permute.xlu0 %6077
      %6080 = vset.pattern.permute.xlu0 21
      %6081 = vperm.xlu0 %6080, %v3925
      %v6082 = vpop.permute.xlu0 %6081
      %6084 = vset.pattern.permute.xlu0 21
      %6085 = vperm.xlu0 %6084, %v3926
      %v6086 = vpop.permute.xlu0 %6085
      %6088 = vset.pattern.permute.xlu0 21
      %6089 = vperm.xlu0 %6088, %v3927
      %v6090 = vpop.permute.xlu0 %6089
      %6092 = vset.pattern.permute.xlu0 21
      %6093 = vperm.xlu0 %6092, %v3928
      %v6094 = vpop.permute.xlu0 %6093
      %6096 = vset.pattern.permute.xlu0 21
      %6097 = vperm.xlu0 %6096, %v3929
      %v6098 = vpop.permute.xlu0 %6097
      %6100 = vset.pattern.permute.xlu0 21
      %6101 = vperm.xlu0 %6100, %v3930
      %v6102 = vpop.permute.xlu0 %6101
      %6104 = vset.pattern.permute.xlu0 21
      %6105 = vperm.xlu0 %6104, %v3931
      %v6106 = vpop.permute.xlu0 %6105
      %6108 = vset.pattern.permute.xlu0 21
      %6109 = vperm.xlu0 %6108, %v3932
      %v6110 = vpop.permute.xlu0 %6109
      %6112 = vset.pattern.permute.xlu0 21
      %6113 = vperm.xlu0 %6112, %v3933
      %v6114 = vpop.permute.xlu0 %6113
      %6116 = vset.pattern.permute.xlu0 21
      %6117 = vperm.xlu0 %6116, %v3934
      %v6118 = vpop.permute.xlu0 %6117
      %6120 = vset.pattern.permute.xlu0 21
      %6121 = vperm.xlu0 %6120, %v3935
      %v6122 = vpop.permute.xlu0 %6121
      %6124 = vset.pattern.permute.xlu0 21
      %6125 = vperm.xlu0 %6124, %v3936
      %v6126 = vpop.permute.xlu0 %6125
      %v6128 = vlaneseq
      %v6129 = vshrl.u32 %v6128, 7
      %v6130 = vsub.s32 5, %v6129
      %v6131 = vrot.slane %v3939, %v6130
      %v6132 = vmul.f32 %v6066, %v6131
      %v6133 = vmul.f32 %v6070, %v6131
      %v6134 = vmul.f32 %v6074, %v6131
      %v6135 = vmul.f32 %v6078, %v6131
      %v6136 = vmul.f32 %v6082, %v6131
      %v6137 = vmul.f32 %v6086, %v6131
      %v6138 = vmul.f32 %v6090, %v6131
      %v6139 = vmul.f32 %v6094, %v6131
      %v6140 = vmul.f32 %v6098, %v6131
      %v6141 = vmul.f32 %v6102, %v6131
      %v6142 = vmul.f32 %v6106, %v6131
      %v6143 = vmul.f32 %v6110, %v6131
      %v6144 = vmul.f32 %v6114, %v6131
      %v6145 = vmul.f32 %v6118, %v6131
      %v6146 = vmul.f32 %v6122, %v6131
      %v6147 = vmul.f32 %v6126, %v6131
      %v6148 = vadd.f32 %v6048, %v6132
      %v6149 = vadd.f32 %v6049, %v6133
      %v6150 = vadd.f32 %v6050, %v6134
      %v6151 = vadd.f32 %v6051, %v6135
      %v6152 = vadd.f32 %v6052, %v6136
      %v6153 = vadd.f32 %v6053, %v6137
      %v6154 = vadd.f32 %v6054, %v6138
      %v6155 = vadd.f32 %v6055, %v6139
      %v6156 = vadd.f32 %v6056, %v6140
      %v6157 = vadd.f32 %v6057, %v6141
      %v6158 = vadd.f32 %v6058, %v6142
      %v6159 = vadd.f32 %v6059, %v6143
      %v6160 = vadd.f32 %v6060, %v6144
      %v6161 = vadd.f32 %v6061, %v6145
      %v6162 = vadd.f32 %v6062, %v6146
      %v6163 = vadd.f32 %v6063, %v6147
      %6164 = vset.pattern.permute.xlu0 22
      %6165 = vperm.xlu0 %6164, %v3921
      %v6166 = vpop.permute.xlu0 %6165
      %6168 = vset.pattern.permute.xlu0 22
      %6169 = vperm.xlu0 %6168, %v3922
      %v6170 = vpop.permute.xlu0 %6169
      %6172 = vset.pattern.permute.xlu0 22
      %6173 = vperm.xlu0 %6172, %v3923
      %v6174 = vpop.permute.xlu0 %6173
      %6176 = vset.pattern.permute.xlu0 22
      %6177 = vperm.xlu0 %6176, %v3924
      %v6178 = vpop.permute.xlu0 %6177
      %6180 = vset.pattern.permute.xlu0 22
      %6181 = vperm.xlu0 %6180, %v3925
      %v6182 = vpop.permute.xlu0 %6181
      %6184 = vset.pattern.permute.xlu0 22
      %6185 = vperm.xlu0 %6184, %v3926
      %v6186 = vpop.permute.xlu0 %6185
      %6188 = vset.pattern.permute.xlu0 22
      %6189 = vperm.xlu0 %6188, %v3927
      %v6190 = vpop.permute.xlu0 %6189
      %6192 = vset.pattern.permute.xlu0 22
      %6193 = vperm.xlu0 %6192, %v3928
      %v6194 = vpop.permute.xlu0 %6193
      %6196 = vset.pattern.permute.xlu0 22
      %6197 = vperm.xlu0 %6196, %v3929
      %v6198 = vpop.permute.xlu0 %6197
      %6200 = vset.pattern.permute.xlu0 22
      %6201 = vperm.xlu0 %6200, %v3930
      %v6202 = vpop.permute.xlu0 %6201
      %6204 = vset.pattern.permute.xlu0 22
      %6205 = vperm.xlu0 %6204, %v3931
      %v6206 = vpop.permute.xlu0 %6205
      %6208 = vset.pattern.permute.xlu0 22
      %6209 = vperm.xlu0 %6208, %v3932
      %v6210 = vpop.permute.xlu0 %6209
      %6212 = vset.pattern.permute.xlu0 22
      %6213 = vperm.xlu0 %6212, %v3933
      %v6214 = vpop.permute.xlu0 %6213
      %6216 = vset.pattern.permute.xlu0 22
      %6217 = vperm.xlu0 %6216, %v3934
      %v6218 = vpop.permute.xlu0 %6217
      %6220 = vset.pattern.permute.xlu0 22
      %6221 = vperm.xlu0 %6220, %v3935
      %v6222 = vpop.permute.xlu0 %6221
      %6224 = vset.pattern.permute.xlu0 22
      %6225 = vperm.xlu0 %6224, %v3936
      %v6226 = vpop.permute.xlu0 %6225
      %v6228 = vlaneseq
      %v6229 = vshrl.u32 %v6228, 7
      %v6230 = vsub.s32 6, %v6229
      %v6231 = vrot.slane %v3939, %v6230
      %v6232 = vmul.f32 %v6166, %v6231
      %v6233 = vmul.f32 %v6170, %v6231
      %v6234 = vmul.f32 %v6174, %v6231
      %v6235 = vmul.f32 %v6178, %v6231
      %v6236 = vmul.f32 %v6182, %v6231
      %v6237 = vmul.f32 %v6186, %v6231
      %v6238 = vmul.f32 %v6190, %v6231
      %v6239 = vmul.f32 %v6194, %v6231
      %v6240 = vmul.f32 %v6198, %v6231
      %v6241 = vmul.f32 %v6202, %v6231
      %v6242 = vmul.f32 %v6206, %v6231
      %v6243 = vmul.f32 %v6210, %v6231
      %v6244 = vmul.f32 %v6214, %v6231
      %v6245 = vmul.f32 %v6218, %v6231
      %v6246 = vmul.f32 %v6222, %v6231
      %v6247 = vmul.f32 %v6226, %v6231
      %v6248 = vadd.f32 %v6148, %v6232
      %v6249 = vadd.f32 %v6149, %v6233
      %v6250 = vadd.f32 %v6150, %v6234
      %v6251 = vadd.f32 %v6151, %v6235
      %v6252 = vadd.f32 %v6152, %v6236
      %v6253 = vadd.f32 %v6153, %v6237
      %v6254 = vadd.f32 %v6154, %v6238
      %v6255 = vadd.f32 %v6155, %v6239
      %v6256 = vadd.f32 %v6156, %v6240
      %v6257 = vadd.f32 %v6157, %v6241
      %v6258 = vadd.f32 %v6158, %v6242
      %v6259 = vadd.f32 %v6159, %v6243
      %v6260 = vadd.f32 %v6160, %v6244
      %v6261 = vadd.f32 %v6161, %v6245
      %v6262 = vadd.f32 %v6162, %v6246
      %v6263 = vadd.f32 %v6163, %v6247
      %6264 = vset.pattern.permute.xlu0 23
      %6265 = vperm.xlu0 %6264, %v3921
      %v6266 = vpop.permute.xlu0 %6265
      %6268 = vset.pattern.permute.xlu0 23
      %6269 = vperm.xlu0 %6268, %v3922
      %v6270 = vpop.permute.xlu0 %6269
      %6272 = vset.pattern.permute.xlu0 23
      %6273 = vperm.xlu0 %6272, %v3923
      %v6274 = vpop.permute.xlu0 %6273
      %6276 = vset.pattern.permute.xlu0 23
      %6277 = vperm.xlu0 %6276, %v3924
      %v6278 = vpop.permute.xlu0 %6277
      %6280 = vset.pattern.permute.xlu0 23
      %6281 = vperm.xlu0 %6280, %v3925
      %v6282 = vpop.permute.xlu0 %6281
      %6284 = vset.pattern.permute.xlu0 23
      %6285 = vperm.xlu0 %6284, %v3926
      %v6286 = vpop.permute.xlu0 %6285
      %6288 = vset.pattern.permute.xlu0 23
      %6289 = vperm.xlu0 %6288, %v3927
      %v6290 = vpop.permute.xlu0 %6289
      %6292 = vset.pattern.permute.xlu0 23
      %6293 = vperm.xlu0 %6292, %v3928
      %v6294 = vpop.permute.xlu0 %6293
      %6296 = vset.pattern.permute.xlu0 23
      %6297 = vperm.xlu0 %6296, %v3929
      %v6298 = vpop.permute.xlu0 %6297
      %6300 = vset.pattern.permute.xlu0 23
      %6301 = vperm.xlu0 %6300, %v3930
      %v6302 = vpop.permute.xlu0 %6301
      %6304 = vset.pattern.permute.xlu0 23
      %6305 = vperm.xlu0 %6304, %v3931
      %v6306 = vpop.permute.xlu0 %6305
      %6308 = vset.pattern.permute.xlu0 23
      %6309 = vperm.xlu0 %6308, %v3932
      %v6310 = vpop.permute.xlu0 %6309
      %6312 = vset.pattern.permute.xlu0 23
      %6313 = vperm.xlu0 %6312, %v3933
      %v6314 = vpop.permute.xlu0 %6313
      %6316 = vset.pattern.permute.xlu0 23
      %6317 = vperm.xlu0 %6316, %v3934
      %v6318 = vpop.permute.xlu0 %6317
      %6320 = vset.pattern.permute.xlu0 23
      %6321 = vperm.xlu0 %6320, %v3935
      %v6322 = vpop.permute.xlu0 %6321
      %6324 = vset.pattern.permute.xlu0 23
      %6325 = vperm.xlu0 %6324, %v3936
      %v6326 = vpop.permute.xlu0 %6325
      %v6328 = vlaneseq
      %v6329 = vshrl.u32 %v6328, 7
      %v6330 = vsub.s32 7, %v6329
      %v6331 = vrot.slane %v3939, %v6330
      %v6332 = vmul.f32 %v6266, %v6331
      %v6333 = vmul.f32 %v6270, %v6331
      %v6334 = vmul.f32 %v6274, %v6331
      %v6335 = vmul.f32 %v6278, %v6331
      %v6336 = vmul.f32 %v6282, %v6331
      %v6337 = vmul.f32 %v6286, %v6331
      %v6338 = vmul.f32 %v6290, %v6331
      %v6339 = vmul.f32 %v6294, %v6331
      %v6340 = vmul.f32 %v6298, %v6331
      %v6341 = vmul.f32 %v6302, %v6331
      %v6342 = vmul.f32 %v6306, %v6331
      %v6343 = vmul.f32 %v6310, %v6331
      %v6344 = vmul.f32 %v6314, %v6331
      %v6345 = vmul.f32 %v6318, %v6331
      %v6346 = vmul.f32 %v6322, %v6331
      %v6347 = vmul.f32 %v6326, %v6331
      %v6348 = vadd.f32 %v6248, %v6332
      %v6349 = vadd.f32 %v6249, %v6333
      %v6350 = vadd.f32 %v6250, %v6334
      %v6351 = vadd.f32 %v6251, %v6335
      %v6352 = vadd.f32 %v6252, %v6336
      %v6353 = vadd.f32 %v6253, %v6337
      %v6354 = vadd.f32 %v6254, %v6338
      %v6355 = vadd.f32 %v6255, %v6339
      %v6356 = vadd.f32 %v6256, %v6340
      %v6357 = vadd.f32 %v6257, %v6341
      %v6358 = vadd.f32 %v6258, %v6342
      %v6359 = vadd.f32 %v6259, %v6343
      %v6360 = vadd.f32 %v6260, %v6344
      %v6361 = vadd.f32 %v6261, %v6345
      %v6362 = vadd.f32 %v6262, %v6346
      %v6363 = vadd.f32 %v6263, %v6347
      %6364 = vset.pattern.permute.xlu0 24
      %6365 = vperm.xlu0 %6364, %v3921
      %v6366 = vpop.permute.xlu0 %6365
      %6368 = vset.pattern.permute.xlu0 24
      %6369 = vperm.xlu0 %6368, %v3922
      %v6370 = vpop.permute.xlu0 %6369
      %6372 = vset.pattern.permute.xlu0 24
      %6373 = vperm.xlu0 %6372, %v3923
      %v6374 = vpop.permute.xlu0 %6373
      %6376 = vset.pattern.permute.xlu0 24
      %6377 = vperm.xlu0 %6376, %v3924
      %v6378 = vpop.permute.xlu0 %6377
      %6380 = vset.pattern.permute.xlu0 24
      %6381 = vperm.xlu0 %6380, %v3925
      %v6382 = vpop.permute.xlu0 %6381
      %6384 = vset.pattern.permute.xlu0 24
      %6385 = vperm.xlu0 %6384, %v3926
      %v6386 = vpop.permute.xlu0 %6385
      %6388 = vset.pattern.permute.xlu0 24
      %6389 = vperm.xlu0 %6388, %v3927
      %v6390 = vpop.permute.xlu0 %6389
      %6392 = vset.pattern.permute.xlu0 24
      %6393 = vperm.xlu0 %6392, %v3928
      %v6394 = vpop.permute.xlu0 %6393
      %6396 = vset.pattern.permute.xlu0 24
      %6397 = vperm.xlu0 %6396, %v3929
      %v6398 = vpop.permute.xlu0 %6397
      %6400 = vset.pattern.permute.xlu0 24
      %6401 = vperm.xlu0 %6400, %v3930
      %v6402 = vpop.permute.xlu0 %6401
      %6404 = vset.pattern.permute.xlu0 24
      %6405 = vperm.xlu0 %6404, %v3931
      %v6406 = vpop.permute.xlu0 %6405
      %6408 = vset.pattern.permute.xlu0 24
      %6409 = vperm.xlu0 %6408, %v3932
      %v6410 = vpop.permute.xlu0 %6409
      %6412 = vset.pattern.permute.xlu0 24
      %6413 = vperm.xlu0 %6412, %v3933
      %v6414 = vpop.permute.xlu0 %6413
      %6416 = vset.pattern.permute.xlu0 24
      %6417 = vperm.xlu0 %6416, %v3934
      %v6418 = vpop.permute.xlu0 %6417
      %6420 = vset.pattern.permute.xlu0 24
      %6421 = vperm.xlu0 %6420, %v3935
      %v6422 = vpop.permute.xlu0 %6421
      %6424 = vset.pattern.permute.xlu0 24
      %6425 = vperm.xlu0 %6424, %v3936
      %v6426 = vpop.permute.xlu0 %6425
      %v6428 = vlaneseq
      %v6429 = vshrl.u32 %v6428, 7
      %v6430 = vsub.s32 0, %v6429
      %v6431 = vrot.slane %v3940, %v6430
      %v6432 = vmul.f32 %v6366, %v6431
      %v6433 = vmul.f32 %v6370, %v6431
      %v6434 = vmul.f32 %v6374, %v6431
      %v6435 = vmul.f32 %v6378, %v6431
      %v6436 = vmul.f32 %v6382, %v6431
      %v6437 = vmul.f32 %v6386, %v6431
      %v6438 = vmul.f32 %v6390, %v6431
      %v6439 = vmul.f32 %v6394, %v6431
      %v6440 = vmul.f32 %v6398, %v6431
      %v6441 = vmul.f32 %v6402, %v6431
      %v6442 = vmul.f32 %v6406, %v6431
      %v6443 = vmul.f32 %v6410, %v6431
      %v6444 = vmul.f32 %v6414, %v6431
      %v6445 = vmul.f32 %v6418, %v6431
      %v6446 = vmul.f32 %v6422, %v6431
      %v6447 = vmul.f32 %v6426, %v6431
      %v6448 = vadd.f32 %v6348, %v6432
      %v6449 = vadd.f32 %v6349, %v6433
      %v6450 = vadd.f32 %v6350, %v6434
      %v6451 = vadd.f32 %v6351, %v6435
      %v6452 = vadd.f32 %v6352, %v6436
      %v6453 = vadd.f32 %v6353, %v6437
      %v6454 = vadd.f32 %v6354, %v6438
      %v6455 = vadd.f32 %v6355, %v6439
      %v6456 = vadd.f32 %v6356, %v6440
      %v6457 = vadd.f32 %v6357, %v6441
      %v6458 = vadd.f32 %v6358, %v6442
      %v6459 = vadd.f32 %v6359, %v6443
      %v6460 = vadd.f32 %v6360, %v6444
      %v6461 = vadd.f32 %v6361, %v6445
      %v6462 = vadd.f32 %v6362, %v6446
      %v6463 = vadd.f32 %v6363, %v6447
      %6464 = vset.pattern.permute.xlu0 25
      %6465 = vperm.xlu0 %6464, %v3921
      %v6466 = vpop.permute.xlu0 %6465
      %6468 = vset.pattern.permute.xlu0 25
      %6469 = vperm.xlu0 %6468, %v3922
      %v6470 = vpop.permute.xlu0 %6469
      %6472 = vset.pattern.permute.xlu0 25
      %6473 = vperm.xlu0 %6472, %v3923
      %v6474 = vpop.permute.xlu0 %6473
      %6476 = vset.pattern.permute.xlu0 25
      %6477 = vperm.xlu0 %6476, %v3924
      %v6478 = vpop.permute.xlu0 %6477
      %6480 = vset.pattern.permute.xlu0 25
      %6481 = vperm.xlu0 %6480, %v3925
      %v6482 = vpop.permute.xlu0 %6481
      %6484 = vset.pattern.permute.xlu0 25
      %6485 = vperm.xlu0 %6484, %v3926
      %v6486 = vpop.permute.xlu0 %6485
      %6488 = vset.pattern.permute.xlu0 25
      %6489 = vperm.xlu0 %6488, %v3927
      %v6490 = vpop.permute.xlu0 %6489
      %6492 = vset.pattern.permute.xlu0 25
      %6493 = vperm.xlu0 %6492, %v3928
      %v6494 = vpop.permute.xlu0 %6493
      %6496 = vset.pattern.permute.xlu0 25
      %6497 = vperm.xlu0 %6496, %v3929
      %v6498 = vpop.permute.xlu0 %6497
      %6500 = vset.pattern.permute.xlu0 25
      %6501 = vperm.xlu0 %6500, %v3930
      %v6502 = vpop.permute.xlu0 %6501
      %6504 = vset.pattern.permute.xlu0 25
      %6505 = vperm.xlu0 %6504, %v3931
      %v6506 = vpop.permute.xlu0 %6505
      %6508 = vset.pattern.permute.xlu0 25
      %6509 = vperm.xlu0 %6508, %v3932
      %v6510 = vpop.permute.xlu0 %6509
      %6512 = vset.pattern.permute.xlu0 25
      %6513 = vperm.xlu0 %6512, %v3933
      %v6514 = vpop.permute.xlu0 %6513
      %6516 = vset.pattern.permute.xlu0 25
      %6517 = vperm.xlu0 %6516, %v3934
      %v6518 = vpop.permute.xlu0 %6517
      %6520 = vset.pattern.permute.xlu0 25
      %6521 = vperm.xlu0 %6520, %v3935
      %v6522 = vpop.permute.xlu0 %6521
      %6524 = vset.pattern.permute.xlu0 25
      %6525 = vperm.xlu0 %6524, %v3936
      %v6526 = vpop.permute.xlu0 %6525
      %v6528 = vlaneseq
      %v6529 = vshrl.u32 %v6528, 7
      %v6530 = vsub.s32 1, %v6529
      %v6531 = vrot.slane %v3940, %v6530
      %v6532 = vmul.f32 %v6466, %v6531
      %v6533 = vmul.f32 %v6470, %v6531
      %v6534 = vmul.f32 %v6474, %v6531
      %v6535 = vmul.f32 %v6478, %v6531
      %v6536 = vmul.f32 %v6482, %v6531
      %v6537 = vmul.f32 %v6486, %v6531
      %v6538 = vmul.f32 %v6490, %v6531
      %v6539 = vmul.f32 %v6494, %v6531
      %v6540 = vmul.f32 %v6498, %v6531
      %v6541 = vmul.f32 %v6502, %v6531
      %v6542 = vmul.f32 %v6506, %v6531
      %v6543 = vmul.f32 %v6510, %v6531
      %v6544 = vmul.f32 %v6514, %v6531
      %v6545 = vmul.f32 %v6518, %v6531
      %v6546 = vmul.f32 %v6522, %v6531
      %v6547 = vmul.f32 %v6526, %v6531
      %v6548 = vadd.f32 %v6448, %v6532
      %v6549 = vadd.f32 %v6449, %v6533
      %v6550 = vadd.f32 %v6450, %v6534
      %v6551 = vadd.f32 %v6451, %v6535
      %v6552 = vadd.f32 %v6452, %v6536
      %v6553 = vadd.f32 %v6453, %v6537
      %v6554 = vadd.f32 %v6454, %v6538
      %v6555 = vadd.f32 %v6455, %v6539
      %v6556 = vadd.f32 %v6456, %v6540
      %v6557 = vadd.f32 %v6457, %v6541
      %v6558 = vadd.f32 %v6458, %v6542
      %v6559 = vadd.f32 %v6459, %v6543
      %v6560 = vadd.f32 %v6460, %v6544
      %v6561 = vadd.f32 %v6461, %v6545
      %v6562 = vadd.f32 %v6462, %v6546
      %v6563 = vadd.f32 %v6463, %v6547
      %6564 = vset.pattern.permute.xlu0 26
      %6565 = vperm.xlu0 %6564, %v3921
      %v6566 = vpop.permute.xlu0 %6565
      %6568 = vset.pattern.permute.xlu0 26
      %6569 = vperm.xlu0 %6568, %v3922
      %v6570 = vpop.permute.xlu0 %6569
      %6572 = vset.pattern.permute.xlu0 26
      %6573 = vperm.xlu0 %6572, %v3923
      %v6574 = vpop.permute.xlu0 %6573
      %6576 = vset.pattern.permute.xlu0 26
      %6577 = vperm.xlu0 %6576, %v3924
      %v6578 = vpop.permute.xlu0 %6577
      %6580 = vset.pattern.permute.xlu0 26
      %6581 = vperm.xlu0 %6580, %v3925
      %v6582 = vpop.permute.xlu0 %6581
      %6584 = vset.pattern.permute.xlu0 26
      %6585 = vperm.xlu0 %6584, %v3926
      %v6586 = vpop.permute.xlu0 %6585
      %6588 = vset.pattern.permute.xlu0 26
      %6589 = vperm.xlu0 %6588, %v3927
      %v6590 = vpop.permute.xlu0 %6589
      %6592 = vset.pattern.permute.xlu0 26
      %6593 = vperm.xlu0 %6592, %v3928
      %v6594 = vpop.permute.xlu0 %6593
      %6596 = vset.pattern.permute.xlu0 26
      %6597 = vperm.xlu0 %6596, %v3929
      %v6598 = vpop.permute.xlu0 %6597
      %6600 = vset.pattern.permute.xlu0 26
      %6601 = vperm.xlu0 %6600, %v3930
      %v6602 = vpop.permute.xlu0 %6601
      %6604 = vset.pattern.permute.xlu0 26
      %6605 = vperm.xlu0 %6604, %v3931
      %v6606 = vpop.permute.xlu0 %6605
      %6608 = vset.pattern.permute.xlu0 26
      %6609 = vperm.xlu0 %6608, %v3932
      %v6610 = vpop.permute.xlu0 %6609
      %6612 = vset.pattern.permute.xlu0 26
      %6613 = vperm.xlu0 %6612, %v3933
      %v6614 = vpop.permute.xlu0 %6613
      %6616 = vset.pattern.permute.xlu0 26
      %6617 = vperm.xlu0 %6616, %v3934
      %v6618 = vpop.permute.xlu0 %6617
      %6620 = vset.pattern.permute.xlu0 26
      %6621 = vperm.xlu0 %6620, %v3935
      %v6622 = vpop.permute.xlu0 %6621
      %6624 = vset.pattern.permute.xlu0 26
      %6625 = vperm.xlu0 %6624, %v3936
      %v6626 = vpop.permute.xlu0 %6625
      %v6628 = vlaneseq
      %v6629 = vshrl.u32 %v6628, 7
      %v6630 = vsub.s32 2, %v6629
      %v6631 = vrot.slane %v3940, %v6630
      %v6632 = vmul.f32 %v6566, %v6631
      %v6633 = vmul.f32 %v6570, %v6631
      %v6634 = vmul.f32 %v6574, %v6631
      %v6635 = vmul.f32 %v6578, %v6631
      %v6636 = vmul.f32 %v6582, %v6631
      %v6637 = vmul.f32 %v6586, %v6631
      %v6638 = vmul.f32 %v6590, %v6631
      %v6639 = vmul.f32 %v6594, %v6631
      %v6640 = vmul.f32 %v6598, %v6631
      %v6641 = vmul.f32 %v6602, %v6631
      %v6642 = vmul.f32 %v6606, %v6631
      %v6643 = vmul.f32 %v6610, %v6631
      %v6644 = vmul.f32 %v6614, %v6631
      %v6645 = vmul.f32 %v6618, %v6631
      %v6646 = vmul.f32 %v6622, %v6631
      %v6647 = vmul.f32 %v6626, %v6631
      %v6648 = vadd.f32 %v6548, %v6632
      %v6649 = vadd.f32 %v6549, %v6633
      %v6650 = vadd.f32 %v6550, %v6634
      %v6651 = vadd.f32 %v6551, %v6635
      %v6652 = vadd.f32 %v6552, %v6636
      %v6653 = vadd.f32 %v6553, %v6637
      %v6654 = vadd.f32 %v6554, %v6638
      %v6655 = vadd.f32 %v6555, %v6639
      %v6656 = vadd.f32 %v6556, %v6640
      %v6657 = vadd.f32 %v6557, %v6641
      %v6658 = vadd.f32 %v6558, %v6642
      %v6659 = vadd.f32 %v6559, %v6643
      %v6660 = vadd.f32 %v6560, %v6644
      %v6661 = vadd.f32 %v6561, %v6645
      %v6662 = vadd.f32 %v6562, %v6646
      %v6663 = vadd.f32 %v6563, %v6647
      %6664 = vset.pattern.permute.xlu0 27
      %6665 = vperm.xlu0 %6664, %v3921
      %v6666 = vpop.permute.xlu0 %6665
      %6668 = vset.pattern.permute.xlu0 27
      %6669 = vperm.xlu0 %6668, %v3922
      %v6670 = vpop.permute.xlu0 %6669
      %6672 = vset.pattern.permute.xlu0 27
      %6673 = vperm.xlu0 %6672, %v3923
      %v6674 = vpop.permute.xlu0 %6673
      %6676 = vset.pattern.permute.xlu0 27
      %6677 = vperm.xlu0 %6676, %v3924
      %v6678 = vpop.permute.xlu0 %6677
      %6680 = vset.pattern.permute.xlu0 27
      %6681 = vperm.xlu0 %6680, %v3925
      %v6682 = vpop.permute.xlu0 %6681
      %6684 = vset.pattern.permute.xlu0 27
      %6685 = vperm.xlu0 %6684, %v3926
      %v6686 = vpop.permute.xlu0 %6685
      %6688 = vset.pattern.permute.xlu0 27
      %6689 = vperm.xlu0 %6688, %v3927
      %v6690 = vpop.permute.xlu0 %6689
      %6692 = vset.pattern.permute.xlu0 27
      %6693 = vperm.xlu0 %6692, %v3928
      %v6694 = vpop.permute.xlu0 %6693
      %6696 = vset.pattern.permute.xlu0 27
      %6697 = vperm.xlu0 %6696, %v3929
      %v6698 = vpop.permute.xlu0 %6697
      %6700 = vset.pattern.permute.xlu0 27
      %6701 = vperm.xlu0 %6700, %v3930
      %v6702 = vpop.permute.xlu0 %6701
      %6704 = vset.pattern.permute.xlu0 27
      %6705 = vperm.xlu0 %6704, %v3931
      %v6706 = vpop.permute.xlu0 %6705
      %6708 = vset.pattern.permute.xlu0 27
      %6709 = vperm.xlu0 %6708, %v3932
      %v6710 = vpop.permute.xlu0 %6709
      %6712 = vset.pattern.permute.xlu0 27
      %6713 = vperm.xlu0 %6712, %v3933
      %v6714 = vpop.permute.xlu0 %6713
      %6716 = vset.pattern.permute.xlu0 27
      %6717 = vperm.xlu0 %6716, %v3934
      %v6718 = vpop.permute.xlu0 %6717
      %6720 = vset.pattern.permute.xlu0 27
      %6721 = vperm.xlu0 %6720, %v3935
      %v6722 = vpop.permute.xlu0 %6721
      %6724 = vset.pattern.permute.xlu0 27
      %6725 = vperm.xlu0 %6724, %v3936
      %v6726 = vpop.permute.xlu0 %6725
      %v6728 = vlaneseq
      %v6729 = vshrl.u32 %v6728, 7
      %v6730 = vsub.s32 3, %v6729
      %v6731 = vrot.slane %v3940, %v6730
      %v6732 = vmul.f32 %v6666, %v6731
      %v6733 = vmul.f32 %v6670, %v6731
      %v6734 = vmul.f32 %v6674, %v6731
      %v6735 = vmul.f32 %v6678, %v6731
      %v6736 = vmul.f32 %v6682, %v6731
      %v6737 = vmul.f32 %v6686, %v6731
      %v6738 = vmul.f32 %v6690, %v6731
      %v6739 = vmul.f32 %v6694, %v6731
      %v6740 = vmul.f32 %v6698, %v6731
      %v6741 = vmul.f32 %v6702, %v6731
      %v6742 = vmul.f32 %v6706, %v6731
      %v6743 = vmul.f32 %v6710, %v6731
      %v6744 = vmul.f32 %v6714, %v6731
      %v6745 = vmul.f32 %v6718, %v6731
      %v6746 = vmul.f32 %v6722, %v6731
      %v6747 = vmul.f32 %v6726, %v6731
      %v6748 = vadd.f32 %v6648, %v6732
      %v6749 = vadd.f32 %v6649, %v6733
      %v6750 = vadd.f32 %v6650, %v6734
      %v6751 = vadd.f32 %v6651, %v6735
      %v6752 = vadd.f32 %v6652, %v6736
      %v6753 = vadd.f32 %v6653, %v6737
      %v6754 = vadd.f32 %v6654, %v6738
      %v6755 = vadd.f32 %v6655, %v6739
      %v6756 = vadd.f32 %v6656, %v6740
      %v6757 = vadd.f32 %v6657, %v6741
      %v6758 = vadd.f32 %v6658, %v6742
      %v6759 = vadd.f32 %v6659, %v6743
      %v6760 = vadd.f32 %v6660, %v6744
      %v6761 = vadd.f32 %v6661, %v6745
      %v6762 = vadd.f32 %v6662, %v6746
      %v6763 = vadd.f32 %v6663, %v6747
      %6764 = vset.pattern.permute.xlu0 28
      %6765 = vperm.xlu0 %6764, %v3921
      %v6766 = vpop.permute.xlu0 %6765
      %6768 = vset.pattern.permute.xlu0 28
      %6769 = vperm.xlu0 %6768, %v3922
      %v6770 = vpop.permute.xlu0 %6769
      %6772 = vset.pattern.permute.xlu0 28
      %6773 = vperm.xlu0 %6772, %v3923
      %v6774 = vpop.permute.xlu0 %6773
      %6776 = vset.pattern.permute.xlu0 28
      %6777 = vperm.xlu0 %6776, %v3924
      %v6778 = vpop.permute.xlu0 %6777
      %6780 = vset.pattern.permute.xlu0 28
      %6781 = vperm.xlu0 %6780, %v3925
      %v6782 = vpop.permute.xlu0 %6781
      %6784 = vset.pattern.permute.xlu0 28
      %6785 = vperm.xlu0 %6784, %v3926
      %v6786 = vpop.permute.xlu0 %6785
      %6788 = vset.pattern.permute.xlu0 28
      %6789 = vperm.xlu0 %6788, %v3927
      %v6790 = vpop.permute.xlu0 %6789
      %6792 = vset.pattern.permute.xlu0 28
      %6793 = vperm.xlu0 %6792, %v3928
      %v6794 = vpop.permute.xlu0 %6793
      %6796 = vset.pattern.permute.xlu0 28
      %6797 = vperm.xlu0 %6796, %v3929
      %v6798 = vpop.permute.xlu0 %6797
      %6800 = vset.pattern.permute.xlu0 28
      %6801 = vperm.xlu0 %6800, %v3930
      %v6802 = vpop.permute.xlu0 %6801
      %6804 = vset.pattern.permute.xlu0 28
      %6805 = vperm.xlu0 %6804, %v3931
      %v6806 = vpop.permute.xlu0 %6805
      %6808 = vset.pattern.permute.xlu0 28
      %6809 = vperm.xlu0 %6808, %v3932
      %v6810 = vpop.permute.xlu0 %6809
      %6812 = vset.pattern.permute.xlu0 28
      %6813 = vperm.xlu0 %6812, %v3933
      %v6814 = vpop.permute.xlu0 %6813
      %6816 = vset.pattern.permute.xlu0 28
      %6817 = vperm.xlu0 %6816, %v3934
      %v6818 = vpop.permute.xlu0 %6817
      %6820 = vset.pattern.permute.xlu0 28
      %6821 = vperm.xlu0 %6820, %v3935
      %v6822 = vpop.permute.xlu0 %6821
      %6824 = vset.pattern.permute.xlu0 28
      %6825 = vperm.xlu0 %6824, %v3936
      %v6826 = vpop.permute.xlu0 %6825
      %v6828 = vlaneseq
      %v6829 = vshrl.u32 %v6828, 7
      %v6830 = vsub.s32 4, %v6829
      %v6831 = vrot.slane %v3940, %v6830
      %v6832 = vmul.f32 %v6766, %v6831
      %v6833 = vmul.f32 %v6770, %v6831
      %v6834 = vmul.f32 %v6774, %v6831
      %v6835 = vmul.f32 %v6778, %v6831
      %v6836 = vmul.f32 %v6782, %v6831
      %v6837 = vmul.f32 %v6786, %v6831
      %v6838 = vmul.f32 %v6790, %v6831
      %v6839 = vmul.f32 %v6794, %v6831
      %v6840 = vmul.f32 %v6798, %v6831
      %v6841 = vmul.f32 %v6802, %v6831
      %v6842 = vmul.f32 %v6806, %v6831
      %v6843 = vmul.f32 %v6810, %v6831
      %v6844 = vmul.f32 %v6814, %v6831
      %v6845 = vmul.f32 %v6818, %v6831
      %v6846 = vmul.f32 %v6822, %v6831
      %v6847 = vmul.f32 %v6826, %v6831
      %v6848 = vadd.f32 %v6748, %v6832
      %v6849 = vadd.f32 %v6749, %v6833
      %v6850 = vadd.f32 %v6750, %v6834
      %v6851 = vadd.f32 %v6751, %v6835
      %v6852 = vadd.f32 %v6752, %v6836
      %v6853 = vadd.f32 %v6753, %v6837
      %v6854 = vadd.f32 %v6754, %v6838
      %v6855 = vadd.f32 %v6755, %v6839
      %v6856 = vadd.f32 %v6756, %v6840
      %v6857 = vadd.f32 %v6757, %v6841
      %v6858 = vadd.f32 %v6758, %v6842
      %v6859 = vadd.f32 %v6759, %v6843
      %v6860 = vadd.f32 %v6760, %v6844
      %v6861 = vadd.f32 %v6761, %v6845
      %v6862 = vadd.f32 %v6762, %v6846
      %v6863 = vadd.f32 %v6763, %v6847
      %6864 = vset.pattern.permute.xlu0 29
      %6865 = vperm.xlu0 %6864, %v3921
      %v6866 = vpop.permute.xlu0 %6865
      %6868 = vset.pattern.permute.xlu0 29
      %6869 = vperm.xlu0 %6868, %v3922
      %v6870 = vpop.permute.xlu0 %6869
      %6872 = vset.pattern.permute.xlu0 29
      %6873 = vperm.xlu0 %6872, %v3923
      %v6874 = vpop.permute.xlu0 %6873
      %6876 = vset.pattern.permute.xlu0 29
      %6877 = vperm.xlu0 %6876, %v3924
      %v6878 = vpop.permute.xlu0 %6877
      %6880 = vset.pattern.permute.xlu0 29
      %6881 = vperm.xlu0 %6880, %v3925
      %v6882 = vpop.permute.xlu0 %6881
      %6884 = vset.pattern.permute.xlu0 29
      %6885 = vperm.xlu0 %6884, %v3926
      %v6886 = vpop.permute.xlu0 %6885
      %6888 = vset.pattern.permute.xlu0 29
      %6889 = vperm.xlu0 %6888, %v3927
      %v6890 = vpop.permute.xlu0 %6889
      %6892 = vset.pattern.permute.xlu0 29
      %6893 = vperm.xlu0 %6892, %v3928
      %v6894 = vpop.permute.xlu0 %6893
      %6896 = vset.pattern.permute.xlu0 29
      %6897 = vperm.xlu0 %6896, %v3929
      %v6898 = vpop.permute.xlu0 %6897
      %6900 = vset.pattern.permute.xlu0 29
      %6901 = vperm.xlu0 %6900, %v3930
      %v6902 = vpop.permute.xlu0 %6901
      %6904 = vset.pattern.permute.xlu0 29
      %6905 = vperm.xlu0 %6904, %v3931
      %v6906 = vpop.permute.xlu0 %6905
      %6908 = vset.pattern.permute.xlu0 29
      %6909 = vperm.xlu0 %6908, %v3932
      %v6910 = vpop.permute.xlu0 %6909
      %6912 = vset.pattern.permute.xlu0 29
      %6913 = vperm.xlu0 %6912, %v3933
      %v6914 = vpop.permute.xlu0 %6913
      %6916 = vset.pattern.permute.xlu0 29
      %6917 = vperm.xlu0 %6916, %v3934
      %v6918 = vpop.permute.xlu0 %6917
      %6920 = vset.pattern.permute.xlu0 29
      %6921 = vperm.xlu0 %6920, %v3935
      %v6922 = vpop.permute.xlu0 %6921
      %6924 = vset.pattern.permute.xlu0 29
      %6925 = vperm.xlu0 %6924, %v3936
      %v6926 = vpop.permute.xlu0 %6925
      %v6928 = vlaneseq
      %v6929 = vshrl.u32 %v6928, 7
      %v6930 = vsub.s32 5, %v6929
      %v6931 = vrot.slane %v3940, %v6930
      %v6932 = vmul.f32 %v6866, %v6931
      %v6933 = vmul.f32 %v6870, %v6931
      %v6934 = vmul.f32 %v6874, %v6931
      %v6935 = vmul.f32 %v6878, %v6931
      %v6936 = vmul.f32 %v6882, %v6931
      %v6937 = vmul.f32 %v6886, %v6931
      %v6938 = vmul.f32 %v6890, %v6931
      %v6939 = vmul.f32 %v6894, %v6931
      %v6940 = vmul.f32 %v6898, %v6931
      %v6941 = vmul.f32 %v6902, %v6931
      %v6942 = vmul.f32 %v6906, %v6931
      %v6943 = vmul.f32 %v6910, %v6931
      %v6944 = vmul.f32 %v6914, %v6931
      %v6945 = vmul.f32 %v6918, %v6931
      %v6946 = vmul.f32 %v6922, %v6931
      %v6947 = vmul.f32 %v6926, %v6931
      %v6948 = vadd.f32 %v6848, %v6932
      %v6949 = vadd.f32 %v6849, %v6933
      %v6950 = vadd.f32 %v6850, %v6934
      %v6951 = vadd.f32 %v6851, %v6935
      %v6952 = vadd.f32 %v6852, %v6936
      %v6953 = vadd.f32 %v6853, %v6937
      %v6954 = vadd.f32 %v6854, %v6938
      %v6955 = vadd.f32 %v6855, %v6939
      %v6956 = vadd.f32 %v6856, %v6940
      %v6957 = vadd.f32 %v6857, %v6941
      %v6958 = vadd.f32 %v6858, %v6942
      %v6959 = vadd.f32 %v6859, %v6943
      %v6960 = vadd.f32 %v6860, %v6944
      %v6961 = vadd.f32 %v6861, %v6945
      %v6962 = vadd.f32 %v6862, %v6946
      %v6963 = vadd.f32 %v6863, %v6947
      %6964 = vset.pattern.permute.xlu0 30
      %6965 = vperm.xlu0 %6964, %v3921
      %v6966 = vpop.permute.xlu0 %6965
      %6968 = vset.pattern.permute.xlu0 30
      %6969 = vperm.xlu0 %6968, %v3922
      %v6970 = vpop.permute.xlu0 %6969
      %6972 = vset.pattern.permute.xlu0 30
      %6973 = vperm.xlu0 %6972, %v3923
      %v6974 = vpop.permute.xlu0 %6973
      %6976 = vset.pattern.permute.xlu0 30
      %6977 = vperm.xlu0 %6976, %v3924
      %v6978 = vpop.permute.xlu0 %6977
      %6980 = vset.pattern.permute.xlu0 30
      %6981 = vperm.xlu0 %6980, %v3925
      %v6982 = vpop.permute.xlu0 %6981
      %6984 = vset.pattern.permute.xlu0 30
      %6985 = vperm.xlu0 %6984, %v3926
      %v6986 = vpop.permute.xlu0 %6985
      %6988 = vset.pattern.permute.xlu0 30
      %6989 = vperm.xlu0 %6988, %v3927
      %v6990 = vpop.permute.xlu0 %6989
      %6992 = vset.pattern.permute.xlu0 30
      %6993 = vperm.xlu0 %6992, %v3928
      %v6994 = vpop.permute.xlu0 %6993
      %6996 = vset.pattern.permute.xlu0 30
      %6997 = vperm.xlu0 %6996, %v3929
      %v6998 = vpop.permute.xlu0 %6997
      %7000 = vset.pattern.permute.xlu0 30
      %7001 = vperm.xlu0 %7000, %v3930
      %v7002 = vpop.permute.xlu0 %7001
      %7004 = vset.pattern.permute.xlu0 30
      %7005 = vperm.xlu0 %7004, %v3931
      %v7006 = vpop.permute.xlu0 %7005
      %7008 = vset.pattern.permute.xlu0 30
      %7009 = vperm.xlu0 %7008, %v3932
      %v7010 = vpop.permute.xlu0 %7009
      %7012 = vset.pattern.permute.xlu0 30
      %7013 = vperm.xlu0 %7012, %v3933
      %v7014 = vpop.permute.xlu0 %7013
      %7016 = vset.pattern.permute.xlu0 30
      %7017 = vperm.xlu0 %7016, %v3934
      %v7018 = vpop.permute.xlu0 %7017
      %7020 = vset.pattern.permute.xlu0 30
      %7021 = vperm.xlu0 %7020, %v3935
      %v7022 = vpop.permute.xlu0 %7021
      %7024 = vset.pattern.permute.xlu0 30
      %7025 = vperm.xlu0 %7024, %v3936
      %v7026 = vpop.permute.xlu0 %7025
      %v7028 = vlaneseq
      %v7029 = vshrl.u32 %v7028, 7
      %v7030 = vsub.s32 6, %v7029
      %v7031 = vrot.slane %v3940, %v7030
      %v7032 = vmul.f32 %v6966, %v7031
      %v7033 = vmul.f32 %v6970, %v7031
      %v7034 = vmul.f32 %v6974, %v7031
      %v7035 = vmul.f32 %v6978, %v7031
      %v7036 = vmul.f32 %v6982, %v7031
      %v7037 = vmul.f32 %v6986, %v7031
      %v7038 = vmul.f32 %v6990, %v7031
      %v7039 = vmul.f32 %v6994, %v7031
      %v7040 = vmul.f32 %v6998, %v7031
      %v7041 = vmul.f32 %v7002, %v7031
      %v7042 = vmul.f32 %v7006, %v7031
      %v7043 = vmul.f32 %v7010, %v7031
      %v7044 = vmul.f32 %v7014, %v7031
      %v7045 = vmul.f32 %v7018, %v7031
      %v7046 = vmul.f32 %v7022, %v7031
      %v7047 = vmul.f32 %v7026, %v7031
      %v7048 = vadd.f32 %v6948, %v7032
      %v7049 = vadd.f32 %v6949, %v7033
      %v7050 = vadd.f32 %v6950, %v7034
      %v7051 = vadd.f32 %v6951, %v7035
      %v7052 = vadd.f32 %v6952, %v7036
      %v7053 = vadd.f32 %v6953, %v7037
      %v7054 = vadd.f32 %v6954, %v7038
      %v7055 = vadd.f32 %v6955, %v7039
      %v7056 = vadd.f32 %v6956, %v7040
      %v7057 = vadd.f32 %v6957, %v7041
      %v7058 = vadd.f32 %v6958, %v7042
      %v7059 = vadd.f32 %v6959, %v7043
      %v7060 = vadd.f32 %v6960, %v7044
      %v7061 = vadd.f32 %v6961, %v7045
      %v7062 = vadd.f32 %v6962, %v7046
      %v7063 = vadd.f32 %v6963, %v7047
      %7064 = vset.pattern.permute.xlu0 31
      %7065 = vperm.xlu0 %7064, %v3921
      %v7066 = vpop.permute.xlu0 %7065
      %7068 = vset.pattern.permute.xlu0 31
      %7069 = vperm.xlu0 %7068, %v3922
      %v7070 = vpop.permute.xlu0 %7069
      %7072 = vset.pattern.permute.xlu0 31
      %7073 = vperm.xlu0 %7072, %v3923
      %v7074 = vpop.permute.xlu0 %7073
      %7076 = vset.pattern.permute.xlu0 31
      %7077 = vperm.xlu0 %7076, %v3924
      %v7078 = vpop.permute.xlu0 %7077
      %7080 = vset.pattern.permute.xlu0 31
      %7081 = vperm.xlu0 %7080, %v3925
      %v7082 = vpop.permute.xlu0 %7081
      %7084 = vset.pattern.permute.xlu0 31
      %7085 = vperm.xlu0 %7084, %v3926
      %v7086 = vpop.permute.xlu0 %7085
      %7088 = vset.pattern.permute.xlu0 31
      %7089 = vperm.xlu0 %7088, %v3927
      %v7090 = vpop.permute.xlu0 %7089
      %7092 = vset.pattern.permute.xlu0 31
      %7093 = vperm.xlu0 %7092, %v3928
      %v7094 = vpop.permute.xlu0 %7093
      %7096 = vset.pattern.permute.xlu0 31
      %7097 = vperm.xlu0 %7096, %v3929
      %v7098 = vpop.permute.xlu0 %7097
      %7100 = vset.pattern.permute.xlu0 31
      %7101 = vperm.xlu0 %7100, %v3930
      %v7102 = vpop.permute.xlu0 %7101
      %7104 = vset.pattern.permute.xlu0 31
      %7105 = vperm.xlu0 %7104, %v3931
      %v7106 = vpop.permute.xlu0 %7105
      %7108 = vset.pattern.permute.xlu0 31
      %7109 = vperm.xlu0 %7108, %v3932
      %v7110 = vpop.permute.xlu0 %7109
      %7112 = vset.pattern.permute.xlu0 31
      %7113 = vperm.xlu0 %7112, %v3933
      %v7114 = vpop.permute.xlu0 %7113
      %7116 = vset.pattern.permute.xlu0 31
      %7117 = vperm.xlu0 %7116, %v3934
      %v7118 = vpop.permute.xlu0 %7117
      %7120 = vset.pattern.permute.xlu0 31
      %7121 = vperm.xlu0 %7120, %v3935
      %v7122 = vpop.permute.xlu0 %7121
      %7124 = vset.pattern.permute.xlu0 31
      %7125 = vperm.xlu0 %7124, %v3936
      %v7126 = vpop.permute.xlu0 %7125
      %v7128 = vlaneseq
      %v7129 = vshrl.u32 %v7128, 7
      %v7130 = vsub.s32 7, %v7129
      %v7131 = vrot.slane %v3940, %v7130
      %v7132 = vmul.f32 %v7066, %v7131
      %v7133 = vmul.f32 %v7070, %v7131
      %v7134 = vmul.f32 %v7074, %v7131
      %v7135 = vmul.f32 %v7078, %v7131
      %v7136 = vmul.f32 %v7082, %v7131
      %v7137 = vmul.f32 %v7086, %v7131
      %v7138 = vmul.f32 %v7090, %v7131
      %v7139 = vmul.f32 %v7094, %v7131
      %v7140 = vmul.f32 %v7098, %v7131
      %v7141 = vmul.f32 %v7102, %v7131
      %v7142 = vmul.f32 %v7106, %v7131
      %v7143 = vmul.f32 %v7110, %v7131
      %v7144 = vmul.f32 %v7114, %v7131
      %v7145 = vmul.f32 %v7118, %v7131
      %v7146 = vmul.f32 %v7122, %v7131
      %v7147 = vmul.f32 %v7126, %v7131
      %v7148 = vadd.f32 %v7048, %v7132
      %v7149 = vadd.f32 %v7049, %v7133
      %v7150 = vadd.f32 %v7050, %v7134
      %v7151 = vadd.f32 %v7051, %v7135
      %v7152 = vadd.f32 %v7052, %v7136
      %v7153 = vadd.f32 %v7053, %v7137
      %v7154 = vadd.f32 %v7054, %v7138
      %v7155 = vadd.f32 %v7055, %v7139
      %v7156 = vadd.f32 %v7056, %v7140
      %v7157 = vadd.f32 %v7057, %v7141
      %v7158 = vadd.f32 %v7058, %v7142
      %v7159 = vadd.f32 %v7059, %v7143
      %v7160 = vadd.f32 %v7060, %v7144
      %v7161 = vadd.f32 %v7061, %v7145
      %v7162 = vadd.f32 %v7062, %v7146
      %v7163 = vadd.f32 %v7063, %v7147
      %v7164 = vmax.f32 %v7148, 0.0
      %v7165 = vmax.f32 %v7149, 0.0
      %v7166 = vmax.f32 %v7150, 0.0
      %v7167 = vmax.f32 %v7151, 0.0
      %v7168 = vmax.f32 %v7152, 0.0
      %v7169 = vmax.f32 %v7153, 0.0
      %v7170 = vmax.f32 %v7154, 0.0
      %v7171 = vmax.f32 %v7155, 0.0
      %v7172 = vmax.f32 %v7156, 0.0
      %v7173 = vmax.f32 %v7157, 0.0
      %v7174 = vmax.f32 %v7158, 0.0
      %v7175 = vmax.f32 %v7159, 0.0
      %v7176 = vmax.f32 %v7160, 0.0
      %v7177 = vmax.f32 %v7161, 0.0
      %v7178 = vmax.f32 %v7162, 0.0
      %v7179 = vmax.f32 %v7163, 0.0
      %v7180 = vld [vmem:[%s7] sm:$0x1]
      %v7181 = vld [vmem:[#allocation2] sm:$0x1]
      %v7183 = vlaneseq
      %v7184 = vshrl.u32 %v7183, 7
      %v7185 = vsub.s32 0, %v7184
      %v7186 = vrot.slane %v7180, %v7185
      %v7188 = vmul.f32 %v7164, %v7186
      %v7189 = vmul.f32 %v7165, %v7186
      %v7190 = vmul.f32 %v7166, %v7186
      %v7191 = vmul.f32 %v7167, %v7186
      %v7192 = vmul.f32 %v7168, %v7186
      %v7193 = vmul.f32 %v7169, %v7186
      %v7194 = vmul.f32 %v7170, %v7186
      %v7195 = vmul.f32 %v7171, %v7186
      %v7196 = vmul.f32 %v7172, %v7186
      %v7197 = vmul.f32 %v7173, %v7186
      %v7198 = vmul.f32 %v7174, %v7186
      %v7199 = vmul.f32 %v7175, %v7186
      %v7200 = vmul.f32 %v7176, %v7186
      %v7201 = vmul.f32 %v7177, %v7186
      %v7202 = vmul.f32 %v7178, %v7186
      %v7203 = vmul.f32 %v7179, %v7186
      %vm7204 = vcmask 261120
      %v7205 = vsel %vm7204, %v7188, 0.0
      %7206 = vadd.xlane.f32.xlu0 %v7205
      %v7207 = vpop.xlane.xlu0 %7206
      %v7208 = vsel %vm7204, %v7189, 0.0
      %7209 = vadd.xlane.f32.xlu0 %v7208
      %v7210 = vpop.xlane.xlu0 %7209
      %v7211 = vsel %vm7204, %v7190, 0.0
      %7212 = vadd.xlane.f32.xlu0 %v7211
      %v7213 = vpop.xlane.xlu0 %7212
      %v7214 = vsel %vm7204, %v7191, 0.0
      %7215 = vadd.xlane.f32.xlu0 %v7214
      %v7216 = vpop.xlane.xlu0 %7215
      %v7217 = vsel %vm7204, %v7192, 0.0
      %7218 = vadd.xlane.f32.xlu0 %v7217
      %v7219 = vpop.xlane.xlu0 %7218
      %v7220 = vsel %vm7204, %v7193, 0.0
      %7221 = vadd.xlane.f32.xlu0 %v7220
      %v7222 = vpop.xlane.xlu0 %7221
      %v7223 = vsel %vm7204, %v7194, 0.0
      %7224 = vadd.xlane.f32.xlu0 %v7223
      %v7225 = vpop.xlane.xlu0 %7224
      %v7226 = vsel %vm7204, %v7195, 0.0
      %7227 = vadd.xlane.f32.xlu0 %v7226
      %v7228 = vpop.xlane.xlu0 %7227
      %v7229 = vsel %vm7204, %v7196, 0.0
      %7230 = vadd.xlane.f32.xlu0 %v7229
      %v7231 = vpop.xlane.xlu0 %7230
      %v7232 = vsel %vm7204, %v7197, 0.0
      %7233 = vadd.xlane.f32.xlu0 %v7232
      %v7234 = vpop.xlane.xlu0 %7233
      %v7235 = vsel %vm7204, %v7198, 0.0
      %7236 = vadd.xlane.f32.xlu0 %v7235
      %v7237 = vpop.xlane.xlu0 %7236
      %v7238 = vsel %vm7204, %v7199, 0.0
      %7239 = vadd.xlane.f32.xlu0 %v7238
      %v7240 = vpop.xlane.xlu0 %7239
      %v7241 = vsel %vm7204, %v7200, 0.0
      %7242 = vadd.xlane.f32.xlu0 %v7241
      %v7243 = vpop.xlane.xlu0 %7242
      %v7244 = vsel %vm7204, %v7201, 0.0
      %7245 = vadd.xlane.f32.xlu0 %v7244
      %v7246 = vpop.xlane.xlu0 %7245
      %v7247 = vsel %vm7204, %v7202, 0.0
      %7248 = vadd.xlane.f32.xlu0 %v7247
      %v7249 = vpop.xlane.xlu0 %7248
      %v7250 = vsel %vm7204, %v7203, 0.0
      %7251 = vadd.xlane.f32.xlu0 %v7250
      %v7252 = vpop.xlane.xlu0 %7251
      %v7254 = vlaneseq
      %v7255 = vshrl.u32 %v7254, 7
      %v7256 = vsub.s32 0, %v7255
      %v7257 = vrot.slane %v7181, %v7256
      %v7259 = vadd.f32 %v7207, %v7257
      %v7260 = vadd.f32 %v7210, %v7257
      %v7261 = vadd.f32 %v7213, %v7257
      %v7262 = vadd.f32 %v7216, %v7257
      %v7263 = vadd.f32 %v7219, %v7257
      %v7264 = vadd.f32 %v7222, %v7257
      %v7265 = vadd.f32 %v7225, %v7257
      %v7266 = vadd.f32 %v7228, %v7257
      %v7267 = vadd.f32 %v7231, %v7257
      %v7268 = vadd.f32 %v7234, %v7257
      %v7269 = vadd.f32 %v7237, %v7257
      %v7270 = vadd.f32 %v7240, %v7257
      %v7271 = vadd.f32 %v7243, %v7257
      %v7272 = vadd.f32 %v7246, %v7257
      %v7273 = vadd.f32 %v7249, %v7257
      %v7274 = vadd.f32 %v7252, %v7257
      %v7275 = vmul.f32 %v7259, %v7259
      %v7276 = vmul.f32 %v7260, %v7260
      %v7277 = vmul.f32 %v7261, %v7261
      %v7278 = vmul.f32 %v7262, %v7262
      %v7279 = vmul.f32 %v7263, %v7263
      %v7280 = vmul.f32 %v7264, %v7264
      %v7281 = vmul.f32 %v7265, %v7265
      %v7282 = vmul.f32 %v7266, %v7266
      %v7283 = vmul.f32 %v7267, %v7267
      %v7284 = vmul.f32 %v7268, %v7268
      %v7285 = vmul.f32 %v7269, %v7269
      %v7286 = vmul.f32 %v7270, %v7270
      %v7287 = vmul.f32 %v7271, %v7271
      %v7288 = vmul.f32 %v7272, %v7272
      %v7289 = vmul.f32 %v7273, %v7273
      %v7290 = vmul.f32 %v7274, %v7274
      %v7291 = vadd.f32 %v7275, 0.01
      %v7292 = vadd.f32 %v7276, 0.01
      %v7293 = vadd.f32 %v7277, 0.01
      %v7294 = vadd.f32 %v7278, 0.01
      %v7295 = vadd.f32 %v7279, 0.01
      %v7296 = vadd.f32 %v7280, 0.01
      %v7297 = vadd.f32 %v7281, 0.01
      %v7298 = vadd.f32 %v7282, 0.01
      %v7299 = vadd.f32 %v7283, 0.01
      %v7300 = vadd.f32 %v7284, 0.01
      %v7301 = vadd.f32 %v7285, 0.01
      %v7302 = vadd.f32 %v7286, 0.01
      %v7303 = vadd.f32 %v7287, 0.01
      %v7304 = vadd.f32 %v7288, 0.01
      %v7305 = vadd.f32 %v7289, 0.01
      %v7306 = vadd.f32 %v7290, 0.01
      %v7307 = vsub.f32 0.0, %v7291
      %v7308 = vsub.f32 0.0, %v7292
      %v7309 = vsub.f32 0.0, %v7293
      %v7310 = vsub.f32 0.0, %v7294
      %v7311 = vsub.f32 0.0, %v7295
      %v7312 = vsub.f32 0.0, %v7296
      %v7313 = vsub.f32 0.0, %v7297
      %v7314 = vsub.f32 0.0, %v7298
      %v7315 = vsub.f32 0.0, %v7299
      %v7316 = vsub.f32 0.0, %v7300
      %v7317 = vsub.f32 0.0, %v7301
      %v7318 = vsub.f32 0.0, %v7302
      %v7319 = vsub.f32 0.0, %v7303
      %v7320 = vsub.f32 0.0, %v7304
      %v7321 = vsub.f32 0.0, %v7305
      %v7322 = vsub.f32 0.0, %v7306
      %v7323 = vmul.f32 %v7307, 1.442695
      %v7324 = vpow.pop %v7323
      %v7325 = vmul.f32 %v7308, 1.442695
      %v7326 = vpow.pop %v7325
      %v7327 = vmul.f32 %v7309, 1.442695
      %v7328 = vpow.pop %v7327
      %v7329 = vmul.f32 %v7310, 1.442695
      %v7330 = vpow.pop %v7329
      %v7331 = vmul.f32 %v7311, 1.442695
      %v7332 = vpow.pop %v7331
      %v7333 = vmul.f32 %v7312, 1.442695
      %v7334 = vpow.pop %v7333
      %v7335 = vmul.f32 %v7313, 1.442695
      %v7336 = vpow.pop %v7335
      %v7337 = vmul.f32 %v7314, 1.442695
      %v7338 = vpow.pop %v7337
      %v7339 = vmul.f32 %v7315, 1.442695
      %v7340 = vpow.pop %v7339
      %v7341 = vmul.f32 %v7316, 1.442695
      %v7342 = vpow.pop %v7341
      %v7343 = vmul.f32 %v7317, 1.442695
      %v7344 = vpow.pop %v7343
      %v7345 = vmul.f32 %v7318, 1.442695
      %v7346 = vpow.pop %v7345
      %v7347 = vmul.f32 %v7319, 1.442695
      %v7348 = vpow.pop %v7347
      %v7349 = vmul.f32 %v7320, 1.442695
      %v7350 = vpow.pop %v7349
      %v7351 = vmul.f32 %v7321, 1.442695
      %v7352 = vpow.pop %v7351
      %v7353 = vmul.f32 %v7322, 1.442695
      %v7354 = vpow.pop %v7353
      %v7355 = vmul.f32 %v338, %v7324
      %v7356 = vmul.f32 %v339, %v7326
      %v7357 = vmul.f32 %v340, %v7328
      %v7358 = vmul.f32 %v341, %v7330
      %v7359 = vmul.f32 %v342, %v7332
      %v7360 = vmul.f32 %v343, %v7334
      %v7361 = vmul.f32 %v344, %v7336
      %v7362 = vmul.f32 %v345, %v7338
      %v7363 = vmul.f32 %v346, %v7340
      %v7364 = vmul.f32 %v347, %v7342
      %v7365 = vmul.f32 %v348, %v7344
      %v7366 = vmul.f32 %v349, %v7346
      %v7367 = vmul.f32 %v350, %v7348
      %v7368 = vmul.f32 %v351, %v7350
      %v7369 = vmul.f32 %v352, %v7352
      %v7370 = vmul.f32 %v353, %v7354
      %vm7371 = vcmask 31752
      %7372 = vst.msk [vmem:[%s336] sm:$0xff] %vm7371, %v338
      %7373 = vst.msk [vmem:[%s336 + $0x8] sm:$0xff] %vm7371, %v339
      %7374 = vst.msk [vmem:[%s336 + $0x10] sm:$0xff] %vm7371, %v340
      %7375 = vst.msk [vmem:[%s336 + $0x18] sm:$0xff] %vm7371, %v341
      %7376 = vst.msk [vmem:[%s336 + $0x20] sm:$0xff] %vm7371, %v342
      %7377 = vst.msk [vmem:[%s336 + $0x28] sm:$0xff] %vm7371, %v343
      %7378 = vst.msk [vmem:[%s336 + $0x30] sm:$0xff] %vm7371, %v344
      %7379 = vst.msk [vmem:[%s336 + $0x38] sm:$0xff] %vm7371, %v345
      %7380 = vst.msk [vmem:[%s336 + $0x40] sm:$0xff] %vm7371, %v346
      %7381 = vst.msk [vmem:[%s336 + $0x48] sm:$0xff] %vm7371, %v347
      %7382 = vst.msk [vmem:[%s336 + $0x50] sm:$0xff] %vm7371, %v348
      %7383 = vst.msk [vmem:[%s336 + $0x58] sm:$0xff] %vm7371, %v349
      %7384 = vst.msk [vmem:[%s336 + $0x60] sm:$0xff] %vm7371, %v350
      %7385 = vst.msk [vmem:[%s336 + $0x68] sm:$0xff] %vm7371, %v351
      %7386 = vst.msk [vmem:[%s336 + $0x70] sm:$0xff] %vm7371, %v352
      %7387 = vst.msk [vmem:[%s336 + $0x78] sm:$0xff] %vm7371, %v353
      %vm7388 = vcmask 7168
      %7389 = vst.msk [vmem:[%s336] sm:$0xff] %vm7388, %v7355
      %7390 = vst.msk [vmem:[%s336 + $0x8] sm:$0xff] %vm7388, %v7356
      %7391 = vst.msk [vmem:[%s336 + $0x10] sm:$0xff] %vm7388, %v7357
      %7392 = vst.msk [vmem:[%s336 + $0x18] sm:$0xff] %vm7388, %v7358
      %7393 = vst.msk [vmem:[%s336 + $0x20] sm:$0xff] %vm7388, %v7359
      %7394 = vst.msk [vmem:[%s336 + $0x28] sm:$0xff] %vm7388, %v7360
      %7395 = vst.msk [vmem:[%s336 + $0x30] sm:$0xff] %vm7388, %v7361
      %7396 = vst.msk [vmem:[%s336 + $0x38] sm:$0xff] %vm7388, %v7362
      %7397 = vst.msk [vmem:[%s336 + $0x40] sm:$0xff] %vm7388, %v7363
      %7398 = vst.msk [vmem:[%s336 + $0x48] sm:$0xff] %vm7388, %v7364
      %7399 = vst.msk [vmem:[%s336 + $0x50] sm:$0xff] %vm7388, %v7365
      %7400 = vst.msk [vmem:[%s336 + $0x58] sm:$0xff] %vm7388, %v7366
      %7401 = vst.msk [vmem:[%s336 + $0x60] sm:$0xff] %vm7388, %v7367
      %7402 = vst.msk [vmem:[%s336 + $0x68] sm:$0xff] %vm7388, %v7368
      %7403 = vst.msk [vmem:[%s336 + $0x70] sm:$0xff] %vm7388, %v7369
      %7404 = vst.msk [vmem:[%s336 + $0x78] sm:$0xff] %vm7388, %v7370
      %s7405 = smul.u32 16, %s22
      %p7406 = scmp.lt.s32.totalorder %s7405, 31
      %s7407 = scalar_select %p7406, %s7405, 31
      %s7408 = smul.addr %s7407, 8
      %s7409 = scalar_lea.vmem %s9, %s7408
      // Predicated region
      $region57: #{tpu_custom_call.1} parent=55 // pred_check
        %p7410 = pneg %p234
      $region58: #{tpu_custom_call.1} parent=55 // pred_check_branch
        %7412 = sbr.rel (%p7410) target = $region60
      $region59: #{tpu_custom_call.1} parent=55 // pred_region
        %s7413 = smul.u32 16, %s22
      $region60: #{tpu_custom_call.1} parent=55 // pred_fallthru
        _
    $region56: #{tpu_custom_call.1} parent=5 // pred_fallthru
      _
    %p7414 = scmp.le.s32.totalorder 2, %s17
    // Predicated region
    $region61: #{tpu_custom_call.1} parent=5 // pred_check
      %p7415 = pneg %p7414
    $region62: #{tpu_custom_call.1} parent=5 // pred_check_branch
      %7417 = sbr.rel (%p7415) target = $region64
    $region63: #{tpu_custom_call.1} parent=5 // pred_region
      %s7418 = ssub.s32 %s17, 2
      // Predicated region
      $region65: #{tpu_custom_call.1} parent=63 // pred_check
        %p7419 = pneg %p240
      $region66: #{tpu_custom_call.1} parent=63 // pred_check_branch
        %7421 = sbr.rel (%p7419) target = $region68
      $region67: #{tpu_custom_call.1} parent=63 // pred_region
        %s7422 = smul.u32 16, %s23
        %p7423 = scmp.lt.s32.totalorder %s7422, 31
        %s7424 = scalar_select %p7423, %s7422, 31
        %s7425 = smul.addr %s7424, 8
        %s7426 = scalar_lea.vmem %s9, %s7425
      $region68: #{tpu_custom_call.1} parent=63 // pred_fallthru
        _
    $region64: #{tpu_custom_call.1} parent=5 // pred_fallthru
      _
  $region6: #{tpu_custom_call.1} parent=0 // loop_footer
    %s21 = sadd.s32 1, %s17
  $region7: #{tpu_custom_call.1} parent=0 // loop_footer_branch
    %16 = sbr.rel target = $region3
  $region8: #{tpu_custom_call.1} parent=0 // loop_exit
    _

</llo_original>
